<compile_context>
chip_gen: v7x
topology: tpu7x:2x2x1
jax: 0.10.0
libtpu: 0.0.40
codegen_flags: <defaults>
</compile_context>

<pallas_src>
import jax
import jax.numpy as jnp
from jax.experimental import pallas as pl
from jax.experimental.pallas import tpu as pltpu

# Scaled-down stand-ins for the module constants (original: 480 / 2048 / 96).
SOURCE_MAX_LEN = 32     # text / transformed-visual sequence length
VISUAL_DIM = 128        # visual feature dim (attention embed dim)
VISUAL_MAX_LEN = 16     # raw visual sequence length
DIM_MODEL = 32          # text feature dim
LN_EPS = 1e-5


def maf_tv_kernel(text_ref, vc_ref,
                  wt_ref, wvct_ref, bqkv_ref, wtxt_ref,
                  wlself_ref, wlctx_ref, woc_ref, boc_ref,
                  wg_ref, wgb_ref, gamma_ref, beta_ref,
                  out_ref):
    Bb, Lv, Dv = vc_ref.shape          # batch-block, visual seq, visual dim
    M, Dm = text_ref.shape             # M = Bb * Ls (batch elements stacked on rows)
    Ls = M // Bb

    text = text_ref[...]                       # (M, Dm) f32 — residual / LayerNorm path
    text_bf = text.astype(jnp.bfloat16)

    # visual_context_transform: one batched bf16 matmul (wt broadcast along the batch
    # dim so the dot_general output is already (Bb, Ls, Dv) — no transpose, no concat).
    wt_b = jnp.broadcast_to(wt_ref[...], (Bb, Ls, Lv))
    vct = jnp.einsum('bsl,bld->bsd', wt_b, vc_ref[...],
                     preferred_element_type=jnp.float32).reshape(M, Dv)
    vct_bf = vct.astype(jnp.bfloat16)

    # Fused q/k/v projection of vct (attention scale pre-folded into the q columns).
    qkv = jnp.dot(vct_bf, wvct_ref[...], preferred_element_type=jnp.float32)    # (M, 3Dv)
    # Context terms folded through wk/wv: text @ [ukT@wkT | uvT@wvT].
    ctx = jnp.dot(text_bf, wtxt_ref[...], preferred_element_type=jnp.float32)   # (M, 2Dv)

    # Lambda gates: sigmoid(vct @ [w1_k | w1_v] + text @ [ukT@w2_k | uvT@w2_v]).
    lam = jax.nn.sigmoid(
        jnp.dot(vct_bf, wlself_ref[...], preferred_element_type=jnp.float32)
        + jnp.dot(text_bf, wlctx_ref[...], preferred_element_type=jnp.float32))  # (M, 2)
    lam_k = lam[:, 0:1]
    lam_v = lam[:, 1:2]

    q_p = qkv[:, 0:Dv] + bqkv_ref[:, 0:Dv]
    k_p = ((1.0 - lam_k) * qkv[:, Dv:2 * Dv] + lam_k * ctx[:, 0:Dv]
           + bqkv_ref[:, Dv:2 * Dv])
    v_p = ((1.0 - lam_v) * qkv[:, 2 * Dv:3 * Dv] + lam_v * ctx[:, Dv:2 * Dv]
           + bqkv_ref[:, 2 * Dv:3 * Dv])

    # Block-diagonal single-head attention per batch element (batched bf16 einsums;
    # contract the trailing dim directly — no explicit k transpose through the XLU).
    q3 = q_p.astype(jnp.bfloat16).reshape(Bb, Ls, Dv)
    k3 = k_p.astype(jnp.bfloat16).reshape(Bb, Ls, Dv)
    v3 = v_p.astype(jnp.bfloat16).reshape(Bb, Ls, Dv)
    scores = jnp.einsum('bqd,bkd->bqk', q3, k3,
                        preferred_element_type=jnp.float32)          # (Bb, Ls, Ls) f32
    m = jnp.max(scores, axis=-1, keepdims=True)
    e = jnp.exp(scores - m)
    attn = e * pl.reciprocal(jnp.sum(e, axis=-1, keepdims=True), approx=True)
    ao = jnp.einsum('bqk,bkd->bqd', attn.astype(jnp.bfloat16), v3,
                    preferred_element_type=jnp.float32).reshape(M, Dv)

    # Fused attention out_proj + correct_dim: ao @ (woT @ wcT) + (wob @ wcT + wcb).
    video_out = jnp.dot(ao.astype(jnp.bfloat16), woc_ref[...],
                        preferred_element_type=jnp.float32) + boc_ref[...]       # (M, Dm)

    # visual_gate over cat([video_out, text_input], -1), split to avoid a concat.
    gate_logit = (jnp.dot(video_out.astype(jnp.bfloat16), wg_ref[0:Dm, :],
                          preferred_element_type=jnp.float32)
                  + jnp.dot(text_bf, wg_ref[Dm:2 * Dm, :],
                            preferred_element_type=jnp.float32)
                  + wgb_ref[...])
    weight_v = jax.nn.sigmoid(gate_logit)

    # residual + LayerNorm (all elementwise math in f32 — v5e has no bf16 VPU/EUP).
    y = text + weight_v * video_out
    mu = jnp.mean(y, axis=-1, keepdims=True)
    var = jnp.mean((y - mu) ** 2, axis=-1, keepdims=True)
    out_ref[...] = (y - mu) * jax.lax.rsqrt(var + LN_EPS) * gamma_ref[...] + beta_ref[...]
    # TODO(synk): Dm (32 toy / 96 prod) < 128 lanes, so this store is a masked vst; present
    # text/out as (B, Ls*Dm) lane-dense slabs once the in-kernel relayout cost is profiled —
    # the kernel is MXU-bound at these shapes so the masked writeback is off the critical path.


def _prepare_weights(p, dv):
    """Fold / transpose module params into the kernel weight list (bf16 matmul weights)."""
    scale = 1.0 / float(dv) ** 0.5
    inpT, inpb = p["inpT"], p["inpb"]
    wqT, wkT, wvT = inpT[:, :dv], inpT[:, dv:2 * dv], inpT[:, 2 * dv:]
    wlam = p["wlam"]                                   # rows [w1_k, w2_k, w1_v, w2_v]

    w_vct = jnp.concatenate([wqT * scale, wkT, wvT], axis=1)               # (Dv, 3Dv)
    b_qkv = jnp.concatenate([inpb[:, :dv] * scale, inpb[:, dv:]], axis=1)  # (1, 3Dv) f32
    w_txt = jnp.concatenate([p["ukT"] @ wkT, p["uvT"] @ wvT], axis=1)      # (Dm, 2Dv)
    w_lam_self = jnp.stack([wlam[0], wlam[2]], axis=1)                     # (Dv, 2)
    w_lam_ctx = jnp.stack([p["ukT"] @ wlam[1], p["uvT"] @ wlam[3]], axis=1)  # (Dm, 2)
    w_oc = p["woT"] @ p["wcT"]                                             # (Dv, Dm)
    b_oc = p["wob"] @ p["wcT"] + p["wcb"]                                  # (1, Dm) f32

    bf = lambda w: w.astype(jnp.bfloat16)
    return [bf(p["wt"]), bf(w_vct), b_qkv, bf(w_txt), bf(w_lam_self), bf(w_lam_ctx),
            bf(w_oc), b_oc, bf(p["wgT"]), p["wgb"], p["gamma"], p["beta"]]


def maf_tv_forward(text, vc, p, *, batch_block=None, single_buffer_weights=True):
    B, Ls, Dm = text.shape
    Bv, Lv, Dv = vc.shape
    assert Bv == B

    if batch_block is None:
        # Target M = Bb*Ls ~ 256 rows per step (fills the MXU, amortizes the ~0.35 us/step
        # pipeline overhead), but keep >= 2 grid steps so the "parallel" batch axis can
        # still be split across v7x's two TensorCores (near-neutral on v5e/v6e).
        batch_block = max(1, min(B, 256 // max(Ls, 1)))
        if B >= 2:
            batch_block = min(batch_block, max(1, B // 2))
        while B % batch_block:
            batch_block -= 1
    Bb = batch_block
    assert B % Bb == 0, "batch_block must divide batch size"

    weights = _prepare_weights(p, Dv)
    # Flat (B*Ls, Dm) text slab -> one dense (Bb*Ls, Dm) block per grid step.
    text2 = text.reshape(B * Ls, Dm)
    # Largest activation input in bf16 -> halves its HBM->VMEM DMA traffic.
    vc_bf = vc.astype(jnp.bfloat16)

    def _bytes(a):
        return int(a.size) * a.dtype.itemsize

    # Weights single-buffered, activation/output slabs double-buffered, plus a rough
    # f32-intermediate estimate. Cap at 48 MiB so v7x (64 MiB physical) keeps headroom
    # for Mosaic internal scratch; floor at 32 MiB so toy shapes never starve.
    weight_bytes = sum(_bytes(w) for w in weights)
    slab_bytes = 2 * (Bb * Ls * Dm * 4 + Bb * Lv * Dv * 2 + Bb * Ls * Dm * 4)
    inter_bytes = Bb * Ls * (8 * Dv + 2 * Ls) * 4
    vmem_limit = int(min(48 << 20,
                         max(32 << 20, 2 * (weight_bytes + slab_bytes + inter_bytes))))

    def _build(single_buf):
        def _wspec(shape):
            nd = len(shape)
            imap = lambda b, _nd=nd: (0,) * _nd
            if single_buf:
                # Weights are revisited every grid step with a constant index — a second
                # pipeline buffer only wastes VMEM.
                return pl.BlockSpec(shape, imap, pipeline_mode=pl.Buffered(1))
            return pl.BlockSpec(shape, imap)

        in_specs = [
            pl.BlockSpec((Bb * Ls, Dm), lambda b: (b, 0)),      # text_input slab
            pl.BlockSpec((Bb, Lv, Dv), lambda b: (b, 0, 0)),    # visual_context block
        ] + [_wspec(w.shape) for w in weights]

        return pl.pallas_call(
            maf_tv_kernel,
            out_shape=jax.ShapeDtypeStruct((B * Ls, Dm), jnp.float32),
            grid=(B // Bb,),
            in_specs=in_specs,
            out_specs=pl.BlockSpec((Bb * Ls, Dm), lambda b: (b, 0)),
            compiler_params=pltpu.CompilerParams(
                dimension_semantics=("parallel",),              # batch axis is independent
                vmem_limit_bytes=vmem_limit),
        )

    args = (text2, vc_bf, *weights)
    if single_buffer_weights:
        try:
            out = _build(True)(*args)
        except Exception:
            # Fallback for jax versions without pipeline_mode=pl.Buffered single-buffering.
            out = _build(False)(*args)
    else:
        out = _build(False)(*args)
    return out.reshape(B, Ls, Dm)


def init_params(key):
    Dv, Dm, Ls, Lv = VISUAL_DIM, DIM_MODEL, SOURCE_MAX_LEN, VISUAL_MAX_LEN
    ks = jax.random.split(key, 12)
    s = 0.05
    p = {
        # visual_context_transform.weight  (SOURCE_MAX_LEN, VISUAL_MAX_LEN)
        "wt":   s * jax.random.normal(ks[0], (Ls, Lv), jnp.float32),
        # u_k.weight.T / u_v.weight.T      (dim_model, VISUAL_DIM)
        "ukT":  s * jax.random.normal(ks[1], (Dm, Dv), jnp.float32),
        "uvT":  s * jax.random.normal(ks[2], (Dm, Dv), jnp.float32),
        # [w1_k, w2_k, w1_v, w2_v] weight rows, each (VISUAL_DIM,)
        "wlam": s * jax.random.normal(ks[3], (4, Dv), jnp.float32),
        # MultiheadAttention in_proj_weight.T / in_proj_bias
        "inpT": s * jax.random.normal(ks[4], (Dv, 3 * Dv), jnp.float32),
        "inpb": s * jax.random.normal(ks[5], (1, 3 * Dv), jnp.float32),
        # out_proj weight.T / bias
        "woT":  s * jax.random.normal(ks[6], (Dv, Dv), jnp.float32),
        "wob":  s * jax.random.normal(ks[7], (1, Dv), jnp.float32),
        # correct_dim weight.T / bias
        "wcT":  s * jax.random.normal(ks[8], (Dv, Dm), jnp.float32),
        "wcb":  s * jax.random.normal(ks[9], (1, Dm), jnp.float32),
        # visual_gate weight.T / bias
        "wgT":  s * jax.random.normal(ks[10], (2 * Dm, Dm), jnp.float32),
        "wgb":  s * jax.random.normal(ks[11], (1, Dm), jnp.float32),
        # final_layer_norm
        "gamma": jnp.ones((1, Dm), jnp.float32),
        "beta":  jnp.zeros((1, Dm), jnp.float32),
    }
    return p


def maf_tv_reference(text, vc, p):
    """Pure-JAX f32 reference mirroring the PyTorch forward (no folding)."""
    Dv, Dm = VISUAL_DIM, DIM_MODEL
    vct = jnp.einsum('sl,bld->bsd', p["wt"], vc)
    key_ctx = text @ p["ukT"]
    val_ctx = text @ p["uvT"]
    lam_k = jax.nn.sigmoid(jnp.sum(vct * p["wlam"][0], -1, keepdims=True)
                           + jnp.sum(key_ctx * p["wlam"][1], -1, keepdims=True))
    lam_v = jax.nn.sigmoid(jnp.sum(vct * p["wlam"][2], -1, keepdims=True)
                           + jnp.sum(val_ctx * p["wlam"][3], -1, keepdims=True))
    k_cap = (1 - lam_k) * vct + lam_k * key_ctx
    v_cap = (1 - lam_v) * vct + lam_v * val_ctx
    q_p = vct @ p["inpT"][:, :Dv] + p["inpb"][:, :Dv]
    k_p = k_cap @ p["inpT"][:, Dv:2 * Dv] + p["inpb"][:, Dv:2 * Dv]
    v_p = v_cap @ p["inpT"][:, 2 * Dv:] + p["inpb"][:, 2 * Dv:]
    scores = jnp.einsum('bqd,bkd->bqk', q_p, k_p) / jnp.sqrt(jnp.float32(Dv))
    attn = jax.nn.softmax(scores, axis=-1)
    ao = jnp.einsum('bqk,bkd->bqd', attn, v_p) @ p["woT"] + p["wob"]
    video_out = ao @ p["wcT"] + p["wcb"]
    gate = jax.nn.sigmoid(video_out @ p["wgT"][:Dm] + text @ p["wgT"][Dm:] + p["wgb"])
    y = text + gate * video_out
    mu = jnp.mean(y, -1, keepdims=True)
    var = jnp.mean((y - mu) ** 2, -1, keepdims=True)
    return (y - mu) * jax.lax.rsqrt(var + LN_EPS) * p["gamma"] + p["beta"]


if __name__ == "__main__":
    B = 8
    key = jax.random.PRNGKey(0)
    k_text, k_vc, k_params = jax.random.split(key, 3)

    text_input = jax.random.normal(k_text, (B, SOURCE_MAX_LEN, DIM_MODEL), jnp.float32)
    visual_context = jax.random.normal(k_vc, (B, VISUAL_MAX_LEN, VISUAL_DIM), jnp.float32)
    params = init_params(k_params)

    out = maf_tv_forward(text_input, visual_context, params)   # Bb=4 -> grid=(2,), M=128
    out = jax.block_until_ready(out)

    ref = jax.block_until_ready(maf_tv_reference(text_input, visual_context, params))
    assert out.shape == (B, SOURCE_MAX_LEN, DIM_MODEL)
    # bf16 matmuls + approx softmax reciprocal vs exact f32 reference: comfortably inside 1e-2
    # because video_out is a small additive perturbation on the f32 text residual before LN.
    assert bool(jnp.allclose(out, ref, rtol=1e-2, atol=1e-2)), "mismatch vs JAX reference"

    print("KERNEL_OK")
</pallas_src>

<mosaic_0001>
module attributes {stable_mosaic.version = 11 : i64} {
  func.func @maf_tv_kernel(%arg0: i32, %arg1: memref<128x32xf32, #tpu.memory_space<vmem>>, %arg2: memref<4x16x128xbf16, #tpu.memory_space<vmem>>, %arg3: memref<32x16xbf16, #tpu.memory_space<vmem>>, %arg4: memref<128x384xbf16, #tpu.memory_space<vmem>>, %arg5: memref<1x384xf32, #tpu.memory_space<vmem>>, %arg6: memref<32x256xbf16, #tpu.memory_space<vmem>>, %arg7: memref<128x2xbf16, #tpu.memory_space<vmem>>, %arg8: memref<32x2xbf16, #tpu.memory_space<vmem>>, %arg9: memref<128x32xbf16, #tpu.memory_space<vmem>>, %arg10: memref<1x32xf32, #tpu.memory_space<vmem>>, %arg11: memref<64x32xbf16, #tpu.memory_space<vmem>>, %arg12: memref<1x32xf32, #tpu.memory_space<vmem>>, %arg13: memref<1x32xf32, #tpu.memory_space<vmem>>, %arg14: memref<1x32xf32, #tpu.memory_space<vmem>>, %arg15: memref<128x32xf32, #tpu.memory_space<vmem>>) attributes {dimension_semantics = [#tpu.dimension_semantics<parallel>], iteration_bounds = array<i64: 2>, scalar_prefetch = 0 : i64, scratch_operands = 0 : i64, tpu.core_type = #tpu.core_type<tc>, window_params = [{transform_indices = @transform_0, window_bounds = array<i64: 128, 32>}, {transform_indices = @transform_1, window_bounds = array<i64: 4, 16, 128>}, {pipeline_mode = #tpu.pipeline_mode<synchronous>, transform_indices = @transform_2, window_bounds = array<i64: 32, 16>}, {pipeline_mode = #tpu.pipeline_mode<synchronous>, transform_indices = @transform_3, window_bounds = array<i64: 128, 384>}, {pipeline_mode = #tpu.pipeline_mode<synchronous>, transform_indices = @transform_4, window_bounds = array<i64: 1, 384>}, {pipeline_mode = #tpu.pipeline_mode<synchronous>, transform_indices = @transform_5, window_bounds = array<i64: 32, 256>}, {pipeline_mode = #tpu.pipeline_mode<synchronous>, transform_indices = @transform_6, window_bounds = array<i64: 128, 2>}, {pipeline_mode = #tpu.pipeline_mode<synchronous>, transform_indices = @transform_7, window_bounds = array<i64: 32, 2>}, {pipeline_mode = #tpu.pipeline_mode<synchronous>, transform_indices = @transform_8, window_bounds = array<i64: 128, 32>}, {pipeline_mode = #tpu.pipeline_mode<synchronous>, transform_indices = @transform_9, window_bounds = array<i64: 1, 32>}, {pipeline_mode = #tpu.pipeline_mode<synchronous>, transform_indices = @transform_10, window_bounds = array<i64: 64, 32>}, {pipeline_mode = #tpu.pipeline_mode<synchronous>, transform_indices = @transform_11, window_bounds = array<i64: 1, 32>}, {pipeline_mode = #tpu.pipeline_mode<synchronous>, transform_indices = @transform_12, window_bounds = array<i64: 1, 32>}, {pipeline_mode = #tpu.pipeline_mode<synchronous>, transform_indices = @transform_13, window_bounds = array<i64: 1, 32>}, {transform_indices = @transform_14, window_bounds = array<i64: 128, 32>}]} {
    %c0 = arith.constant 0 : index
    %c0_0 = arith.constant 0 : index
    %0 = vector.load %arg1[%c0, %c0_0] : memref<128x32xf32, #tpu.memory_space<vmem>>, vector<128x32xf32>
    %1 = arith.truncf %0 : vector<128x32xf32> to vector<128x32xbf16>
    %c0_1 = arith.constant 0 : index
    %c0_2 = arith.constant 0 : index
    %2 = vector.load %arg3[%c0_1, %c0_2] : memref<32x16xbf16, #tpu.memory_space<vmem>>, vector<32x16xbf16>
    %3 = vector.shape_cast %2 : vector<32x16xbf16> to vector<1x32x16xbf16>
    %4 = vector.broadcast %3 : vector<1x32x16xbf16> to vector<4x32x16xbf16>
    %c0_3 = arith.constant 0 : index
    %c0_4 = arith.constant 0 : index
    %c0_5 = arith.constant 0 : index
    %5 = vector.load %arg2[%c0_3, %c0_4, %c0_5] : memref<4x16x128xbf16, #tpu.memory_space<vmem>>, vector<4x16x128xbf16>
    "tpu.trace_start"() <{level = 10 : i32, message = "bsl,bld->bsd"}> : () -> ()
    %cst = arith.constant dense<0.000000e+00> : vector<4x32x128xf32>
    %6 = tpu.matmul %4, %5, %cst {dimension_numbers = #tpu.dot_dimension_numbers<[2], [1], [1], [2], [0, 0, 0, 1, 1, 2], [0], [0]>} : vector<4x32x16xbf16>, vector<4x16x128xbf16>, vector<4x32x128xf32> -> vector<4x32x128xf32>
    "tpu.trace_stop"() : () -> ()
    %7 = vector.shape_cast %6 : vector<4x32x128xf32> to vector<128x128xf32>
    %8 = arith.truncf %7 : vector<128x128xf32> to vector<128x128xbf16>
    %c0_6 = arith.constant 0 : index
    %c0_7 = arith.constant 0 : index
    %9 = vector.load %arg4[%c0_6, %c0_7] : memref<128x384xbf16, #tpu.memory_space<vmem>>, vector<128x384xbf16>
    %cst_8 = arith.constant dense<0.000000e+00> : vector<128x384xf32>
    %10 = tpu.matmul %8, %9, %cst_8 {dimension_numbers = #tpu.dot_dimension_numbers<[1], [0], [0], [1], [0, 0, 1, 1], [], []>} : vector<128x128xbf16>, vector<128x384xbf16>, vector<128x384xf32> -> vector<128x384xf32>
    %c0_9 = arith.constant 0 : index
    %c0_10 = arith.constant 0 : index
    %11 = vector.load %arg6[%c0_9, %c0_10] : memref<32x256xbf16, #tpu.memory_space<vmem>>, vector<32x256xbf16>
    %cst_11 = arith.constant dense<0.000000e+00> : vector<128x256xf32>
    %12 = tpu.matmul %1, %11, %cst_11 {dimension_numbers = #tpu.dot_dimension_numbers<[1], [0], [0], [1], [0, 0, 1, 1], [], []>} : vector<128x32xbf16>, vector<32x256xbf16>, vector<128x256xf32> -> vector<128x256xf32>
    %c0_12 = arith.constant 0 : index
    %c0_13 = arith.constant 0 : index
    %13 = vector.load %arg7[%c0_12, %c0_13] : memref<128x2xbf16, #tpu.memory_space<vmem>>, vector<128x2xbf16>
    %cst_14 = arith.constant dense<0.000000e+00> : vector<128x2xf32>
    %14 = tpu.matmul %8, %13, %cst_14 {dimension_numbers = #tpu.dot_dimension_numbers<[1], [0], [0], [1], [0, 0, 1, 1], [], []>} : vector<128x128xbf16>, vector<128x2xbf16>, vector<128x2xf32> -> vector<128x2xf32>
    %c0_15 = arith.constant 0 : index
    %c0_16 = arith.constant 0 : index
    %15 = vector.load %arg8[%c0_15, %c0_16] : memref<32x2xbf16, #tpu.memory_space<vmem>>, vector<32x2xbf16>
    %cst_17 = arith.constant dense<0.000000e+00> : vector<128x2xf32>
    %16 = tpu.matmul %1, %15, %cst_17 {dimension_numbers = #tpu.dot_dimension_numbers<[1], [0], [0], [1], [0, 0, 1, 1], [], []>} : vector<128x32xbf16>, vector<32x2xbf16>, vector<128x2xf32> -> vector<128x2xf32>
    %17 = arith.addf %14, %16 : vector<128x2xf32>
    %18 = arith.negf %17 : vector<128x2xf32>
    %19 = math.exp %18 : vector<128x2xf32>
    %cst_18 = arith.constant 1.000000e+00 : f32
    %20 = vector.broadcast %cst_18 : f32 to vector<128x2xf32>
    %21 = arith.addf %20, %19 : vector<128x2xf32>
    %22 = arith.divf %20, %21 : vector<128x2xf32>
    %23 = vector.extract_strided_slice %22 {offsets = [0, 0], sizes = [128, 1], strides = [1, 1]} : vector<128x2xf32> to vector<128x1xf32>
    %24 = vector.extract_strided_slice %22 {offsets = [0, 1], sizes = [128, 1], strides = [1, 1]} : vector<128x2xf32> to vector<128x1xf32>
    %25 = vector.extract_strided_slice %10 {offsets = [0, 0], sizes = [128, 128], strides = [1, 1]} : vector<128x384xf32> to vector<128x128xf32>
    %c0_19 = arith.constant 0 : index
    %c0_20 = arith.constant 0 : index
    %26 = vector.load %arg5[%c0_19, %c0_20] : memref<1x384xf32, #tpu.memory_space<vmem>>, vector<1x128xf32>
    %27 = vector.broadcast %26 : vector<1x128xf32> to vector<128x128xf32>
    %28 = arith.addf %25, %27 : vector<128x128xf32>
    %cst_21 = arith.constant 1.000000e+00 : f32
    %29 = vector.broadcast %cst_21 : f32 to vector<128x1xf32>
    %30 = arith.subf %29, %23 : vector<128x1xf32>
    %31 = vector.extract_strided_slice %10 {offsets = [0, 128], sizes = [128, 128], strides = [1, 1]} : vector<128x384xf32> to vector<128x128xf32>
    %32 = vector.broadcast %30 : vector<128x1xf32> to vector<128x128xf32>
    %33 = arith.mulf %32, %31 : vector<128x128xf32>
    %34 = vector.extract_strided_slice %12 {offsets = [0, 0], sizes = [128, 128], strides = [1, 1]} : vector<128x256xf32> to vector<128x128xf32>
    %35 = vector.broadcast %23 : vector<128x1xf32> to vector<128x128xf32>
    %36 = arith.mulf %35, %34 : vector<128x128xf32>
    %37 = arith.addf %33, %36 : vector<128x128xf32>
    %c0_22 = arith.constant 0 : index
    %c128 = arith.constant 128 : index
    %38 = vector.load %arg5[%c0_22, %c128] : memref<1x384xf32, #tpu.memory_space<vmem>>, vector<1x128xf32>
    %39 = vector.broadcast %38 : vector<1x128xf32> to vector<128x128xf32>
    %40 = arith.addf %37, %39 : vector<128x128xf32>
    %cst_23 = arith.constant 1.000000e+00 : f32
    %41 = vector.broadcast %cst_23 : f32 to vector<128x1xf32>
    %42 = arith.subf %41, %24 : vector<128x1xf32>
    %43 = vector.extract_strided_slice %10 {offsets = [0, 256], sizes = [128, 128], strides = [1, 1]} : vector<128x384xf32> to vector<128x128xf32>
    %44 = vector.broadcast %42 : vector<128x1xf32> to vector<128x128xf32>
    %45 = arith.mulf %44, %43 : vector<128x128xf32>
    %46 = vector.extract_strided_slice %12 {offsets = [0, 128], sizes = [128, 128], strides = [1, 1]} : vector<128x256xf32> to vector<128x128xf32>
    %47 = vector.broadcast %24 : vector<128x1xf32> to vector<128x128xf32>
    %48 = arith.mulf %47, %46 : vector<128x128xf32>
    %49 = arith.addf %45, %48 : vector<128x128xf32>
    %c0_24 = arith.constant 0 : index
    %c256 = arith.constant 256 : index
    %50 = vector.load %arg5[%c0_24, %c256] : memref<1x384xf32, #tpu.memory_space<vmem>>, vector<1x128xf32>
    %51 = vector.broadcast %50 : vector<1x128xf32> to vector<128x128xf32>
    %52 = arith.addf %49, %51 : vector<128x128xf32>
    %53 = arith.truncf %28 : vector<128x128xf32> to vector<128x128xbf16>
    %54 = vector.shape_cast %53 : vector<128x128xbf16> to vector<4x32x128xbf16>
    %55 = arith.truncf %40 : vector<128x128xf32> to vector<128x128xbf16>
    %56 = vector.shape_cast %55 : vector<128x128xbf16> to vector<4x32x128xbf16>
    %57 = arith.truncf %52 : vector<128x128xf32> to vector<128x128xbf16>
    %58 = vector.shape_cast %57 : vector<128x128xbf16> to vector<4x32x128xbf16>
    "tpu.trace_start"() <{level = 10 : i32, message = "bqd,bkd->bqk"}> : () -> ()
    %cst_25 = arith.constant dense<0.000000e+00> : vector<4x32x32xf32>
    %59 = tpu.matmul %54, %56, %cst_25 {dimension_numbers = #tpu.dot_dimension_numbers<[2], [2], [1], [1], [0, 0, 0, 1, 1, 1], [0], [0]>} : vector<4x32x128xbf16>, vector<4x32x128xbf16>, vector<4x32x32xf32> -> vector<4x32x32xf32>
    "tpu.trace_stop"() : () -> ()
    %cst_26 = arith.constant dense<0xFF800000> : vector<4x32xf32>
    %60 = vector.multi_reduction <maximumf>, %59, %cst_26 [2] : vector<4x32x32xf32> to vector<4x32xf32>
    %61 = vector.shape_cast %60 : vector<4x32xf32> to vector<4x32x1xf32>
    %62 = vector.broadcast %61 : vector<4x32x1xf32> to vector<4x32x32xf32>
    %63 = arith.subf %59, %62 : vector<4x32x32xf32>
    %64 = math.exp %63 : vector<4x32x32xf32>
    %cst_27 = arith.constant dense<0.000000e+00> : vector<4x32xf32>
    %65 = vector.multi_reduction <add>, %64, %cst_27 [2] : vector<4x32x32xf32> to vector<4x32xf32>
    %66 = vector.shape_cast %65 : vector<4x32xf32> to vector<4x32x1xf32>
    %67 = tpu.reciprocal %66 {approx = true} : vector<4x32x1xf32> -> vector<4x32x1xf32>
    %68 = vector.broadcast %67 : vector<4x32x1xf32> to vector<4x32x32xf32>
    %69 = arith.mulf %64, %68 : vector<4x32x32xf32>
    %70 = arith.truncf %69 : vector<4x32x32xf32> to vector<4x32x32xbf16>
    "tpu.trace_start"() <{level = 10 : i32, message = "bqk,bkd->bqd"}> : () -> ()
    %cst_28 = arith.constant dense<0.000000e+00> : vector<4x32x128xf32>
    %71 = tpu.matmul %70, %58, %cst_28 {dimension_numbers = #tpu.dot_dimension_numbers<[2], [1], [1], [2], [0, 0, 0, 1, 1, 2], [0], [0]>} : vector<4x32x32xbf16>, vector<4x32x128xbf16>, vector<4x32x128xf32> -> vector<4x32x128xf32>
    "tpu.trace_stop"() : () -> ()
    %72 = vector.shape_cast %71 : vector<4x32x128xf32> to vector<128x128xf32>
    %73 = arith.truncf %72 : vector<128x128xf32> to vector<128x128xbf16>
    %c0_29 = arith.constant 0 : index
    %c0_30 = arith.constant 0 : index
    %74 = vector.load %arg9[%c0_29, %c0_30] : memref<128x32xbf16, #tpu.memory_space<vmem>>, vector<128x32xbf16>
    %cst_31 = arith.constant dense<0.000000e+00> : vector<128x32xf32>
    %75 = tpu.matmul %73, %74, %cst_31 {dimension_numbers = #tpu.dot_dimension_numbers<[1], [0], [0], [1], [0, 0, 1, 1], [], []>} : vector<128x128xbf16>, vector<128x32xbf16>, vector<128x32xf32> -> vector<128x32xf32>
    %c0_32 = arith.constant 0 : index
    %c0_33 = arith.constant 0 : index
    %76 = vector.load %arg10[%c0_32, %c0_33] : memref<1x32xf32, #tpu.memory_space<vmem>>, vector<1x32xf32>
    %77 = vector.broadcast %76 : vector<1x32xf32> to vector<128x32xf32>
    %78 = arith.addf %75, %77 : vector<128x32xf32>
    %79 = arith.truncf %78 : vector<128x32xf32> to vector<128x32xbf16>
    %c0_34 = arith.constant 0 : index
    %c0_35 = arith.constant 0 : index
    %80 = vector.load %arg11[%c0_34, %c0_35] : memref<64x32xbf16, #tpu.memory_space<vmem>>, vector<32x32xbf16>
    %cst_36 = arith.constant dense<0.000000e+00> : vector<128x32xf32>
    %81 = tpu.matmul %79, %80, %cst_36 {dimension_numbers = #tpu.dot_dimension_numbers<[1], [0], [0], [1], [0, 0, 1, 1], [], []>} : vector<128x32xbf16>, vector<32x32xbf16>, vector<128x32xf32> -> vector<128x32xf32>
    %c32 = arith.constant 32 : index
    %c0_37 = arith.constant 0 : index
    %82 = vector.load %arg11[%c32, %c0_37] : memref<64x32xbf16, #tpu.memory_space<vmem>>, vector<32x32xbf16>
    %cst_38 = arith.constant dense<0.000000e+00> : vector<128x32xf32>
    %83 = tpu.matmul %1, %82, %cst_38 {dimension_numbers = #tpu.dot_dimension_numbers<[1], [0], [0], [1], [0, 0, 1, 1], [], []>} : vector<128x32xbf16>, vector<32x32xbf16>, vector<128x32xf32> -> vector<128x32xf32>
    %84 = arith.addf %81, %83 : vector<128x32xf32>
    %c0_39 = arith.constant 0 : index
    %c0_40 = arith.constant 0 : index
    %85 = vector.load %arg12[%c0_39, %c0_40] : memref<1x32xf32, #tpu.memory_space<vmem>>, vector<1x32xf32>
    %86 = vector.broadcast %85 : vector<1x32xf32> to vector<128x32xf32>
    %87 = arith.addf %84, %86 : vector<128x32xf32>
    %88 = arith.negf %87 : vector<128x32xf32>
    %89 = math.exp %88 : vector<128x32xf32>
    %cst_41 = arith.constant 1.000000e+00 : f32
    %90 = vector.broadcast %cst_41 : f32 to vector<128x32xf32>
    %91 = arith.addf %90, %89 : vector<128x32xf32>
    %92 = arith.divf %90, %91 : vector<128x32xf32>
    %93 = arith.mulf %92, %78 : vector<128x32xf32>
    %94 = arith.addf %0, %93 : vector<128x32xf32>
    %cst_42 = arith.constant dense<0.000000e+00> : vector<128xf32>
    %95 = vector.multi_reduction <add>, %94, %cst_42 [1] : vector<128x32xf32> to vector<128xf32>
    %96 = vector.shape_cast %95 : vector<128xf32> to vector<128x1xf32>
    %cst_43 = arith.constant 3.200000e+01 : f32
    %97 = vector.broadcast %cst_43 : f32 to vector<128x1xf32>
    %98 = arith.divf %96, %97 : vector<128x1xf32>
    %99 = vector.broadcast %98 : vector<128x1xf32> to vector<128x32xf32>
    %100 = arith.subf %94, %99 : vector<128x32xf32>
    %101 = arith.mulf %100, %100 : vector<128x32xf32>
    %cst_44 = arith.constant dense<0.000000e+00> : vector<128xf32>
    %102 = vector.multi_reduction <add>, %101, %cst_44 [1] : vector<128x32xf32> to vector<128xf32>
    %103 = vector.shape_cast %102 : vector<128xf32> to vector<128x1xf32>
    %cst_45 = arith.constant 3.200000e+01 : f32
    %104 = vector.broadcast %cst_45 : f32 to vector<128x1xf32>
    %105 = arith.divf %103, %104 : vector<128x1xf32>
    %106 = vector.broadcast %98 : vector<128x1xf32> to vector<128x32xf32>
    %107 = arith.subf %94, %106 : vector<128x32xf32>
    %cst_46 = arith.constant 9.99999974E-6 : f32
    %108 = vector.broadcast %cst_46 : f32 to vector<128x1xf32>
    %109 = arith.addf %105, %108 : vector<128x1xf32>
    %110 = math.rsqrt %109 : vector<128x1xf32>
    %111 = vector.broadcast %110 : vector<128x1xf32> to vector<128x32xf32>
    %112 = arith.mulf %107, %111 : vector<128x32xf32>
    %c0_47 = arith.constant 0 : index
    %c0_48 = arith.constant 0 : index
    %113 = vector.load %arg13[%c0_47, %c0_48] : memref<1x32xf32, #tpu.memory_space<vmem>>, vector<1x32xf32>
    %114 = vector.broadcast %113 : vector<1x32xf32> to vector<128x32xf32>
    %115 = arith.mulf %112, %114 : vector<128x32xf32>
    %c0_49 = arith.constant 0 : index
    %c0_50 = arith.constant 0 : index
    %116 = vector.load %arg14[%c0_49, %c0_50] : memref<1x32xf32, #tpu.memory_space<vmem>>, vector<1x32xf32>
    %117 = vector.broadcast %116 : vector<1x32xf32> to vector<128x32xf32>
    %118 = arith.addf %115, %117 : vector<128x32xf32>
    %c0_51 = arith.constant 0 : index
    %c0_52 = arith.constant 0 : index
    %119 = vector.load %arg15[%c0_51, %c0_52] : memref<128x32xf32, #tpu.memory_space<vmem>>, vector<128x32xf32>
    tpu.vector_store %arg15[%c0_51, %c0_52], %118 {strides = array<i32>} : memref<128x32xf32, #tpu.memory_space<vmem>>, vector<128x32xf32>,
    return
  }
  func.func @transform_0(%arg0: i32) -> (i32, i32) {
    %c0_i32 = arith.constant 0 : i32
    %c0_i32_0 = arith.constant 0 : i32
    return %arg0, %c0_i32 : i32, i32
  }
  func.func @transform_1(%arg0: i32) -> (i32, i32, i32) {
    %c0_i32 = arith.constant 0 : i32
    %c0_i32_0 = arith.constant 0 : i32
    %c0_i32_1 = arith.constant 0 : i32
    return %arg0, %c0_i32, %c0_i32_0 : i32, i32, i32
  }
  func.func @transform_2(%arg0: i32) -> (i32, i32) {
    %c0_i32 = arith.constant 0 : i32
    %c0_i32_0 = arith.constant 0 : i32
    %c0_i32_1 = arith.constant 0 : i32
    return %c0_i32, %c0_i32_0 : i32, i32
  }
  func.func @transform_3(%arg0: i32) -> (i32, i32) {
    %c0_i32 = arith.constant 0 : i32
    %c0_i32_0 = arith.constant 0 : i32
    %c0_i32_1 = arith.constant 0 : i32
    return %c0_i32, %c0_i32_0 : i32, i32
  }
  func.func @transform_4(%arg0: i32) -> (i32, i32) {
    %c0_i32 = arith.constant 0 : i32
    %c0_i32_0 = arith.constant 0 : i32
    %c0_i32_1 = arith.constant 0 : i32
    return %c0_i32, %c0_i32_0 : i32, i32
  }
  func.func @transform_5(%arg0: i32) -> (i32, i32) {
    %c0_i32 = arith.constant 0 : i32
    %c0_i32_0 = arith.constant 0 : i32
    %c0_i32_1 = arith.constant 0 : i32
    return %c0_i32, %c0_i32_0 : i32, i32
  }
  func.func @transform_6(%arg0: i32) -> (i32, i32) {
    %c0_i32 = arith.constant 0 : i32
    %c0_i32_0 = arith.constant 0 : i32
    %c0_i32_1 = arith.constant 0 : i32
    return %c0_i32, %c0_i32_0 : i32, i32
  }
  func.func @transform_7(%arg0: i32) -> (i32, i32) {
    %c0_i32 = arith.constant 0 : i32
    %c0_i32_0 = arith.constant 0 : i32
    %c0_i32_1 = arith.constant 0 : i32
    return %c0_i32, %c0_i32_0 : i32, i32
  }
  func.func @transform_8(%arg0: i32) -> (i32, i32) {
    %c0_i32 = arith.constant 0 : i32
    %c0_i32_0 = arith.constant 0 : i32
    %c0_i32_1 = arith.constant 0 : i32
    return %c0_i32, %c0_i32_0 : i32, i32
  }
  func.func @transform_9(%arg0: i32) -> (i32, i32) {
    %c0_i32 = arith.constant 0 : i32
    %c0_i32_0 = arith.constant 0 : i32
    %c0_i32_1 = arith.constant 0 : i32
    return %c0_i32, %c0_i32_0 : i32, i32
  }
  func.func @transform_10(%arg0: i32) -> (i32, i32) {
    %c0_i32 = arith.constant 0 : i32
    %c0_i32_0 = arith.constant 0 : i32
    %c0_i32_1 = arith.constant 0 : i32
    return %c0_i32, %c0_i32_0 : i32, i32
  }
  func.func @transform_11(%arg0: i32) -> (i32, i32) {
    %c0_i32 = arith.constant 0 : i32
    %c0_i32_0 = arith.constant 0 : i32
    %c0_i32_1 = arith.constant 0 : i32
    return %c0_i32, %c0_i32_0 : i32, i32
  }
  func.func @transform_12(%arg0: i32) -> (i32, i32) {
    %c0_i32 = arith.constant 0 : i32
    %c0_i32_0 = arith.constant 0 : i32
    %c0_i32_1 = arith.constant 0 : i32
    return %c0_i32, %c0_i32_0 : i32, i32
  }
  func.func @transform_13(%arg0: i32) -> (i32, i32) {
    %c0_i32 = arith.constant 0 : i32
    %c0_i32_0 = arith.constant 0 : i32
    %c0_i32_1 = arith.constant 0 : i32
    return %c0_i32, %c0_i32_0 : i32, i32
  }
  func.func @transform_14(%arg0: i32) -> (i32, i32) {
    %c0_i32 = arith.constant 0 : i32
    %c0_i32_0 = arith.constant 0 : i32
    return %arg0, %c0_i32 : i32, i32
  }
}

module attributes {stable_mosaic.version = 11 : i64} {
  func.func @maf_tv_kernel(%arg0: i32, %arg1: memref<128x32xf32, #tpu.memory_space<vmem>>, %arg2: memref<4x16x128xbf16, #tpu.memory_space<vmem>>, %arg3: memref<32x16xbf16, #tpu.memory_space<vmem>>, %arg4: memref<128x384xbf16, #tpu.memory_space<vmem>>, %arg5: memref<1x384xf32, #tpu.memory_space<vmem>>, %arg6: memref<32x256xbf16, #tpu.memory_space<vmem>>, %arg7: memref<128x2xbf16, #tpu.memory_space<vmem>>, %arg8: memref<32x2xbf16, #tpu.memory_space<vmem>>, %arg9: memref<128x32xbf16, #tpu.memory_space<vmem>>, %arg10: memref<1x32xf32, #tpu.memory_space<vmem>>, %arg11: memref<64x32xbf16, #tpu.memory_space<vmem>>, %arg12: memref<1x32xf32, #tpu.memory_space<vmem>>, %arg13: memref<1x32xf32, #tpu.memory_space<vmem>>, %arg14: memref<1x32xf32, #tpu.memory_space<vmem>>, %arg15: memref<128x32xf32, #tpu.memory_space<vmem>>) attributes {dimension_semantics = [#tpu.dimension_semantics<parallel>], iteration_bounds = array<i64: 2>, scalar_prefetch = 0 : i64, scratch_operands = 0 : i64, tpu.core_type = #tpu.core_type<tc>, window_params = [{transform_indices = @transform_0, window_bounds = array<i64: 128, 32>}, {transform_indices = @transform_1, window_bounds = array<i64: 4, 16, 128>}, {pipeline_mode = #tpu.pipeline_mode<synchronous>, transform_indices = @transform_2, window_bounds = array<i64: 32, 16>}, {pipeline_mode = #tpu.pipeline_mode<synchronous>, transform_indices = @transform_3, window_bounds = array<i64: 128, 384>}, {pipeline_mode = #tpu.pipeline_mode<synchronous>, transform_indices = @transform_4, window_bounds = array<i64: 1, 384>}, {pipeline_mode = #tpu.pipeline_mode<synchronous>, transform_indices = @transform_5, window_bounds = array<i64: 32, 256>}, {pipeline_mode = #tpu.pipeline_mode<synchronous>, transform_indices = @transform_6, window_bounds = array<i64: 128, 2>}, {pipeline_mode = #tpu.pipeline_mode<synchronous>, transform_indices = @transform_7, window_bounds = array<i64: 32, 2>}, {pipeline_mode = #tpu.pipeline_mode<synchronous>, transform_indices = @transform_8, window_bounds = array<i64: 128, 32>}, {pipeline_mode = #tpu.pipeline_mode<synchronous>, transform_indices = @transform_9, window_bounds = array<i64: 1, 32>}, {pipeline_mode = #tpu.pipeline_mode<synchronous>, transform_indices = @transform_10, window_bounds = array<i64: 64, 32>}, {pipeline_mode = #tpu.pipeline_mode<synchronous>, transform_indices = @transform_11, window_bounds = array<i64: 1, 32>}, {pipeline_mode = #tpu.pipeline_mode<synchronous>, transform_indices = @transform_12, window_bounds = array<i64: 1, 32>}, {pipeline_mode = #tpu.pipeline_mode<synchronous>, transform_indices = @transform_13, window_bounds = array<i64: 1, 32>}, {transform_indices = @transform_14, window_bounds = array<i64: 128, 32>}]} {
    %c0 = arith.constant 0 : index
    %c0_0 = arith.constant 0 : index
    %0 = vector.load %arg1[%c0, %c0_0] : memref<128x32xf32, #tpu.memory_space<vmem>>, vector<128x32xf32>
    %1 = arith.truncf %0 : vector<128x32xf32> to vector<128x32xbf16>
    %c0_1 = arith.constant 0 : index
    %c0_2 = arith.constant 0 : index
    %2 = vector.load %arg3[%c0_1, %c0_2] : memref<32x16xbf16, #tpu.memory_space<vmem>>, vector<32x16xbf16>
    %3 = vector.shape_cast %2 : vector<32x16xbf16> to vector<1x32x16xbf16>
    %4 = vector.broadcast %3 : vector<1x32x16xbf16> to vector<4x32x16xbf16>
    %c0_3 = arith.constant 0 : index
    %c0_4 = arith.constant 0 : index
    %c0_5 = arith.constant 0 : index
    %5 = vector.load %arg2[%c0_3, %c0_4, %c0_5] : memref<4x16x128xbf16, #tpu.memory_space<vmem>>, vector<4x16x128xbf16>
    "tpu.trace_start"() <{level = 10 : i32, message = "bsl,bld->bsd"}> : () -> ()
    %cst = arith.constant dense<0.000000e+00> : vector<4x32x128xf32>
    %6 = tpu.matmul %4, %5, %cst {dimension_numbers = #tpu.dot_dimension_numbers<[2], [1], [1], [2], [0, 0, 0, 1, 1, 2], [0], [0]>} : vector<4x32x16xbf16>, vector<4x16x128xbf16>, vector<4x32x128xf32> -> vector<4x32x128xf32>
    "tpu.trace_stop"() : () -> ()
    %7 = vector.shape_cast %6 : vector<4x32x128xf32> to vector<128x128xf32>
    %8 = arith.truncf %7 : vector<128x128xf32> to vector<128x128xbf16>
    %c0_6 = arith.constant 0 : index
    %c0_7 = arith.constant 0 : index
    %9 = vector.load %arg4[%c0_6, %c0_7] : memref<128x384xbf16, #tpu.memory_space<vmem>>, vector<128x384xbf16>
    %cst_8 = arith.constant dense<0.000000e+00> : vector<128x384xf32>
    %10 = tpu.matmul %8, %9, %cst_8 {dimension_numbers = #tpu.dot_dimension_numbers<[1], [0], [0], [1], [0, 0, 1, 1], [], []>} : vector<128x128xbf16>, vector<128x384xbf16>, vector<128x384xf32> -> vector<128x384xf32>
    %c0_9 = arith.constant 0 : index
    %c0_10 = arith.constant 0 : index
    %11 = vector.load %arg6[%c0_9, %c0_10] : memref<32x256xbf16, #tpu.memory_space<vmem>>, vector<32x256xbf16>
    %cst_11 = arith.constant dense<0.000000e+00> : vector<128x256xf32>
    %12 = tpu.matmul %1, %11, %cst_11 {dimension_numbers = #tpu.dot_dimension_numbers<[1], [0], [0], [1], [0, 0, 1, 1], [], []>} : vector<128x32xbf16>, vector<32x256xbf16>, vector<128x256xf32> -> vector<128x256xf32>
    %c0_12 = arith.constant 0 : index
    %c0_13 = arith.constant 0 : index
    %13 = vector.load %arg7[%c0_12, %c0_13] : memref<128x2xbf16, #tpu.memory_space<vmem>>, vector<128x2xbf16>
    %cst_14 = arith.constant dense<0.000000e+00> : vector<128x2xf32>
    %14 = tpu.matmul %8, %13, %cst_14 {dimension_numbers = #tpu.dot_dimension_numbers<[1], [0], [0], [1], [0, 0, 1, 1], [], []>} : vector<128x128xbf16>, vector<128x2xbf16>, vector<128x2xf32> -> vector<128x2xf32>
    %c0_15 = arith.constant 0 : index
    %c0_16 = arith.constant 0 : index
    %15 = vector.load %arg8[%c0_15, %c0_16] : memref<32x2xbf16, #tpu.memory_space<vmem>>, vector<32x2xbf16>
    %cst_17 = arith.constant dense<0.000000e+00> : vector<128x2xf32>
    %16 = tpu.matmul %1, %15, %cst_17 {dimension_numbers = #tpu.dot_dimension_numbers<[1], [0], [0], [1], [0, 0, 1, 1], [], []>} : vector<128x32xbf16>, vector<32x2xbf16>, vector<128x2xf32> -> vector<128x2xf32>
    %17 = arith.addf %14, %16 : vector<128x2xf32>
    %18 = arith.negf %17 : vector<128x2xf32>
    %19 = math.exp %18 : vector<128x2xf32>
    %cst_18 = arith.constant 1.000000e+00 : f32
    %20 = vector.broadcast %cst_18 : f32 to vector<128x2xf32>
    %21 = arith.addf %20, %19 : vector<128x2xf32>
    %22 = arith.divf %20, %21 : vector<128x2xf32>
    %23 = vector.extract_strided_slice %22 {offsets = [0, 0], sizes = [128, 1], strides = [1, 1]} : vector<128x2xf32> to vector<128x1xf32>
    %24 = vector.extract_strided_slice %22 {offsets = [0, 1], sizes = [128, 1], strides = [1, 1]} : vector<128x2xf32> to vector<128x1xf32>
    %25 = vector.extract_strided_slice %10 {offsets = [0, 0], sizes = [128, 128], strides = [1, 1]} : vector<128x384xf32> to vector<128x128xf32>
    %c0_19 = arith.constant 0 : index
    %c0_20 = arith.constant 0 : index
    %26 = vector.load %arg5[%c0_19, %c0_20] : memref<1x384xf32, #tpu.memory_space<vmem>>, vector<1x128xf32>
    %27 = vector.broadcast %26 : vector<1x128xf32> to vector<128x128xf32>
    %28 = arith.addf %25, %27 : vector<128x128xf32>
    %cst_21 = arith.constant 1.000000e+00 : f32
    %29 = vector.broadcast %cst_21 : f32 to vector<128x1xf32>
    %30 = arith.subf %29, %23 : vector<128x1xf32>
    %31 = vector.extract_strided_slice %10 {offsets = [0, 128], sizes = [128, 128], strides = [1, 1]} : vector<128x384xf32> to vector<128x128xf32>
    %32 = vector.broadcast %30 : vector<128x1xf32> to vector<128x128xf32>
    %33 = arith.mulf %32, %31 : vector<128x128xf32>
    %34 = vector.extract_strided_slice %12 {offsets = [0, 0], sizes = [128, 128], strides = [1, 1]} : vector<128x256xf32> to vector<128x128xf32>
    %35 = vector.broadcast %23 : vector<128x1xf32> to vector<128x128xf32>
    %36 = arith.mulf %35, %34 : vector<128x128xf32>
    %37 = arith.addf %33, %36 : vector<128x128xf32>
    %c0_22 = arith.constant 0 : index
    %c128 = arith.constant 128 : index
    %38 = vector.load %arg5[%c0_22, %c128] : memref<1x384xf32, #tpu.memory_space<vmem>>, vector<1x128xf32>
    %39 = vector.broadcast %38 : vector<1x128xf32> to vector<128x128xf32>
    %40 = arith.addf %37, %39 : vector<128x128xf32>
    %cst_23 = arith.constant 1.000000e+00 : f32
    %41 = vector.broadcast %cst_23 : f32 to vector<128x1xf32>
    %42 = arith.subf %41, %24 : vector<128x1xf32>
    %43 = vector.extract_strided_slice %10 {offsets = [0, 256], sizes = [128, 128], strides = [1, 1]} : vector<128x384xf32> to vector<128x128xf32>
    %44 = vector.broadcast %42 : vector<128x1xf32> to vector<128x128xf32>
    %45 = arith.mulf %44, %43 : vector<128x128xf32>
    %46 = vector.extract_strided_slice %12 {offsets = [0, 128], sizes = [128, 128], strides = [1, 1]} : vector<128x256xf32> to vector<128x128xf32>
    %47 = vector.broadcast %24 : vector<128x1xf32> to vector<128x128xf32>
    %48 = arith.mulf %47, %46 : vector<128x128xf32>
    %49 = arith.addf %45, %48 : vector<128x128xf32>
    %c0_24 = arith.constant 0 : index
    %c256 = arith.constant 256 : index
    %50 = vector.load %arg5[%c0_24, %c256] : memref<1x384xf32, #tpu.memory_space<vmem>>, vector<1x128xf32>
    %51 = vector.broadcast %50 : vector<1x128xf32> to vector<128x128xf32>
    %52 = arith.addf %49, %51 : vector<128x128xf32>
    %53 = arith.truncf %28 : vector<128x128xf32> to vector<128x128xbf16>
    %54 = vector.shape_cast %53 : vector<128x128xbf16> to vector<4x32x128xbf16>
    %55 = arith.truncf %40 : vector<128x128xf32> to vector<128x128xbf16>
    %56 = vector.shape_cast %55 : vector<128x128xbf16> to vector<4x32x128xbf16>
    %57 = arith.truncf %52 : vector<128x128xf32> to vector<128x128xbf16>
    %58 = vector.shape_cast %57 : vector<128x128xbf16> to vector<4x32x128xbf16>
    "tpu.trace_start"() <{level = 10 : i32, message = "bqd,bkd->bqk"}> : () -> ()
    %cst_25 = arith.constant dense<0.000000e+00> : vector<4x32x32xf32>
    %59 = tpu.matmul %54, %56, %cst_25 {dimension_numbers = #tpu.dot_dimension_numbers<[2], [2], [1], [1], [0, 0, 0, 1, 1, 1], [0], [0]>} : vector<4x32x128xbf16>, vector<4x32x128xbf16>, vector<4x32x32xf32> -> vector<4x32x32xf32>
    "tpu.trace_stop"() : () -> ()
    %cst_26 = arith.constant dense<0xFF800000> : vector<4x32xf32>
    %60 = vector.multi_reduction <maximumf>, %59, %cst_26 [2] : vector<4x32x32xf32> to vector<4x32xf32>
    %61 = vector.shape_cast %60 : vector<4x32xf32> to vector<4x32x1xf32>
    %62 = vector.broadcast %61 : vector<4x32x1xf32> to vector<4x32x32xf32>
    %63 = arith.subf %59, %62 : vector<4x32x32xf32>
    %64 = math.exp %63 : vector<4x32x32xf32>
    %cst_27 = arith.constant dense<0.000000e+00> : vector<4x32xf32>
    %65 = vector.multi_reduction <add>, %64, %cst_27 [2] : vector<4x32x32xf32> to vector<4x32xf32>
    %66 = vector.shape_cast %65 : vector<4x32xf32> to vector<4x32x1xf32>
    %67 = tpu.reciprocal %66 {approx = true} : vector<4x32x1xf32> -> vector<4x32x1xf32>
    %68 = vector.broadcast %67 : vector<4x32x1xf32> to vector<4x32x32xf32>
    %69 = arith.mulf %64, %68 : vector<4x32x32xf32>
    %70 = arith.truncf %69 : vector<4x32x32xf32> to vector<4x32x32xbf16>
    "tpu.trace_start"() <{level = 10 : i32, message = "bqk,bkd->bqd"}> : () -> ()
    %cst_28 = arith.constant dense<0.000000e+00> : vector<4x32x128xf32>
    %71 = tpu.matmul %70, %58, %cst_28 {dimension_numbers = #tpu.dot_dimension_numbers<[2], [1], [1], [2], [0, 0, 0, 1, 1, 2], [0], [0]>} : vector<4x32x32xbf16>, vector<4x32x128xbf16>, vector<4x32x128xf32> -> vector<4x32x128xf32>
    "tpu.trace_stop"() : () -> ()
    %72 = vector.shape_cast %71 : vector<4x32x128xf32> to vector<128x128xf32>
    %73 = arith.truncf %72 : vector<128x128xf32> to vector<128x128xbf16>
    %c0_29 = arith.constant 0 : index
    %c0_30 = arith.constant 0 : index
    %74 = vector.load %arg9[%c0_29, %c0_30] : memref<128x32xbf16, #tpu.memory_space<vmem>>, vector<128x32xbf16>
    %cst_31 = arith.constant dense<0.000000e+00> : vector<128x32xf32>
    %75 = tpu.matmul %73, %74, %cst_31 {dimension_numbers = #tpu.dot_dimension_numbers<[1], [0], [0], [1], [0, 0, 1, 1], [], []>} : vector<128x128xbf16>, vector<128x32xbf16>, vector<128x32xf32> -> vector<128x32xf32>
    %c0_32 = arith.constant 0 : index
    %c0_33 = arith.constant 0 : index
    %76 = vector.load %arg10[%c0_32, %c0_33] : memref<1x32xf32, #tpu.memory_space<vmem>>, vector<1x32xf32>
    %77 = vector.broadcast %76 : vector<1x32xf32> to vector<128x32xf32>
    %78 = arith.addf %75, %77 : vector<128x32xf32>
    %79 = arith.truncf %78 : vector<128x32xf32> to vector<128x32xbf16>
    %c0_34 = arith.constant 0 : index
    %c0_35 = arith.constant 0 : index
    %80 = vector.load %arg11[%c0_34, %c0_35] : memref<64x32xbf16, #tpu.memory_space<vmem>>, vector<32x32xbf16>
    %cst_36 = arith.constant dense<0.000000e+00> : vector<128x32xf32>
    %81 = tpu.matmul %79, %80, %cst_36 {dimension_numbers = #tpu.dot_dimension_numbers<[1], [0], [0], [1], [0, 0, 1, 1], [], []>} : vector<128x32xbf16>, vector<32x32xbf16>, vector<128x32xf32> -> vector<128x32xf32>
    %c32 = arith.constant 32 : index
    %c0_37 = arith.constant 0 : index
    %82 = vector.load %arg11[%c32, %c0_37] : memref<64x32xbf16, #tpu.memory_space<vmem>>, vector<32x32xbf16>
    %cst_38 = arith.constant dense<0.000000e+00> : vector<128x32xf32>
    %83 = tpu.matmul %1, %82, %cst_38 {dimension_numbers = #tpu.dot_dimension_numbers<[1], [0], [0], [1], [0, 0, 1, 1], [], []>} : vector<128x32xbf16>, vector<32x32xbf16>, vector<128x32xf32> -> vector<128x32xf32>
    %84 = arith.addf %81, %83 : vector<128x32xf32>
    %c0_39 = arith.constant 0 : index
    %c0_40 = arith.constant 0 : index
    %85 = vector.load %arg12[%c0_39, %c0_40] : memref<1x32xf32, #tpu.memory_space<vmem>>, vector<1x32xf32>
    %86 = vector.broadcast %85 : vector<1x32xf32> to vector<128x32xf32>
    %87 = arith.addf %84, %86 : vector<128x32xf32>
    %88 = arith.negf %87 : vector<128x32xf32>
    %89 = math.exp %88 : vector<128x32xf32>
    %cst_41 = arith.constant 1.000000e+00 : f32
    %90 = vector.broadcast %cst_41 : f32 to vector<128x32xf32>
    %91 = arith.addf %90, %89 : vector<128x32xf32>
    %92 = arith.divf %90, %91 : vector<128x32xf32>
    %93 = arith.mulf %92, %78 : vector<128x32xf32>
    %94 = arith.addf %0, %93 : vector<128x32xf32>
    %cst_42 = arith.constant dense<0.000000e+00> : vector<128xf32>
    %95 = vector.multi_reduction <add>, %94, %cst_42 [1] : vector<128x32xf32> to vector<128xf32>
    %96 = vector.shape_cast %95 : vector<128xf32> to vector<128x1xf32>
    %cst_43 = arith.constant 3.200000e+01 : f32
    %97 = vector.broadcast %cst_43 : f32 to vector<128x1xf32>
    %98 = arith.divf %96, %97 : vector<128x1xf32>
    %99 = vector.broadcast %98 : vector<128x1xf32> to vector<128x32xf32>
    %100 = arith.subf %94, %99 : vector<128x32xf32>
    %101 = arith.mulf %100, %100 : vector<128x32xf32>
    %cst_44 = arith.constant dense<0.000000e+00> : vector<128xf32>
    %102 = vector.multi_reduction <add>, %101, %cst_44 [1] : vector<128x32xf32> to vector<128xf32>
    %103 = vector.shape_cast %102 : vector<128xf32> to vector<128x1xf32>
    %cst_45 = arith.constant 3.200000e+01 : f32
    %104 = vector.broadcast %cst_45 : f32 to vector<128x1xf32>
    %105 = arith.divf %103, %104 : vector<128x1xf32>
    %106 = vector.broadcast %98 : vector<128x1xf32> to vector<128x32xf32>
    %107 = arith.subf %94, %106 : vector<128x32xf32>
    %cst_46 = arith.constant 9.99999974E-6 : f32
    %108 = vector.broadcast %cst_46 : f32 to vector<128x1xf32>
    %109 = arith.addf %105, %108 : vector<128x1xf32>
    %110 = math.rsqrt %109 : vector<128x1xf32>
    %111 = vector.broadcast %110 : vector<128x1xf32> to vector<128x32xf32>
    %112 = arith.mulf %107, %111 : vector<128x32xf32>
    %c0_47 = arith.constant 0 : index
    %c0_48 = arith.constant 0 : index
    %113 = vector.load %arg13[%c0_47, %c0_48] : memref<1x32xf32, #tpu.memory_space<vmem>>, vector<1x32xf32>
    %114 = vector.broadcast %113 : vector<1x32xf32> to vector<128x32xf32>
    %115 = arith.mulf %112, %114 : vector<128x32xf32>
    %c0_49 = arith.constant 0 : index
    %c0_50 = arith.constant 0 : index
    %116 = vector.load %arg14[%c0_49, %c0_50] : memref<1x32xf32, #tpu.memory_space<vmem>>, vector<1x32xf32>
    %117 = vector.broadcast %116 : vector<1x32xf32> to vector<128x32xf32>
    %118 = arith.addf %115, %117 : vector<128x32xf32>
    %c0_51 = arith.constant 0 : index
    %c0_52 = arith.constant 0 : index
    %119 = vector.load %arg15[%c0_51, %c0_52] : memref<128x32xf32, #tpu.memory_space<vmem>>, vector<128x32xf32>
    tpu.vector_store %arg15[%c0_51, %c0_52], %118 {strides = array<i32>} : memref<128x32xf32, #tpu.memory_space<vmem>>, vector<128x32xf32>,
    return
  }
  func.func @transform_0(%arg0: i32) -> (i32, i32) {
    %c0_i32 = arith.constant 0 : i32
    %c0_i32_0 = arith.constant 0 : i32
    return %arg0, %c0_i32 : i32, i32
  }
  func.func @transform_1(%arg0: i32) -> (i32, i32, i32) {
    %c0_i32 = arith.constant 0 : i32
    %c0_i32_0 = arith.constant 0 : i32
    %c0_i32_1 = arith.constant 0 : i32
    return %arg0, %c0_i32, %c0_i32_0 : i32, i32, i32
  }
  func.func @transform_2(%arg0: i32) -> (i32, i32) {
    %c0_i32 = arith.constant 0 : i32
    %c0_i32_0 = arith.constant 0 : i32
    %c0_i32_1 = arith.constant 0 : i32
    return %c0_i32, %c0_i32_0 : i32, i32
  }
  func.func @transform_3(%arg0: i32) -> (i32, i32) {
    %c0_i32 = arith.constant 0 : i32
    %c0_i32_0 = arith.constant 0 : i32
    %c0_i32_1 = arith.constant 0 : i32
    return %c0_i32, %c0_i32_0 : i32, i32
  }
  func.func @transform_4(%arg0: i32) -> (i32, i32) {
    %c0_i32 = arith.constant 0 : i32
    %c0_i32_0 = arith.constant 0 : i32
    %c0_i32_1 = arith.constant 0 : i32
    return %c0_i32, %c0_i32_0 : i32, i32
  }
  func.func @transform_5(%arg0: i32) -> (i32, i32) {
    %c0_i32 = arith.constant 0 : i32
    %c0_i32_0 = arith.constant 0 : i32
    %c0_i32_1 = arith.constant 0 : i32
    return %c0_i32, %c0_i32_0 : i32, i32
  }
  func.func @transform_6(%arg0: i32) -> (i32, i32) {
    %c0_i32 = arith.constant 0 : i32
    %c0_i32_0 = arith.constant 0 : i32
    %c0_i32_1 = arith.constant 0 : i32
    return %c0_i32, %c0_i32_0 : i32, i32
  }
  func.func @transform_7(%arg0: i32) -> (i32, i32) {
    %c0_i32 = arith.constant 0 : i32
    %c0_i32_0 = arith.constant 0 : i32
    %c0_i32_1 = arith.constant 0 : i32
    return %c0_i32, %c0_i32_0 : i32, i32
  }
  func.func @transform_8(%arg0: i32) -> (i32, i32) {
    %c0_i32 = arith.constant 0 : i32
    %c0_i32_0 = arith.constant 0 : i32
    %c0_i32_1 = arith.constant 0 : i32
    return %c0_i32, %c0_i32_0 : i32, i32
  }
  func.func @transform_9(%arg0: i32) -> (i32, i32) {
    %c0_i32 = arith.constant 0 : i32
    %c0_i32_0 = arith.constant 0 : i32
    %c0_i32_1 = arith.constant 0 : i32
    return %c0_i32, %c0_i32_0 : i32, i32
  }
  func.func @transform_10(%arg0: i32) -> (i32, i32) {
    %c0_i32 = arith.constant 0 : i32
    %c0_i32_0 = arith.constant 0 : i32
    %c0_i32_1 = arith.constant 0 : i32
    return %c0_i32, %c0_i32_0 : i32, i32
  }
  func.func @transform_11(%arg0: i32) -> (i32, i32) {
    %c0_i32 = arith.constant 0 : i32
    %c0_i32_0 = arith.constant 0 : i32
    %c0_i32_1 = arith.constant 0 : i32
    return %c0_i32, %c0_i32_0 : i32, i32
  }
  func.func @transform_12(%arg0: i32) -> (i32, i32) {
    %c0_i32 = arith.constant 0 : i32
    %c0_i32_0 = arith.constant 0 : i32
    %c0_i32_1 = arith.constant 0 : i32
    return %c0_i32, %c0_i32_0 : i32, i32
  }
  func.func @transform_13(%arg0: i32) -> (i32, i32) {
    %c0_i32 = arith.constant 0 : i32
    %c0_i32_0 = arith.constant 0 : i32
    %c0_i32_1 = arith.constant 0 : i32
    return %c0_i32, %c0_i32_0 : i32, i32
  }
  func.func @transform_14(%arg0: i32) -> (i32, i32) {
    %c0_i32 = arith.constant 0 : i32
    %c0_i32_0 = arith.constant 0 : i32
    return %arg0, %c0_i32 : i32, i32
  }
}

</mosaic_0001>

<llo_original>
// kernel: tpu_custom_call.1
$region0: #{tpu_custom_call.1}
  #allocation0 [shape = 'u32[]', space=smem, size = 0x4, offset = 0x4, fixed_abs, tag = 'smem constant byte address 0x4 - core index']
  #allocation1 [shape = 'u32[144,128]{1,0:T(1,128)}', space=vmem, size = 0x12000, scoped, tag = 'internal scratch']
  %s0 = inlined_call_operand.vmem [shape: f32[256,32], index: 0, kind: input, shape index: {}]
  %s1 = inlined_call_operand.vmem [shape: bf16[8,16,128], index: 1, kind: input, shape index: {}]
  %s2 = inlined_call_operand.vmem [shape: bf16[32,16], index: 2, kind: input, shape index: {}]
  %s3 = inlined_call_operand.vmem [shape: bf16[128,384], index: 3, kind: input, shape index: {}]
  %s4 = inlined_call_operand.vmem [shape: f32[1,384], index: 4, kind: input, shape index: {}]
  %s5 = inlined_call_operand.vmem [shape: bf16[32,256], index: 5, kind: input, shape index: {}]
  %s6 = inlined_call_operand.vmem [shape: bf16[128,2], index: 6, kind: input, shape index: {}]
  %s7 = inlined_call_operand.vmem [shape: bf16[32,2], index: 7, kind: input, shape index: {}]
  %s8 = inlined_call_operand.vmem [shape: bf16[128,32], index: 8, kind: input, shape index: {}]
  %s9 = inlined_call_operand.vmem [shape: f32[1,32], index: 9, kind: input, shape index: {}]
  %s10 = inlined_call_operand.vmem [shape: bf16[64,32], index: 10, kind: input, shape index: {}]
  %s11 = inlined_call_operand.vmem [shape: f32[1,32], index: 11, kind: input, shape index: {}]
  %s12 = inlined_call_operand.vmem [shape: f32[1,32], index: 12, kind: input, shape index: {}]
  %s13 = inlined_call_operand.vmem [shape: f32[1,32], index: 13, kind: input, shape index: {}]
  %s14 = inlined_call_operand.vmem [shape: f32[256,32], index: 14, kind: output, shape index: {}]
  %s15 = sld [smem:[#allocation0]]
  $region89: #{tpu_custom_call.1} parent=0
    _
  %s17 = ssub.s32 1, %s15
  %s18 = scalar_select 0, %s17, %s15
  loop: start=0, step=1, limit=4
  $region2: #{tpu_custom_call.1} parent=0 // loop_pre_header
    _
  $region3: #{tpu_custom_call.1} parent=0 // loop_header
    %s20 = sphi 0, %s24
    %p21 = scmp.ge.s32.totalorder %s20, 4
    %s30 = sphi 0, %s32
    %s33 = sphi 0, %s30
    %s34 = sphi 0, %s33
    %s50 = sphi 0, %s34
    %s56 = sphi 0, %s58
    %s59 = sphi 0, %s56
    %s60 = sphi 0, %s59
    %s76 = sphi 0, %s60
    %s80 = sphi 0, %s80
    %s82 = sphi 0, %s80
    %s83 = sphi 0, %s82
    %s97 = sphi 0, %s83
    %s101 = sphi 0, %s101
    %s103 = sphi 0, %s101
    %s104 = sphi 0, %s103
    %s118 = sphi 0, %s104
    %s122 = sphi 0, %s122
    %s124 = sphi 0, %s122
    %s125 = sphi 0, %s124
    %s139 = sphi 0, %s125
    %s143 = sphi 0, %s143
    %s145 = sphi 0, %s143
    %s146 = sphi 0, %s145
    %s160 = sphi 0, %s146
    %s164 = sphi 0, %s164
    %s166 = sphi 0, %s164
    %s167 = sphi 0, %s166
    %s181 = sphi 0, %s167
    %s185 = sphi 0, %s185
    %s187 = sphi 0, %s185
    %s188 = sphi 0, %s187
    %s202 = sphi 0, %s188
    %s206 = sphi 0, %s206
    %s208 = sphi 0, %s206
    %s209 = sphi 0, %s208
    %s223 = sphi 0, %s209
    %s227 = sphi 0, %s227
    %s229 = sphi 0, %s227
    %s230 = sphi 0, %s229
    %s244 = sphi 0, %s230
    %s248 = sphi 0, %s248
    %s250 = sphi 0, %s248
    %s251 = sphi 0, %s250
    %s265 = sphi 0, %s251
    %s269 = sphi 0, %s269
    %s271 = sphi 0, %s269
    %s272 = sphi 0, %s271
    %s286 = sphi 0, %s272
    %s290 = sphi 0, %s290
    %s292 = sphi 0, %s290
    %s293 = sphi 0, %s292
    %s307 = sphi 0, %s293
    %s311 = sphi 0, %s311
    %s313 = sphi 0, %s311
    %s314 = sphi 0, %s313
    %s328 = sphi 0, %s314
    %s334 = sphi 0, %s336
    %s337 = sphi 0, %s334
    %s338 = sphi 0, %s337
    %s354 = sphi 0, %s338
  $region4: #{tpu_custom_call.1} parent=0 // loop_header_branch
    %23 = sbr.rel (%p21) target = $region8
  $region5: #{tpu_custom_call.1} parent=0 // loop_body
    %s25 = ssub.s32 %s20, 1
    %s26 = ssub.s32 %s20, 2
    %s27 = sadd.s32 %s20, 1
    %s28 = ssub.s32 %s20, %s27
    %p29 = scmp.eq.s32.totalorder %s28, 0
    %s31 = sadd.s32 %s30, 1
    %s32 = scalar_select %p29, %s30, %s31
    %p35 = pneg %p29
    %p36 = scmp.eq.s32.totalorder %s20, 1
    %p37 = por %p35, %p36
    %p38 = scmp.ne.s32.totalorder %s30, %s33
    %p39 = scmp.eq.s32.totalorder %s20, 0
    %p40 = por %p38, %p39
    %p41 = scmp.ne.s32.totalorder %s30, %s33
    %p42 = scmp.eq.s32.totalorder %s25, 1
    %p43 = por %p41, %p42
    %p44 = scmp.ne.s32.totalorder %s33, %s34
    %p45 = scmp.eq.s32.totalorder %s25, 0
    %p46 = por %p44, %p45
    %p47 = scmp.ne.s32.totalorder %s33, %s34
    %p48 = scmp.eq.s32.totalorder %s26, 1
    %p49 = por %p47, %p48
    %p51 = scmp.ne.s32.totalorder %s34, %s50
    %p52 = scmp.eq.s32.totalorder %s26, 0
    %p53 = por %p51, %p52
    %s54 = ssub.s32 %s20, %s27
    %p55 = scmp.eq.s32.totalorder %s54, 0
    %s57 = sadd.s32 %s56, 1
    %s58 = scalar_select %p55, %s56, %s57
    %p61 = pneg %p55
    %p62 = scmp.eq.s32.totalorder %s20, 1
    %p63 = por %p61, %p62
    %p64 = scmp.ne.s32.totalorder %s56, %s59
    %p65 = scmp.eq.s32.totalorder %s20, 0
    %p66 = por %p64, %p65
    %p67 = scmp.ne.s32.totalorder %s56, %s59
    %p68 = scmp.eq.s32.totalorder %s25, 1
    %p69 = por %p67, %p68
    %p70 = scmp.ne.s32.totalorder %s59, %s60
    %p71 = scmp.eq.s32.totalorder %s25, 0
    %p72 = por %p70, %p71
    %p73 = scmp.ne.s32.totalorder %s59, %s60
    %p74 = scmp.eq.s32.totalorder %s26, 1
    %p75 = por %p73, %p74
    %p77 = scmp.ne.s32.totalorder %s60, %s76
    %p78 = scmp.eq.s32.totalorder %s26, 0
    %p79 = por %p77, %p78
    %s81 = sadd.s32 %s80, 1
    %p84 = scmp.eq.s32.totalorder %s20, 1
    %p85 = scmp.ne.s32.totalorder %s80, %s82
    %p86 = scmp.eq.s32.totalorder %s20, 0
    %p87 = por %p85, %p86
    %p88 = scmp.ne.s32.totalorder %s80, %s82
    %p89 = scmp.eq.s32.totalorder %s25, 1
    %p90 = por %p88, %p89
    %p91 = scmp.ne.s32.totalorder %s82, %s83
    %p92 = scmp.eq.s32.totalorder %s25, 0
    %p93 = por %p91, %p92
    %p94 = scmp.ne.s32.totalorder %s82, %s83
    %p95 = scmp.eq.s32.totalorder %s26, 1
    %p96 = por %p94, %p95
    %p98 = scmp.ne.s32.totalorder %s83, %s97
    %p99 = scmp.eq.s32.totalorder %s26, 0
    %p100 = por %p98, %p99
    %s102 = sadd.s32 %s101, 1
    %p105 = scmp.eq.s32.totalorder %s20, 1
    %p106 = scmp.ne.s32.totalorder %s101, %s103
    %p107 = scmp.eq.s32.totalorder %s20, 0
    %p108 = por %p106, %p107
    %p109 = scmp.ne.s32.totalorder %s101, %s103
    %p110 = scmp.eq.s32.totalorder %s25, 1
    %p111 = por %p109, %p110
    %p112 = scmp.ne.s32.totalorder %s103, %s104
    %p113 = scmp.eq.s32.totalorder %s25, 0
    %p114 = por %p112, %p113
    %p115 = scmp.ne.s32.totalorder %s103, %s104
    %p116 = scmp.eq.s32.totalorder %s26, 1
    %p117 = por %p115, %p116
    %p119 = scmp.ne.s32.totalorder %s104, %s118
    %p120 = scmp.eq.s32.totalorder %s26, 0
    %p121 = por %p119, %p120
    %s123 = sadd.s32 %s122, 1
    %p126 = scmp.eq.s32.totalorder %s20, 1
    %p127 = scmp.ne.s32.totalorder %s122, %s124
    %p128 = scmp.eq.s32.totalorder %s20, 0
    %p129 = por %p127, %p128
    %p130 = scmp.ne.s32.totalorder %s122, %s124
    %p131 = scmp.eq.s32.totalorder %s25, 1
    %p132 = por %p130, %p131
    %p133 = scmp.ne.s32.totalorder %s124, %s125
    %p134 = scmp.eq.s32.totalorder %s25, 0
    %p135 = por %p133, %p134
    %p136 = scmp.ne.s32.totalorder %s124, %s125
    %p137 = scmp.eq.s32.totalorder %s26, 1
    %p138 = por %p136, %p137
    %p140 = scmp.ne.s32.totalorder %s125, %s139
    %p141 = scmp.eq.s32.totalorder %s26, 0
    %p142 = por %p140, %p141
    %s144 = sadd.s32 %s143, 1
    %p147 = scmp.eq.s32.totalorder %s20, 1
    %p148 = scmp.ne.s32.totalorder %s143, %s145
    %p149 = scmp.eq.s32.totalorder %s20, 0
    %p150 = por %p148, %p149
    %p151 = scmp.ne.s32.totalorder %s143, %s145
    %p152 = scmp.eq.s32.totalorder %s25, 1
    %p153 = por %p151, %p152
    %p154 = scmp.ne.s32.totalorder %s145, %s146
    %p155 = scmp.eq.s32.totalorder %s25, 0
    %p156 = por %p154, %p155
    %p157 = scmp.ne.s32.totalorder %s145, %s146
    %p158 = scmp.eq.s32.totalorder %s26, 1
    %p159 = por %p157, %p158
    %p161 = scmp.ne.s32.totalorder %s146, %s160
    %p162 = scmp.eq.s32.totalorder %s26, 0
    %p163 = por %p161, %p162
    %s165 = sadd.s32 %s164, 1
    %p168 = scmp.eq.s32.totalorder %s20, 1
    %p169 = scmp.ne.s32.totalorder %s164, %s166
    %p170 = scmp.eq.s32.totalorder %s20, 0
    %p171 = por %p169, %p170
    %p172 = scmp.ne.s32.totalorder %s164, %s166
    %p173 = scmp.eq.s32.totalorder %s25, 1
    %p174 = por %p172, %p173
    %p175 = scmp.ne.s32.totalorder %s166, %s167
    %p176 = scmp.eq.s32.totalorder %s25, 0
    %p177 = por %p175, %p176
    %p178 = scmp.ne.s32.totalorder %s166, %s167
    %p179 = scmp.eq.s32.totalorder %s26, 1
    %p180 = por %p178, %p179
    %p182 = scmp.ne.s32.totalorder %s167, %s181
    %p183 = scmp.eq.s32.totalorder %s26, 0
    %p184 = por %p182, %p183
    %s186 = sadd.s32 %s185, 1
    %p189 = scmp.eq.s32.totalorder %s20, 1
    %p190 = scmp.ne.s32.totalorder %s185, %s187
    %p191 = scmp.eq.s32.totalorder %s20, 0
    %p192 = por %p190, %p191
    %p193 = scmp.ne.s32.totalorder %s185, %s187
    %p194 = scmp.eq.s32.totalorder %s25, 1
    %p195 = por %p193, %p194
    %p196 = scmp.ne.s32.totalorder %s187, %s188
    %p197 = scmp.eq.s32.totalorder %s25, 0
    %p198 = por %p196, %p197
    %p199 = scmp.ne.s32.totalorder %s187, %s188
    %p200 = scmp.eq.s32.totalorder %s26, 1
    %p201 = por %p199, %p200
    %p203 = scmp.ne.s32.totalorder %s188, %s202
    %p204 = scmp.eq.s32.totalorder %s26, 0
    %p205 = por %p203, %p204
    %s207 = sadd.s32 %s206, 1
    %p210 = scmp.eq.s32.totalorder %s20, 1
    %p211 = scmp.ne.s32.totalorder %s206, %s208
    %p212 = scmp.eq.s32.totalorder %s20, 0
    %p213 = por %p211, %p212
    %p214 = scmp.ne.s32.totalorder %s206, %s208
    %p215 = scmp.eq.s32.totalorder %s25, 1
    %p216 = por %p214, %p215
    %p217 = scmp.ne.s32.totalorder %s208, %s209
    %p218 = scmp.eq.s32.totalorder %s25, 0
    %p219 = por %p217, %p218
    %p220 = scmp.ne.s32.totalorder %s208, %s209
    %p221 = scmp.eq.s32.totalorder %s26, 1
    %p222 = por %p220, %p221
    %p224 = scmp.ne.s32.totalorder %s209, %s223
    %p225 = scmp.eq.s32.totalorder %s26, 0
    %p226 = por %p224, %p225
    %s228 = sadd.s32 %s227, 1
    %p231 = scmp.eq.s32.totalorder %s20, 1
    %p232 = scmp.ne.s32.totalorder %s227, %s229
    %p233 = scmp.eq.s32.totalorder %s20, 0
    %p234 = por %p232, %p233
    %p235 = scmp.ne.s32.totalorder %s227, %s229
    %p236 = scmp.eq.s32.totalorder %s25, 1
    %p237 = por %p235, %p236
    %p238 = scmp.ne.s32.totalorder %s229, %s230
    %p239 = scmp.eq.s32.totalorder %s25, 0
    %p240 = por %p238, %p239
    %p241 = scmp.ne.s32.totalorder %s229, %s230
    %p242 = scmp.eq.s32.totalorder %s26, 1
    %p243 = por %p241, %p242
    %p245 = scmp.ne.s32.totalorder %s230, %s244
    %p246 = scmp.eq.s32.totalorder %s26, 0
    %p247 = por %p245, %p246
    %s249 = sadd.s32 %s248, 1
    %p252 = scmp.eq.s32.totalorder %s20, 1
    %p253 = scmp.ne.s32.totalorder %s248, %s250
    %p254 = scmp.eq.s32.totalorder %s20, 0
    %p255 = por %p253, %p254
    %p256 = scmp.ne.s32.totalorder %s248, %s250
    %p257 = scmp.eq.s32.totalorder %s25, 1
    %p258 = por %p256, %p257
    %p259 = scmp.ne.s32.totalorder %s250, %s251
    %p260 = scmp.eq.s32.totalorder %s25, 0
    %p261 = por %p259, %p260
    %p262 = scmp.ne.s32.totalorder %s250, %s251
    %p263 = scmp.eq.s32.totalorder %s26, 1
    %p264 = por %p262, %p263
    %p266 = scmp.ne.s32.totalorder %s251, %s265
    %p267 = scmp.eq.s32.totalorder %s26, 0
    %p268 = por %p266, %p267
    %s270 = sadd.s32 %s269, 1
    %p273 = scmp.eq.s32.totalorder %s20, 1
    %p274 = scmp.ne.s32.totalorder %s269, %s271
    %p275 = scmp.eq.s32.totalorder %s20, 0
    %p276 = por %p274, %p275
    %p277 = scmp.ne.s32.totalorder %s269, %s271
    %p278 = scmp.eq.s32.totalorder %s25, 1
    %p279 = por %p277, %p278
    %p280 = scmp.ne.s32.totalorder %s271, %s272
    %p281 = scmp.eq.s32.totalorder %s25, 0
    %p282 = por %p280, %p281
    %p283 = scmp.ne.s32.totalorder %s271, %s272
    %p284 = scmp.eq.s32.totalorder %s26, 1
    %p285 = por %p283, %p284
    %p287 = scmp.ne.s32.totalorder %s272, %s286
    %p288 = scmp.eq.s32.totalorder %s26, 0
    %p289 = por %p287, %p288
    %s291 = sadd.s32 %s290, 1
    %p294 = scmp.eq.s32.totalorder %s20, 1
    %p295 = scmp.ne.s32.totalorder %s290, %s292
    %p296 = scmp.eq.s32.totalorder %s20, 0
    %p297 = por %p295, %p296
    %p298 = scmp.ne.s32.totalorder %s290, %s292
    %p299 = scmp.eq.s32.totalorder %s25, 1
    %p300 = por %p298, %p299
    %p301 = scmp.ne.s32.totalorder %s292, %s293
    %p302 = scmp.eq.s32.totalorder %s25, 0
    %p303 = por %p301, %p302
    %p304 = scmp.ne.s32.totalorder %s292, %s293
    %p305 = scmp.eq.s32.totalorder %s26, 1
    %p306 = por %p304, %p305
    %p308 = scmp.ne.s32.totalorder %s293, %s307
    %p309 = scmp.eq.s32.totalorder %s26, 0
    %p310 = por %p308, %p309
    %s312 = sadd.s32 %s311, 1
    %p315 = scmp.eq.s32.totalorder %s20, 1
    %p316 = scmp.ne.s32.totalorder %s311, %s313
    %p317 = scmp.eq.s32.totalorder %s20, 0
    %p318 = por %p316, %p317
    %p319 = scmp.ne.s32.totalorder %s311, %s313
    %p320 = scmp.eq.s32.totalorder %s25, 1
    %p321 = por %p319, %p320
    %p322 = scmp.ne.s32.totalorder %s313, %s314
    %p323 = scmp.eq.s32.totalorder %s25, 0
    %p324 = por %p322, %p323
    %p325 = scmp.ne.s32.totalorder %s313, %s314
    %p326 = scmp.eq.s32.totalorder %s26, 1
    %p327 = por %p325, %p326
    %p329 = scmp.ne.s32.totalorder %s314, %s328
    %p330 = scmp.eq.s32.totalorder %s26, 0
    %p331 = por %p329, %p330
    %s332 = ssub.s32 %s20, %s27
    %p333 = scmp.eq.s32.totalorder %s332, 0
    %s335 = sadd.s32 %s334, 1
    %s336 = scalar_select %p333, %s334, %s335
    %p339 = pneg %p333
    %p340 = scmp.eq.s32.totalorder %s20, 1
    %p341 = por %p339, %p340
    %p342 = scmp.ne.s32.totalorder %s334, %s337
    %p343 = scmp.eq.s32.totalorder %s20, 0
    %p344 = por %p342, %p343
    %p345 = scmp.ne.s32.totalorder %s334, %s337
    %p346 = scmp.eq.s32.totalorder %s25, 1
    %p347 = por %p345, %p346
    %p348 = scmp.ne.s32.totalorder %s337, %s338
    %p349 = scmp.eq.s32.totalorder %s25, 0
    %p350 = por %p348, %p349
    %p351 = scmp.ne.s32.totalorder %s337, %s338
    %p352 = scmp.eq.s32.totalorder %s26, 1
    %p353 = por %p351, %p352
    %p355 = scmp.ne.s32.totalorder %s338, %s354
    %p356 = scmp.eq.s32.totalorder %s26, 0
    %p357 = por %p355, %p356
    %p358 = scmp.le.s32.totalorder 1, %s20
    %p359 = scmp.lt.s32.totalorder %s20, 3
    %p360 = pnand %p358, %p359
    %p361 = pneg %p360
    // Predicated region
    $region9: #{tpu_custom_call.1} parent=5 // pred_check
      _
    $region10: #{tpu_custom_call.1} parent=5 // pred_check_branch
      %363 = sbr.rel (%p360) target = $region12
    $region11: #{tpu_custom_call.1} parent=5 // pred_region
      %s364 = ssub.s32 %s20, 1
      // Predicated region
      $region13: #{tpu_custom_call.1} parent=11 // pred_check
        %p365 = pneg %p93
      $region14: #{tpu_custom_call.1} parent=11 // pred_check_branch
        %367 = sbr.rel (%p365) target = $region16
      $region15: #{tpu_custom_call.1} parent=11 // pred_region
        _
      $region16: #{tpu_custom_call.1} parent=11 // pred_fallthru
        _
      // Predicated region
      $region17: #{tpu_custom_call.1} parent=11 // pred_check
        %p368 = pneg %p114
      $region18: #{tpu_custom_call.1} parent=11 // pred_check_branch
        %370 = sbr.rel (%p368) target = $region20
      $region19: #{tpu_custom_call.1} parent=11 // pred_region
        _
      $region20: #{tpu_custom_call.1} parent=11 // pred_fallthru
        _
      // Predicated region
      $region21: #{tpu_custom_call.1} parent=11 // pred_check
        %p371 = pneg %p135
      $region22: #{tpu_custom_call.1} parent=11 // pred_check_branch
        %373 = sbr.rel (%p371) target = $region24
      $region23: #{tpu_custom_call.1} parent=11 // pred_region
        _
      $region24: #{tpu_custom_call.1} parent=11 // pred_fallthru
        _
      // Predicated region
      $region25: #{tpu_custom_call.1} parent=11 // pred_check
        %p374 = pneg %p156
      $region26: #{tpu_custom_call.1} parent=11 // pred_check_branch
        %376 = sbr.rel (%p374) target = $region28
      $region27: #{tpu_custom_call.1} parent=11 // pred_region
        _
      $region28: #{tpu_custom_call.1} parent=11 // pred_fallthru
        _
      // Predicated region
      $region29: #{tpu_custom_call.1} parent=11 // pred_check
        %p377 = pneg %p177
      $region30: #{tpu_custom_call.1} parent=11 // pred_check_branch
        %379 = sbr.rel (%p377) target = $region32
      $region31: #{tpu_custom_call.1} parent=11 // pred_region
        _
      $region32: #{tpu_custom_call.1} parent=11 // pred_fallthru
        _
      // Predicated region
      $region33: #{tpu_custom_call.1} parent=11 // pred_check
        %p380 = pneg %p198
      $region34: #{tpu_custom_call.1} parent=11 // pred_check_branch
        %382 = sbr.rel (%p380) target = $region36
      $region35: #{tpu_custom_call.1} parent=11 // pred_region
        _
      $region36: #{tpu_custom_call.1} parent=11 // pred_fallthru
        _
      // Predicated region
      $region37: #{tpu_custom_call.1} parent=11 // pred_check
        %p383 = pneg %p219
      $region38: #{tpu_custom_call.1} parent=11 // pred_check_branch
        %385 = sbr.rel (%p383) target = $region40
      $region39: #{tpu_custom_call.1} parent=11 // pred_region
        _
      $region40: #{tpu_custom_call.1} parent=11 // pred_fallthru
        _
      // Predicated region
      $region41: #{tpu_custom_call.1} parent=11 // pred_check
        %p386 = pneg %p240
      $region42: #{tpu_custom_call.1} parent=11 // pred_check_branch
        %388 = sbr.rel (%p386) target = $region44
      $region43: #{tpu_custom_call.1} parent=11 // pred_region
        _
      $region44: #{tpu_custom_call.1} parent=11 // pred_fallthru
        _
      // Predicated region
      $region45: #{tpu_custom_call.1} parent=11 // pred_check
        %p389 = pneg %p261
      $region46: #{tpu_custom_call.1} parent=11 // pred_check_branch
        %391 = sbr.rel (%p389) target = $region48
      $region47: #{tpu_custom_call.1} parent=11 // pred_region
        _
      $region48: #{tpu_custom_call.1} parent=11 // pred_fallthru
        _
      // Predicated region
      $region49: #{tpu_custom_call.1} parent=11 // pred_check
        %p392 = pneg %p282
      $region50: #{tpu_custom_call.1} parent=11 // pred_check_branch
        %394 = sbr.rel (%p392) target = $region52
      $region51: #{tpu_custom_call.1} parent=11 // pred_region
        _
      $region52: #{tpu_custom_call.1} parent=11 // pred_fallthru
        _
      // Predicated region
      $region53: #{tpu_custom_call.1} parent=11 // pred_check
        %p395 = pneg %p303
      $region54: #{tpu_custom_call.1} parent=11 // pred_check_branch
        %397 = sbr.rel (%p395) target = $region56
      $region55: #{tpu_custom_call.1} parent=11 // pred_region
        _
      $region56: #{tpu_custom_call.1} parent=11 // pred_fallthru
        _
      // Predicated region
      $region57: #{tpu_custom_call.1} parent=11 // pred_check
        %p398 = pneg %p324
      $region58: #{tpu_custom_call.1} parent=11 // pred_check_branch
        %400 = sbr.rel (%p398) target = $region60
      $region59: #{tpu_custom_call.1} parent=11 // pred_region
        _
      $region60: #{tpu_custom_call.1} parent=11 // pred_fallthru
        _
    $region12: #{tpu_custom_call.1} parent=5 // pred_fallthru
      _
    %p401 = scmp.lt.s32.totalorder %s20, 2
    // Predicated region
    $region61: #{tpu_custom_call.1} parent=5 // pred_check
      %p402 = pneg %p401
    $region62: #{tpu_custom_call.1} parent=5 // pred_check_branch
      %404 = sbr.rel (%p402) target = $region64
    $region63: #{tpu_custom_call.1} parent=5 // pred_region
      // Predicated region
      $region65: #{tpu_custom_call.1} parent=63 // pred_check
        %p405 = pneg %p40
      $region66: #{tpu_custom_call.1} parent=63 // pred_check_branch
        %407 = sbr.rel (%p405) target = $region68
      $region67: #{tpu_custom_call.1} parent=63 // pred_region
        %s408 = smul.u32 16, %s20
        %p409 = scmp.lt.s32.totalorder %s408, 31
        %s410 = scalar_select %p409, %s408, 31
        %s411 = smul.addr %s410, 8
        %s412 = scalar_lea.vmem %s0, %s411
        %s413 = smul.u32 16, %s20
      $region68: #{tpu_custom_call.1} parent=63 // pred_fallthru
        _
      // Predicated region
      $region69: #{tpu_custom_call.1} parent=63 // pred_check
        %p414 = pneg %p66
      $region70: #{tpu_custom_call.1} parent=63 // pred_check_branch
        %416 = sbr.rel (%p414) target = $region72
      $region71: #{tpu_custom_call.1} parent=63 // pred_region
        %s417 = smul.u32 4, %s20
        %p418 = scmp.lt.s32.totalorder %s417, 7
        %s419 = scalar_select %p418, %s417, 7
        %s420 = smul.addr %s419, 2
        %s421 = smul.addr %s420, 4
        %s422 = scalar_lea.vmem %s1, %s421
        %s423 = smul.u32 4, %s20
      $region72: #{tpu_custom_call.1} parent=63 // pred_fallthru
        _
    $region64: #{tpu_custom_call.1} parent=5 // pred_fallthru
      _
    %p424 = scmp.le.s32.totalorder 1, %s20
    %p425 = scmp.lt.s32.totalorder %s20, 3
    %p426 = pnand %p424, %p425
    %p427 = pneg %p426
    // Predicated region
    $region73: #{tpu_custom_call.1} parent=5 // pred_check
      _
    $region74: #{tpu_custom_call.1} parent=5 // pred_check_branch
      %429 = sbr.rel (%p426) target = $region76
    $region75: #{tpu_custom_call.1} parent=5 // pred_region
      %s430 = ssub.s32 %s20, 1
      %s431 = smul.u32 16, %s25
      %p432 = scmp.lt.s32.totalorder %s431, 31
      %s433 = scalar_select %p432, %s431, 31
      %s434 = smul.addr %s433, 8
      %s435 = scalar_lea.vmem %s0, %s434
      %p436 = pneg %p46
      %p437 = pneg %p43
      %s438 = smul.u32 4, %s25
      %p439 = scmp.lt.s32.totalorder %s438, 7
      %s440 = scalar_select %p439, %s438, 7
      %s441 = smul.addr %s440, 2
      %s442 = smul.addr %s441, 4
      %s443 = scalar_lea.vmem %s1, %s442
      %p444 = pneg %p72
      %p445 = pneg %p69
      %p446 = pneg %p93
      %p447 = pneg %p90
      %p448 = pneg %p114
      %p449 = pneg %p111
      %p450 = pneg %p135
      %p451 = pneg %p132
      %p452 = pneg %p156
      %p453 = pneg %p153
      %p454 = pneg %p177
      %p455 = pneg %p174
      %p456 = pneg %p198
      %p457 = pneg %p195
      %p458 = pneg %p219
      %p459 = pneg %p216
      %p460 = pneg %p240
      %p461 = pneg %p237
      %p462 = pneg %p261
      %p463 = pneg %p258
      %p464 = pneg %p282
      %p465 = pneg %p279
      %p466 = pneg %p303
      %p467 = pneg %p300
      %p468 = pneg %p324
      %p469 = pneg %p321
      %p470 = pneg %p350
      %p471 = pneg %p347
      %s472 = smul.u32 16, %s25
      %p473 = scmp.lt.s32.totalorder %s472, 31
      %s474 = scalar_select %p473, %s472, 31
      %s475 = smul.addr %s474, 8
      %s476 = scalar_lea.vmem %s14, %s475
      %s477 = smul.u32 16, %s25
      %p478 = scmp.lt.s32.totalorder %s477, 31
      %s479 = scalar_select %p478, %s477, 31
      %s480 = smul.addr %s479, 8
      %s481 = scalar_lea.vmem %s0, %s480
      %s482 = smul.u32 16, %s25
      %s483 = smul.u32 4, %s25
      %p484 = scmp.lt.s32.totalorder %s483, 7
      %s485 = scalar_select %p484, %s483, 7
      %s486 = smul.addr %s485, 2
      %s487 = smul.addr %s486, 4
      %s488 = scalar_lea.vmem %s1, %s487
      %s489 = smul.u32 4, %s25
      %s490 = smul.u32 16, %s25
      %p491 = scmp.lt.s32.totalorder %s490, 31
      %s492 = scalar_select %p491, %s490, 31
      %s493 = smul.addr %s492, 8
      %s494 = scalar_lea.vmem %s14, %s493
      %s495 = smul.u32 16, %s25
      %v497 = vld [vmem:[%s481] sm:$0xff]
      %v498 = vld [vmem:[%s481 + $0x8] sm:$0xff]
      %v499 = vld [vmem:[%s481 + $0x10] sm:$0xff]
      %v500 = vld [vmem:[%s481 + $0x18] sm:$0xff]
      %v501 = vld [vmem:[%s481 + $0x20] sm:$0xff]
      %v502 = vld [vmem:[%s481 + $0x28] sm:$0xff]
      %v503 = vld [vmem:[%s481 + $0x30] sm:$0xff]
      %v504 = vld [vmem:[%s481 + $0x38] sm:$0xff]
      %v505 = vld [vmem:[%s481 + $0x40] sm:$0xff]
      %v506 = vld [vmem:[%s481 + $0x48] sm:$0xff]
      %v507 = vld [vmem:[%s481 + $0x50] sm:$0xff]
      %v508 = vld [vmem:[%s481 + $0x58] sm:$0xff]
      %v509 = vld [vmem:[%s481 + $0x60] sm:$0xff]
      %v510 = vld [vmem:[%s481 + $0x68] sm:$0xff]
      %v511 = vld [vmem:[%s481 + $0x70] sm:$0xff]
      %v512 = vld [vmem:[%s481 + $0x78] sm:$0xff]
      %v513 = vpack.c.bf16 %v498, %v497
      %v514 = vpack.c.bf16 %v500, %v499
      %v515 = vpack.c.bf16 %v502, %v501
      %v516 = vpack.c.bf16 %v504, %v503
      %v517 = vpack.c.bf16 %v506, %v505
      %v518 = vpack.c.bf16 %v508, %v507
      %v519 = vpack.c.bf16 %v510, %v509
      %v520 = vpack.c.bf16 %v512, %v511
      %v521 = vld [vmem:[%s2] sm:$0xf]
      %v522 = vld [vmem:[%s2 + $0x4] sm:$0xf]
      %v523 = vld [vmem:[%s2 + $0x8] sm:$0xf]
      %v524 = vld [vmem:[%s2 + $0xc] sm:$0xf]
      %v525 = vld [vmem:[%s488] sm:$0xf]
      %v526 = vld [vmem:[%s488 + $0x4] sm:$0xf]
      %v527 = vld [vmem:[%s488 + $0x8] sm:$0xf]
      %v528 = vld [vmem:[%s488 + $0xc] sm:$0xf]
      %v529 = vld [vmem:[%s488 + $0x10] sm:$0xf]
      %v530 = vld [vmem:[%s488 + $0x14] sm:$0xf]
      %v531 = vld [vmem:[%s488 + $0x18] sm:$0xf]
      %v532 = vld [vmem:[%s488 + $0x1c] sm:$0xf]
      %v537 = vunpack.c.l.b16 %v521
      %v538 = vunpack.c.l.b16 %v522
      %v539 = vunpack.c.l.b16 %v523
      %v540 = vunpack.c.l.b16 %v524
      %v541 = vpack.c.b16 %v538, %v537
      %v542 = vpack.c.b16 %v540, %v539
      %v545 = vunpack.c.l.b16 %v525
      %v546 = vunpack.c.l.b16 %v526
      %v547 = vpack.c.b16 %v546, %v545
      %vm549 = vcmask 130048
      %v551 = vsel %vm549, %v541, 0
      %v554 = vsel %vm549, %v542, 0
      %556 = vmatprep.subr.bf16.mxu0 0
      %557 = vmatpush1.bf16.msra.mxu0 %v547
      %558 = vmatprep.subr.bf16.mxu0 0
      %559 = vmatpush1.bf16.msra.mxu0 0
      %560 = vmatprep.subr.bf16.mxu0 0
      %561 = vmatpush1.bf16.msra.mxu0 0
      %562 = vmatprep.subr.bf16.mxu0 0
      %563 = vmatpush1.bf16.msra.mxu0 0
      %564 = vmatprep.subr.bf16.mxu0 0
      %565 = vmatpush1.bf16.msra.mxu0 0
      %566 = vmatprep.subr.bf16.mxu0 0
      %567 = vmatpush1.bf16.msra.mxu0 0
      %568 = vmatprep.subr.bf16.mxu0 0
      %569 = vmatpush1.bf16.msra.mxu0 0
      %570 = vmatprep.subr.bf16.mxu0 0
      %571 = vmatpush1.bf16.msra.mxu0 0
      %572 = vmatprep.subr.bf16.mxu0 0
      %573 = vmatpush1.bf16.msra.mxu0 0
      %574 = vmatprep.subr.bf16.mxu0 0
      %575 = vmatpush1.bf16.msra.mxu0 0
      %576 = vmatprep.subr.bf16.mxu0 0
      %577 = vmatpush1.bf16.msra.mxu0 0
      %578 = vmatprep.subr.bf16.mxu0 0
      %579 = vmatpush1.bf16.msra.mxu0 0
      %580 = vmatprep.subr.bf16.mxu0 0
      %581 = vmatpush1.bf16.msra.mxu0 0
      %582 = vmatprep.subr.bf16.mxu0 0
      %583 = vmatpush1.bf16.msra.mxu0 0
      %584 = vmatprep.subr.bf16.mxu0 0
      %585 = vmatpush1.bf16.msra.mxu0 0
      %586 = vmatprep.subr.bf16.mxu0 0
      %587 = vmatpush1.bf16.msra.mxu0 0
      %588 = vmatprep.mubr.bf16.mxu0 0
      %589 = vmatmul.mubr.bf16.gmra.mrb[0].mxu0 %v551
      %v590 = vpop.f32.mrb[0].mxu0
      %v591 = vadd.f32 0.0, %v590
      %v592 = vpop.f32.mrb[0].mxu0
      %v593 = vpop.f32.mrb[0].mxu0
      %v594 = vadd.f32 0.0, %v593
      %v595 = vpop.f32.mrb[0].mxu0
      %596 = vmatprep.mubr.bf16.mxu0 0
      %597 = vmatmul.mubr.bf16.gmra.mrb[0].mxu0 %v554
      %v598 = vpop.f32.mrb[0].mxu0
      %v599 = vadd.f32 0.0, %v598
      %v600 = vpop.f32.mrb[0].mxu0
      %v601 = vpop.f32.mrb[0].mxu0
      %v602 = vadd.f32 0.0, %v601
      %v603 = vpop.f32.mrb[0].mxu0
      %604 = vdwg.mxu0
      %v607 = vunpack.c.l.b16 %v527
      %v608 = vunpack.c.l.b16 %v528
      %v609 = vpack.c.b16 %v608, %v607
      %611 = vmatprep.subr.bf16.mxu0 0
      %612 = vmatpush1.bf16.msra.mxu0 %v609
      %613 = vmatprep.subr.bf16.mxu0 0
      %614 = vmatpush1.bf16.msra.mxu0 0
      %615 = vmatprep.subr.bf16.mxu0 0
      %616 = vmatpush1.bf16.msra.mxu0 0
      %617 = vmatprep.subr.bf16.mxu0 0
      %618 = vmatpush1.bf16.msra.mxu0 0
      %619 = vmatprep.subr.bf16.mxu0 0
      %620 = vmatpush1.bf16.msra.mxu0 0
      %621 = vmatprep.subr.bf16.mxu0 0
      %622 = vmatpush1.bf16.msra.mxu0 0
      %623 = vmatprep.subr.bf16.mxu0 0
      %624 = vmatpush1.bf16.msra.mxu0 0
      %625 = vmatprep.subr.bf16.mxu0 0
      %626 = vmatpush1.bf16.msra.mxu0 0
      %627 = vmatprep.subr.bf16.mxu0 0
      %628 = vmatpush1.bf16.msra.mxu0 0
      %629 = vmatprep.subr.bf16.mxu0 0
      %630 = vmatpush1.bf16.msra.mxu0 0
      %631 = vmatprep.subr.bf16.mxu0 0
      %632 = vmatpush1.bf16.msra.mxu0 0
      %633 = vmatprep.subr.bf16.mxu0 0
      %634 = vmatpush1.bf16.msra.mxu0 0
      %635 = vmatprep.subr.bf16.mxu0 0
      %636 = vmatpush1.bf16.msra.mxu0 0
      %637 = vmatprep.subr.bf16.mxu0 0
      %638 = vmatpush1.bf16.msra.mxu0 0
      %639 = vmatprep.subr.bf16.mxu0 0
      %640 = vmatpush1.bf16.msra.mxu0 0
      %641 = vmatprep.subr.bf16.mxu0 0
      %642 = vmatpush1.bf16.msra.mxu0 0
      %643 = vmatprep.mubr.bf16.mxu0 0
      %644 = vmatmul.mubr.bf16.gmra.mrb[0].mxu0 %v551
      %v645 = vpop.f32.mrb[0].mxu0
      %v646 = vadd.f32 0.0, %v645
      %v647 = vpop.f32.mrb[0].mxu0
      %v648 = vpop.f32.mrb[0].mxu0
      %v649 = vadd.f32 0.0, %v648
      %v650 = vpop.f32.mrb[0].mxu0
      %651 = vmatprep.mubr.bf16.mxu0 0
      %652 = vmatmul.mubr.bf16.gmra.mrb[0].mxu0 %v554
      %v653 = vpop.f32.mrb[0].mxu0
      %v654 = vadd.f32 0.0, %v653
      %v655 = vpop.f32.mrb[0].mxu0
      %v656 = vpop.f32.mrb[0].mxu0
      %v657 = vadd.f32 0.0, %v656
      %v658 = vpop.f32.mrb[0].mxu0
      %659 = vdwg.mxu0
      %v662 = vunpack.c.l.b16 %v529
      %v663 = vunpack.c.l.b16 %v530
      %v664 = vpack.c.b16 %v663, %v662
      %666 = vmatprep.subr.bf16.mxu0 0
      %667 = vmatpush1.bf16.msra.mxu0 %v664
      %668 = vmatprep.subr.bf16.mxu0 0
      %669 = vmatpush1.bf16.msra.mxu0 0
      %670 = vmatprep.subr.bf16.mxu0 0
      %671 = vmatpush1.bf16.msra.mxu0 0
      %672 = vmatprep.subr.bf16.mxu0 0
      %673 = vmatpush1.bf16.msra.mxu0 0
      %674 = vmatprep.subr.bf16.mxu0 0
      %675 = vmatpush1.bf16.msra.mxu0 0
      %676 = vmatprep.subr.bf16.mxu0 0
      %677 = vmatpush1.bf16.msra.mxu0 0
      %678 = vmatprep.subr.bf16.mxu0 0
      %679 = vmatpush1.bf16.msra.mxu0 0
      %680 = vmatprep.subr.bf16.mxu0 0
      %681 = vmatpush1.bf16.msra.mxu0 0
      %682 = vmatprep.subr.bf16.mxu0 0
      %683 = vmatpush1.bf16.msra.mxu0 0
      %684 = vmatprep.subr.bf16.mxu0 0
      %685 = vmatpush1.bf16.msra.mxu0 0
      %686 = vmatprep.subr.bf16.mxu0 0
      %687 = vmatpush1.bf16.msra.mxu0 0
      %688 = vmatprep.subr.bf16.mxu0 0
      %689 = vmatpush1.bf16.msra.mxu0 0
      %690 = vmatprep.subr.bf16.mxu0 0
      %691 = vmatpush1.bf16.msra.mxu0 0
      %692 = vmatprep.subr.bf16.mxu0 0
      %693 = vmatpush1.bf16.msra.mxu0 0
      %694 = vmatprep.subr.bf16.mxu0 0
      %695 = vmatpush1.bf16.msra.mxu0 0
      %696 = vmatprep.subr.bf16.mxu0 0
      %697 = vmatpush1.bf16.msra.mxu0 0
      %698 = vmatprep.mubr.bf16.mxu0 0
      %699 = vmatmul.mubr.bf16.gmra.mrb[0].mxu0 %v551
      %v700 = vpop.f32.mrb[0].mxu0
      %v701 = vadd.f32 0.0, %v700
      %v702 = vpop.f32.mrb[0].mxu0
      %v703 = vpop.f32.mrb[0].mxu0
      %v704 = vadd.f32 0.0, %v703
      %v705 = vpop.f32.mrb[0].mxu0
      %706 = vmatprep.mubr.bf16.mxu0 0
      %707 = vmatmul.mubr.bf16.gmra.mrb[0].mxu0 %v554
      %v708 = vpop.f32.mrb[0].mxu0
      %v709 = vadd.f32 0.0, %v708
      %v710 = vpop.f32.mrb[0].mxu0
      %v711 = vpop.f32.mrb[0].mxu0
      %v712 = vadd.f32 0.0, %v711
      %v713 = vpop.f32.mrb[0].mxu0
      %714 = vdwg.mxu0
      %v717 = vunpack.c.l.b16 %v531
      %v718 = vunpack.c.l.b16 %v532
      %v719 = vpack.c.b16 %v718, %v717
      %721 = vmatprep.subr.bf16.mxu0 0
      %722 = vmatpush1.bf16.msra.mxu0 %v719
      %723 = vmatprep.subr.bf16.mxu0 0
      %724 = vmatpush1.bf16.msra.mxu0 0
      %725 = vmatprep.subr.bf16.mxu0 0
      %726 = vmatpush1.bf16.msra.mxu0 0
      %727 = vmatprep.subr.bf16.mxu0 0
      %728 = vmatpush1.bf16.msra.mxu0 0
      %729 = vmatprep.subr.bf16.mxu0 0
      %730 = vmatpush1.bf16.msra.mxu0 0
      %731 = vmatprep.subr.bf16.mxu0 0
      %732 = vmatpush1.bf16.msra.mxu0 0
      %733 = vmatprep.subr.bf16.mxu0 0
      %734 = vmatpush1.bf16.msra.mxu0 0
      %735 = vmatprep.subr.bf16.mxu0 0
      %736 = vmatpush1.bf16.msra.mxu0 0
      %737 = vmatprep.subr.bf16.mxu0 0
      %738 = vmatpush1.bf16.msra.mxu0 0
      %739 = vmatprep.subr.bf16.mxu0 0
      %740 = vmatpush1.bf16.msra.mxu0 0
      %741 = vmatprep.subr.bf16.mxu0 0
      %742 = vmatpush1.bf16.msra.mxu0 0
      %743 = vmatprep.subr.bf16.mxu0 0
      %744 = vmatpush1.bf16.msra.mxu0 0
      %745 = vmatprep.subr.bf16.mxu0 0
      %746 = vmatpush1.bf16.msra.mxu0 0
      %747 = vmatprep.subr.bf16.mxu0 0
      %748 = vmatpush1.bf16.msra.mxu0 0
      %749 = vmatprep.subr.bf16.mxu0 0
      %750 = vmatpush1.bf16.msra.mxu0 0
      %751 = vmatprep.subr.bf16.mxu0 0
      %752 = vmatpush1.bf16.msra.mxu0 0
      %753 = vmatprep.mubr.bf16.mxu0 0
      %754 = vmatmul.mubr.bf16.gmra.mrb[0].mxu0 %v551
      %v755 = vpop.f32.mrb[0].mxu0
      %v756 = vadd.f32 0.0, %v755
      %v757 = vpop.f32.mrb[0].mxu0
      %v758 = vpop.f32.mrb[0].mxu0
      %v759 = vadd.f32 0.0, %v758
      %v760 = vpop.f32.mrb[0].mxu0
      %761 = vmatprep.mubr.bf16.mxu0 0
      %762 = vmatmul.mubr.bf16.gmra.mrb[0].mxu0 %v554
      %v763 = vpop.f32.mrb[0].mxu0
      %v764 = vadd.f32 0.0, %v763
      %v765 = vpop.f32.mrb[0].mxu0
      %v766 = vpop.f32.mrb[0].mxu0
      %v767 = vadd.f32 0.0, %v766
      %v768 = vpop.f32.mrb[0].mxu0
      %769 = vdwg.mxu0
      %v770 = vpack.c.bf16 %v594, %v591
      %v771 = vpack.c.bf16 %v602, %v599
      %v772 = vpack.c.bf16 %v649, %v646
      %v773 = vpack.c.bf16 %v657, %v654
      %v774 = vpack.c.bf16 %v704, %v701
      %v775 = vpack.c.bf16 %v712, %v709
      %v776 = vpack.c.bf16 %v759, %v756
      %v777 = vpack.c.bf16 %v767, %v764
      %v778 = vld [vmem:[%s3] sm:$0xff]
      %v779 = vld [vmem:[%s3 + $0x8] sm:$0xf]
      %v780 = vld [vmem:[%s3 + $0xc] sm:$0xff]
      %v781 = vld [vmem:[%s3 + $0x14] sm:$0xf]
      %v782 = vld [vmem:[%s3 + $0x18] sm:$0xff]
      %v783 = vld [vmem:[%s3 + $0x20] sm:$0xf]
      %v784 = vld [vmem:[%s3 + $0x24] sm:$0xff]
      %v785 = vld [vmem:[%s3 + $0x2c] sm:$0xf]
      %v786 = vld [vmem:[%s3 + $0x30] sm:$0xff]
      %v787 = vld [vmem:[%s3 + $0x38] sm:$0xf]
      %v788 = vld [vmem:[%s3 + $0x3c] sm:$0xff]
      %v789 = vld [vmem:[%s3 + $0x44] sm:$0xf]
      %v790 = vld [vmem:[%s3 + $0x48] sm:$0xff]
      %v791 = vld [vmem:[%s3 + $0x50] sm:$0xf]
      %v792 = vld [vmem:[%s3 + $0x54] sm:$0xff]
      %v793 = vld [vmem:[%s3 + $0x5c] sm:$0xf]
      %v794 = vld [vmem:[%s3 + $0x60] sm:$0xff]
      %v795 = vld [vmem:[%s3 + $0x68] sm:$0xf]
      %v796 = vld [vmem:[%s3 + $0x6c] sm:$0xff]
      %v797 = vld [vmem:[%s3 + $0x74] sm:$0xf]
      %v798 = vld [vmem:[%s3 + $0x78] sm:$0xff]
      %v799 = vld [vmem:[%s3 + $0x80] sm:$0xf]
      %v800 = vld [vmem:[%s3 + $0x84] sm:$0xff]
      %v801 = vld [vmem:[%s3 + $0x8c] sm:$0xf]
      %v802 = vld [vmem:[%s3 + $0x90] sm:$0xff]
      %v803 = vld [vmem:[%s3 + $0x98] sm:$0xf]
      %v804 = vld [vmem:[%s3 + $0x9c] sm:$0xff]
      %v805 = vld [vmem:[%s3 + $0xa4] sm:$0xf]
      %v806 = vld [vmem:[%s3 + $0xa8] sm:$0xff]
      %v807 = vld [vmem:[%s3 + $0xb0] sm:$0xf]
      %v808 = vld [vmem:[%s3 + $0xb4] sm:$0xff]
      %v809 = vld [vmem:[%s3 + $0xbc] sm:$0xf]
      %v842 = vunpack.c.l.b16 %v778
      %v843 = vunpack.c.h.b16 %v778
      %v844 = vunpack.c.l.b16 %v779
      %v845 = vunpack.c.l.b16 %v780
      %v846 = vunpack.c.h.b16 %v780
      %v847 = vunpack.c.l.b16 %v781
      %v848 = vunpack.c.l.b16 %v782
      %v849 = vunpack.c.h.b16 %v782
      %v850 = vunpack.c.l.b16 %v783
      %v851 = vunpack.c.l.b16 %v784
      %v852 = vunpack.c.h.b16 %v784
      %v853 = vunpack.c.l.b16 %v785
      %v854 = vunpack.c.l.b16 %v786
      %v855 = vunpack.c.h.b16 %v786
      %v856 = vunpack.c.l.b16 %v787
      %v857 = vunpack.c.l.b16 %v788
      %v858 = vunpack.c.h.b16 %v788
      %v859 = vunpack.c.l.b16 %v789
      %v860 = vunpack.c.l.b16 %v790
      %v861 = vunpack.c.h.b16 %v790
      %v862 = vunpack.c.l.b16 %v791
      %v863 = vunpack.c.l.b16 %v792
      %v864 = vunpack.c.h.b16 %v792
      %v865 = vunpack.c.l.b16 %v793
      %v866 = vunpack.c.l.b16 %v794
      %v867 = vunpack.c.h.b16 %v794
      %v868 = vunpack.c.l.b16 %v795
      %v869 = vunpack.c.l.b16 %v796
      %v870 = vunpack.c.h.b16 %v796
      %v871 = vunpack.c.l.b16 %v797
      %v872 = vunpack.c.l.b16 %v798
      %v873 = vunpack.c.h.b16 %v798
      %v874 = vunpack.c.l.b16 %v799
      %v875 = vunpack.c.l.b16 %v800
      %v876 = vunpack.c.h.b16 %v800
      %v877 = vunpack.c.l.b16 %v801
      %v878 = vunpack.c.l.b16 %v802
      %v879 = vunpack.c.h.b16 %v802
      %v880 = vunpack.c.l.b16 %v803
      %v881 = vunpack.c.l.b16 %v804
      %v882 = vunpack.c.h.b16 %v804
      %v883 = vunpack.c.l.b16 %v805
      %v884 = vunpack.c.l.b16 %v806
      %v885 = vunpack.c.h.b16 %v806
      %v886 = vunpack.c.l.b16 %v807
      %v887 = vunpack.c.l.b16 %v808
      %v888 = vunpack.c.h.b16 %v808
      %v889 = vunpack.c.l.b16 %v809
      %v890 = vpack.c.b16 %v845, %v842
      %v891 = vpack.c.b16 %v846, %v843
      %v892 = vpack.c.b16 %v847, %v844
      %v893 = vpack.c.b16 %v851, %v848
      %v894 = vpack.c.b16 %v852, %v849
      %v895 = vpack.c.b16 %v853, %v850
      %v896 = vpack.c.b16 %v857, %v854
      %v897 = vpack.c.b16 %v858, %v855
      %v898 = vpack.c.b16 %v859, %v856
      %v899 = vpack.c.b16 %v863, %v860
      %v900 = vpack.c.b16 %v864, %v861
      %v901 = vpack.c.b16 %v865, %v862
      %v902 = vpack.c.b16 %v869, %v866
      %v903 = vpack.c.b16 %v870, %v867
      %v904 = vpack.c.b16 %v871, %v868
      %v905 = vpack.c.b16 %v875, %v872
      %v906 = vpack.c.b16 %v876, %v873
      %v907 = vpack.c.b16 %v877, %v874
      %v908 = vpack.c.b16 %v881, %v878
      %v909 = vpack.c.b16 %v882, %v879
      %v910 = vpack.c.b16 %v883, %v880
      %v911 = vpack.c.b16 %v887, %v884
      %v912 = vpack.c.b16 %v888, %v885
      %v913 = vpack.c.b16 %v889, %v886
      %938 = vmatprep.subr.bf16.mxu0 %v891
      %939 = vmatpush1.bf16.msra.mxu0 %v890
      %940 = vmatprep.subr.bf16.mxu0 %v894
      %941 = vmatpush1.bf16.msra.mxu0 %v893
      %942 = vmatprep.subr.bf16.mxu0 %v897
      %943 = vmatpush1.bf16.msra.mxu0 %v896
      %944 = vmatprep.subr.bf16.mxu0 %v900
      %945 = vmatpush1.bf16.msra.mxu0 %v899
      %946 = vmatprep.subr.bf16.mxu0 %v903
      %947 = vmatpush1.bf16.msra.mxu0 %v902
      %948 = vmatprep.subr.bf16.mxu0 %v906
      %949 = vmatpush1.bf16.msra.mxu0 %v905
      %950 = vmatprep.subr.bf16.mxu0 %v909
      %951 = vmatpush1.bf16.msra.mxu0 %v908
      %952 = vmatprep.subr.bf16.mxu0 %v912
      %953 = vmatpush1.bf16.msra.mxu0 %v911
      %954 = vmatprep.subr.bf16.mxu0 0
      %955 = vmatpush1.bf16.msra.mxu0 0
      %956 = vmatprep.subr.bf16.mxu0 0
      %957 = vmatpush1.bf16.msra.mxu0 0
      %958 = vmatprep.subr.bf16.mxu0 0
      %959 = vmatpush1.bf16.msra.mxu0 0
      %960 = vmatprep.subr.bf16.mxu0 0
      %961 = vmatpush1.bf16.msra.mxu0 0
      %962 = vmatprep.subr.bf16.mxu0 0
      %963 = vmatpush1.bf16.msra.mxu0 0
      %964 = vmatprep.subr.bf16.mxu0 0
      %965 = vmatpush1.bf16.msra.mxu0 0
      %966 = vmatprep.subr.bf16.mxu0 0
      %967 = vmatpush1.bf16.msra.mxu0 0
      %968 = vmatprep.subr.bf16.mxu0 0
      %969 = vmatpush1.bf16.msra.mxu0 0
      %970 = vmatprep.mubr.bf16.mxu0 0
      %971 = vmatmul.mubr.bf16.gmra.mrb[0].mxu0 %v770
      %v972 = vpop.f32.mrb[0].mxu0
      %v973 = vadd.f32 0.0, %v972
      %v974 = vpop.f32.mrb[0].mxu0
      %v975 = vadd.f32 0.0, %v974
      %v976 = vpop.f32.mrb[0].mxu0
      %v977 = vadd.f32 0.0, %v976
      %v978 = vpop.f32.mrb[0].mxu0
      %v979 = vadd.f32 0.0, %v978
      %980 = vmatprep.mubr.bf16.mxu0 0
      %981 = vmatmul.mubr.bf16.gmra.mrb[0].mxu0 %v771
      %v982 = vpop.f32.mrb[0].mxu0
      %v983 = vadd.f32 0.0, %v982
      %v984 = vpop.f32.mrb[0].mxu0
      %v985 = vadd.f32 0.0, %v984
      %v986 = vpop.f32.mrb[0].mxu0
      %v987 = vadd.f32 0.0, %v986
      %v988 = vpop.f32.mrb[0].mxu0
      %v989 = vadd.f32 0.0, %v988
      %990 = vmatprep.mubr.bf16.mxu0 0
      %991 = vmatmul.mubr.bf16.gmra.mrb[0].mxu0 %v772
      %v992 = vpop.f32.mrb[0].mxu0
      %v993 = vadd.f32 0.0, %v992
      %v994 = vpop.f32.mrb[0].mxu0
      %v995 = vadd.f32 0.0, %v994
      %v996 = vpop.f32.mrb[0].mxu0
      %v997 = vadd.f32 0.0, %v996
      %v998 = vpop.f32.mrb[0].mxu0
      %v999 = vadd.f32 0.0, %v998
      %1000 = vmatprep.mubr.bf16.mxu0 0
      %1001 = vmatmul.mubr.bf16.gmra.mrb[0].mxu0 %v773
      %v1002 = vpop.f32.mrb[0].mxu0
      %v1003 = vadd.f32 0.0, %v1002
      %v1004 = vpop.f32.mrb[0].mxu0
      %v1005 = vadd.f32 0.0, %v1004
      %v1006 = vpop.f32.mrb[0].mxu0
      %v1007 = vadd.f32 0.0, %v1006
      %v1008 = vpop.f32.mrb[0].mxu0
      %v1009 = vadd.f32 0.0, %v1008
      %1010 = vmatprep.mubr.bf16.mxu0 0
      %1011 = vmatmul.mubr.bf16.gmra.mrb[0].mxu0 %v774
      %v1012 = vpop.f32.mrb[0].mxu0
      %v1013 = vadd.f32 0.0, %v1012
      %v1014 = vpop.f32.mrb[0].mxu0
      %v1015 = vadd.f32 0.0, %v1014
      %v1016 = vpop.f32.mrb[0].mxu0
      %v1017 = vadd.f32 0.0, %v1016
      %v1018 = vpop.f32.mrb[0].mxu0
      %v1019 = vadd.f32 0.0, %v1018
      %1020 = vmatprep.mubr.bf16.mxu0 0
      %1021 = vmatmul.mubr.bf16.gmra.mrb[0].mxu0 %v775
      %v1022 = vpop.f32.mrb[0].mxu0
      %v1023 = vadd.f32 0.0, %v1022
      %v1024 = vpop.f32.mrb[0].mxu0
      %v1025 = vadd.f32 0.0, %v1024
      %v1026 = vpop.f32.mrb[0].mxu0
      %v1027 = vadd.f32 0.0, %v1026
      %v1028 = vpop.f32.mrb[0].mxu0
      %v1029 = vadd.f32 0.0, %v1028
      %1030 = vmatprep.mubr.bf16.mxu0 0
      %1031 = vmatmul.mubr.bf16.gmra.mrb[0].mxu0 %v776
      %v1032 = vpop.f32.mrb[0].mxu0
      %v1033 = vadd.f32 0.0, %v1032
      %v1034 = vpop.f32.mrb[0].mxu0
      %v1035 = vadd.f32 0.0, %v1034
      %v1036 = vpop.f32.mrb[0].mxu0
      %v1037 = vadd.f32 0.0, %v1036
      %v1038 = vpop.f32.mrb[0].mxu0
      %v1039 = vadd.f32 0.0, %v1038
      %1040 = vmatprep.mubr.bf16.mxu0 0
      %1041 = vmatmul.mubr.bf16.gmra.mrb[0].mxu0 %v777
      %v1042 = vpop.f32.mrb[0].mxu0
      %v1043 = vadd.f32 0.0, %v1042
      %v1044 = vpop.f32.mrb[0].mxu0
      %v1045 = vadd.f32 0.0, %v1044
      %v1046 = vpop.f32.mrb[0].mxu0
      %v1047 = vadd.f32 0.0, %v1046
      %v1048 = vpop.f32.mrb[0].mxu0
      %v1049 = vadd.f32 0.0, %v1048
      %1050 = vdwg.mxu0
      %1051 = vmatprep.subr.bf16.mxu0 0
      %1052 = vmatpush1.bf16.msra.mxu0 %v892
      %1053 = vmatprep.subr.bf16.mxu0 0
      %1054 = vmatpush1.bf16.msra.mxu0 %v895
      %1055 = vmatprep.subr.bf16.mxu0 0
      %1056 = vmatpush1.bf16.msra.mxu0 %v898
      %1057 = vmatprep.subr.bf16.mxu0 0
      %1058 = vmatpush1.bf16.msra.mxu0 %v901
      %1059 = vmatprep.subr.bf16.mxu0 0
      %1060 = vmatpush1.bf16.msra.mxu0 %v904
      %1061 = vmatprep.subr.bf16.mxu0 0
      %1062 = vmatpush1.bf16.msra.mxu0 %v907
      %1063 = vmatprep.subr.bf16.mxu0 0
      %1064 = vmatpush1.bf16.msra.mxu0 %v910
      %1065 = vmatprep.subr.bf16.mxu0 0
      %1066 = vmatpush1.bf16.msra.mxu0 %v913
      %1067 = vmatprep.subr.bf16.mxu0 0
      %1068 = vmatpush1.bf16.msra.mxu0 0
      %1069 = vmatprep.subr.bf16.mxu0 0
      %1070 = vmatpush1.bf16.msra.mxu0 0
      %1071 = vmatprep.subr.bf16.mxu0 0
      %1072 = vmatpush1.bf16.msra.mxu0 0
      %1073 = vmatprep.subr.bf16.mxu0 0
      %1074 = vmatpush1.bf16.msra.mxu0 0
      %1075 = vmatprep.subr.bf16.mxu0 0
      %1076 = vmatpush1.bf16.msra.mxu0 0
      %1077 = vmatprep.subr.bf16.mxu0 0
      %1078 = vmatpush1.bf16.msra.mxu0 0
      %1079 = vmatprep.subr.bf16.mxu0 0
      %1080 = vmatpush1.bf16.msra.mxu0 0
      %1081 = vmatprep.subr.bf16.mxu0 0
      %1082 = vmatpush1.bf16.msra.mxu0 0
      %1083 = vmatprep.mubr.bf16.mxu0 0
      %1084 = vmatmul.mubr.bf16.gmra.mrb[0].mxu0 %v770
      %v1085 = vpop.f32.mrb[0].mxu0
      %v1086 = vadd.f32 0.0, %v1085
      %v1087 = vpop.f32.mrb[0].mxu0
      %v1088 = vpop.f32.mrb[0].mxu0
      %v1089 = vadd.f32 0.0, %v1088
      %v1090 = vpop.f32.mrb[0].mxu0
      %1091 = vmatprep.mubr.bf16.mxu0 0
      %1092 = vmatmul.mubr.bf16.gmra.mrb[0].mxu0 %v771
      %v1093 = vpop.f32.mrb[0].mxu0
      %v1094 = vadd.f32 0.0, %v1093
      %v1095 = vpop.f32.mrb[0].mxu0
      %v1096 = vpop.f32.mrb[0].mxu0
      %v1097 = vadd.f32 0.0, %v1096
      %v1098 = vpop.f32.mrb[0].mxu0
      %1099 = vmatprep.mubr.bf16.mxu0 0
      %1100 = vmatmul.mubr.bf16.gmra.mrb[0].mxu0 %v772
      %v1101 = vpop.f32.mrb[0].mxu0
      %v1102 = vadd.f32 0.0, %v1101
      %v1103 = vpop.f32.mrb[0].mxu0
      %v1104 = vpop.f32.mrb[0].mxu0
      %v1105 = vadd.f32 0.0, %v1104
      %v1106 = vpop.f32.mrb[0].mxu0
      %1107 = vmatprep.mubr.bf16.mxu0 0
      %1108 = vmatmul.mubr.bf16.gmra.mrb[0].mxu0 %v773
      %v1109 = vpop.f32.mrb[0].mxu0
      %v1110 = vadd.f32 0.0, %v1109
      %v1111 = vpop.f32.mrb[0].mxu0
      %v1112 = vpop.f32.mrb[0].mxu0
      %v1113 = vadd.f32 0.0, %v1112
      %v1114 = vpop.f32.mrb[0].mxu0
      %1115 = vmatprep.mubr.bf16.mxu0 0
      %1116 = vmatmul.mubr.bf16.gmra.mrb[0].mxu0 %v774
      %v1117 = vpop.f32.mrb[0].mxu0
      %v1118 = vadd.f32 0.0, %v1117
      %v1119 = vpop.f32.mrb[0].mxu0
      %v1120 = vpop.f32.mrb[0].mxu0
      %v1121 = vadd.f32 0.0, %v1120
      %v1122 = vpop.f32.mrb[0].mxu0
      %1123 = vmatprep.mubr.bf16.mxu0 0
      %1124 = vmatmul.mubr.bf16.gmra.mrb[0].mxu0 %v775
      %v1125 = vpop.f32.mrb[0].mxu0
      %v1126 = vadd.f32 0.0, %v1125
      %v1127 = vpop.f32.mrb[0].mxu0
      %v1128 = vpop.f32.mrb[0].mxu0
      %v1129 = vadd.f32 0.0, %v1128
      %v1130 = vpop.f32.mrb[0].mxu0
      %1131 = vmatprep.mubr.bf16.mxu0 0
      %1132 = vmatmul.mubr.bf16.gmra.mrb[0].mxu0 %v776
      %v1133 = vpop.f32.mrb[0].mxu0
      %v1134 = vadd.f32 0.0, %v1133
      %v1135 = vpop.f32.mrb[0].mxu0
      %v1136 = vpop.f32.mrb[0].mxu0
      %v1137 = vadd.f32 0.0, %v1136
      %v1138 = vpop.f32.mrb[0].mxu0
      %1139 = vmatprep.mubr.bf16.mxu0 0
      %1140 = vmatmul.mubr.bf16.gmra.mrb[0].mxu0 %v777
      %v1141 = vpop.f32.mrb[0].mxu0
      %v1142 = vadd.f32 0.0, %v1141
      %v1143 = vpop.f32.mrb[0].mxu0
      %v1144 = vpop.f32.mrb[0].mxu0
      %v1145 = vadd.f32 0.0, %v1144
      %v1146 = vpop.f32.mrb[0].mxu0
      %1147 = vdwg.mxu0
      %v1148 = vld [vmem:[%s5] sm:$0xff]
      %v1149 = vld [vmem:[%s5 + $0x8] sm:$0xff]
      %v1150 = vld [vmem:[%s5 + $0x10] sm:$0xff]
      %v1151 = vld [vmem:[%s5 + $0x18] sm:$0xff]
      %v1156 = vunpack.c.l.b16 %v1148
      %v1157 = vunpack.c.h.b16 %v1148
      %v1158 = vunpack.c.l.b16 %v1149
      %v1159 = vunpack.c.h.b16 %v1149
      %v1160 = vunpack.c.l.b16 %v1150
      %v1161 = vunpack.c.h.b16 %v1150
      %v1162 = vunpack.c.l.b16 %v1151
      %v1163 = vunpack.c.h.b16 %v1151
      %v1164 = vpack.c.b16 %v1158, %v1156
      %v1165 = vpack.c.b16 %v1159, %v1157
      %v1166 = vpack.c.b16 %v1162, %v1160
      %v1167 = vpack.c.b16 %v1163, %v1161
      %vm1172 = vcmask 261120
      %v1174 = vsel %vm1172, %v513, 0
      %v1177 = vsel %vm1172, %v514, 0
      %v1180 = vsel %vm1172, %v515, 0
      %v1183 = vsel %vm1172, %v516, 0
      %v1186 = vsel %vm1172, %v517, 0
      %v1189 = vsel %vm1172, %v518, 0
      %v1192 = vsel %vm1172, %v519, 0
      %v1195 = vsel %vm1172, %v520, 0
      %1197 = vmatprep.subr.bf16.mxu0 %v1165
      %1198 = vmatpush1.bf16.msra.mxu0 %v1164
      %1199 = vmatprep.subr.bf16.mxu0 %v1167
      %1200 = vmatpush1.bf16.msra.mxu0 %v1166
      %1201 = vmatprep.subr.bf16.mxu0 0
      %1202 = vmatpush1.bf16.msra.mxu0 0
      %1203 = vmatprep.subr.bf16.mxu0 0
      %1204 = vmatpush1.bf16.msra.mxu0 0
      %1205 = vmatprep.subr.bf16.mxu0 0
      %1206 = vmatpush1.bf16.msra.mxu0 0
      %1207 = vmatprep.subr.bf16.mxu0 0
      %1208 = vmatpush1.bf16.msra.mxu0 0
      %1209 = vmatprep.subr.bf16.mxu0 0
      %1210 = vmatpush1.bf16.msra.mxu0 0
      %1211 = vmatprep.subr.bf16.mxu0 0
      %1212 = vmatpush1.bf16.msra.mxu0 0
      %1213 = vmatprep.subr.bf16.mxu0 0
      %1214 = vmatpush1.bf16.msra.mxu0 0
      %1215 = vmatprep.subr.bf16.mxu0 0
      %1216 = vmatpush1.bf16.msra.mxu0 0
      %1217 = vmatprep.subr.bf16.mxu0 0
      %1218 = vmatpush1.bf16.msra.mxu0 0
      %1219 = vmatprep.subr.bf16.mxu0 0
      %1220 = vmatpush1.bf16.msra.mxu0 0
      %1221 = vmatprep.subr.bf16.mxu0 0
      %1222 = vmatpush1.bf16.msra.mxu0 0
      %1223 = vmatprep.subr.bf16.mxu0 0
      %1224 = vmatpush1.bf16.msra.mxu0 0
      %1225 = vmatprep.subr.bf16.mxu0 0
      %1226 = vmatpush1.bf16.msra.mxu0 0
      %1227 = vmatprep.subr.bf16.mxu0 0
      %1228 = vmatpush1.bf16.msra.mxu0 0
      %1229 = vmatprep.mubr.bf16.mxu0 0
      %1230 = vmatmul.mubr.bf16.gmra.mrb[0].mxu0 %v1174
      %v1231 = vpop.f32.mrb[0].mxu0
      %v1232 = vadd.f32 0.0, %v1231
      %v1233 = vpop.f32.mrb[0].mxu0
      %v1234 = vadd.f32 0.0, %v1233
      %v1235 = vpop.f32.mrb[0].mxu0
      %v1236 = vadd.f32 0.0, %v1235
      %v1237 = vpop.f32.mrb[0].mxu0
      %v1238 = vadd.f32 0.0, %v1237
      %1239 = vmatprep.mubr.bf16.mxu0 0
      %1240 = vmatmul.mubr.bf16.gmra.mrb[0].mxu0 %v1177
      %v1241 = vpop.f32.mrb[0].mxu0
      %v1242 = vadd.f32 0.0, %v1241
      %v1243 = vpop.f32.mrb[0].mxu0
      %v1244 = vadd.f32 0.0, %v1243
      %v1245 = vpop.f32.mrb[0].mxu0
      %v1246 = vadd.f32 0.0, %v1245
      %v1247 = vpop.f32.mrb[0].mxu0
      %v1248 = vadd.f32 0.0, %v1247
      %1249 = vmatprep.mubr.bf16.mxu0 0
      %1250 = vmatmul.mubr.bf16.gmra.mrb[0].mxu0 %v1180
      %v1251 = vpop.f32.mrb[0].mxu0
      %v1252 = vadd.f32 0.0, %v1251
      %v1253 = vpop.f32.mrb[0].mxu0
      %v1254 = vadd.f32 0.0, %v1253
      %v1255 = vpop.f32.mrb[0].mxu0
      %v1256 = vadd.f32 0.0, %v1255
      %v1257 = vpop.f32.mrb[0].mxu0
      %v1258 = vadd.f32 0.0, %v1257
      %1259 = vmatprep.mubr.bf16.mxu0 0
      %1260 = vmatmul.mubr.bf16.gmra.mrb[0].mxu0 %v1183
      %v1261 = vpop.f32.mrb[0].mxu0
      %v1262 = vadd.f32 0.0, %v1261
      %v1263 = vpop.f32.mrb[0].mxu0
      %v1264 = vadd.f32 0.0, %v1263
      %v1265 = vpop.f32.mrb[0].mxu0
      %v1266 = vadd.f32 0.0, %v1265
      %v1267 = vpop.f32.mrb[0].mxu0
      %v1268 = vadd.f32 0.0, %v1267
      %1269 = vmatprep.mubr.bf16.mxu0 0
      %1270 = vmatmul.mubr.bf16.gmra.mrb[0].mxu0 %v1186
      %v1271 = vpop.f32.mrb[0].mxu0
      %v1272 = vadd.f32 0.0, %v1271
      %v1273 = vpop.f32.mrb[0].mxu0
      %v1274 = vadd.f32 0.0, %v1273
      %v1275 = vpop.f32.mrb[0].mxu0
      %v1276 = vadd.f32 0.0, %v1275
      %v1277 = vpop.f32.mrb[0].mxu0
      %v1278 = vadd.f32 0.0, %v1277
      %1279 = vmatprep.mubr.bf16.mxu0 0
      %1280 = vmatmul.mubr.bf16.gmra.mrb[0].mxu0 %v1189
      %v1281 = vpop.f32.mrb[0].mxu0
      %v1282 = vadd.f32 0.0, %v1281
      %v1283 = vpop.f32.mrb[0].mxu0
      %v1284 = vadd.f32 0.0, %v1283
      %v1285 = vpop.f32.mrb[0].mxu0
      %v1286 = vadd.f32 0.0, %v1285
      %v1287 = vpop.f32.mrb[0].mxu0
      %v1288 = vadd.f32 0.0, %v1287
      %1289 = vmatprep.mubr.bf16.mxu0 0
      %1290 = vmatmul.mubr.bf16.gmra.mrb[0].mxu0 %v1192
      %v1291 = vpop.f32.mrb[0].mxu0
      %v1292 = vadd.f32 0.0, %v1291
      %v1293 = vpop.f32.mrb[0].mxu0
      %v1294 = vadd.f32 0.0, %v1293
      %v1295 = vpop.f32.mrb[0].mxu0
      %v1296 = vadd.f32 0.0, %v1295
      %v1297 = vpop.f32.mrb[0].mxu0
      %v1298 = vadd.f32 0.0, %v1297
      %1299 = vmatprep.mubr.bf16.mxu0 0
      %1300 = vmatmul.mubr.bf16.gmra.mrb[0].mxu0 %v1195
      %v1301 = vpop.f32.mrb[0].mxu0
      %v1302 = vadd.f32 0.0, %v1301
      %v1303 = vpop.f32.mrb[0].mxu0
      %v1304 = vadd.f32 0.0, %v1303
      %v1305 = vpop.f32.mrb[0].mxu0
      %v1306 = vadd.f32 0.0, %v1305
      %v1307 = vpop.f32.mrb[0].mxu0
      %v1308 = vadd.f32 0.0, %v1307
      %1309 = vdwg.mxu0
      %v1310 = vld [vmem:[%s6] sm:$0xf]
      %v1311 = vld [vmem:[%s6 + $0x4] sm:$0xf]
      %v1312 = vld [vmem:[%s6 + $0x8] sm:$0xf]
      %v1313 = vld [vmem:[%s6 + $0xc] sm:$0xf]
      %v1314 = vld [vmem:[%s6 + $0x10] sm:$0xf]
      %v1315 = vld [vmem:[%s6 + $0x14] sm:$0xf]
      %v1316 = vld [vmem:[%s6 + $0x18] sm:$0xf]
      %v1317 = vld [vmem:[%s6 + $0x1c] sm:$0xf]
      %v1318 = vld [vmem:[%s6 + $0x20] sm:$0xf]
      %v1319 = vld [vmem:[%s6 + $0x24] sm:$0xf]
      %v1320 = vld [vmem:[%s6 + $0x28] sm:$0xf]
      %v1321 = vld [vmem:[%s6 + $0x2c] sm:$0xf]
      %v1322 = vld [vmem:[%s6 + $0x30] sm:$0xf]
      %v1323 = vld [vmem:[%s6 + $0x34] sm:$0xf]
      %v1324 = vld [vmem:[%s6 + $0x38] sm:$0xf]
      %v1325 = vld [vmem:[%s6 + $0x3c] sm:$0xf]
      %v1326 = vld [vmem:[%s7] sm:$0xf]
      %v1327 = vld [vmem:[%s7 + $0x4] sm:$0xf]
      %v1328 = vld [vmem:[%s7 + $0x8] sm:$0xf]
      %v1329 = vld [vmem:[%s7 + $0xc] sm:$0xf]
      %v1334 = vunpack.c.l.b16 %v1326
      %v1335 = vunpack.c.l.b16 %v1327
      %v1336 = vunpack.c.l.b16 %v1328
      %v1337 = vunpack.c.l.b16 %v1329
      %v1338 = vpack.c.b16 %v1335, %v1334
      %v1339 = vpack.c.b16 %v1337, %v1336
      %1342 = vmatprep.subr.bf16.mxu0 0
      %1343 = vmatpush1.bf16.msra.mxu0 %v1338
      %1344 = vmatprep.subr.bf16.mxu0 0
      %1345 = vmatpush1.bf16.msra.mxu0 %v1339
      %1346 = vmatprep.subr.bf16.mxu0 0
      %1347 = vmatpush1.bf16.msra.mxu0 0
      %1348 = vmatprep.subr.bf16.mxu0 0
      %1349 = vmatpush1.bf16.msra.mxu0 0
      %1350 = vmatprep.subr.bf16.mxu0 0
      %1351 = vmatpush1.bf16.msra.mxu0 0
      %1352 = vmatprep.subr.bf16.mxu0 0
      %1353 = vmatpush1.bf16.msra.mxu0 0
      %1354 = vmatprep.subr.bf16.mxu0 0
      %1355 = vmatpush1.bf16.msra.mxu0 0
      %1356 = vmatprep.subr.bf16.mxu0 0
      %1357 = vmatpush1.bf16.msra.mxu0 0
      %1358 = vmatprep.subr.bf16.mxu0 0
      %1359 = vmatpush1.bf16.msra.mxu0 0
      %1360 = vmatprep.subr.bf16.mxu0 0
      %1361 = vmatpush1.bf16.msra.mxu0 0
      %1362 = vmatprep.subr.bf16.mxu0 0
      %1363 = vmatpush1.bf16.msra.mxu0 0
      %1364 = vmatprep.subr.bf16.mxu0 0
      %1365 = vmatpush1.bf16.msra.mxu0 0
      %1366 = vmatprep.subr.bf16.mxu0 0
      %1367 = vmatpush1.bf16.msra.mxu0 0
      %1368 = vmatprep.subr.bf16.mxu0 0
      %1369 = vmatpush1.bf16.msra.mxu0 0
      %1370 = vmatprep.subr.bf16.mxu0 0
      %1371 = vmatpush1.bf16.msra.mxu0 0
      %1372 = vmatprep.subr.bf16.mxu0 0
      %1373 = vmatpush1.bf16.msra.mxu0 0
      %1374 = vmatprep.mubr.bf16.mxu0 0
      %1375 = vmatmul.mubr.bf16.gmra.mrb[0].mxu0 %v1174
      %v1376 = vpop.f32.mrb[0].mxu0
      %v1377 = vadd.f32 0.0, %v1376
      %v1378 = vpop.f32.mrb[0].mxu0
      %v1379 = vpop.f32.mrb[0].mxu0
      %v1380 = vadd.f32 0.0, %v1379
      %v1381 = vpop.f32.mrb[0].mxu0
      %1382 = vmatprep.mubr.bf16.mxu0 0
      %1383 = vmatmul.mubr.bf16.gmra.mrb[0].mxu0 %v1177
      %v1384 = vpop.f32.mrb[0].mxu0
      %v1385 = vadd.f32 0.0, %v1384
      %v1386 = vpop.f32.mrb[0].mxu0
      %v1387 = vpop.f32.mrb[0].mxu0
      %v1388 = vadd.f32 0.0, %v1387
      %v1389 = vpop.f32.mrb[0].mxu0
      %1390 = vmatprep.mubr.bf16.mxu0 0
      %1391 = vmatmul.mubr.bf16.gmra.mrb[0].mxu0 %v1180
      %v1392 = vpop.f32.mrb[0].mxu0
      %v1393 = vadd.f32 0.0, %v1392
      %v1394 = vpop.f32.mrb[0].mxu0
      %v1395 = vpop.f32.mrb[0].mxu0
      %v1396 = vadd.f32 0.0, %v1395
      %v1397 = vpop.f32.mrb[0].mxu0
      %1398 = vmatprep.mubr.bf16.mxu0 0
      %1399 = vmatmul.mubr.bf16.gmra.mrb[0].mxu0 %v1183
      %v1400 = vpop.f32.mrb[0].mxu0
      %v1401 = vadd.f32 0.0, %v1400
      %v1402 = vpop.f32.mrb[0].mxu0
      %v1403 = vpop.f32.mrb[0].mxu0
      %v1404 = vadd.f32 0.0, %v1403
      %v1405 = vpop.f32.mrb[0].mxu0
      %1406 = vmatprep.mubr.bf16.mxu0 0
      %1407 = vmatmul.mubr.bf16.gmra.mrb[0].mxu0 %v1186
      %v1408 = vpop.f32.mrb[0].mxu0
      %v1409 = vadd.f32 0.0, %v1408
      %v1410 = vpop.f32.mrb[0].mxu0
      %v1411 = vpop.f32.mrb[0].mxu0
      %v1412 = vadd.f32 0.0, %v1411
      %v1413 = vpop.f32.mrb[0].mxu0
      %1414 = vmatprep.mubr.bf16.mxu0 0
      %1415 = vmatmul.mubr.bf16.gmra.mrb[0].mxu0 %v1189
      %v1416 = vpop.f32.mrb[0].mxu0
      %v1417 = vadd.f32 0.0, %v1416
      %v1418 = vpop.f32.mrb[0].mxu0
      %v1419 = vpop.f32.mrb[0].mxu0
      %v1420 = vadd.f32 0.0, %v1419
      %v1421 = vpop.f32.mrb[0].mxu0
      %1422 = vmatprep.mubr.bf16.mxu0 0
      %1423 = vmatmul.mubr.bf16.gmra.mrb[0].mxu0 %v1192
      %v1424 = vpop.f32.mrb[0].mxu0
      %v1425 = vadd.f32 0.0, %v1424
      %v1426 = vpop.f32.mrb[0].mxu0
      %v1427 = vpop.f32.mrb[0].mxu0
      %v1428 = vadd.f32 0.0, %v1427
      %v1429 = vpop.f32.mrb[0].mxu0
      %1430 = vmatprep.mubr.bf16.mxu0 0
      %1431 = vmatmul.mubr.bf16.gmra.mrb[0].mxu0 %v1195
      %v1432 = vpop.f32.mrb[0].mxu0
      %v1433 = vadd.f32 0.0, %v1432
      %v1434 = vpop.f32.mrb[0].mxu0
      %v1435 = vpop.f32.mrb[0].mxu0
      %v1436 = vadd.f32 0.0, %v1435
      %v1437 = vpop.f32.mrb[0].mxu0
      %1438 = vdwg.mxu0
      %v1455 = vunpack.c.l.b16 %v1310
      %v1456 = vunpack.c.l.b16 %v1311
      %v1457 = vunpack.c.l.b16 %v1312
      %v1458 = vunpack.c.l.b16 %v1313
      %v1459 = vunpack.c.l.b16 %v1314
      %v1460 = vunpack.c.l.b16 %v1315
      %v1461 = vunpack.c.l.b16 %v1316
      %v1462 = vunpack.c.l.b16 %v1317
      %v1463 = vunpack.c.l.b16 %v1318
      %v1464 = vunpack.c.l.b16 %v1319
      %v1465 = vunpack.c.l.b16 %v1320
      %v1466 = vunpack.c.l.b16 %v1321
      %v1467 = vunpack.c.l.b16 %v1322
      %v1468 = vunpack.c.l.b16 %v1323
      %v1469 = vunpack.c.l.b16 %v1324
      %v1470 = vunpack.c.l.b16 %v1325
      %v1471 = vpack.c.b16 %v1456, %v1455
      %v1472 = vpack.c.b16 %v1458, %v1457
      %v1473 = vpack.c.b16 %v1460, %v1459
      %v1474 = vpack.c.b16 %v1462, %v1461
      %v1475 = vpack.c.b16 %v1464, %v1463
      %v1476 = vpack.c.b16 %v1466, %v1465
      %v1477 = vpack.c.b16 %v1468, %v1467
      %v1478 = vpack.c.b16 %v1470, %v1469
      %1487 = vmatprep.subr.bf16.mxu0 0
      %1488 = vmatpush1.bf16.msra.mxu0 %v1471
      %1489 = vmatprep.subr.bf16.mxu0 0
      %1490 = vmatpush1.bf16.msra.mxu0 %v1472
      %1491 = vmatprep.subr.bf16.mxu0 0
      %1492 = vmatpush1.bf16.msra.mxu0 %v1473
      %1493 = vmatprep.subr.bf16.mxu0 0
      %1494 = vmatpush1.bf16.msra.mxu0 %v1474
      %1495 = vmatprep.subr.bf16.mxu0 0
      %1496 = vmatpush1.bf16.msra.mxu0 %v1475
      %1497 = vmatprep.subr.bf16.mxu0 0
      %1498 = vmatpush1.bf16.msra.mxu0 %v1476
      %1499 = vmatprep.subr.bf16.mxu0 0
      %1500 = vmatpush1.bf16.msra.mxu0 %v1477
      %1501 = vmatprep.subr.bf16.mxu0 0
      %1502 = vmatpush1.bf16.msra.mxu0 %v1478
      %1503 = vmatprep.subr.bf16.mxu0 0
      %1504 = vmatpush1.bf16.msra.mxu0 0
      %1505 = vmatprep.subr.bf16.mxu0 0
      %1506 = vmatpush1.bf16.msra.mxu0 0
      %1507 = vmatprep.subr.bf16.mxu0 0
      %1508 = vmatpush1.bf16.msra.mxu0 0
      %1509 = vmatprep.subr.bf16.mxu0 0
      %1510 = vmatpush1.bf16.msra.mxu0 0
      %1511 = vmatprep.subr.bf16.mxu0 0
      %1512 = vmatpush1.bf16.msra.mxu0 0
      %1513 = vmatprep.subr.bf16.mxu0 0
      %1514 = vmatpush1.bf16.msra.mxu0 0
      %1515 = vmatprep.subr.bf16.mxu0 0
      %1516 = vmatpush1.bf16.msra.mxu0 0
      %1517 = vmatprep.subr.bf16.mxu0 0
      %1518 = vmatpush1.bf16.msra.mxu0 0
      %1519 = vmatprep.mubr.bf16.mxu0 0
      %1520 = vmatmul.mubr.bf16.gmra.mrb[0].mxu0 %v770
      %v1521 = vpop.f32.mrb[0].mxu0
      %v1522 = vadd.f32 %v1377, %v1521
      %v1523 = vpop.f32.mrb[0].mxu0
      %v1524 = vpop.f32.mrb[0].mxu0
      %v1525 = vadd.f32 %v1380, %v1524
      %v1526 = vpop.f32.mrb[0].mxu0
      %1527 = vmatprep.mubr.bf16.mxu0 0
      %1528 = vmatmul.mubr.bf16.gmra.mrb[0].mxu0 %v771
      %v1529 = vpop.f32.mrb[0].mxu0
      %v1530 = vadd.f32 %v1385, %v1529
      %v1531 = vpop.f32.mrb[0].mxu0
      %v1532 = vpop.f32.mrb[0].mxu0
      %v1533 = vadd.f32 %v1388, %v1532
      %v1534 = vpop.f32.mrb[0].mxu0
      %1535 = vmatprep.mubr.bf16.mxu0 0
      %1536 = vmatmul.mubr.bf16.gmra.mrb[0].mxu0 %v772
      %v1537 = vpop.f32.mrb[0].mxu0
      %v1538 = vadd.f32 %v1393, %v1537
      %v1539 = vpop.f32.mrb[0].mxu0
      %v1540 = vpop.f32.mrb[0].mxu0
      %v1541 = vadd.f32 %v1396, %v1540
      %v1542 = vpop.f32.mrb[0].mxu0
      %1543 = vmatprep.mubr.bf16.mxu0 0
      %1544 = vmatmul.mubr.bf16.gmra.mrb[0].mxu0 %v773
      %v1545 = vpop.f32.mrb[0].mxu0
      %v1546 = vadd.f32 %v1401, %v1545
      %v1547 = vpop.f32.mrb[0].mxu0
      %v1548 = vpop.f32.mrb[0].mxu0
      %v1549 = vadd.f32 %v1404, %v1548
      %v1550 = vpop.f32.mrb[0].mxu0
      %1551 = vmatprep.mubr.bf16.mxu0 0
      %1552 = vmatmul.mubr.bf16.gmra.mrb[0].mxu0 %v774
      %v1553 = vpop.f32.mrb[0].mxu0
      %v1554 = vadd.f32 %v1409, %v1553
      %v1555 = vpop.f32.mrb[0].mxu0
      %v1556 = vpop.f32.mrb[0].mxu0
      %v1557 = vadd.f32 %v1412, %v1556
      %v1558 = vpop.f32.mrb[0].mxu0
      %1559 = vmatprep.mubr.bf16.mxu0 0
      %1560 = vmatmul.mubr.bf16.gmra.mrb[0].mxu0 %v775
      %v1561 = vpop.f32.mrb[0].mxu0
      %v1562 = vadd.f32 %v1417, %v1561
      %v1563 = vpop.f32.mrb[0].mxu0
      %v1564 = vpop.f32.mrb[0].mxu0
      %v1565 = vadd.f32 %v1420, %v1564
      %v1566 = vpop.f32.mrb[0].mxu0
      %1567 = vmatprep.mubr.bf16.mxu0 0
      %1568 = vmatmul.mubr.bf16.gmra.mrb[0].mxu0 %v776
      %v1569 = vpop.f32.mrb[0].mxu0
      %v1570 = vadd.f32 %v1425, %v1569
      %v1571 = vpop.f32.mrb[0].mxu0
      %v1572 = vpop.f32.mrb[0].mxu0
      %v1573 = vadd.f32 %v1428, %v1572
      %v1574 = vpop.f32.mrb[0].mxu0
      %1575 = vmatprep.mubr.bf16.mxu0 0
      %1576 = vmatmul.mubr.bf16.gmra.mrb[0].mxu0 %v777
      %v1577 = vpop.f32.mrb[0].mxu0
      %v1578 = vadd.f32 %v1433, %v1577
      %v1579 = vpop.f32.mrb[0].mxu0
      %v1580 = vpop.f32.mrb[0].mxu0
      %v1581 = vadd.f32 %v1436, %v1580
      %v1582 = vpop.f32.mrb[0].mxu0
      %1583 = vdwg.mxu0
      %v1584 = vxor.u32 %v1522, 2147483648
      %v1585 = vxor.u32 %v1525, 2147483648
      %v1586 = vxor.u32 %v1530, 2147483648
      %v1587 = vxor.u32 %v1533, 2147483648
      %v1588 = vxor.u32 %v1538, 2147483648
      %v1589 = vxor.u32 %v1541, 2147483648
      %v1590 = vxor.u32 %v1546, 2147483648
      %v1591 = vxor.u32 %v1549, 2147483648
      %v1592 = vxor.u32 %v1554, 2147483648
      %v1593 = vxor.u32 %v1557, 2147483648
      %v1594 = vxor.u32 %v1562, 2147483648
      %v1595 = vxor.u32 %v1565, 2147483648
      %v1596 = vxor.u32 %v1570, 2147483648
      %v1597 = vxor.u32 %v1573, 2147483648
      %v1598 = vxor.u32 %v1578, 2147483648
      %v1599 = vxor.u32 %v1581, 2147483648
      %v1600 = vmul.f32 %v1584, 1.442695
      %v1601 = vpow.pop %v1600
      %v1602 = vmul.f32 %v1585, 1.442695
      %v1603 = vpow.pop %v1602
      %v1604 = vmul.f32 %v1586, 1.442695
      %v1605 = vpow.pop %v1604
      %v1606 = vmul.f32 %v1587, 1.442695
      %v1607 = vpow.pop %v1606
      %v1608 = vmul.f32 %v1588, 1.442695
      %v1609 = vpow.pop %v1608
      %v1610 = vmul.f32 %v1589, 1.442695
      %v1611 = vpow.pop %v1610
      %v1612 = vmul.f32 %v1590, 1.442695
      %v1613 = vpow.pop %v1612
      %v1614 = vmul.f32 %v1591, 1.442695
      %v1615 = vpow.pop %v1614
      %v1616 = vmul.f32 %v1592, 1.442695
      %v1617 = vpow.pop %v1616
      %v1618 = vmul.f32 %v1593, 1.442695
      %v1619 = vpow.pop %v1618
      %v1620 = vmul.f32 %v1594, 1.442695
      %v1621 = vpow.pop %v1620
      %v1622 = vmul.f32 %v1595, 1.442695
      %v1623 = vpow.pop %v1622
      %v1624 = vmul.f32 %v1596, 1.442695
      %v1625 = vpow.pop %v1624
      %v1626 = vmul.f32 %v1597, 1.442695
      %v1627 = vpow.pop %v1626
      %v1628 = vmul.f32 %v1598, 1.442695
      %v1629 = vpow.pop %v1628
      %v1630 = vmul.f32 %v1599, 1.442695
      %v1631 = vpow.pop %v1630
      %v1632 = vadd.f32 %v1601, 1.0
      %v1633 = vadd.f32 %v1603, 1.0
      %v1634 = vadd.f32 %v1605, 1.0
      %v1635 = vadd.f32 %v1607, 1.0
      %v1636 = vadd.f32 %v1609, 1.0
      %v1637 = vadd.f32 %v1611, 1.0
      %v1638 = vadd.f32 %v1613, 1.0
      %v1639 = vadd.f32 %v1615, 1.0
      %v1640 = vadd.f32 %v1617, 1.0
      %v1641 = vadd.f32 %v1619, 1.0
      %v1642 = vadd.f32 %v1621, 1.0
      %v1643 = vadd.f32 %v1623, 1.0
      %v1644 = vadd.f32 %v1625, 1.0
      %v1645 = vadd.f32 %v1627, 1.0
      %v1646 = vadd.f32 %v1629, 1.0
      %v1647 = vadd.f32 %v1631, 1.0
      %v1648 = vrcp.pop %v1632
      %v1649 = vmul.f32 1.0, %v1648
      %v1650 = vrcp.pop %v1633
      %v1651 = vmul.f32 1.0, %v1650
      %v1652 = vrcp.pop %v1634
      %v1653 = vmul.f32 1.0, %v1652
      %v1654 = vrcp.pop %v1635
      %v1655 = vmul.f32 1.0, %v1654
      %v1656 = vrcp.pop %v1636
      %v1657 = vmul.f32 1.0, %v1656
      %v1658 = vrcp.pop %v1637
      %v1659 = vmul.f32 1.0, %v1658
      %v1660 = vrcp.pop %v1638
      %v1661 = vmul.f32 1.0, %v1660
      %v1662 = vrcp.pop %v1639
      %v1663 = vmul.f32 1.0, %v1662
      %v1664 = vrcp.pop %v1640
      %v1665 = vmul.f32 1.0, %v1664
      %v1666 = vrcp.pop %v1641
      %v1667 = vmul.f32 1.0, %v1666
      %v1668 = vrcp.pop %v1642
      %v1669 = vmul.f32 1.0, %v1668
      %v1670 = vrcp.pop %v1643
      %v1671 = vmul.f32 1.0, %v1670
      %v1672 = vrcp.pop %v1644
      %v1673 = vmul.f32 1.0, %v1672
      %v1674 = vrcp.pop %v1645
      %v1675 = vmul.f32 1.0, %v1674
      %v1676 = vrcp.pop %v1646
      %v1677 = vmul.f32 1.0, %v1676
      %v1678 = vrcp.pop %v1647
      %v1679 = vmul.f32 1.0, %v1678
      %v1680 = vld [vmem:[%s4] sm:$0x1]
      %v1682 = vlaneseq
      %v1683 = vshrl.u32 %v1682, 7
      %v1684 = vsub.s32 0, %v1683
      %v1685 = vrot.slane %v1680, %v1684
      %v1687 = vadd.f32 %v973, %v1685
      %v1688 = vadd.f32 %v977, %v1685
      %v1689 = vadd.f32 %v983, %v1685
      %v1690 = vadd.f32 %v987, %v1685
      %v1691 = vadd.f32 %v993, %v1685
      %v1692 = vadd.f32 %v997, %v1685
      %v1693 = vadd.f32 %v1003, %v1685
      %v1694 = vadd.f32 %v1007, %v1685
      %v1695 = vadd.f32 %v1013, %v1685
      %v1696 = vadd.f32 %v1017, %v1685
      %v1697 = vadd.f32 %v1023, %v1685
      %v1698 = vadd.f32 %v1027, %v1685
      %v1699 = vadd.f32 %v1033, %v1685
      %v1700 = vadd.f32 %v1037, %v1685
      %v1701 = vadd.f32 %v1043, %v1685
      %v1702 = vadd.f32 %v1047, %v1685
      %v1703 = vsub.f32 1.0, %v1649
      %v1704 = vsub.f32 1.0, %v1651
      %v1705 = vsub.f32 1.0, %v1653
      %v1706 = vsub.f32 1.0, %v1655
      %v1707 = vsub.f32 1.0, %v1657
      %v1708 = vsub.f32 1.0, %v1659
      %v1709 = vsub.f32 1.0, %v1661
      %v1710 = vsub.f32 1.0, %v1663
      %v1711 = vsub.f32 1.0, %v1665
      %v1712 = vsub.f32 1.0, %v1667
      %v1713 = vsub.f32 1.0, %v1669
      %v1714 = vsub.f32 1.0, %v1671
      %v1715 = vsub.f32 1.0, %v1673
      %v1716 = vsub.f32 1.0, %v1675
      %v1717 = vsub.f32 1.0, %v1677
      %v1718 = vsub.f32 1.0, %v1679
      %1720 = vset.pattern.permute.xlu0 0
      %1721 = vperm.xlu0 %1720, %v1703
      %v1722 = vpop.permute.xlu0 %1721
      %1725 = vset.pattern.permute.xlu0 0
      %1726 = vperm.xlu0 %1725, %v1704
      %v1727 = vpop.permute.xlu0 %1726
      %1730 = vset.pattern.permute.xlu0 0
      %1731 = vperm.xlu0 %1730, %v1705
      %v1732 = vpop.permute.xlu0 %1731
      %1735 = vset.pattern.permute.xlu0 0
      %1736 = vperm.xlu0 %1735, %v1706
      %v1737 = vpop.permute.xlu0 %1736
      %1740 = vset.pattern.permute.xlu0 0
      %1741 = vperm.xlu0 %1740, %v1707
      %v1742 = vpop.permute.xlu0 %1741
      %1745 = vset.pattern.permute.xlu0 0
      %1746 = vperm.xlu0 %1745, %v1708
      %v1747 = vpop.permute.xlu0 %1746
      %1750 = vset.pattern.permute.xlu0 0
      %1751 = vperm.xlu0 %1750, %v1709
      %v1752 = vpop.permute.xlu0 %1751
      %1755 = vset.pattern.permute.xlu0 0
      %1756 = vperm.xlu0 %1755, %v1710
      %v1757 = vpop.permute.xlu0 %1756
      %1760 = vset.pattern.permute.xlu0 0
      %1761 = vperm.xlu0 %1760, %v1711
      %v1762 = vpop.permute.xlu0 %1761
      %1765 = vset.pattern.permute.xlu0 0
      %1766 = vperm.xlu0 %1765, %v1712
      %v1767 = vpop.permute.xlu0 %1766
      %1770 = vset.pattern.permute.xlu0 0
      %1771 = vperm.xlu0 %1770, %v1713
      %v1772 = vpop.permute.xlu0 %1771
      %1775 = vset.pattern.permute.xlu0 0
      %1776 = vperm.xlu0 %1775, %v1714
      %v1777 = vpop.permute.xlu0 %1776
      %1780 = vset.pattern.permute.xlu0 0
      %1781 = vperm.xlu0 %1780, %v1715
      %v1782 = vpop.permute.xlu0 %1781
      %1785 = vset.pattern.permute.xlu0 0
      %1786 = vperm.xlu0 %1785, %v1716
      %v1787 = vpop.permute.xlu0 %1786
      %1790 = vset.pattern.permute.xlu0 0
      %1791 = vperm.xlu0 %1790, %v1717
      %v1792 = vpop.permute.xlu0 %1791
      %1795 = vset.pattern.permute.xlu0 0
      %1796 = vperm.xlu0 %1795, %v1718
      %v1797 = vpop.permute.xlu0 %1796
      %v1799 = vmul.f32 %v1722, %v975
      %v1800 = vmul.f32 %v1727, %v979
      %v1801 = vmul.f32 %v1732, %v985
      %v1802 = vmul.f32 %v1737, %v989
      %v1803 = vmul.f32 %v1742, %v995
      %v1804 = vmul.f32 %v1747, %v999
      %v1805 = vmul.f32 %v1752, %v1005
      %v1806 = vmul.f32 %v1757, %v1009
      %v1807 = vmul.f32 %v1762, %v1015
      %v1808 = vmul.f32 %v1767, %v1019
      %v1809 = vmul.f32 %v1772, %v1025
      %v1810 = vmul.f32 %v1777, %v1029
      %v1811 = vmul.f32 %v1782, %v1035
      %v1812 = vmul.f32 %v1787, %v1039
      %v1813 = vmul.f32 %v1792, %v1045
      %v1814 = vmul.f32 %v1797, %v1049
      %1816 = vset.pattern.permute.xlu0 0
      %1817 = vperm.xlu0 %1816, %v1649
      %v1818 = vpop.permute.xlu0 %1817
      %1821 = vset.pattern.permute.xlu0 0
      %1822 = vperm.xlu0 %1821, %v1651
      %v1823 = vpop.permute.xlu0 %1822
      %1826 = vset.pattern.permute.xlu0 0
      %1827 = vperm.xlu0 %1826, %v1653
      %v1828 = vpop.permute.xlu0 %1827
      %1831 = vset.pattern.permute.xlu0 0
      %1832 = vperm.xlu0 %1831, %v1655
      %v1833 = vpop.permute.xlu0 %1832
      %1836 = vset.pattern.permute.xlu0 0
      %1837 = vperm.xlu0 %1836, %v1657
      %v1838 = vpop.permute.xlu0 %1837
      %1841 = vset.pattern.permute.xlu0 0
      %1842 = vperm.xlu0 %1841, %v1659
      %v1843 = vpop.permute.xlu0 %1842
      %1846 = vset.pattern.permute.xlu0 0
      %1847 = vperm.xlu0 %1846, %v1661
      %v1848 = vpop.permute.xlu0 %1847
      %1851 = vset.pattern.permute.xlu0 0
      %1852 = vperm.xlu0 %1851, %v1663
      %v1853 = vpop.permute.xlu0 %1852
      %1856 = vset.pattern.permute.xlu0 0
      %1857 = vperm.xlu0 %1856, %v1665
      %v1858 = vpop.permute.xlu0 %1857
      %1861 = vset.pattern.permute.xlu0 0
      %1862 = vperm.xlu0 %1861, %v1667
      %v1863 = vpop.permute.xlu0 %1862
      %1866 = vset.pattern.permute.xlu0 0
      %1867 = vperm.xlu0 %1866, %v1669
      %v1868 = vpop.permute.xlu0 %1867
      %1871 = vset.pattern.permute.xlu0 0
      %1872 = vperm.xlu0 %1871, %v1671
      %v1873 = vpop.permute.xlu0 %1872
      %1876 = vset.pattern.permute.xlu0 0
      %1877 = vperm.xlu0 %1876, %v1673
      %v1878 = vpop.permute.xlu0 %1877
      %1881 = vset.pattern.permute.xlu0 0
      %1882 = vperm.xlu0 %1881, %v1675
      %v1883 = vpop.permute.xlu0 %1882
      %1886 = vset.pattern.permute.xlu0 0
      %1887 = vperm.xlu0 %1886, %v1677
      %v1888 = vpop.permute.xlu0 %1887
      %1891 = vset.pattern.permute.xlu0 0
      %1892 = vperm.xlu0 %1891, %v1679
      %v1893 = vpop.permute.xlu0 %1892
      %v1895 = vmul.f32 %v1818, %v1232
      %v1896 = vmul.f32 %v1823, %v1236
      %v1897 = vmul.f32 %v1828, %v1242
      %v1898 = vmul.f32 %v1833, %v1246
      %v1899 = vmul.f32 %v1838, %v1252
      %v1900 = vmul.f32 %v1843, %v1256
      %v1901 = vmul.f32 %v1848, %v1262
      %v1902 = vmul.f32 %v1853, %v1266
      %v1903 = vmul.f32 %v1858, %v1272
      %v1904 = vmul.f32 %v1863, %v1276
      %v1905 = vmul.f32 %v1868, %v1282
      %v1906 = vmul.f32 %v1873, %v1286
      %v1907 = vmul.f32 %v1878, %v1292
      %v1908 = vmul.f32 %v1883, %v1296
      %v1909 = vmul.f32 %v1888, %v1302
      %v1910 = vmul.f32 %v1893, %v1306
      %v1911 = vadd.f32 %v1799, %v1895
      %v1912 = vadd.f32 %v1800, %v1896
      %v1913 = vadd.f32 %v1801, %v1897
      %v1914 = vadd.f32 %v1802, %v1898
      %v1915 = vadd.f32 %v1803, %v1899
      %v1916 = vadd.f32 %v1804, %v1900
      %v1917 = vadd.f32 %v1805, %v1901
      %v1918 = vadd.f32 %v1806, %v1902
      %v1919 = vadd.f32 %v1807, %v1903
      %v1920 = vadd.f32 %v1808, %v1904
      %v1921 = vadd.f32 %v1809, %v1905
      %v1922 = vadd.f32 %v1810, %v1906
      %v1923 = vadd.f32 %v1811, %v1907
      %v1924 = vadd.f32 %v1812, %v1908
      %v1925 = vadd.f32 %v1813, %v1909
      %v1926 = vadd.f32 %v1814, %v1910
      %v1927 = vld [vmem:[%s4 + $0x1] sm:$0x1]
      %v1929 = vlaneseq
      %v1930 = vshrl.u32 %v1929, 7
      %v1931 = vsub.s32 0, %v1930
      %v1932 = vrot.slane %v1927, %v1931
      %v1934 = vadd.f32 %v1911, %v1932
      %v1935 = vadd.f32 %v1912, %v1932
      %v1936 = vadd.f32 %v1913, %v1932
      %v1937 = vadd.f32 %v1914, %v1932
      %v1938 = vadd.f32 %v1915, %v1932
      %v1939 = vadd.f32 %v1916, %v1932
      %v1940 = vadd.f32 %v1917, %v1932
      %v1941 = vadd.f32 %v1918, %v1932
      %v1942 = vadd.f32 %v1919, %v1932
      %v1943 = vadd.f32 %v1920, %v1932
      %v1944 = vadd.f32 %v1921, %v1932
      %v1945 = vadd.f32 %v1922, %v1932
      %v1946 = vadd.f32 %v1923, %v1932
      %v1947 = vadd.f32 %v1924, %v1932
      %v1948 = vadd.f32 %v1925, %v1932
      %v1949 = vadd.f32 %v1926, %v1932
      %1950 = vset.pattern.permute.xlu0 1
      %1951 = vperm.xlu0 %1950, %v1703
      %v1952 = vpop.permute.xlu0 %1951
      %1954 = vset.pattern.permute.xlu0 1
      %1955 = vperm.xlu0 %1954, %v1704
      %v1956 = vpop.permute.xlu0 %1955
      %1958 = vset.pattern.permute.xlu0 1
      %1959 = vperm.xlu0 %1958, %v1705
      %v1960 = vpop.permute.xlu0 %1959
      %1962 = vset.pattern.permute.xlu0 1
      %1963 = vperm.xlu0 %1962, %v1706
      %v1964 = vpop.permute.xlu0 %1963
      %1966 = vset.pattern.permute.xlu0 1
      %1967 = vperm.xlu0 %1966, %v1707
      %v1968 = vpop.permute.xlu0 %1967
      %1970 = vset.pattern.permute.xlu0 1
      %1971 = vperm.xlu0 %1970, %v1708
      %v1972 = vpop.permute.xlu0 %1971
      %1974 = vset.pattern.permute.xlu0 1
      %1975 = vperm.xlu0 %1974, %v1709
      %v1976 = vpop.permute.xlu0 %1975
      %1978 = vset.pattern.permute.xlu0 1
      %1979 = vperm.xlu0 %1978, %v1710
      %v1980 = vpop.permute.xlu0 %1979
      %1982 = vset.pattern.permute.xlu0 1
      %1983 = vperm.xlu0 %1982, %v1711
      %v1984 = vpop.permute.xlu0 %1983
      %1986 = vset.pattern.permute.xlu0 1
      %1987 = vperm.xlu0 %1986, %v1712
      %v1988 = vpop.permute.xlu0 %1987
      %1990 = vset.pattern.permute.xlu0 1
      %1991 = vperm.xlu0 %1990, %v1713
      %v1992 = vpop.permute.xlu0 %1991
      %1994 = vset.pattern.permute.xlu0 1
      %1995 = vperm.xlu0 %1994, %v1714
      %v1996 = vpop.permute.xlu0 %1995
      %1998 = vset.pattern.permute.xlu0 1
      %1999 = vperm.xlu0 %1998, %v1715
      %v2000 = vpop.permute.xlu0 %1999
      %2002 = vset.pattern.permute.xlu0 1
      %2003 = vperm.xlu0 %2002, %v1716
      %v2004 = vpop.permute.xlu0 %2003
      %2006 = vset.pattern.permute.xlu0 1
      %2007 = vperm.xlu0 %2006, %v1717
      %v2008 = vpop.permute.xlu0 %2007
      %2010 = vset.pattern.permute.xlu0 1
      %2011 = vperm.xlu0 %2010, %v1718
      %v2012 = vpop.permute.xlu0 %2011
      %v2014 = vmul.f32 %v1952, %v1086
      %v2015 = vmul.f32 %v1956, %v1089
      %v2016 = vmul.f32 %v1960, %v1094
      %v2017 = vmul.f32 %v1964, %v1097
      %v2018 = vmul.f32 %v1968, %v1102
      %v2019 = vmul.f32 %v1972, %v1105
      %v2020 = vmul.f32 %v1976, %v1110
      %v2021 = vmul.f32 %v1980, %v1113
      %v2022 = vmul.f32 %v1984, %v1118
      %v2023 = vmul.f32 %v1988, %v1121
      %v2024 = vmul.f32 %v1992, %v1126
      %v2025 = vmul.f32 %v1996, %v1129
      %v2026 = vmul.f32 %v2000, %v1134
      %v2027 = vmul.f32 %v2004, %v1137
      %v2028 = vmul.f32 %v2008, %v1142
      %v2029 = vmul.f32 %v2012, %v1145
      %2030 = vset.pattern.permute.xlu0 1
      %2031 = vperm.xlu0 %2030, %v1649
      %v2032 = vpop.permute.xlu0 %2031
      %2034 = vset.pattern.permute.xlu0 1
      %2035 = vperm.xlu0 %2034, %v1651
      %v2036 = vpop.permute.xlu0 %2035
      %2038 = vset.pattern.permute.xlu0 1
      %2039 = vperm.xlu0 %2038, %v1653
      %v2040 = vpop.permute.xlu0 %2039
      %2042 = vset.pattern.permute.xlu0 1
      %2043 = vperm.xlu0 %2042, %v1655
      %v2044 = vpop.permute.xlu0 %2043
      %2046 = vset.pattern.permute.xlu0 1
      %2047 = vperm.xlu0 %2046, %v1657
      %v2048 = vpop.permute.xlu0 %2047
      %2050 = vset.pattern.permute.xlu0 1
      %2051 = vperm.xlu0 %2050, %v1659
      %v2052 = vpop.permute.xlu0 %2051
      %2054 = vset.pattern.permute.xlu0 1
      %2055 = vperm.xlu0 %2054, %v1661
      %v2056 = vpop.permute.xlu0 %2055
      %2058 = vset.pattern.permute.xlu0 1
      %2059 = vperm.xlu0 %2058, %v1663
      %v2060 = vpop.permute.xlu0 %2059
      %2062 = vset.pattern.permute.xlu0 1
      %2063 = vperm.xlu0 %2062, %v1665
      %v2064 = vpop.permute.xlu0 %2063
      %2066 = vset.pattern.permute.xlu0 1
      %2067 = vperm.xlu0 %2066, %v1667
      %v2068 = vpop.permute.xlu0 %2067
      %2070 = vset.pattern.permute.xlu0 1
      %2071 = vperm.xlu0 %2070, %v1669
      %v2072 = vpop.permute.xlu0 %2071
      %2074 = vset.pattern.permute.xlu0 1
      %2075 = vperm.xlu0 %2074, %v1671
      %v2076 = vpop.permute.xlu0 %2075
      %2078 = vset.pattern.permute.xlu0 1
      %2079 = vperm.xlu0 %2078, %v1673
      %v2080 = vpop.permute.xlu0 %2079
      %2082 = vset.pattern.permute.xlu0 1
      %2083 = vperm.xlu0 %2082, %v1675
      %v2084 = vpop.permute.xlu0 %2083
      %2086 = vset.pattern.permute.xlu0 1
      %2087 = vperm.xlu0 %2086, %v1677
      %v2088 = vpop.permute.xlu0 %2087
      %2090 = vset.pattern.permute.xlu0 1
      %2091 = vperm.xlu0 %2090, %v1679
      %v2092 = vpop.permute.xlu0 %2091
      %v2094 = vmul.f32 %v2032, %v1234
      %v2095 = vmul.f32 %v2036, %v1238
      %v2096 = vmul.f32 %v2040, %v1244
      %v2097 = vmul.f32 %v2044, %v1248
      %v2098 = vmul.f32 %v2048, %v1254
      %v2099 = vmul.f32 %v2052, %v1258
      %v2100 = vmul.f32 %v2056, %v1264
      %v2101 = vmul.f32 %v2060, %v1268
      %v2102 = vmul.f32 %v2064, %v1274
      %v2103 = vmul.f32 %v2068, %v1278
      %v2104 = vmul.f32 %v2072, %v1284
      %v2105 = vmul.f32 %v2076, %v1288
      %v2106 = vmul.f32 %v2080, %v1294
      %v2107 = vmul.f32 %v2084, %v1298
      %v2108 = vmul.f32 %v2088, %v1304
      %v2109 = vmul.f32 %v2092, %v1308
      %v2110 = vadd.f32 %v2014, %v2094
      %v2111 = vadd.f32 %v2015, %v2095
      %v2112 = vadd.f32 %v2016, %v2096
      %v2113 = vadd.f32 %v2017, %v2097
      %v2114 = vadd.f32 %v2018, %v2098
      %v2115 = vadd.f32 %v2019, %v2099
      %v2116 = vadd.f32 %v2020, %v2100
      %v2117 = vadd.f32 %v2021, %v2101
      %v2118 = vadd.f32 %v2022, %v2102
      %v2119 = vadd.f32 %v2023, %v2103
      %v2120 = vadd.f32 %v2024, %v2104
      %v2121 = vadd.f32 %v2025, %v2105
      %v2122 = vadd.f32 %v2026, %v2106
      %v2123 = vadd.f32 %v2027, %v2107
      %v2124 = vadd.f32 %v2028, %v2108
      %v2125 = vadd.f32 %v2029, %v2109
      %v2126 = vld [vmem:[%s4 + $0x2] sm:$0x1]
      %v2128 = vlaneseq
      %v2129 = vshrl.u32 %v2128, 7
      %v2130 = vsub.s32 0, %v2129
      %v2131 = vrot.slane %v2126, %v2130
      %v2133 = vadd.f32 %v2110, %v2131
      %v2134 = vadd.f32 %v2111, %v2131
      %v2135 = vadd.f32 %v2112, %v2131
      %v2136 = vadd.f32 %v2113, %v2131
      %v2137 = vadd.f32 %v2114, %v2131
      %v2138 = vadd.f32 %v2115, %v2131
      %v2139 = vadd.f32 %v2116, %v2131
      %v2140 = vadd.f32 %v2117, %v2131
      %v2141 = vadd.f32 %v2118, %v2131
      %v2142 = vadd.f32 %v2119, %v2131
      %v2143 = vadd.f32 %v2120, %v2131
      %v2144 = vadd.f32 %v2121, %v2131
      %v2145 = vadd.f32 %v2122, %v2131
      %v2146 = vadd.f32 %v2123, %v2131
      %v2147 = vadd.f32 %v2124, %v2131
      %v2148 = vadd.f32 %v2125, %v2131
      %v2149 = vpack.c.bf16 %v1688, %v1687
      %v2150 = vpack.c.bf16 %v1690, %v1689
      %v2151 = vpack.c.bf16 %v1692, %v1691
      %v2152 = vpack.c.bf16 %v1694, %v1693
      %v2153 = vpack.c.bf16 %v1696, %v1695
      %v2154 = vpack.c.bf16 %v1698, %v1697
      %v2155 = vpack.c.bf16 %v1700, %v1699
      %v2156 = vpack.c.bf16 %v1702, %v1701
      %v2157 = vpack.c.bf16 %v1935, %v1934
      %v2158 = vpack.c.bf16 %v1937, %v1936
      %v2159 = vpack.c.bf16 %v1939, %v1938
      %v2160 = vpack.c.bf16 %v1941, %v1940
      %v2161 = vpack.c.bf16 %v1943, %v1942
      %v2162 = vpack.c.bf16 %v1945, %v1944
      %v2163 = vpack.c.bf16 %v1947, %v1946
      %v2164 = vpack.c.bf16 %v1949, %v1948
      %v2165 = vpack.c.bf16 %v2134, %v2133
      %v2166 = vpack.c.bf16 %v2136, %v2135
      %v2167 = vpack.c.bf16 %v2138, %v2137
      %v2168 = vpack.c.bf16 %v2140, %v2139
      %v2169 = vpack.c.bf16 %v2142, %v2141
      %v2170 = vpack.c.bf16 %v2144, %v2143
      %v2171 = vpack.c.bf16 %v2146, %v2145
      %v2172 = vpack.c.bf16 %v2148, %v2147
      %2173 = vmatprep.subr.bf16.mxu0 0
      %2174 = vmatpush1.bf16.xpose.msra.mxu0 %v2157
      %2175 = vmatprep.subr.bf16.mxu0 0
      %2176 = vmatpush1.bf16.xpose.msra.mxu0 %v2158
      %2177 = vmatprep.subr.bf16.mxu0 0
      %2178 = vmatpush1.bf16.xpose.msra.mxu0 0
      %2179 = vmatprep.subr.bf16.mxu0 0
      %2180 = vmatpush1.bf16.xpose.msra.mxu0 0
      %2181 = vmatprep.subr.bf16.mxu0 0
      %2182 = vmatpush1.bf16.xpose.msra.mxu0 0
      %2183 = vmatprep.subr.bf16.mxu0 0
      %2184 = vmatpush1.bf16.xpose.msra.mxu0 0
      %2185 = vmatprep.subr.bf16.mxu0 0
      %2186 = vmatpush1.bf16.xpose.msra.mxu0 0
      %2187 = vmatprep.subr.bf16.mxu0 0
      %2188 = vmatpush1.bf16.xpose.msra.mxu0 0
      %2189 = vmatprep.subr.bf16.mxu0 0
      %2190 = vmatpush1.bf16.xpose.msra.mxu0 0
      %2191 = vmatprep.subr.bf16.mxu0 0
      %2192 = vmatpush1.bf16.xpose.msra.mxu0 0
      %2193 = vmatprep.subr.bf16.mxu0 0
      %2194 = vmatpush1.bf16.xpose.msra.mxu0 0
      %2195 = vmatprep.subr.bf16.mxu0 0
      %2196 = vmatpush1.bf16.xpose.msra.mxu0 0
      %2197 = vmatprep.subr.bf16.mxu0 0
      %2198 = vmatpush1.bf16.xpose.msra.mxu0 0
      %2199 = vmatprep.subr.bf16.mxu0 0
      %2200 = vmatpush1.bf16.xpose.msra.mxu0 0
      %2201 = vmatprep.subr.bf16.mxu0 0
      %2202 = vmatpush1.bf16.xpose.msra.mxu0 0
      %2203 = vmatprep.subr.bf16.mxu0 0
      %2204 = vmatpush1.bf16.xpose.msra.mxu0 0
      %2205 = vmatprep.mubr.bf16.mxu0 0
      %2206 = vmatmul.mubr.bf16.gmra.mrb[0].mxu0 %v2149
      %v2207 = vpop.f32.mrb[0].mxu0
      %v2208 = vadd.f32 0.0, %v2207
      %v2209 = vpop.f32.mrb[0].mxu0
      %v2210 = vpop.f32.mrb[0].mxu0
      %v2211 = vadd.f32 0.0, %v2210
      %v2212 = vpop.f32.mrb[0].mxu0
      %2213 = vmatprep.mubr.bf16.mxu0 0
      %2214 = vmatmul.mubr.bf16.gmra.mrb[0].mxu0 %v2150
      %v2215 = vpop.f32.mrb[0].mxu0
      %v2216 = vadd.f32 0.0, %v2215
      %v2217 = vpop.f32.mrb[0].mxu0
      %v2218 = vpop.f32.mrb[0].mxu0
      %v2219 = vadd.f32 0.0, %v2218
      %v2220 = vpop.f32.mrb[0].mxu0
      %2221 = vdwg.mxu0
      %2222 = vmatprep.subr.bf16.mxu0 0
      %2223 = vmatpush1.bf16.xpose.msra.mxu0 %v2159
      %2224 = vmatprep.subr.bf16.mxu0 0
      %2225 = vmatpush1.bf16.xpose.msra.mxu0 %v2160
      %2226 = vmatprep.subr.bf16.mxu0 0
      %2227 = vmatpush1.bf16.xpose.msra.mxu0 0
      %2228 = vmatprep.subr.bf16.mxu0 0
      %2229 = vmatpush1.bf16.xpose.msra.mxu0 0
      %2230 = vmatprep.subr.bf16.mxu0 0
      %2231 = vmatpush1.bf16.xpose.msra.mxu0 0
      %2232 = vmatprep.subr.bf16.mxu0 0
      %2233 = vmatpush1.bf16.xpose.msra.mxu0 0
      %2234 = vmatprep.subr.bf16.mxu0 0
      %2235 = vmatpush1.bf16.xpose.msra.mxu0 0
      %2236 = vmatprep.subr.bf16.mxu0 0
      %2237 = vmatpush1.bf16.xpose.msra.mxu0 0
      %2238 = vmatprep.subr.bf16.mxu0 0
      %2239 = vmatpush1.bf16.xpose.msra.mxu0 0
      %2240 = vmatprep.subr.bf16.mxu0 0
      %2241 = vmatpush1.bf16.xpose.msra.mxu0 0
      %2242 = vmatprep.subr.bf16.mxu0 0
      %2243 = vmatpush1.bf16.xpose.msra.mxu0 0
      %2244 = vmatprep.subr.bf16.mxu0 0
      %2245 = vmatpush1.bf16.xpose.msra.mxu0 0
      %2246 = vmatprep.subr.bf16.mxu0 0
      %2247 = vmatpush1.bf16.xpose.msra.mxu0 0
      %2248 = vmatprep.subr.bf16.mxu0 0
      %2249 = vmatpush1.bf16.xpose.msra.mxu0 0
      %2250 = vmatprep.subr.bf16.mxu0 0
      %2251 = vmatpush1.bf16.xpose.msra.mxu0 0
      %2252 = vmatprep.subr.bf16.mxu0 0
      %2253 = vmatpush1.bf16.xpose.msra.mxu0 0
      %2254 = vmatprep.mubr.bf16.mxu0 0
      %2255 = vmatmul.mubr.bf16.gmra.mrb[0].mxu0 %v2151
      %v2256 = vpop.f32.mrb[0].mxu0
      %v2257 = vadd.f32 0.0, %v2256
      %v2258 = vpop.f32.mrb[0].mxu0
      %v2259 = vpop.f32.mrb[0].mxu0
      %v2260 = vadd.f32 0.0, %v2259
      %v2261 = vpop.f32.mrb[0].mxu0
      %2262 = vmatprep.mubr.bf16.mxu0 0
      %2263 = vmatmul.mubr.bf16.gmra.mrb[0].mxu0 %v2152
      %v2264 = vpop.f32.mrb[0].mxu0
      %v2265 = vadd.f32 0.0, %v2264
      %v2266 = vpop.f32.mrb[0].mxu0
      %v2267 = vpop.f32.mrb[0].mxu0
      %v2268 = vadd.f32 0.0, %v2267
      %v2269 = vpop.f32.mrb[0].mxu0
      %2270 = vdwg.mxu0
      %2271 = vmatprep.subr.bf16.mxu0 0
      %2272 = vmatpush1.bf16.xpose.msra.mxu0 %v2161
      %2273 = vmatprep.subr.bf16.mxu0 0
      %2274 = vmatpush1.bf16.xpose.msra.mxu0 %v2162
      %2275 = vmatprep.subr.bf16.mxu0 0
      %2276 = vmatpush1.bf16.xpose.msra.mxu0 0
      %2277 = vmatprep.subr.bf16.mxu0 0
      %2278 = vmatpush1.bf16.xpose.msra.mxu0 0
      %2279 = vmatprep.subr.bf16.mxu0 0
      %2280 = vmatpush1.bf16.xpose.msra.mxu0 0
      %2281 = vmatprep.subr.bf16.mxu0 0
      %2282 = vmatpush1.bf16.xpose.msra.mxu0 0
      %2283 = vmatprep.subr.bf16.mxu0 0
      %2284 = vmatpush1.bf16.xpose.msra.mxu0 0
      %2285 = vmatprep.subr.bf16.mxu0 0
      %2286 = vmatpush1.bf16.xpose.msra.mxu0 0
      %2287 = vmatprep.subr.bf16.mxu0 0
      %2288 = vmatpush1.bf16.xpose.msra.mxu0 0
      %2289 = vmatprep.subr.bf16.mxu0 0
      %2290 = vmatpush1.bf16.xpose.msra.mxu0 0
      %2291 = vmatprep.subr.bf16.mxu0 0
      %2292 = vmatpush1.bf16.xpose.msra.mxu0 0
      %2293 = vmatprep.subr.bf16.mxu0 0
      %2294 = vmatpush1.bf16.xpose.msra.mxu0 0
      %2295 = vmatprep.subr.bf16.mxu0 0
      %2296 = vmatpush1.bf16.xpose.msra.mxu0 0
      %2297 = vmatprep.subr.bf16.mxu0 0
      %2298 = vmatpush1.bf16.xpose.msra.mxu0 0
      %2299 = vmatprep.subr.bf16.mxu0 0
      %2300 = vmatpush1.bf16.xpose.msra.mxu0 0
      %2301 = vmatprep.subr.bf16.mxu0 0
      %2302 = vmatpush1.bf16.xpose.msra.mxu0 0
      %2303 = vmatprep.mubr.bf16.mxu0 0
      %2304 = vmatmul.mubr.bf16.gmra.mrb[0].mxu0 %v2153
      %v2305 = vpop.f32.mrb[0].mxu0
      %v2306 = vadd.f32 0.0, %v2305
      %v2307 = vpop.f32.mrb[0].mxu0
      %v2308 = vpop.f32.mrb[0].mxu0
      %v2309 = vadd.f32 0.0, %v2308
      %v2310 = vpop.f32.mrb[0].mxu0
      %2311 = vmatprep.mubr.bf16.mxu0 0
      %2312 = vmatmul.mubr.bf16.gmra.mrb[0].mxu0 %v2154
      %v2313 = vpop.f32.mrb[0].mxu0
      %v2314 = vadd.f32 0.0, %v2313
      %v2315 = vpop.f32.mrb[0].mxu0
      %v2316 = vpop.f32.mrb[0].mxu0
      %v2317 = vadd.f32 0.0, %v2316
      %v2318 = vpop.f32.mrb[0].mxu0
      %2319 = vdwg.mxu0
      %2320 = vmatprep.subr.bf16.mxu0 0
      %2321 = vmatpush1.bf16.xpose.msra.mxu0 %v2163
      %2322 = vmatprep.subr.bf16.mxu0 0
      %2323 = vmatpush1.bf16.xpose.msra.mxu0 %v2164
      %2324 = vmatprep.subr.bf16.mxu0 0
      %2325 = vmatpush1.bf16.xpose.msra.mxu0 0
      %2326 = vmatprep.subr.bf16.mxu0 0
      %2327 = vmatpush1.bf16.xpose.msra.mxu0 0
      %2328 = vmatprep.subr.bf16.mxu0 0
      %2329 = vmatpush1.bf16.xpose.msra.mxu0 0
      %2330 = vmatprep.subr.bf16.mxu0 0
      %2331 = vmatpush1.bf16.xpose.msra.mxu0 0
      %2332 = vmatprep.subr.bf16.mxu0 0
      %2333 = vmatpush1.bf16.xpose.msra.mxu0 0
      %2334 = vmatprep.subr.bf16.mxu0 0
      %2335 = vmatpush1.bf16.xpose.msra.mxu0 0
      %2336 = vmatprep.subr.bf16.mxu0 0
      %2337 = vmatpush1.bf16.xpose.msra.mxu0 0
      %2338 = vmatprep.subr.bf16.mxu0 0
      %2339 = vmatpush1.bf16.xpose.msra.mxu0 0
      %2340 = vmatprep.subr.bf16.mxu0 0
      %2341 = vmatpush1.bf16.xpose.msra.mxu0 0
      %2342 = vmatprep.subr.bf16.mxu0 0
      %2343 = vmatpush1.bf16.xpose.msra.mxu0 0
      %2344 = vmatprep.subr.bf16.mxu0 0
      %2345 = vmatpush1.bf16.xpose.msra.mxu0 0
      %2346 = vmatprep.subr.bf16.mxu0 0
      %2347 = vmatpush1.bf16.xpose.msra.mxu0 0
      %2348 = vmatprep.subr.bf16.mxu0 0
      %2349 = vmatpush1.bf16.xpose.msra.mxu0 0
      %2350 = vmatprep.subr.bf16.mxu0 0
      %2351 = vmatpush1.bf16.xpose.msra.mxu0 0
      %2352 = vmatprep.mubr.bf16.mxu0 0
      %2353 = vmatmul.mubr.bf16.gmra.mrb[0].mxu0 %v2155
      %v2354 = vpop.f32.mrb[0].mxu0
      %v2355 = vadd.f32 0.0, %v2354
      %v2356 = vpop.f32.mrb[0].mxu0
      %v2357 = vpop.f32.mrb[0].mxu0
      %v2358 = vadd.f32 0.0, %v2357
      %v2359 = vpop.f32.mrb[0].mxu0
      %2360 = vmatprep.mubr.bf16.mxu0 0
      %2361 = vmatmul.mubr.bf16.gmra.mrb[0].mxu0 %v2156
      %v2362 = vpop.f32.mrb[0].mxu0
      %v2363 = vadd.f32 0.0, %v2362
      %v2364 = vpop.f32.mrb[0].mxu0
      %v2365 = vpop.f32.mrb[0].mxu0
      %v2366 = vadd.f32 0.0, %v2365
      %v2367 = vpop.f32.mrb[0].mxu0
      %2368 = vdwg.mxu0
      %v2369 = vsel %vm1172, %v2208, -inf
      %2370 = vmax.xlane.f32.xlu0 %v2369
      %v2371 = vpop.xlane.xlu0 %2370
      %v2372 = vsel %vm1172, %v2211, -inf
      %2373 = vmax.xlane.f32.xlu0 %v2372
      %v2374 = vpop.xlane.xlu0 %2373
      %v2375 = vsel %vm1172, %v2216, -inf
      %2376 = vmax.xlane.f32.xlu0 %v2375
      %v2377 = vpop.xlane.xlu0 %2376
      %v2378 = vsel %vm1172, %v2219, -inf
      %2379 = vmax.xlane.f32.xlu0 %v2378
      %v2380 = vpop.xlane.xlu0 %2379
      %v2381 = vsel %vm1172, %v2257, -inf
      %2382 = vmax.xlane.f32.xlu0 %v2381
      %v2383 = vpop.xlane.xlu0 %2382
      %v2384 = vsel %vm1172, %v2260, -inf
      %2385 = vmax.xlane.f32.xlu0 %v2384
      %v2386 = vpop.xlane.xlu0 %2385
      %v2387 = vsel %vm1172, %v2265, -inf
      %2388 = vmax.xlane.f32.xlu0 %v2387
      %v2389 = vpop.xlane.xlu0 %2388
      %v2390 = vsel %vm1172, %v2268, -inf
      %2391 = vmax.xlane.f32.xlu0 %v2390
      %v2392 = vpop.xlane.xlu0 %2391
      %v2393 = vsel %vm1172, %v2306, -inf
      %2394 = vmax.xlane.f32.xlu0 %v2393
      %v2395 = vpop.xlane.xlu0 %2394
      %v2396 = vsel %vm1172, %v2309, -inf
      %2397 = vmax.xlane.f32.xlu0 %v2396
      %v2398 = vpop.xlane.xlu0 %2397
      %v2399 = vsel %vm1172, %v2314, -inf
      %2400 = vmax.xlane.f32.xlu0 %v2399
      %v2401 = vpop.xlane.xlu0 %2400
      %v2402 = vsel %vm1172, %v2317, -inf
      %2403 = vmax.xlane.f32.xlu0 %v2402
      %v2404 = vpop.xlane.xlu0 %2403
      %v2405 = vsel %vm1172, %v2355, -inf
      %2406 = vmax.xlane.f32.xlu0 %v2405
      %v2407 = vpop.xlane.xlu0 %2406
      %v2408 = vsel %vm1172, %v2358, -inf
      %2409 = vmax.xlane.f32.xlu0 %v2408
      %v2410 = vpop.xlane.xlu0 %2409
      %v2411 = vsel %vm1172, %v2363, -inf
      %2412 = vmax.xlane.f32.xlu0 %v2411
      %v2413 = vpop.xlane.xlu0 %2412
      %v2414 = vsel %vm1172, %v2366, -inf
      %2415 = vmax.xlane.f32.xlu0 %v2414
      %v2416 = vpop.xlane.xlu0 %2415
      %v2417 = vsub.f32 %v2208, %v2371
      %v2418 = vsub.f32 %v2211, %v2374
      %v2419 = vsub.f32 %v2216, %v2377
      %v2420 = vsub.f32 %v2219, %v2380
      %v2421 = vsub.f32 %v2257, %v2383
      %v2422 = vsub.f32 %v2260, %v2386
      %v2423 = vsub.f32 %v2265, %v2389
      %v2424 = vsub.f32 %v2268, %v2392
      %v2425 = vsub.f32 %v2306, %v2395
      %v2426 = vsub.f32 %v2309, %v2398
      %v2427 = vsub.f32 %v2314, %v2401
      %v2428 = vsub.f32 %v2317, %v2404
      %v2429 = vsub.f32 %v2355, %v2407
      %v2430 = vsub.f32 %v2358, %v2410
      %v2431 = vsub.f32 %v2363, %v2413
      %v2432 = vsub.f32 %v2366, %v2416
      %v2433 = vmul.f32 %v2417, 1.442695
      %v2434 = vpow.pop %v2433
      %v2435 = vmul.f32 %v2418, 1.442695
      %v2436 = vpow.pop %v2435
      %v2437 = vmul.f32 %v2419, 1.442695
      %v2438 = vpow.pop %v2437
      %v2439 = vmul.f32 %v2420, 1.442695
      %v2440 = vpow.pop %v2439
      %v2441 = vmul.f32 %v2421, 1.442695
      %v2442 = vpow.pop %v2441
      %v2443 = vmul.f32 %v2422, 1.442695
      %v2444 = vpow.pop %v2443
      %v2445 = vmul.f32 %v2423, 1.442695
      %v2446 = vpow.pop %v2445
      %v2447 = vmul.f32 %v2424, 1.442695
      %v2448 = vpow.pop %v2447
      %v2449 = vmul.f32 %v2425, 1.442695
      %v2450 = vpow.pop %v2449
      %v2451 = vmul.f32 %v2426, 1.442695
      %v2452 = vpow.pop %v2451
      %v2453 = vmul.f32 %v2427, 1.442695
      %v2454 = vpow.pop %v2453
      %v2455 = vmul.f32 %v2428, 1.442695
      %v2456 = vpow.pop %v2455
      %v2457 = vmul.f32 %v2429, 1.442695
      %v2458 = vpow.pop %v2457
      %v2459 = vmul.f32 %v2430, 1.442695
      %v2460 = vpow.pop %v2459
      %v2461 = vmul.f32 %v2431, 1.442695
      %v2462 = vpow.pop %v2461
      %v2463 = vmul.f32 %v2432, 1.442695
      %v2464 = vpow.pop %v2463
      %v2465 = vsel %vm1172, %v2434, 0.0
      %2466 = vadd.xlane.f32.xlu0 %v2465
      %v2467 = vpop.xlane.xlu0 %2466
      %v2468 = vsel %vm1172, %v2436, 0.0
      %2469 = vadd.xlane.f32.xlu0 %v2468
      %v2470 = vpop.xlane.xlu0 %2469
      %v2471 = vsel %vm1172, %v2438, 0.0
      %2472 = vadd.xlane.f32.xlu0 %v2471
      %v2473 = vpop.xlane.xlu0 %2472
      %v2474 = vsel %vm1172, %v2440, 0.0
      %2475 = vadd.xlane.f32.xlu0 %v2474
      %v2476 = vpop.xlane.xlu0 %2475
      %v2477 = vsel %vm1172, %v2442, 0.0
      %2478 = vadd.xlane.f32.xlu0 %v2477
      %v2479 = vpop.xlane.xlu0 %2478
      %v2480 = vsel %vm1172, %v2444, 0.0
      %2481 = vadd.xlane.f32.xlu0 %v2480
      %v2482 = vpop.xlane.xlu0 %2481
      %v2483 = vsel %vm1172, %v2446, 0.0
      %2484 = vadd.xlane.f32.xlu0 %v2483
      %v2485 = vpop.xlane.xlu0 %2484
      %v2486 = vsel %vm1172, %v2448, 0.0
      %2487 = vadd.xlane.f32.xlu0 %v2486
      %v2488 = vpop.xlane.xlu0 %2487
      %v2489 = vsel %vm1172, %v2450, 0.0
      %2490 = vadd.xlane.f32.xlu0 %v2489
      %v2491 = vpop.xlane.xlu0 %2490
      %v2492 = vsel %vm1172, %v2452, 0.0
      %2493 = vadd.xlane.f32.xlu0 %v2492
      %v2494 = vpop.xlane.xlu0 %2493
      %v2495 = vsel %vm1172, %v2454, 0.0
      %2496 = vadd.xlane.f32.xlu0 %v2495
      %v2497 = vpop.xlane.xlu0 %2496
      %v2498 = vsel %vm1172, %v2456, 0.0
      %2499 = vadd.xlane.f32.xlu0 %v2498
      %v2500 = vpop.xlane.xlu0 %2499
      %v2501 = vsel %vm1172, %v2458, 0.0
      %2502 = vadd.xlane.f32.xlu0 %v2501
      %v2503 = vpop.xlane.xlu0 %2502
      %v2504 = vsel %vm1172, %v2460, 0.0
      %2505 = vadd.xlane.f32.xlu0 %v2504
      %v2506 = vpop.xlane.xlu0 %2505
      %v2507 = vsel %vm1172, %v2462, 0.0
      %2508 = vadd.xlane.f32.xlu0 %v2507
      %v2509 = vpop.xlane.xlu0 %2508
      %v2510 = vsel %vm1172, %v2464, 0.0
      %2511 = vadd.xlane.f32.xlu0 %v2510
      %v2512 = vpop.xlane.xlu0 %2511
      %v2513 = vrcp.pop %v2467
      %v2514 = vrcp.pop %v2470
      %v2515 = vrcp.pop %v2473
      %v2516 = vrcp.pop %v2476
      %v2517 = vrcp.pop %v2479
      %v2518 = vrcp.pop %v2482
      %v2519 = vrcp.pop %v2485
      %v2520 = vrcp.pop %v2488
      %v2521 = vrcp.pop %v2491
      %v2522 = vrcp.pop %v2494
      %v2523 = vrcp.pop %v2497
      %v2524 = vrcp.pop %v2500
      %v2525 = vrcp.pop %v2503
      %v2526 = vrcp.pop %v2506
      %v2527 = vrcp.pop %v2509
      %v2528 = vrcp.pop %v2512
      %v2529 = vmul.f32 %v2434, %v2513
      %v2530 = vmul.f32 %v2436, %v2514
      %v2531 = vmul.f32 %v2438, %v2515
      %v2532 = vmul.f32 %v2440, %v2516
      %v2533 = vmul.f32 %v2442, %v2517
      %v2534 = vmul.f32 %v2444, %v2518
      %v2535 = vmul.f32 %v2446, %v2519
      %v2536 = vmul.f32 %v2448, %v2520
      %v2537 = vmul.f32 %v2450, %v2521
      %v2538 = vmul.f32 %v2452, %v2522
      %v2539 = vmul.f32 %v2454, %v2523
      %v2540 = vmul.f32 %v2456, %v2524
      %v2541 = vmul.f32 %v2458, %v2525
      %v2542 = vmul.f32 %v2460, %v2526
      %v2543 = vmul.f32 %v2462, %v2527
      %v2544 = vmul.f32 %v2464, %v2528
      %v2545 = vpack.c.bf16 %v2530, %v2529
      %v2546 = vpack.c.bf16 %v2532, %v2531
      %v2547 = vpack.c.bf16 %v2534, %v2533
      %v2548 = vpack.c.bf16 %v2536, %v2535
      %v2549 = vpack.c.bf16 %v2538, %v2537
      %v2550 = vpack.c.bf16 %v2540, %v2539
      %v2551 = vpack.c.bf16 %v2542, %v2541
      %v2552 = vpack.c.bf16 %v2544, %v2543
      %v2554 = vsel %vm1172, %v2545, 0
      %v2557 = vsel %vm1172, %v2546, 0
      %2559 = vmatprep.subr.bf16.mxu0 0
      %2560 = vmatpush1.bf16.msra.mxu0 %v2165
      %2561 = vmatprep.subr.bf16.mxu0 0
      %2562 = vmatpush1.bf16.msra.mxu0 %v2166
      %2563 = vmatprep.subr.bf16.mxu0 0
      %2564 = vmatpush1.bf16.msra.mxu0 0
      %2565 = vmatprep.subr.bf16.mxu0 0
      %2566 = vmatpush1.bf16.msra.mxu0 0
      %2567 = vmatprep.subr.bf16.mxu0 0
      %2568 = vmatpush1.bf16.msra.mxu0 0
      %2569 = vmatprep.subr.bf16.mxu0 0
      %2570 = vmatpush1.bf16.msra.mxu0 0
      %2571 = vmatprep.subr.bf16.mxu0 0
      %2572 = vmatpush1.bf16.msra.mxu0 0
      %2573 = vmatprep.subr.bf16.mxu0 0
      %2574 = vmatpush1.bf16.msra.mxu0 0
      %2575 = vmatprep.subr.bf16.mxu0 0
      %2576 = vmatpush1.bf16.msra.mxu0 0
      %2577 = vmatprep.subr.bf16.mxu0 0
      %2578 = vmatpush1.bf16.msra.mxu0 0
      %2579 = vmatprep.subr.bf16.mxu0 0
      %2580 = vmatpush1.bf16.msra.mxu0 0
      %2581 = vmatprep.subr.bf16.mxu0 0
      %2582 = vmatpush1.bf16.msra.mxu0 0
      %2583 = vmatprep.subr.bf16.mxu0 0
      %2584 = vmatpush1.bf16.msra.mxu0 0
      %2585 = vmatprep.subr.bf16.mxu0 0
      %2586 = vmatpush1.bf16.msra.mxu0 0
      %2587 = vmatprep.subr.bf16.mxu0 0
      %2588 = vmatpush1.bf16.msra.mxu0 0
      %2589 = vmatprep.subr.bf16.mxu0 0
      %2590 = vmatpush1.bf16.msra.mxu0 0
      %2591 = vmatprep.mubr.bf16.mxu0 0
      %2592 = vmatmul.mubr.bf16.gmra.mrb[0].mxu0 %v2554
      %v2593 = vpop.f32.mrb[0].mxu0
      %v2594 = vadd.f32 0.0, %v2593
      %v2595 = vpop.f32.mrb[0].mxu0
      %v2596 = vpop.f32.mrb[0].mxu0
      %v2597 = vadd.f32 0.0, %v2596
      %v2598 = vpop.f32.mrb[0].mxu0
      %2599 = vmatprep.mubr.bf16.mxu0 0
      %2600 = vmatmul.mubr.bf16.gmra.mrb[0].mxu0 %v2557
      %v2601 = vpop.f32.mrb[0].mxu0
      %v2602 = vadd.f32 0.0, %v2601
      %v2603 = vpop.f32.mrb[0].mxu0
      %v2604 = vpop.f32.mrb[0].mxu0
      %v2605 = vadd.f32 0.0, %v2604
      %v2606 = vpop.f32.mrb[0].mxu0
      %2607 = vdwg.mxu0
      %v2609 = vsel %vm1172, %v2547, 0
      %v2612 = vsel %vm1172, %v2548, 0
      %2614 = vmatprep.subr.bf16.mxu0 0
      %2615 = vmatpush1.bf16.msra.mxu0 %v2167
      %2616 = vmatprep.subr.bf16.mxu0 0
      %2617 = vmatpush1.bf16.msra.mxu0 %v2168
      %2618 = vmatprep.subr.bf16.mxu0 0
      %2619 = vmatpush1.bf16.msra.mxu0 0
      %2620 = vmatprep.subr.bf16.mxu0 0
      %2621 = vmatpush1.bf16.msra.mxu0 0
      %2622 = vmatprep.subr.bf16.mxu0 0
      %2623 = vmatpush1.bf16.msra.mxu0 0
      %2624 = vmatprep.subr.bf16.mxu0 0
      %2625 = vmatpush1.bf16.msra.mxu0 0
      %2626 = vmatprep.subr.bf16.mxu0 0
      %2627 = vmatpush1.bf16.msra.mxu0 0
      %2628 = vmatprep.subr.bf16.mxu0 0
      %2629 = vmatpush1.bf16.msra.mxu0 0
      %2630 = vmatprep.subr.bf16.mxu0 0
      %2631 = vmatpush1.bf16.msra.mxu0 0
      %2632 = vmatprep.subr.bf16.mxu0 0
      %2633 = vmatpush1.bf16.msra.mxu0 0
      %2634 = vmatprep.subr.bf16.mxu0 0
      %2635 = vmatpush1.bf16.msra.mxu0 0
      %2636 = vmatprep.subr.bf16.mxu0 0
      %2637 = vmatpush1.bf16.msra.mxu0 0
      %2638 = vmatprep.subr.bf16.mxu0 0
      %2639 = vmatpush1.bf16.msra.mxu0 0
      %2640 = vmatprep.subr.bf16.mxu0 0
      %2641 = vmatpush1.bf16.msra.mxu0 0
      %2642 = vmatprep.subr.bf16.mxu0 0
      %2643 = vmatpush1.bf16.msra.mxu0 0
      %2644 = vmatprep.subr.bf16.mxu0 0
      %2645 = vmatpush1.bf16.msra.mxu0 0
      %2646 = vmatprep.mubr.bf16.mxu0 0
      %2647 = vmatmul.mubr.bf16.gmra.mrb[0].mxu0 %v2609
      %v2648 = vpop.f32.mrb[0].mxu0
      %v2649 = vadd.f32 0.0, %v2648
      %v2650 = vpop.f32.mrb[0].mxu0
      %v2651 = vpop.f32.mrb[0].mxu0
      %v2652 = vadd.f32 0.0, %v2651
      %v2653 = vpop.f32.mrb[0].mxu0
      %2654 = vmatprep.mubr.bf16.mxu0 0
      %2655 = vmatmul.mubr.bf16.gmra.mrb[0].mxu0 %v2612
      %v2656 = vpop.f32.mrb[0].mxu0
      %v2657 = vadd.f32 0.0, %v2656
      %v2658 = vpop.f32.mrb[0].mxu0
      %v2659 = vpop.f32.mrb[0].mxu0
      %v2660 = vadd.f32 0.0, %v2659
      %v2661 = vpop.f32.mrb[0].mxu0
      %2662 = vdwg.mxu0
      %v2664 = vsel %vm1172, %v2549, 0
      %v2667 = vsel %vm1172, %v2550, 0
      %2669 = vmatprep.subr.bf16.mxu0 0
      %2670 = vmatpush1.bf16.msra.mxu0 %v2169
      %2671 = vmatprep.subr.bf16.mxu0 0
      %2672 = vmatpush1.bf16.msra.mxu0 %v2170
      %2673 = vmatprep.subr.bf16.mxu0 0
      %2674 = vmatpush1.bf16.msra.mxu0 0
      %2675 = vmatprep.subr.bf16.mxu0 0
      %2676 = vmatpush1.bf16.msra.mxu0 0
      %2677 = vmatprep.subr.bf16.mxu0 0
      %2678 = vmatpush1.bf16.msra.mxu0 0
      %2679 = vmatprep.subr.bf16.mxu0 0
      %2680 = vmatpush1.bf16.msra.mxu0 0
      %2681 = vmatprep.subr.bf16.mxu0 0
      %2682 = vmatpush1.bf16.msra.mxu0 0
      %2683 = vmatprep.subr.bf16.mxu0 0
      %2684 = vmatpush1.bf16.msra.mxu0 0
      %2685 = vmatprep.subr.bf16.mxu0 0
      %2686 = vmatpush1.bf16.msra.mxu0 0
      %2687 = vmatprep.subr.bf16.mxu0 0
      %2688 = vmatpush1.bf16.msra.mxu0 0
      %2689 = vmatprep.subr.bf16.mxu0 0
      %2690 = vmatpush1.bf16.msra.mxu0 0
      %2691 = vmatprep.subr.bf16.mxu0 0
      %2692 = vmatpush1.bf16.msra.mxu0 0
      %2693 = vmatprep.subr.bf16.mxu0 0
      %2694 = vmatpush1.bf16.msra.mxu0 0
      %2695 = vmatprep.subr.bf16.mxu0 0
      %2696 = vmatpush1.bf16.msra.mxu0 0
      %2697 = vmatprep.subr.bf16.mxu0 0
      %2698 = vmatpush1.bf16.msra.mxu0 0
      %2699 = vmatprep.subr.bf16.mxu0 0
      %2700 = vmatpush1.bf16.msra.mxu0 0
      %2701 = vmatprep.mubr.bf16.mxu0 0
      %2702 = vmatmul.mubr.bf16.gmra.mrb[0].mxu0 %v2664
      %v2703 = vpop.f32.mrb[0].mxu0
      %v2704 = vadd.f32 0.0, %v2703
      %v2705 = vpop.f32.mrb[0].mxu0
      %v2706 = vpop.f32.mrb[0].mxu0
      %v2707 = vadd.f32 0.0, %v2706
      %v2708 = vpop.f32.mrb[0].mxu0
      %2709 = vmatprep.mubr.bf16.mxu0 0
      %2710 = vmatmul.mubr.bf16.gmra.mrb[0].mxu0 %v2667
      %v2711 = vpop.f32.mrb[0].mxu0
      %v2712 = vadd.f32 0.0, %v2711
      %v2713 = vpop.f32.mrb[0].mxu0
      %v2714 = vpop.f32.mrb[0].mxu0
      %v2715 = vadd.f32 0.0, %v2714
      %v2716 = vpop.f32.mrb[0].mxu0
      %2717 = vdwg.mxu0
      %v2719 = vsel %vm1172, %v2551, 0
      %v2722 = vsel %vm1172, %v2552, 0
      %2724 = vmatprep.subr.bf16.mxu0 0
      %2725 = vmatpush1.bf16.msra.mxu0 %v2171
      %2726 = vmatprep.subr.bf16.mxu0 0
      %2727 = vmatpush1.bf16.msra.mxu0 %v2172
      %2728 = vmatprep.subr.bf16.mxu0 0
      %2729 = vmatpush1.bf16.msra.mxu0 0
      %2730 = vmatprep.subr.bf16.mxu0 0
      %2731 = vmatpush1.bf16.msra.mxu0 0
      %2732 = vmatprep.subr.bf16.mxu0 0
      %2733 = vmatpush1.bf16.msra.mxu0 0
      %2734 = vmatprep.subr.bf16.mxu0 0
      %2735 = vmatpush1.bf16.msra.mxu0 0
      %2736 = vmatprep.subr.bf16.mxu0 0
      %2737 = vmatpush1.bf16.msra.mxu0 0
      %2738 = vmatprep.subr.bf16.mxu0 0
      %2739 = vmatpush1.bf16.msra.mxu0 0
      %2740 = vmatprep.subr.bf16.mxu0 0
      %2741 = vmatpush1.bf16.msra.mxu0 0
      %2742 = vmatprep.subr.bf16.mxu0 0
      %2743 = vmatpush1.bf16.msra.mxu0 0
      %2744 = vmatprep.subr.bf16.mxu0 0
      %2745 = vmatpush1.bf16.msra.mxu0 0
      %2746 = vmatprep.subr.bf16.mxu0 0
      %2747 = vmatpush1.bf16.msra.mxu0 0
      %2748 = vmatprep.subr.bf16.mxu0 0
      %2749 = vmatpush1.bf16.msra.mxu0 0
      %2750 = vmatprep.subr.bf16.mxu0 0
      %2751 = vmatpush1.bf16.msra.mxu0 0
      %2752 = vmatprep.subr.bf16.mxu0 0
      %2753 = vmatpush1.bf16.msra.mxu0 0
      %2754 = vmatprep.subr.bf16.mxu0 0
      %2755 = vmatpush1.bf16.msra.mxu0 0
      %2756 = vmatprep.mubr.bf16.mxu0 0
      %2757 = vmatmul.mubr.bf16.gmra.mrb[0].mxu0 %v2719
      %v2758 = vpop.f32.mrb[0].mxu0
      %v2759 = vadd.f32 0.0, %v2758
      %v2760 = vpop.f32.mrb[0].mxu0
      %v2761 = vpop.f32.mrb[0].mxu0
      %v2762 = vadd.f32 0.0, %v2761
      %v2763 = vpop.f32.mrb[0].mxu0
      %2764 = vmatprep.mubr.bf16.mxu0 0
      %2765 = vmatmul.mubr.bf16.gmra.mrb[0].mxu0 %v2722
      %v2766 = vpop.f32.mrb[0].mxu0
      %v2767 = vadd.f32 0.0, %v2766
      %v2768 = vpop.f32.mrb[0].mxu0
      %v2769 = vpop.f32.mrb[0].mxu0
      %v2770 = vadd.f32 0.0, %v2769
      %v2771 = vpop.f32.mrb[0].mxu0
      %2772 = vdwg.mxu0
      %v2773 = vpack.c.bf16 %v2597, %v2594
      %v2774 = vpack.c.bf16 %v2605, %v2602
      %v2775 = vpack.c.bf16 %v2652, %v2649
      %v2776 = vpack.c.bf16 %v2660, %v2657
      %v2777 = vpack.c.bf16 %v2707, %v2704
      %v2778 = vpack.c.bf16 %v2715, %v2712
      %v2779 = vpack.c.bf16 %v2762, %v2759
      %v2780 = vpack.c.bf16 %v2770, %v2767
      %v2781 = vld [vmem:[%s8] sm:$0xf]
      %v2782 = vld [vmem:[%s8 + $0x4] sm:$0xf]
      %v2783 = vld [vmem:[%s8 + $0x8] sm:$0xf]
      %v2784 = vld [vmem:[%s8 + $0xc] sm:$0xf]
      %v2785 = vld [vmem:[%s8 + $0x10] sm:$0xf]
      %v2786 = vld [vmem:[%s8 + $0x14] sm:$0xf]
      %v2787 = vld [vmem:[%s8 + $0x18] sm:$0xf]
      %v2788 = vld [vmem:[%s8 + $0x1c] sm:$0xf]
      %v2789 = vld [vmem:[%s8 + $0x20] sm:$0xf]
      %v2790 = vld [vmem:[%s8 + $0x24] sm:$0xf]
      %v2791 = vld [vmem:[%s8 + $0x28] sm:$0xf]
      %v2792 = vld [vmem:[%s8 + $0x2c] sm:$0xf]
      %v2793 = vld [vmem:[%s8 + $0x30] sm:$0xf]
      %v2794 = vld [vmem:[%s8 + $0x34] sm:$0xf]
      %v2795 = vld [vmem:[%s8 + $0x38] sm:$0xf]
      %v2796 = vld [vmem:[%s8 + $0x3c] sm:$0xf]
      %v2797 = vld [vmem:[%s9] sm:$0x1]
      %v2799 = vlaneseq
      %v2800 = vshrl.u32 %v2799, 7
      %v2801 = vsub.s32 0, %v2800
      %v2802 = vrot.slane %v2797, %v2801
      %v2820 = vunpack.c.l.b16 %v2781
      %v2821 = vunpack.c.l.b16 %v2782
      %v2822 = vunpack.c.l.b16 %v2783
      %v2823 = vunpack.c.l.b16 %v2784
      %v2824 = vunpack.c.l.b16 %v2785
      %v2825 = vunpack.c.l.b16 %v2786
      %v2826 = vunpack.c.l.b16 %v2787
      %v2827 = vunpack.c.l.b16 %v2788
      %v2828 = vunpack.c.l.b16 %v2789
      %v2829 = vunpack.c.l.b16 %v2790
      %v2830 = vunpack.c.l.b16 %v2791
      %v2831 = vunpack.c.l.b16 %v2792
      %v2832 = vunpack.c.l.b16 %v2793
      %v2833 = vunpack.c.l.b16 %v2794
      %v2834 = vunpack.c.l.b16 %v2795
      %v2835 = vunpack.c.l.b16 %v2796
      %v2836 = vpack.c.b16 %v2821, %v2820
      %v2837 = vpack.c.b16 %v2823, %v2822
      %v2838 = vpack.c.b16 %v2825, %v2824
      %v2839 = vpack.c.b16 %v2827, %v2826
      %v2840 = vpack.c.b16 %v2829, %v2828
      %v2841 = vpack.c.b16 %v2831, %v2830
      %v2842 = vpack.c.b16 %v2833, %v2832
      %v2843 = vpack.c.b16 %v2835, %v2834
      %2852 = vmatprep.subr.bf16.mxu0 0
      %2853 = vmatpush1.bf16.msra.mxu0 %v2836
      %2854 = vmatprep.subr.bf16.mxu0 0
      %2855 = vmatpush1.bf16.msra.mxu0 %v2837
      %2856 = vmatprep.subr.bf16.mxu0 0
      %2857 = vmatpush1.bf16.msra.mxu0 %v2838
      %2858 = vmatprep.subr.bf16.mxu0 0
      %2859 = vmatpush1.bf16.msra.mxu0 %v2839
      %2860 = vmatprep.subr.bf16.mxu0 0
      %2861 = vmatpush1.bf16.msra.mxu0 %v2840
      %2862 = vmatprep.subr.bf16.mxu0 0
      %2863 = vmatpush1.bf16.msra.mxu0 %v2841
      %2864 = vmatprep.subr.bf16.mxu0 0
      %2865 = vmatpush1.bf16.msra.mxu0 %v2842
      %2866 = vmatprep.subr.bf16.mxu0 0
      %2867 = vmatpush1.bf16.msra.mxu0 %v2843
      %2868 = vmatprep.subr.bf16.mxu0 0
      %2869 = vmatpush1.bf16.msra.mxu0 0
      %2870 = vmatprep.subr.bf16.mxu0 0
      %2871 = vmatpush1.bf16.msra.mxu0 0
      %2872 = vmatprep.subr.bf16.mxu0 0
      %2873 = vmatpush1.bf16.msra.mxu0 0
      %2874 = vmatprep.subr.bf16.mxu0 0
      %2875 = vmatpush1.bf16.msra.mxu0 0
      %2876 = vmatprep.subr.bf16.mxu0 0
      %2877 = vmatpush1.bf16.msra.mxu0 0
      %2878 = vmatprep.subr.bf16.mxu0 0
      %2879 = vmatpush1.bf16.msra.mxu0 0
      %2880 = vmatprep.subr.bf16.mxu0 0
      %2881 = vmatpush1.bf16.msra.mxu0 0
      %2882 = vmatprep.subr.bf16.mxu0 0
      %2883 = vmatpush1.bf16.msra.mxu0 0
      %2884 = vmatprep.mubr.bf16.mxu0 0
      %2885 = vmatmul.mubr.bf16.gmra.mrb[0].mxu0 %v2773
      %v2886 = vpop.f32.mrb[0].mxu0
      %v2887 = vadd.f32 %v2802, %v2886
      %v2888 = vpop.f32.mrb[0].mxu0
      %v2889 = vpop.f32.mrb[0].mxu0
      %v2890 = vadd.f32 %v2802, %v2889
      %v2891 = vpop.f32.mrb[0].mxu0
      %2892 = vmatprep.mubr.bf16.mxu0 0
      %2893 = vmatmul.mubr.bf16.gmra.mrb[0].mxu0 %v2774
      %v2894 = vpop.f32.mrb[0].mxu0
      %v2895 = vadd.f32 %v2802, %v2894
      %v2896 = vpop.f32.mrb[0].mxu0
      %v2897 = vpop.f32.mrb[0].mxu0
      %v2898 = vadd.f32 %v2802, %v2897
      %v2899 = vpop.f32.mrb[0].mxu0
      %2900 = vmatprep.mubr.bf16.mxu0 0
      %2901 = vmatmul.mubr.bf16.gmra.mrb[0].mxu0 %v2775
      %v2902 = vpop.f32.mrb[0].mxu0
      %v2903 = vadd.f32 %v2802, %v2902
      %v2904 = vpop.f32.mrb[0].mxu0
      %v2905 = vpop.f32.mrb[0].mxu0
      %v2906 = vadd.f32 %v2802, %v2905
      %v2907 = vpop.f32.mrb[0].mxu0
      %2908 = vmatprep.mubr.bf16.mxu0 0
      %2909 = vmatmul.mubr.bf16.gmra.mrb[0].mxu0 %v2776
      %v2910 = vpop.f32.mrb[0].mxu0
      %v2911 = vadd.f32 %v2802, %v2910
      %v2912 = vpop.f32.mrb[0].mxu0
      %v2913 = vpop.f32.mrb[0].mxu0
      %v2914 = vadd.f32 %v2802, %v2913
      %v2915 = vpop.f32.mrb[0].mxu0
      %2916 = vmatprep.mubr.bf16.mxu0 0
      %2917 = vmatmul.mubr.bf16.gmra.mrb[0].mxu0 %v2777
      %v2918 = vpop.f32.mrb[0].mxu0
      %v2919 = vadd.f32 %v2802, %v2918
      %v2920 = vpop.f32.mrb[0].mxu0
      %v2921 = vpop.f32.mrb[0].mxu0
      %v2922 = vadd.f32 %v2802, %v2921
      %v2923 = vpop.f32.mrb[0].mxu0
      %2924 = vmatprep.mubr.bf16.mxu0 0
      %2925 = vmatmul.mubr.bf16.gmra.mrb[0].mxu0 %v2778
      %v2926 = vpop.f32.mrb[0].mxu0
      %v2927 = vadd.f32 %v2802, %v2926
      %v2928 = vpop.f32.mrb[0].mxu0
      %v2929 = vpop.f32.mrb[0].mxu0
      %v2930 = vadd.f32 %v2802, %v2929
      %v2931 = vpop.f32.mrb[0].mxu0
      %2932 = vmatprep.mubr.bf16.mxu0 0
      %2933 = vmatmul.mubr.bf16.gmra.mrb[0].mxu0 %v2779
      %v2934 = vpop.f32.mrb[0].mxu0
      %v2935 = vadd.f32 %v2802, %v2934
      %v2936 = vpop.f32.mrb[0].mxu0
      %v2937 = vpop.f32.mrb[0].mxu0
      %v2938 = vadd.f32 %v2802, %v2937
      %v2939 = vpop.f32.mrb[0].mxu0
      %2940 = vmatprep.mubr.bf16.mxu0 0
      %2941 = vmatmul.mubr.bf16.gmra.mrb[0].mxu0 %v2780
      %v2942 = vpop.f32.mrb[0].mxu0
      %v2943 = vadd.f32 %v2802, %v2942
      %v2944 = vpop.f32.mrb[0].mxu0
      %v2945 = vpop.f32.mrb[0].mxu0
      %v2946 = vadd.f32 %v2802, %v2945
      %v2947 = vpop.f32.mrb[0].mxu0
      %2948 = vdwg.mxu0
      %v2949 = vpack.c.bf16 %v2890, %v2887
      %v2950 = vpack.c.bf16 %v2898, %v2895
      %v2951 = vpack.c.bf16 %v2906, %v2903
      %v2952 = vpack.c.bf16 %v2914, %v2911
      %v2953 = vpack.c.bf16 %v2922, %v2919
      %v2954 = vpack.c.bf16 %v2930, %v2927
      %v2955 = vpack.c.bf16 %v2938, %v2935
      %v2956 = vpack.c.bf16 %v2946, %v2943
      %v2957 = vld [vmem:[%s10] sm:$0xf]
      %v2958 = vld [vmem:[%s10 + $0x4] sm:$0xf]
      %v2959 = vld [vmem:[%s10 + $0x8] sm:$0xf]
      %v2960 = vld [vmem:[%s10 + $0xc] sm:$0xf]
      %v2961 = vld [vmem:[%s10 + $0x10] sm:$0xf]
      %v2962 = vld [vmem:[%s10 + $0x14] sm:$0xf]
      %v2963 = vld [vmem:[%s10 + $0x18] sm:$0xf]
      %v2964 = vld [vmem:[%s10 + $0x1c] sm:$0xf]
      %v2969 = vunpack.c.l.b16 %v2961
      %v2970 = vunpack.c.l.b16 %v2962
      %v2971 = vunpack.c.l.b16 %v2963
      %v2972 = vunpack.c.l.b16 %v2964
      %v2973 = vpack.c.b16 %v2970, %v2969
      %v2974 = vpack.c.b16 %v2972, %v2971
      %2977 = vmatprep.subr.bf16.mxu0 0
      %2978 = vmatpush1.bf16.msra.mxu0 %v2973
      %2979 = vmatprep.subr.bf16.mxu0 0
      %2980 = vmatpush1.bf16.msra.mxu0 %v2974
      %2981 = vmatprep.subr.bf16.mxu0 0
      %2982 = vmatpush1.bf16.msra.mxu0 0
      %2983 = vmatprep.subr.bf16.mxu0 0
      %2984 = vmatpush1.bf16.msra.mxu0 0
      %2985 = vmatprep.subr.bf16.mxu0 0
      %2986 = vmatpush1.bf16.msra.mxu0 0
      %2987 = vmatprep.subr.bf16.mxu0 0
      %2988 = vmatpush1.bf16.msra.mxu0 0
      %2989 = vmatprep.subr.bf16.mxu0 0
      %2990 = vmatpush1.bf16.msra.mxu0 0
      %2991 = vmatprep.subr.bf16.mxu0 0
      %2992 = vmatpush1.bf16.msra.mxu0 0
      %2993 = vmatprep.subr.bf16.mxu0 0
      %2994 = vmatpush1.bf16.msra.mxu0 0
      %2995 = vmatprep.subr.bf16.mxu0 0
      %2996 = vmatpush1.bf16.msra.mxu0 0
      %2997 = vmatprep.subr.bf16.mxu0 0
      %2998 = vmatpush1.bf16.msra.mxu0 0
      %2999 = vmatprep.subr.bf16.mxu0 0
      %3000 = vmatpush1.bf16.msra.mxu0 0
      %3001 = vmatprep.subr.bf16.mxu0 0
      %3002 = vmatpush1.bf16.msra.mxu0 0
      %3003 = vmatprep.subr.bf16.mxu0 0
      %3004 = vmatpush1.bf16.msra.mxu0 0
      %3005 = vmatprep.subr.bf16.mxu0 0
      %3006 = vmatpush1.bf16.msra.mxu0 0
      %3007 = vmatprep.subr.bf16.mxu0 0
      %3008 = vmatpush1.bf16.msra.mxu0 0
      %3009 = vmatprep.mubr.bf16.mxu0 0
      %3010 = vmatmul.mubr.bf16.gmra.mrb[0].mxu0 %v1174
      %v3011 = vpop.f32.mrb[0].mxu0
      %v3012 = vadd.f32 0.0, %v3011
      %v3013 = vpop.f32.mrb[0].mxu0
      %v3014 = vpop.f32.mrb[0].mxu0
      %v3015 = vadd.f32 0.0, %v3014
      %v3016 = vpop.f32.mrb[0].mxu0
      %3017 = vmatprep.mubr.bf16.mxu0 0
      %3018 = vmatmul.mubr.bf16.gmra.mrb[0].mxu0 %v1177
      %v3019 = vpop.f32.mrb[0].mxu0
      %v3020 = vadd.f32 0.0, %v3019
      %v3021 = vpop.f32.mrb[0].mxu0
      %v3022 = vpop.f32.mrb[0].mxu0
      %v3023 = vadd.f32 0.0, %v3022
      %v3024 = vpop.f32.mrb[0].mxu0
      %3025 = vmatprep.mubr.bf16.mxu0 0
      %3026 = vmatmul.mubr.bf16.gmra.mrb[0].mxu0 %v1180
      %v3027 = vpop.f32.mrb[0].mxu0
      %v3028 = vadd.f32 0.0, %v3027
      %v3029 = vpop.f32.mrb[0].mxu0
      %v3030 = vpop.f32.mrb[0].mxu0
      %v3031 = vadd.f32 0.0, %v3030
      %v3032 = vpop.f32.mrb[0].mxu0
      %3033 = vmatprep.mubr.bf16.mxu0 0
      %3034 = vmatmul.mubr.bf16.gmra.mrb[0].mxu0 %v1183
      %v3035 = vpop.f32.mrb[0].mxu0
      %v3036 = vadd.f32 0.0, %v3035
      %v3037 = vpop.f32.mrb[0].mxu0
      %v3038 = vpop.f32.mrb[0].mxu0
      %v3039 = vadd.f32 0.0, %v3038
      %v3040 = vpop.f32.mrb[0].mxu0
      %3041 = vmatprep.mubr.bf16.mxu0 0
      %3042 = vmatmul.mubr.bf16.gmra.mrb[0].mxu0 %v1186
      %v3043 = vpop.f32.mrb[0].mxu0
      %v3044 = vadd.f32 0.0, %v3043
      %v3045 = vpop.f32.mrb[0].mxu0
      %v3046 = vpop.f32.mrb[0].mxu0
      %v3047 = vadd.f32 0.0, %v3046
      %v3048 = vpop.f32.mrb[0].mxu0
      %3049 = vmatprep.mubr.bf16.mxu0 0
      %3050 = vmatmul.mubr.bf16.gmra.mrb[0].mxu0 %v1189
      %v3051 = vpop.f32.mrb[0].mxu0
      %v3052 = vadd.f32 0.0, %v3051
      %v3053 = vpop.f32.mrb[0].mxu0
      %v3054 = vpop.f32.mrb[0].mxu0
      %v3055 = vadd.f32 0.0, %v3054
      %v3056 = vpop.f32.mrb[0].mxu0
      %3057 = vmatprep.mubr.bf16.mxu0 0
      %3058 = vmatmul.mubr.bf16.gmra.mrb[0].mxu0 %v1192
      %v3059 = vpop.f32.mrb[0].mxu0
      %v3060 = vadd.f32 0.0, %v3059
      %v3061 = vpop.f32.mrb[0].mxu0
      %v3062 = vpop.f32.mrb[0].mxu0
      %v3063 = vadd.f32 0.0, %v3062
      %v3064 = vpop.f32.mrb[0].mxu0
      %3065 = vmatprep.mubr.bf16.mxu0 0
      %3066 = vmatmul.mubr.bf16.gmra.mrb[0].mxu0 %v1195
      %v3067 = vpop.f32.mrb[0].mxu0
      %v3068 = vadd.f32 0.0, %v3067
      %v3069 = vpop.f32.mrb[0].mxu0
      %v3070 = vpop.f32.mrb[0].mxu0
      %v3071 = vadd.f32 0.0, %v3070
      %v3072 = vpop.f32.mrb[0].mxu0
      %3073 = vdwg.mxu0
      %v3078 = vunpack.c.l.b16 %v2957
      %v3079 = vunpack.c.l.b16 %v2958
      %v3080 = vunpack.c.l.b16 %v2959
      %v3081 = vunpack.c.l.b16 %v2960
      %v3082 = vpack.c.b16 %v3079, %v3078
      %v3083 = vpack.c.b16 %v3081, %v3080
      %v3087 = vsel %vm1172, %v2949, 0
      %v3090 = vsel %vm1172, %v2950, 0
      %v3093 = vsel %vm1172, %v2951, 0
      %v3096 = vsel %vm1172, %v2952, 0
      %v3099 = vsel %vm1172, %v2953, 0
      %v3102 = vsel %vm1172, %v2954, 0
      %v3105 = vsel %vm1172, %v2955, 0
      %v3108 = vsel %vm1172, %v2956, 0
      %3110 = vmatprep.subr.bf16.mxu0 0
      %3111 = vmatpush1.bf16.msra.mxu0 %v3082
      %3112 = vmatprep.subr.bf16.mxu0 0
      %3113 = vmatpush1.bf16.msra.mxu0 %v3083
      %3114 = vmatprep.subr.bf16.mxu0 0
      %3115 = vmatpush1.bf16.msra.mxu0 0
      %3116 = vmatprep.subr.bf16.mxu0 0
      %3117 = vmatpush1.bf16.msra.mxu0 0
      %3118 = vmatprep.subr.bf16.mxu0 0
      %3119 = vmatpush1.bf16.msra.mxu0 0
      %3120 = vmatprep.subr.bf16.mxu0 0
      %3121 = vmatpush1.bf16.msra.mxu0 0
      %3122 = vmatprep.subr.bf16.mxu0 0
      %3123 = vmatpush1.bf16.msra.mxu0 0
      %3124 = vmatprep.subr.bf16.mxu0 0
      %3125 = vmatpush1.bf16.msra.mxu0 0
      %3126 = vmatprep.subr.bf16.mxu0 0
      %3127 = vmatpush1.bf16.msra.mxu0 0
      %3128 = vmatprep.subr.bf16.mxu0 0
      %3129 = vmatpush1.bf16.msra.mxu0 0
      %3130 = vmatprep.subr.bf16.mxu0 0
      %3131 = vmatpush1.bf16.msra.mxu0 0
      %3132 = vmatprep.subr.bf16.mxu0 0
      %3133 = vmatpush1.bf16.msra.mxu0 0
      %3134 = vmatprep.subr.bf16.mxu0 0
      %3135 = vmatpush1.bf16.msra.mxu0 0
      %3136 = vmatprep.subr.bf16.mxu0 0
      %3137 = vmatpush1.bf16.msra.mxu0 0
      %3138 = vmatprep.subr.bf16.mxu0 0
      %3139 = vmatpush1.bf16.msra.mxu0 0
      %3140 = vmatprep.subr.bf16.mxu0 0
      %3141 = vmatpush1.bf16.msra.mxu0 0
      %3142 = vmatprep.mubr.bf16.mxu0 0
      %3143 = vmatmul.mubr.bf16.gmra.mrb[0].mxu0 %v3087
      %v3144 = vpop.f32.mrb[0].mxu0
      %v3145 = vadd.f32 %v3012, %v3144
      %v3146 = vpop.f32.mrb[0].mxu0
      %v3147 = vpop.f32.mrb[0].mxu0
      %v3148 = vadd.f32 %v3015, %v3147
      %v3149 = vpop.f32.mrb[0].mxu0
      %3150 = vmatprep.mubr.bf16.mxu0 0
      %3151 = vmatmul.mubr.bf16.gmra.mrb[0].mxu0 %v3090
      %v3152 = vpop.f32.mrb[0].mxu0
      %v3153 = vadd.f32 %v3020, %v3152
      %v3154 = vpop.f32.mrb[0].mxu0
      %v3155 = vpop.f32.mrb[0].mxu0
      %v3156 = vadd.f32 %v3023, %v3155
      %v3157 = vpop.f32.mrb[0].mxu0
      %3158 = vmatprep.mubr.bf16.mxu0 0
      %3159 = vmatmul.mubr.bf16.gmra.mrb[0].mxu0 %v3093
      %v3160 = vpop.f32.mrb[0].mxu0
      %v3161 = vadd.f32 %v3028, %v3160
      %v3162 = vpop.f32.mrb[0].mxu0
      %v3163 = vpop.f32.mrb[0].mxu0
      %v3164 = vadd.f32 %v3031, %v3163
      %v3165 = vpop.f32.mrb[0].mxu0
      %3166 = vmatprep.mubr.bf16.mxu0 0
      %3167 = vmatmul.mubr.bf16.gmra.mrb[0].mxu0 %v3096
      %v3168 = vpop.f32.mrb[0].mxu0
      %v3169 = vadd.f32 %v3036, %v3168
      %v3170 = vpop.f32.mrb[0].mxu0
      %v3171 = vpop.f32.mrb[0].mxu0
      %v3172 = vadd.f32 %v3039, %v3171
      %v3173 = vpop.f32.mrb[0].mxu0
      %3174 = vmatprep.mubr.bf16.mxu0 0
      %3175 = vmatmul.mubr.bf16.gmra.mrb[0].mxu0 %v3099
      %v3176 = vpop.f32.mrb[0].mxu0
      %v3177 = vadd.f32 %v3044, %v3176
      %v3178 = vpop.f32.mrb[0].mxu0
      %v3179 = vpop.f32.mrb[0].mxu0
      %v3180 = vadd.f32 %v3047, %v3179
      %v3181 = vpop.f32.mrb[0].mxu0
      %3182 = vmatprep.mubr.bf16.mxu0 0
      %3183 = vmatmul.mubr.bf16.gmra.mrb[0].mxu0 %v3102
      %v3184 = vpop.f32.mrb[0].mxu0
      %v3185 = vadd.f32 %v3052, %v3184
      %v3186 = vpop.f32.mrb[0].mxu0
      %v3187 = vpop.f32.mrb[0].mxu0
      %v3188 = vadd.f32 %v3055, %v3187
      %v3189 = vpop.f32.mrb[0].mxu0
      %3190 = vmatprep.mubr.bf16.mxu0 0
      %3191 = vmatmul.mubr.bf16.gmra.mrb[0].mxu0 %v3105
      %v3192 = vpop.f32.mrb[0].mxu0
      %v3193 = vadd.f32 %v3060, %v3192
      %v3194 = vpop.f32.mrb[0].mxu0
      %v3195 = vpop.f32.mrb[0].mxu0
      %v3196 = vadd.f32 %v3063, %v3195
      %v3197 = vpop.f32.mrb[0].mxu0
      %3198 = vmatprep.mubr.bf16.mxu0 0
      %3199 = vmatmul.mubr.bf16.gmra.mrb[0].mxu0 %v3108
      %v3200 = vpop.f32.mrb[0].mxu0
      %v3201 = vadd.f32 %v3068, %v3200
      %v3202 = vpop.f32.mrb[0].mxu0
      %v3203 = vpop.f32.mrb[0].mxu0
      %v3204 = vadd.f32 %v3071, %v3203
      %v3205 = vpop.f32.mrb[0].mxu0
      %3206 = vdwg.mxu0
      %v3207 = vld [vmem:[%s11] sm:$0x1]
      %v3209 = vlaneseq
      %v3210 = vshrl.u32 %v3209, 7
      %v3211 = vsub.s32 0, %v3210
      %v3212 = vrot.slane %v3207, %v3211
      %v3214 = vadd.f32 %v3145, %v3212
      %v3215 = vadd.f32 %v3148, %v3212
      %v3216 = vadd.f32 %v3153, %v3212
      %v3217 = vadd.f32 %v3156, %v3212
      %v3218 = vadd.f32 %v3161, %v3212
      %v3219 = vadd.f32 %v3164, %v3212
      %v3220 = vadd.f32 %v3169, %v3212
      %v3221 = vadd.f32 %v3172, %v3212
      %v3222 = vadd.f32 %v3177, %v3212
      %v3223 = vadd.f32 %v3180, %v3212
      %v3224 = vadd.f32 %v3185, %v3212
      %v3225 = vadd.f32 %v3188, %v3212
      %v3226 = vadd.f32 %v3193, %v3212
      %v3227 = vadd.f32 %v3196, %v3212
      %v3228 = vadd.f32 %v3201, %v3212
      %v3229 = vadd.f32 %v3204, %v3212
      %v3230 = vxor.u32 %v3214, 2147483648
      %v3231 = vxor.u32 %v3215, 2147483648
      %v3232 = vxor.u32 %v3216, 2147483648
      %v3233 = vxor.u32 %v3217, 2147483648
      %v3234 = vxor.u32 %v3218, 2147483648
      %v3235 = vxor.u32 %v3219, 2147483648
      %v3236 = vxor.u32 %v3220, 2147483648
      %v3237 = vxor.u32 %v3221, 2147483648
      %v3238 = vxor.u32 %v3222, 2147483648
      %v3239 = vxor.u32 %v3223, 2147483648
      %v3240 = vxor.u32 %v3224, 2147483648
      %v3241 = vxor.u32 %v3225, 2147483648
      %v3242 = vxor.u32 %v3226, 2147483648
      %v3243 = vxor.u32 %v3227, 2147483648
      %v3244 = vxor.u32 %v3228, 2147483648
      %v3245 = vxor.u32 %v3229, 2147483648
      %v3246 = vmul.f32 %v3230, 1.442695
      %v3247 = vpow.pop %v3246
      %v3248 = vmul.f32 %v3231, 1.442695
      %v3249 = vpow.pop %v3248
      %v3250 = vmul.f32 %v3232, 1.442695
      %v3251 = vpow.pop %v3250
      %v3252 = vmul.f32 %v3233, 1.442695
      %v3253 = vpow.pop %v3252
      %v3254 = vmul.f32 %v3234, 1.442695
      %v3255 = vpow.pop %v3254
      %v3256 = vmul.f32 %v3235, 1.442695
      %v3257 = vpow.pop %v3256
      %v3258 = vmul.f32 %v3236, 1.442695
      %v3259 = vpow.pop %v3258
      %v3260 = vmul.f32 %v3237, 1.442695
      %v3261 = vpow.pop %v3260
      %v3262 = vmul.f32 %v3238, 1.442695
      %v3263 = vpow.pop %v3262
      %v3264 = vmul.f32 %v3239, 1.442695
      %v3265 = vpow.pop %v3264
      %v3266 = vmul.f32 %v3240, 1.442695
      %v3267 = vpow.pop %v3266
      %v3268 = vmul.f32 %v3241, 1.442695
      %v3269 = vpow.pop %v3268
      %v3270 = vmul.f32 %v3242, 1.442695
      %v3271 = vpow.pop %v3270
      %v3272 = vmul.f32 %v3243, 1.442695
      %v3273 = vpow.pop %v3272
      %v3274 = vmul.f32 %v3244, 1.442695
      %v3275 = vpow.pop %v3274
      %v3276 = vmul.f32 %v3245, 1.442695
      %v3277 = vpow.pop %v3276
      %v3278 = vadd.f32 %v3247, 1.0
      %v3279 = vadd.f32 %v3249, 1.0
      %v3280 = vadd.f32 %v3251, 1.0
      %v3281 = vadd.f32 %v3253, 1.0
      %v3282 = vadd.f32 %v3255, 1.0
      %v3283 = vadd.f32 %v3257, 1.0
      %v3284 = vadd.f32 %v3259, 1.0
      %v3285 = vadd.f32 %v3261, 1.0
      %v3286 = vadd.f32 %v3263, 1.0
      %v3287 = vadd.f32 %v3265, 1.0
      %v3288 = vadd.f32 %v3267, 1.0
      %v3289 = vadd.f32 %v3269, 1.0
      %v3290 = vadd.f32 %v3271, 1.0
      %v3291 = vadd.f32 %v3273, 1.0
      %v3292 = vadd.f32 %v3275, 1.0
      %v3293 = vadd.f32 %v3277, 1.0
      %v3294 = vrcp.pop %v3278
      %v3295 = vmul.f32 1.0, %v3294
      %v3296 = vrcp.pop %v3279
      %v3297 = vmul.f32 1.0, %v3296
      %v3298 = vrcp.pop %v3280
      %v3299 = vmul.f32 1.0, %v3298
      %v3300 = vrcp.pop %v3281
      %v3301 = vmul.f32 1.0, %v3300
      %v3302 = vrcp.pop %v3282
      %v3303 = vmul.f32 1.0, %v3302
      %v3304 = vrcp.pop %v3283
      %v3305 = vmul.f32 1.0, %v3304
      %v3306 = vrcp.pop %v3284
      %v3307 = vmul.f32 1.0, %v3306
      %v3308 = vrcp.pop %v3285
      %v3309 = vmul.f32 1.0, %v3308
      %v3310 = vrcp.pop %v3286
      %v3311 = vmul.f32 1.0, %v3310
      %v3312 = vrcp.pop %v3287
      %v3313 = vmul.f32 1.0, %v3312
      %v3314 = vrcp.pop %v3288
      %v3315 = vmul.f32 1.0, %v3314
      %v3316 = vrcp.pop %v3289
      %v3317 = vmul.f32 1.0, %v3316
      %v3318 = vrcp.pop %v3290
      %v3319 = vmul.f32 1.0, %v3318
      %v3320 = vrcp.pop %v3291
      %v3321 = vmul.f32 1.0, %v3320
      %v3322 = vrcp.pop %v3292
      %v3323 = vmul.f32 1.0, %v3322
      %v3324 = vrcp.pop %v3293
      %v3325 = vmul.f32 1.0, %v3324
      %v3326 = vmul.f32 %v3295, %v2887
      %v3327 = vmul.f32 %v3297, %v2890
      %v3328 = vmul.f32 %v3299, %v2895
      %v3329 = vmul.f32 %v3301, %v2898
      %v3330 = vmul.f32 %v3303, %v2903
      %v3331 = vmul.f32 %v3305, %v2906
      %v3332 = vmul.f32 %v3307, %v2911
      %v3333 = vmul.f32 %v3309, %v2914
      %v3334 = vmul.f32 %v3311, %v2919
      %v3335 = vmul.f32 %v3313, %v2922
      %v3336 = vmul.f32 %v3315, %v2927
      %v3337 = vmul.f32 %v3317, %v2930
      %v3338 = vmul.f32 %v3319, %v2935
      %v3339 = vmul.f32 %v3321, %v2938
      %v3340 = vmul.f32 %v3323, %v2943
      %v3341 = vmul.f32 %v3325, %v2946
      %v3342 = vadd.f32 %v497, %v3326
      %v3343 = vadd.f32 %v498, %v3327
      %v3344 = vadd.f32 %v499, %v3328
      %v3345 = vadd.f32 %v500, %v3329
      %v3346 = vadd.f32 %v501, %v3330
      %v3347 = vadd.f32 %v502, %v3331
      %v3348 = vadd.f32 %v503, %v3332
      %v3349 = vadd.f32 %v504, %v3333
      %v3350 = vadd.f32 %v505, %v3334
      %v3351 = vadd.f32 %v506, %v3335
      %v3352 = vadd.f32 %v507, %v3336
      %v3353 = vadd.f32 %v508, %v3337
      %v3354 = vadd.f32 %v509, %v3338
      %v3355 = vadd.f32 %v510, %v3339
      %v3356 = vadd.f32 %v511, %v3340
      %v3357 = vadd.f32 %v512, %v3341
      %v3358 = vsel %vm1172, %v3342, 0.0
      %3359 = vadd.xlane.f32.xlu0 %v3358
      %v3360 = vpop.xlane.xlu0 %3359
      %v3361 = vsel %vm1172, %v3343, 0.0
      %3362 = vadd.xlane.f32.xlu0 %v3361
      %v3363 = vpop.xlane.xlu0 %3362
      %v3364 = vsel %vm1172, %v3344, 0.0
      %3365 = vadd.xlane.f32.xlu0 %v3364
      %v3366 = vpop.xlane.xlu0 %3365
      %v3367 = vsel %vm1172, %v3345, 0.0
      %3368 = vadd.xlane.f32.xlu0 %v3367
      %v3369 = vpop.xlane.xlu0 %3368
      %v3370 = vsel %vm1172, %v3346, 0.0
      %3371 = vadd.xlane.f32.xlu0 %v3370
      %v3372 = vpop.xlane.xlu0 %3371
      %v3373 = vsel %vm1172, %v3347, 0.0
      %3374 = vadd.xlane.f32.xlu0 %v3373
      %v3375 = vpop.xlane.xlu0 %3374
      %v3376 = vsel %vm1172, %v3348, 0.0
      %3377 = vadd.xlane.f32.xlu0 %v3376
      %v3378 = vpop.xlane.xlu0 %3377
      %v3379 = vsel %vm1172, %v3349, 0.0
      %3380 = vadd.xlane.f32.xlu0 %v3379
      %v3381 = vpop.xlane.xlu0 %3380
      %v3382 = vsel %vm1172, %v3350, 0.0
      %3383 = vadd.xlane.f32.xlu0 %v3382
      %v3384 = vpop.xlane.xlu0 %3383
      %v3385 = vsel %vm1172, %v3351, 0.0
      %3386 = vadd.xlane.f32.xlu0 %v3385
      %v3387 = vpop.xlane.xlu0 %3386
      %v3388 = vsel %vm1172, %v3352, 0.0
      %3389 = vadd.xlane.f32.xlu0 %v3388
      %v3390 = vpop.xlane.xlu0 %3389
      %v3391 = vsel %vm1172, %v3353, 0.0
      %3392 = vadd.xlane.f32.xlu0 %v3391
      %v3393 = vpop.xlane.xlu0 %3392
      %v3394 = vsel %vm1172, %v3354, 0.0
      %3395 = vadd.xlane.f32.xlu0 %v3394
      %v3396 = vpop.xlane.xlu0 %3395
      %v3397 = vsel %vm1172, %v3355, 0.0
      %3398 = vadd.xlane.f32.xlu0 %v3397
      %v3399 = vpop.xlane.xlu0 %3398
      %v3400 = vsel %vm1172, %v3356, 0.0
      %3401 = vadd.xlane.f32.xlu0 %v3400
      %v3402 = vpop.xlane.xlu0 %3401
      %v3403 = vsel %vm1172, %v3357, 0.0
      %3404 = vadd.xlane.f32.xlu0 %v3403
      %v3405 = vpop.xlane.xlu0 %3404
      %v3406 = vrcp.pop 32.0
      %v3407 = vmul.f32 %v3360, %v3406
      %v3408 = vmul.f32 %v3363, %v3406
      %v3409 = vmul.f32 %v3366, %v3406
      %v3410 = vmul.f32 %v3369, %v3406
      %v3411 = vmul.f32 %v3372, %v3406
      %v3412 = vmul.f32 %v3375, %v3406
      %v3413 = vmul.f32 %v3378, %v3406
      %v3414 = vmul.f32 %v3381, %v3406
      %v3415 = vmul.f32 %v3384, %v3406
      %v3416 = vmul.f32 %v3387, %v3406
      %v3417 = vmul.f32 %v3390, %v3406
      %v3418 = vmul.f32 %v3393, %v3406
      %v3419 = vmul.f32 %v3396, %v3406
      %v3420 = vmul.f32 %v3399, %v3406
      %v3421 = vmul.f32 %v3402, %v3406
      %v3422 = vmul.f32 %v3405, %v3406
      %v3423 = vsub.f32 %v3342, %v3407
      %v3424 = vsub.f32 %v3343, %v3408
      %v3425 = vsub.f32 %v3344, %v3409
      %v3426 = vsub.f32 %v3345, %v3410
      %v3427 = vsub.f32 %v3346, %v3411
      %v3428 = vsub.f32 %v3347, %v3412
      %v3429 = vsub.f32 %v3348, %v3413
      %v3430 = vsub.f32 %v3349, %v3414
      %v3431 = vsub.f32 %v3350, %v3415
      %v3432 = vsub.f32 %v3351, %v3416
      %v3433 = vsub.f32 %v3352, %v3417
      %v3434 = vsub.f32 %v3353, %v3418
      %v3435 = vsub.f32 %v3354, %v3419
      %v3436 = vsub.f32 %v3355, %v3420
      %v3437 = vsub.f32 %v3356, %v3421
      %v3438 = vsub.f32 %v3357, %v3422
      %v3439 = vmul.f32 %v3423, %v3423
      %v3440 = vmul.f32 %v3424, %v3424
      %v3441 = vmul.f32 %v3425, %v3425
      %v3442 = vmul.f32 %v3426, %v3426
      %v3443 = vmul.f32 %v3427, %v3427
      %v3444 = vmul.f32 %v3428, %v3428
      %v3445 = vmul.f32 %v3429, %v3429
      %v3446 = vmul.f32 %v3430, %v3430
      %v3447 = vmul.f32 %v3431, %v3431
      %v3448 = vmul.f32 %v3432, %v3432
      %v3449 = vmul.f32 %v3433, %v3433
      %v3450 = vmul.f32 %v3434, %v3434
      %v3451 = vmul.f32 %v3435, %v3435
      %v3452 = vmul.f32 %v3436, %v3436
      %v3453 = vmul.f32 %v3437, %v3437
      %v3454 = vmul.f32 %v3438, %v3438
      %v3455 = vsel %vm1172, %v3439, 0.0
      %3456 = vadd.xlane.f32.xlu0 %v3455
      %v3457 = vpop.xlane.xlu0 %3456
      %v3458 = vsel %vm1172, %v3440, 0.0
      %3459 = vadd.xlane.f32.xlu0 %v3458
      %v3460 = vpop.xlane.xlu0 %3459
      %v3461 = vsel %vm1172, %v3441, 0.0
      %3462 = vadd.xlane.f32.xlu0 %v3461
      %v3463 = vpop.xlane.xlu0 %3462
      %v3464 = vsel %vm1172, %v3442, 0.0
      %3465 = vadd.xlane.f32.xlu0 %v3464
      %v3466 = vpop.xlane.xlu0 %3465
      %v3467 = vsel %vm1172, %v3443, 0.0
      %3468 = vadd.xlane.f32.xlu0 %v3467
      %v3469 = vpop.xlane.xlu0 %3468
      %v3470 = vsel %vm1172, %v3444, 0.0
      %3471 = vadd.xlane.f32.xlu0 %v3470
      %v3472 = vpop.xlane.xlu0 %3471
      %v3473 = vsel %vm1172, %v3445, 0.0
      %3474 = vadd.xlane.f32.xlu0 %v3473
      %v3475 = vpop.xlane.xlu0 %3474
      %v3476 = vsel %vm1172, %v3446, 0.0
      %3477 = vadd.xlane.f32.xlu0 %v3476
      %v3478 = vpop.xlane.xlu0 %3477
      %v3479 = vsel %vm1172, %v3447, 0.0
      %3480 = vadd.xlane.f32.xlu0 %v3479
      %v3481 = vpop.xlane.xlu0 %3480
      %v3482 = vsel %vm1172, %v3448, 0.0
      %3483 = vadd.xlane.f32.xlu0 %v3482
      %v3484 = vpop.xlane.xlu0 %3483
      %v3485 = vsel %vm1172, %v3449, 0.0
      %3486 = vadd.xlane.f32.xlu0 %v3485
      %v3487 = vpop.xlane.xlu0 %3486
      %v3488 = vsel %vm1172, %v3450, 0.0
      %3489 = vadd.xlane.f32.xlu0 %v3488
      %v3490 = vpop.xlane.xlu0 %3489
      %v3491 = vsel %vm1172, %v3451, 0.0
      %3492 = vadd.xlane.f32.xlu0 %v3491
      %v3493 = vpop.xlane.xlu0 %3492
      %v3494 = vsel %vm1172, %v3452, 0.0
      %3495 = vadd.xlane.f32.xlu0 %v3494
      %v3496 = vpop.xlane.xlu0 %3495
      %v3497 = vsel %vm1172, %v3453, 0.0
      %3498 = vadd.xlane.f32.xlu0 %v3497
      %v3499 = vpop.xlane.xlu0 %3498
      %v3500 = vsel %vm1172, %v3454, 0.0
      %3501 = vadd.xlane.f32.xlu0 %v3500
      %v3502 = vpop.xlane.xlu0 %3501
      %v3503 = vmul.f32 %v3457, %v3406
      %v3504 = vmul.f32 %v3460, %v3406
      %v3505 = vmul.f32 %v3463, %v3406
      %v3506 = vmul.f32 %v3466, %v3406
      %v3507 = vmul.f32 %v3469, %v3406
      %v3508 = vmul.f32 %v3472, %v3406
      %v3509 = vmul.f32 %v3475, %v3406
      %v3510 = vmul.f32 %v3478, %v3406
      %v3511 = vmul.f32 %v3481, %v3406
      %v3512 = vmul.f32 %v3484, %v3406
      %v3513 = vmul.f32 %v3487, %v3406
      %v3514 = vmul.f32 %v3490, %v3406
      %v3515 = vmul.f32 %v3493, %v3406
      %v3516 = vmul.f32 %v3496, %v3406
      %v3517 = vmul.f32 %v3499, %v3406
      %v3518 = vmul.f32 %v3502, %v3406
      %v3519 = vadd.f32 %v3503, 1e-05
      %v3520 = vadd.f32 %v3504, 1e-05
      %v3521 = vadd.f32 %v3505, 1e-05
      %v3522 = vadd.f32 %v3506, 1e-05
      %v3523 = vadd.f32 %v3507, 1e-05
      %v3524 = vadd.f32 %v3508, 1e-05
      %v3525 = vadd.f32 %v3509, 1e-05
      %v3526 = vadd.f32 %v3510, 1e-05
      %v3527 = vadd.f32 %v3511, 1e-05
      %v3528 = vadd.f32 %v3512, 1e-05
      %v3529 = vadd.f32 %v3513, 1e-05
      %v3530 = vadd.f32 %v3514, 1e-05
      %v3531 = vadd.f32 %v3515, 1e-05
      %v3532 = vadd.f32 %v3516, 1e-05
      %v3533 = vadd.f32 %v3517, 1e-05
      %v3534 = vadd.f32 %v3518, 1e-05
      %v3535 = vrsqrt.pop %v3519
      %v3536 = vrsqrt.pop %v3520
      %v3537 = vrsqrt.pop %v3521
      %v3538 = vrsqrt.pop %v3522
      %v3539 = vrsqrt.pop %v3523
      %v3540 = vrsqrt.pop %v3524
      %v3541 = vrsqrt.pop %v3525
      %v3542 = vrsqrt.pop %v3526
      %v3543 = vrsqrt.pop %v3527
      %v3544 = vrsqrt.pop %v3528
      %v3545 = vrsqrt.pop %v3529
      %v3546 = vrsqrt.pop %v3530
      %v3547 = vrsqrt.pop %v3531
      %v3548 = vrsqrt.pop %v3532
      %v3549 = vrsqrt.pop %v3533
      %v3550 = vrsqrt.pop %v3534
      %v3551 = vmul.f32 %v3423, %v3535
      %v3552 = vmul.f32 %v3424, %v3536
      %v3553 = vmul.f32 %v3425, %v3537
      %v3554 = vmul.f32 %v3426, %v3538
      %v3555 = vmul.f32 %v3427, %v3539
      %v3556 = vmul.f32 %v3428, %v3540
      %v3557 = vmul.f32 %v3429, %v3541
      %v3558 = vmul.f32 %v3430, %v3542
      %v3559 = vmul.f32 %v3431, %v3543
      %v3560 = vmul.f32 %v3432, %v3544
      %v3561 = vmul.f32 %v3433, %v3545
      %v3562 = vmul.f32 %v3434, %v3546
      %v3563 = vmul.f32 %v3435, %v3547
      %v3564 = vmul.f32 %v3436, %v3548
      %v3565 = vmul.f32 %v3437, %v3549
      %v3566 = vmul.f32 %v3438, %v3550
      %v3567 = vld [vmem:[%s12] sm:$0x1]
      %v3569 = vlaneseq
      %v3570 = vshrl.u32 %v3569, 7
      %v3571 = vsub.s32 0, %v3570
      %v3572 = vrot.slane %v3567, %v3571
      %v3574 = vmul.f32 %v3551, %v3572
      %v3575 = vmul.f32 %v3552, %v3572
      %v3576 = vmul.f32 %v3553, %v3572
      %v3577 = vmul.f32 %v3554, %v3572
      %v3578 = vmul.f32 %v3555, %v3572
      %v3579 = vmul.f32 %v3556, %v3572
      %v3580 = vmul.f32 %v3557, %v3572
      %v3581 = vmul.f32 %v3558, %v3572
      %v3582 = vmul.f32 %v3559, %v3572
      %v3583 = vmul.f32 %v3560, %v3572
      %v3584 = vmul.f32 %v3561, %v3572
      %v3585 = vmul.f32 %v3562, %v3572
      %v3586 = vmul.f32 %v3563, %v3572
      %v3587 = vmul.f32 %v3564, %v3572
      %v3588 = vmul.f32 %v3565, %v3572
      %v3589 = vmul.f32 %v3566, %v3572
      %v3590 = vld [vmem:[%s13] sm:$0x1]
      %v3592 = vlaneseq
      %v3593 = vshrl.u32 %v3592, 7
      %v3594 = vsub.s32 0, %v3593
      %v3595 = vrot.slane %v3590, %v3594
      %v3597 = vadd.f32 %v3574, %v3595
      %v3598 = vadd.f32 %v3575, %v3595
      %v3599 = vadd.f32 %v3576, %v3595
      %v3600 = vadd.f32 %v3577, %v3595
      %v3601 = vadd.f32 %v3578, %v3595
      %v3602 = vadd.f32 %v3579, %v3595
      %v3603 = vadd.f32 %v3580, %v3595
      %v3604 = vadd.f32 %v3581, %v3595
      %v3605 = vadd.f32 %v3582, %v3595
      %v3606 = vadd.f32 %v3583, %v3595
      %v3607 = vadd.f32 %v3584, %v3595
      %v3608 = vadd.f32 %v3585, %v3595
      %v3609 = vadd.f32 %v3586, %v3595
      %v3610 = vadd.f32 %v3587, %v3595
      %v3611 = vadd.f32 %v3588, %v3595
      %v3612 = vadd.f32 %v3589, %v3595
      %3613 = vst.msk [vmem:[%s494] sm:$0xff] %vm1172, %v3597
      %3614 = vst.msk [vmem:[%s494 + $0x8] sm:$0xff] %vm1172, %v3598
      %3615 = vst.msk [vmem:[%s494 + $0x10] sm:$0xff] %vm1172, %v3599
      %3616 = vst.msk [vmem:[%s494 + $0x18] sm:$0xff] %vm1172, %v3600
      %3617 = vst.msk [vmem:[%s494 + $0x20] sm:$0xff] %vm1172, %v3601
      %3618 = vst.msk [vmem:[%s494 + $0x28] sm:$0xff] %vm1172, %v3602
      %3619 = vst.msk [vmem:[%s494 + $0x30] sm:$0xff] %vm1172, %v3603
      %3620 = vst.msk [vmem:[%s494 + $0x38] sm:$0xff] %vm1172, %v3604
      %3621 = vst.msk [vmem:[%s494 + $0x40] sm:$0xff] %vm1172, %v3605
      %3622 = vst.msk [vmem:[%s494 + $0x48] sm:$0xff] %vm1172, %v3606
      %3623 = vst.msk [vmem:[%s494 + $0x50] sm:$0xff] %vm1172, %v3607
      %3624 = vst.msk [vmem:[%s494 + $0x58] sm:$0xff] %vm1172, %v3608
      %3625 = vst.msk [vmem:[%s494 + $0x60] sm:$0xff] %vm1172, %v3609
      %3626 = vst.msk [vmem:[%s494 + $0x68] sm:$0xff] %vm1172, %v3610
      %3627 = vst.msk [vmem:[%s494 + $0x70] sm:$0xff] %vm1172, %v3611
      %3628 = vst.msk [vmem:[%s494 + $0x78] sm:$0xff] %vm1172, %v3612
      %s3629 = smul.u32 16, %s25
      %p3630 = scmp.lt.s32.totalorder %s3629, 31
      %s3631 = scalar_select %p3630, %s3629, 31
      %s3632 = smul.addr %s3631, 8
      %s3633 = scalar_lea.vmem %s14, %s3632
      // Predicated region
      $region77: #{tpu_custom_call.1} parent=75 // pred_check
        %p3634 = pneg %p347
      $region78: #{tpu_custom_call.1} parent=75 // pred_check_branch
        %3636 = sbr.rel (%p3634) target = $region80
      $region79: #{tpu_custom_call.1} parent=75 // pred_region
        %s3637 = smul.u32 16, %s25
      $region80: #{tpu_custom_call.1} parent=75 // pred_fallthru
        _
    $region76: #{tpu_custom_call.1} parent=5 // pred_fallthru
      _
    %p3638 = scmp.le.s32.totalorder 2, %s20
    // Predicated region
    $region81: #{tpu_custom_call.1} parent=5 // pred_check
      %p3639 = pneg %p3638
    $region82: #{tpu_custom_call.1} parent=5 // pred_check_branch
      %3641 = sbr.rel (%p3639) target = $region84
    $region83: #{tpu_custom_call.1} parent=5 // pred_region
      %s3642 = ssub.s32 %s20, 2
      // Predicated region
      $region85: #{tpu_custom_call.1} parent=83 // pred_check
        %p3643 = pneg %p353
      $region86: #{tpu_custom_call.1} parent=83 // pred_check_branch
        %3645 = sbr.rel (%p3643) target = $region88
      $region87: #{tpu_custom_call.1} parent=83 // pred_region
        %s3646 = smul.u32 16, %s26
        %p3647 = scmp.lt.s32.totalorder %s3646, 31
        %s3648 = scalar_select %p3647, %s3646, 31
        %s3649 = smul.addr %s3648, 8
        %s3650 = scalar_lea.vmem %s14, %s3649
      $region88: #{tpu_custom_call.1} parent=83 // pred_fallthru
        _
    $region84: #{tpu_custom_call.1} parent=5 // pred_fallthru
      _
  $region6: #{tpu_custom_call.1} parent=0 // loop_footer
    %s24 = sadd.s32 1, %s20
  $region7: #{tpu_custom_call.1} parent=0 // loop_footer_branch
    %19 = sbr.rel target = $region3
  $region8: #{tpu_custom_call.1} parent=0 // loop_exit
    _

// kernel: tpu_custom_call.1
$region0: #{tpu_custom_call.1}
  #allocation0 [shape = 'u32[]', space=smem, size = 0x4, offset = 0x4, fixed_abs, tag = 'smem constant byte address 0x4 - core index']
  #allocation1 [shape = 'u32[144,128]{1,0:T(1,128)}', space=vmem, size = 0x12000, scoped, tag = 'internal scratch']
  %s0 = inlined_call_operand.vmem [shape: f32[256,32], index: 0, kind: input, shape index: {}]
  %s1 = inlined_call_operand.vmem [shape: bf16[8,16,128], index: 1, kind: input, shape index: {}]
  %s2 = inlined_call_operand.vmem [shape: bf16[32,16], index: 2, kind: input, shape index: {}]
  %s3 = inlined_call_operand.vmem [shape: bf16[128,384], index: 3, kind: input, shape index: {}]
  %s4 = inlined_call_operand.vmem [shape: f32[1,384], index: 4, kind: input, shape index: {}]
  %s5 = inlined_call_operand.vmem [shape: bf16[32,256], index: 5, kind: input, shape index: {}]
  %s6 = inlined_call_operand.vmem [shape: bf16[128,2], index: 6, kind: input, shape index: {}]
  %s7 = inlined_call_operand.vmem [shape: bf16[32,2], index: 7, kind: input, shape index: {}]
  %s8 = inlined_call_operand.vmem [shape: bf16[128,32], index: 8, kind: input, shape index: {}]
  %s9 = inlined_call_operand.vmem [shape: f32[1,32], index: 9, kind: input, shape index: {}]
  %s10 = inlined_call_operand.vmem [shape: bf16[64,32], index: 10, kind: input, shape index: {}]
  %s11 = inlined_call_operand.vmem [shape: f32[1,32], index: 11, kind: input, shape index: {}]
  %s12 = inlined_call_operand.vmem [shape: f32[1,32], index: 12, kind: input, shape index: {}]
  %s13 = inlined_call_operand.vmem [shape: f32[1,32], index: 13, kind: input, shape index: {}]
  %s14 = inlined_call_operand.vmem [shape: f32[256,32], index: 14, kind: output, shape index: {}]
  %s15 = sld [smem:[#allocation0]]
  $region89: #{tpu_custom_call.1} parent=0
    _
  %s17 = ssub.s32 1, %s15
  %s18 = scalar_select 0, %s17, %s15
  loop: start=0, step=1, limit=4
  $region2: #{tpu_custom_call.1} parent=0 // loop_pre_header
    _
  $region3: #{tpu_custom_call.1} parent=0 // loop_header
    %s20 = sphi 0, %s24
    %p21 = scmp.ge.s32.totalorder %s20, 4
    %s30 = sphi 0, %s32
    %s33 = sphi 0, %s30
    %s34 = sphi 0, %s33
    %s50 = sphi 0, %s34
    %s56 = sphi 0, %s58
    %s59 = sphi 0, %s56
    %s60 = sphi 0, %s59
    %s76 = sphi 0, %s60
    %s80 = sphi 0, %s80
    %s82 = sphi 0, %s80
    %s83 = sphi 0, %s82
    %s97 = sphi 0, %s83
    %s101 = sphi 0, %s101
    %s103 = sphi 0, %s101
    %s104 = sphi 0, %s103
    %s118 = sphi 0, %s104
    %s122 = sphi 0, %s122
    %s124 = sphi 0, %s122
    %s125 = sphi 0, %s124
    %s139 = sphi 0, %s125
    %s143 = sphi 0, %s143
    %s145 = sphi 0, %s143
    %s146 = sphi 0, %s145
    %s160 = sphi 0, %s146
    %s164 = sphi 0, %s164
    %s166 = sphi 0, %s164
    %s167 = sphi 0, %s166
    %s181 = sphi 0, %s167
    %s185 = sphi 0, %s185
    %s187 = sphi 0, %s185
    %s188 = sphi 0, %s187
    %s202 = sphi 0, %s188
    %s206 = sphi 0, %s206
    %s208 = sphi 0, %s206
    %s209 = sphi 0, %s208
    %s223 = sphi 0, %s209
    %s227 = sphi 0, %s227
    %s229 = sphi 0, %s227
    %s230 = sphi 0, %s229
    %s244 = sphi 0, %s230
    %s248 = sphi 0, %s248
    %s250 = sphi 0, %s248
    %s251 = sphi 0, %s250
    %s265 = sphi 0, %s251
    %s269 = sphi 0, %s269
    %s271 = sphi 0, %s269
    %s272 = sphi 0, %s271
    %s286 = sphi 0, %s272
    %s290 = sphi 0, %s290
    %s292 = sphi 0, %s290
    %s293 = sphi 0, %s292
    %s307 = sphi 0, %s293
    %s311 = sphi 0, %s311
    %s313 = sphi 0, %s311
    %s314 = sphi 0, %s313
    %s328 = sphi 0, %s314
    %s334 = sphi 0, %s336
    %s337 = sphi 0, %s334
    %s338 = sphi 0, %s337
    %s354 = sphi 0, %s338
  $region4: #{tpu_custom_call.1} parent=0 // loop_header_branch
    %23 = sbr.rel (%p21) target = $region8
  $region5: #{tpu_custom_call.1} parent=0 // loop_body
    %s25 = ssub.s32 %s20, 1
    %s26 = ssub.s32 %s20, 2
    %s27 = sadd.s32 %s20, 1
    %s28 = ssub.s32 %s20, %s27
    %p29 = scmp.eq.s32.totalorder %s28, 0
    %s31 = sadd.s32 %s30, 1
    %s32 = scalar_select %p29, %s30, %s31
    %p35 = pneg %p29
    %p36 = scmp.eq.s32.totalorder %s20, 1
    %p37 = por %p35, %p36
    %p38 = scmp.ne.s32.totalorder %s30, %s33
    %p39 = scmp.eq.s32.totalorder %s20, 0
    %p40 = por %p38, %p39
    %p41 = scmp.ne.s32.totalorder %s30, %s33
    %p42 = scmp.eq.s32.totalorder %s25, 1
    %p43 = por %p41, %p42
    %p44 = scmp.ne.s32.totalorder %s33, %s34
    %p45 = scmp.eq.s32.totalorder %s25, 0
    %p46 = por %p44, %p45
    %p47 = scmp.ne.s32.totalorder %s33, %s34
    %p48 = scmp.eq.s32.totalorder %s26, 1
    %p49 = por %p47, %p48
    %p51 = scmp.ne.s32.totalorder %s34, %s50
    %p52 = scmp.eq.s32.totalorder %s26, 0
    %p53 = por %p51, %p52
    %s54 = ssub.s32 %s20, %s27
    %p55 = scmp.eq.s32.totalorder %s54, 0
    %s57 = sadd.s32 %s56, 1
    %s58 = scalar_select %p55, %s56, %s57
    %p61 = pneg %p55
    %p62 = scmp.eq.s32.totalorder %s20, 1
    %p63 = por %p61, %p62
    %p64 = scmp.ne.s32.totalorder %s56, %s59
    %p65 = scmp.eq.s32.totalorder %s20, 0
    %p66 = por %p64, %p65
    %p67 = scmp.ne.s32.totalorder %s56, %s59
    %p68 = scmp.eq.s32.totalorder %s25, 1
    %p69 = por %p67, %p68
    %p70 = scmp.ne.s32.totalorder %s59, %s60
    %p71 = scmp.eq.s32.totalorder %s25, 0
    %p72 = por %p70, %p71
    %p73 = scmp.ne.s32.totalorder %s59, %s60
    %p74 = scmp.eq.s32.totalorder %s26, 1
    %p75 = por %p73, %p74
    %p77 = scmp.ne.s32.totalorder %s60, %s76
    %p78 = scmp.eq.s32.totalorder %s26, 0
    %p79 = por %p77, %p78
    %s81 = sadd.s32 %s80, 1
    %p84 = scmp.eq.s32.totalorder %s20, 1
    %p85 = scmp.ne.s32.totalorder %s80, %s82
    %p86 = scmp.eq.s32.totalorder %s20, 0
    %p87 = por %p85, %p86
    %p88 = scmp.ne.s32.totalorder %s80, %s82
    %p89 = scmp.eq.s32.totalorder %s25, 1
    %p90 = por %p88, %p89
    %p91 = scmp.ne.s32.totalorder %s82, %s83
    %p92 = scmp.eq.s32.totalorder %s25, 0
    %p93 = por %p91, %p92
    %p94 = scmp.ne.s32.totalorder %s82, %s83
    %p95 = scmp.eq.s32.totalorder %s26, 1
    %p96 = por %p94, %p95
    %p98 = scmp.ne.s32.totalorder %s83, %s97
    %p99 = scmp.eq.s32.totalorder %s26, 0
    %p100 = por %p98, %p99
    %s102 = sadd.s32 %s101, 1
    %p105 = scmp.eq.s32.totalorder %s20, 1
    %p106 = scmp.ne.s32.totalorder %s101, %s103
    %p107 = scmp.eq.s32.totalorder %s20, 0
    %p108 = por %p106, %p107
    %p109 = scmp.ne.s32.totalorder %s101, %s103
    %p110 = scmp.eq.s32.totalorder %s25, 1
    %p111 = por %p109, %p110
    %p112 = scmp.ne.s32.totalorder %s103, %s104
    %p113 = scmp.eq.s32.totalorder %s25, 0
    %p114 = por %p112, %p113
    %p115 = scmp.ne.s32.totalorder %s103, %s104
    %p116 = scmp.eq.s32.totalorder %s26, 1
    %p117 = por %p115, %p116
    %p119 = scmp.ne.s32.totalorder %s104, %s118
    %p120 = scmp.eq.s32.totalorder %s26, 0
    %p121 = por %p119, %p120
    %s123 = sadd.s32 %s122, 1
    %p126 = scmp.eq.s32.totalorder %s20, 1
    %p127 = scmp.ne.s32.totalorder %s122, %s124
    %p128 = scmp.eq.s32.totalorder %s20, 0
    %p129 = por %p127, %p128
    %p130 = scmp.ne.s32.totalorder %s122, %s124
    %p131 = scmp.eq.s32.totalorder %s25, 1
    %p132 = por %p130, %p131
    %p133 = scmp.ne.s32.totalorder %s124, %s125
    %p134 = scmp.eq.s32.totalorder %s25, 0
    %p135 = por %p133, %p134
    %p136 = scmp.ne.s32.totalorder %s124, %s125
    %p137 = scmp.eq.s32.totalorder %s26, 1
    %p138 = por %p136, %p137
    %p140 = scmp.ne.s32.totalorder %s125, %s139
    %p141 = scmp.eq.s32.totalorder %s26, 0
    %p142 = por %p140, %p141
    %s144 = sadd.s32 %s143, 1
    %p147 = scmp.eq.s32.totalorder %s20, 1
    %p148 = scmp.ne.s32.totalorder %s143, %s145
    %p149 = scmp.eq.s32.totalorder %s20, 0
    %p150 = por %p148, %p149
    %p151 = scmp.ne.s32.totalorder %s143, %s145
    %p152 = scmp.eq.s32.totalorder %s25, 1
    %p153 = por %p151, %p152
    %p154 = scmp.ne.s32.totalorder %s145, %s146
    %p155 = scmp.eq.s32.totalorder %s25, 0
    %p156 = por %p154, %p155
    %p157 = scmp.ne.s32.totalorder %s145, %s146
    %p158 = scmp.eq.s32.totalorder %s26, 1
    %p159 = por %p157, %p158
    %p161 = scmp.ne.s32.totalorder %s146, %s160
    %p162 = scmp.eq.s32.totalorder %s26, 0
    %p163 = por %p161, %p162
    %s165 = sadd.s32 %s164, 1
    %p168 = scmp.eq.s32.totalorder %s20, 1
    %p169 = scmp.ne.s32.totalorder %s164, %s166
    %p170 = scmp.eq.s32.totalorder %s20, 0
    %p171 = por %p169, %p170
    %p172 = scmp.ne.s32.totalorder %s164, %s166
    %p173 = scmp.eq.s32.totalorder %s25, 1
    %p174 = por %p172, %p173
    %p175 = scmp.ne.s32.totalorder %s166, %s167
    %p176 = scmp.eq.s32.totalorder %s25, 0
    %p177 = por %p175, %p176
    %p178 = scmp.ne.s32.totalorder %s166, %s167
    %p179 = scmp.eq.s32.totalorder %s26, 1
    %p180 = por %p178, %p179
    %p182 = scmp.ne.s32.totalorder %s167, %s181
    %p183 = scmp.eq.s32.totalorder %s26, 0
    %p184 = por %p182, %p183
    %s186 = sadd.s32 %s185, 1
    %p189 = scmp.eq.s32.totalorder %s20, 1
    %p190 = scmp.ne.s32.totalorder %s185, %s187
    %p191 = scmp.eq.s32.totalorder %s20, 0
    %p192 = por %p190, %p191
    %p193 = scmp.ne.s32.totalorder %s185, %s187
    %p194 = scmp.eq.s32.totalorder %s25, 1
    %p195 = por %p193, %p194
    %p196 = scmp.ne.s32.totalorder %s187, %s188
    %p197 = scmp.eq.s32.totalorder %s25, 0
    %p198 = por %p196, %p197
    %p199 = scmp.ne.s32.totalorder %s187, %s188
    %p200 = scmp.eq.s32.totalorder %s26, 1
    %p201 = por %p199, %p200
    %p203 = scmp.ne.s32.totalorder %s188, %s202
    %p204 = scmp.eq.s32.totalorder %s26, 0
    %p205 = por %p203, %p204
    %s207 = sadd.s32 %s206, 1
    %p210 = scmp.eq.s32.totalorder %s20, 1
    %p211 = scmp.ne.s32.totalorder %s206, %s208
    %p212 = scmp.eq.s32.totalorder %s20, 0
    %p213 = por %p211, %p212
    %p214 = scmp.ne.s32.totalorder %s206, %s208
    %p215 = scmp.eq.s32.totalorder %s25, 1
    %p216 = por %p214, %p215
    %p217 = scmp.ne.s32.totalorder %s208, %s209
    %p218 = scmp.eq.s32.totalorder %s25, 0
    %p219 = por %p217, %p218
    %p220 = scmp.ne.s32.totalorder %s208, %s209
    %p221 = scmp.eq.s32.totalorder %s26, 1
    %p222 = por %p220, %p221
    %p224 = scmp.ne.s32.totalorder %s209, %s223
    %p225 = scmp.eq.s32.totalorder %s26, 0
    %p226 = por %p224, %p225
    %s228 = sadd.s32 %s227, 1
    %p231 = scmp.eq.s32.totalorder %s20, 1
    %p232 = scmp.ne.s32.totalorder %s227, %s229
    %p233 = scmp.eq.s32.totalorder %s20, 0
    %p234 = por %p232, %p233
    %p235 = scmp.ne.s32.totalorder %s227, %s229
    %p236 = scmp.eq.s32.totalorder %s25, 1
    %p237 = por %p235, %p236
    %p238 = scmp.ne.s32.totalorder %s229, %s230
    %p239 = scmp.eq.s32.totalorder %s25, 0
    %p240 = por %p238, %p239
    %p241 = scmp.ne.s32.totalorder %s229, %s230
    %p242 = scmp.eq.s32.totalorder %s26, 1
    %p243 = por %p241, %p242
    %p245 = scmp.ne.s32.totalorder %s230, %s244
    %p246 = scmp.eq.s32.totalorder %s26, 0
    %p247 = por %p245, %p246
    %s249 = sadd.s32 %s248, 1
    %p252 = scmp.eq.s32.totalorder %s20, 1
    %p253 = scmp.ne.s32.totalorder %s248, %s250
    %p254 = scmp.eq.s32.totalorder %s20, 0
    %p255 = por %p253, %p254
    %p256 = scmp.ne.s32.totalorder %s248, %s250
    %p257 = scmp.eq.s32.totalorder %s25, 1
    %p258 = por %p256, %p257
    %p259 = scmp.ne.s32.totalorder %s250, %s251
    %p260 = scmp.eq.s32.totalorder %s25, 0
    %p261 = por %p259, %p260
    %p262 = scmp.ne.s32.totalorder %s250, %s251
    %p263 = scmp.eq.s32.totalorder %s26, 1
    %p264 = por %p262, %p263
    %p266 = scmp.ne.s32.totalorder %s251, %s265
    %p267 = scmp.eq.s32.totalorder %s26, 0
    %p268 = por %p266, %p267
    %s270 = sadd.s32 %s269, 1
    %p273 = scmp.eq.s32.totalorder %s20, 1
    %p274 = scmp.ne.s32.totalorder %s269, %s271
    %p275 = scmp.eq.s32.totalorder %s20, 0
    %p276 = por %p274, %p275
    %p277 = scmp.ne.s32.totalorder %s269, %s271
    %p278 = scmp.eq.s32.totalorder %s25, 1
    %p279 = por %p277, %p278
    %p280 = scmp.ne.s32.totalorder %s271, %s272
    %p281 = scmp.eq.s32.totalorder %s25, 0
    %p282 = por %p280, %p281
    %p283 = scmp.ne.s32.totalorder %s271, %s272
    %p284 = scmp.eq.s32.totalorder %s26, 1
    %p285 = por %p283, %p284
    %p287 = scmp.ne.s32.totalorder %s272, %s286
    %p288 = scmp.eq.s32.totalorder %s26, 0
    %p289 = por %p287, %p288
    %s291 = sadd.s32 %s290, 1
    %p294 = scmp.eq.s32.totalorder %s20, 1
    %p295 = scmp.ne.s32.totalorder %s290, %s292
    %p296 = scmp.eq.s32.totalorder %s20, 0
    %p297 = por %p295, %p296
    %p298 = scmp.ne.s32.totalorder %s290, %s292
    %p299 = scmp.eq.s32.totalorder %s25, 1
    %p300 = por %p298, %p299
    %p301 = scmp.ne.s32.totalorder %s292, %s293
    %p302 = scmp.eq.s32.totalorder %s25, 0
    %p303 = por %p301, %p302
    %p304 = scmp.ne.s32.totalorder %s292, %s293
    %p305 = scmp.eq.s32.totalorder %s26, 1
    %p306 = por %p304, %p305
    %p308 = scmp.ne.s32.totalorder %s293, %s307
    %p309 = scmp.eq.s32.totalorder %s26, 0
    %p310 = por %p308, %p309
    %s312 = sadd.s32 %s311, 1
    %p315 = scmp.eq.s32.totalorder %s20, 1
    %p316 = scmp.ne.s32.totalorder %s311, %s313
    %p317 = scmp.eq.s32.totalorder %s20, 0
    %p318 = por %p316, %p317
    %p319 = scmp.ne.s32.totalorder %s311, %s313
    %p320 = scmp.eq.s32.totalorder %s25, 1
    %p321 = por %p319, %p320
    %p322 = scmp.ne.s32.totalorder %s313, %s314
    %p323 = scmp.eq.s32.totalorder %s25, 0
    %p324 = por %p322, %p323
    %p325 = scmp.ne.s32.totalorder %s313, %s314
    %p326 = scmp.eq.s32.totalorder %s26, 1
    %p327 = por %p325, %p326
    %p329 = scmp.ne.s32.totalorder %s314, %s328
    %p330 = scmp.eq.s32.totalorder %s26, 0
    %p331 = por %p329, %p330
    %s332 = ssub.s32 %s20, %s27
    %p333 = scmp.eq.s32.totalorder %s332, 0
    %s335 = sadd.s32 %s334, 1
    %s336 = scalar_select %p333, %s334, %s335
    %p339 = pneg %p333
    %p340 = scmp.eq.s32.totalorder %s20, 1
    %p341 = por %p339, %p340
    %p342 = scmp.ne.s32.totalorder %s334, %s337
    %p343 = scmp.eq.s32.totalorder %s20, 0
    %p344 = por %p342, %p343
    %p345 = scmp.ne.s32.totalorder %s334, %s337
    %p346 = scmp.eq.s32.totalorder %s25, 1
    %p347 = por %p345, %p346
    %p348 = scmp.ne.s32.totalorder %s337, %s338
    %p349 = scmp.eq.s32.totalorder %s25, 0
    %p350 = por %p348, %p349
    %p351 = scmp.ne.s32.totalorder %s337, %s338
    %p352 = scmp.eq.s32.totalorder %s26, 1
    %p353 = por %p351, %p352
    %p355 = scmp.ne.s32.totalorder %s338, %s354
    %p356 = scmp.eq.s32.totalorder %s26, 0
    %p357 = por %p355, %p356
    %p358 = scmp.le.s32.totalorder 1, %s20
    %p359 = scmp.lt.s32.totalorder %s20, 3
    %p360 = pnand %p358, %p359
    %p361 = pneg %p360
    // Predicated region
    $region9: #{tpu_custom_call.1} parent=5 // pred_check
      _
    $region10: #{tpu_custom_call.1} parent=5 // pred_check_branch
      %363 = sbr.rel (%p360) target = $region12
    $region11: #{tpu_custom_call.1} parent=5 // pred_region
      %s364 = ssub.s32 %s20, 1
      // Predicated region
      $region13: #{tpu_custom_call.1} parent=11 // pred_check
        %p365 = pneg %p93
      $region14: #{tpu_custom_call.1} parent=11 // pred_check_branch
        %367 = sbr.rel (%p365) target = $region16
      $region15: #{tpu_custom_call.1} parent=11 // pred_region
        _
      $region16: #{tpu_custom_call.1} parent=11 // pred_fallthru
        _
      // Predicated region
      $region17: #{tpu_custom_call.1} parent=11 // pred_check
        %p368 = pneg %p114
      $region18: #{tpu_custom_call.1} parent=11 // pred_check_branch
        %370 = sbr.rel (%p368) target = $region20
      $region19: #{tpu_custom_call.1} parent=11 // pred_region
        _
      $region20: #{tpu_custom_call.1} parent=11 // pred_fallthru
        _
      // Predicated region
      $region21: #{tpu_custom_call.1} parent=11 // pred_check
        %p371 = pneg %p135
      $region22: #{tpu_custom_call.1} parent=11 // pred_check_branch
        %373 = sbr.rel (%p371) target = $region24
      $region23: #{tpu_custom_call.1} parent=11 // pred_region
        _
      $region24: #{tpu_custom_call.1} parent=11 // pred_fallthru
        _
      // Predicated region
      $region25: #{tpu_custom_call.1} parent=11 // pred_check
        %p374 = pneg %p156
      $region26: #{tpu_custom_call.1} parent=11 // pred_check_branch
        %376 = sbr.rel (%p374) target = $region28
      $region27: #{tpu_custom_call.1} parent=11 // pred_region
        _
      $region28: #{tpu_custom_call.1} parent=11 // pred_fallthru
        _
      // Predicated region
      $region29: #{tpu_custom_call.1} parent=11 // pred_check
        %p377 = pneg %p177
      $region30: #{tpu_custom_call.1} parent=11 // pred_check_branch
        %379 = sbr.rel (%p377) target = $region32
      $region31: #{tpu_custom_call.1} parent=11 // pred_region
        _
      $region32: #{tpu_custom_call.1} parent=11 // pred_fallthru
        _
      // Predicated region
      $region33: #{tpu_custom_call.1} parent=11 // pred_check
        %p380 = pneg %p198
      $region34: #{tpu_custom_call.1} parent=11 // pred_check_branch
        %382 = sbr.rel (%p380) target = $region36
      $region35: #{tpu_custom_call.1} parent=11 // pred_region
        _
      $region36: #{tpu_custom_call.1} parent=11 // pred_fallthru
        _
      // Predicated region
      $region37: #{tpu_custom_call.1} parent=11 // pred_check
        %p383 = pneg %p219
      $region38: #{tpu_custom_call.1} parent=11 // pred_check_branch
        %385 = sbr.rel (%p383) target = $region40
      $region39: #{tpu_custom_call.1} parent=11 // pred_region
        _
      $region40: #{tpu_custom_call.1} parent=11 // pred_fallthru
        _
      // Predicated region
      $region41: #{tpu_custom_call.1} parent=11 // pred_check
        %p386 = pneg %p240
      $region42: #{tpu_custom_call.1} parent=11 // pred_check_branch
        %388 = sbr.rel (%p386) target = $region44
      $region43: #{tpu_custom_call.1} parent=11 // pred_region
        _
      $region44: #{tpu_custom_call.1} parent=11 // pred_fallthru
        _
      // Predicated region
      $region45: #{tpu_custom_call.1} parent=11 // pred_check
        %p389 = pneg %p261
      $region46: #{tpu_custom_call.1} parent=11 // pred_check_branch
        %391 = sbr.rel (%p389) target = $region48
      $region47: #{tpu_custom_call.1} parent=11 // pred_region
        _
      $region48: #{tpu_custom_call.1} parent=11 // pred_fallthru
        _
      // Predicated region
      $region49: #{tpu_custom_call.1} parent=11 // pred_check
        %p392 = pneg %p282
      $region50: #{tpu_custom_call.1} parent=11 // pred_check_branch
        %394 = sbr.rel (%p392) target = $region52
      $region51: #{tpu_custom_call.1} parent=11 // pred_region
        _
      $region52: #{tpu_custom_call.1} parent=11 // pred_fallthru
        _
      // Predicated region
      $region53: #{tpu_custom_call.1} parent=11 // pred_check
        %p395 = pneg %p303
      $region54: #{tpu_custom_call.1} parent=11 // pred_check_branch
        %397 = sbr.rel (%p395) target = $region56
      $region55: #{tpu_custom_call.1} parent=11 // pred_region
        _
      $region56: #{tpu_custom_call.1} parent=11 // pred_fallthru
        _
      // Predicated region
      $region57: #{tpu_custom_call.1} parent=11 // pred_check
        %p398 = pneg %p324
      $region58: #{tpu_custom_call.1} parent=11 // pred_check_branch
        %400 = sbr.rel (%p398) target = $region60
      $region59: #{tpu_custom_call.1} parent=11 // pred_region
        _
      $region60: #{tpu_custom_call.1} parent=11 // pred_fallthru
        _
    $region12: #{tpu_custom_call.1} parent=5 // pred_fallthru
      _
    %p401 = scmp.lt.s32.totalorder %s20, 2
    // Predicated region
    $region61: #{tpu_custom_call.1} parent=5 // pred_check
      %p402 = pneg %p401
    $region62: #{tpu_custom_call.1} parent=5 // pred_check_branch
      %404 = sbr.rel (%p402) target = $region64
    $region63: #{tpu_custom_call.1} parent=5 // pred_region
      // Predicated region
      $region65: #{tpu_custom_call.1} parent=63 // pred_check
        %p405 = pneg %p40
      $region66: #{tpu_custom_call.1} parent=63 // pred_check_branch
        %407 = sbr.rel (%p405) target = $region68
      $region67: #{tpu_custom_call.1} parent=63 // pred_region
        %s408 = smul.u32 16, %s20
        %p409 = scmp.lt.s32.totalorder %s408, 31
        %s410 = scalar_select %p409, %s408, 31
        %s411 = smul.addr %s410, 8
        %s412 = scalar_lea.vmem %s0, %s411
        %s413 = smul.u32 16, %s20
      $region68: #{tpu_custom_call.1} parent=63 // pred_fallthru
        _
      // Predicated region
      $region69: #{tpu_custom_call.1} parent=63 // pred_check
        %p414 = pneg %p66
      $region70: #{tpu_custom_call.1} parent=63 // pred_check_branch
        %416 = sbr.rel (%p414) target = $region72
      $region71: #{tpu_custom_call.1} parent=63 // pred_region
        %s417 = smul.u32 4, %s20
        %p418 = scmp.lt.s32.totalorder %s417, 7
        %s419 = scalar_select %p418, %s417, 7
        %s420 = smul.addr %s419, 2
        %s421 = smul.addr %s420, 4
        %s422 = scalar_lea.vmem %s1, %s421
        %s423 = smul.u32 4, %s20
      $region72: #{tpu_custom_call.1} parent=63 // pred_fallthru
        _
    $region64: #{tpu_custom_call.1} parent=5 // pred_fallthru
      _
    %p424 = scmp.le.s32.totalorder 1, %s20
    %p425 = scmp.lt.s32.totalorder %s20, 3
    %p426 = pnand %p424, %p425
    %p427 = pneg %p426
    // Predicated region
    $region73: #{tpu_custom_call.1} parent=5 // pred_check
      _
    $region74: #{tpu_custom_call.1} parent=5 // pred_check_branch
      %429 = sbr.rel (%p426) target = $region76
    $region75: #{tpu_custom_call.1} parent=5 // pred_region
      %s430 = ssub.s32 %s20, 1
      %s431 = smul.u32 16, %s25
      %p432 = scmp.lt.s32.totalorder %s431, 31
      %s433 = scalar_select %p432, %s431, 31
      %s434 = smul.addr %s433, 8
      %s435 = scalar_lea.vmem %s0, %s434
      %p436 = pneg %p46
      %p437 = pneg %p43
      %s438 = smul.u32 4, %s25
      %p439 = scmp.lt.s32.totalorder %s438, 7
      %s440 = scalar_select %p439, %s438, 7
      %s441 = smul.addr %s440, 2
      %s442 = smul.addr %s441, 4
      %s443 = scalar_lea.vmem %s1, %s442
      %p444 = pneg %p72
      %p445 = pneg %p69
      %p446 = pneg %p93
      %p447 = pneg %p90
      %p448 = pneg %p114
      %p449 = pneg %p111
      %p450 = pneg %p135
      %p451 = pneg %p132
      %p452 = pneg %p156
      %p453 = pneg %p153
      %p454 = pneg %p177
      %p455 = pneg %p174
      %p456 = pneg %p198
      %p457 = pneg %p195
      %p458 = pneg %p219
      %p459 = pneg %p216
      %p460 = pneg %p240
      %p461 = pneg %p237
      %p462 = pneg %p261
      %p463 = pneg %p258
      %p464 = pneg %p282
      %p465 = pneg %p279
      %p466 = pneg %p303
      %p467 = pneg %p300
      %p468 = pneg %p324
      %p469 = pneg %p321
      %p470 = pneg %p350
      %p471 = pneg %p347
      %s472 = smul.u32 16, %s25
      %p473 = scmp.lt.s32.totalorder %s472, 31
      %s474 = scalar_select %p473, %s472, 31
      %s475 = smul.addr %s474, 8
      %s476 = scalar_lea.vmem %s14, %s475
      %s477 = smul.u32 16, %s25
      %p478 = scmp.lt.s32.totalorder %s477, 31
      %s479 = scalar_select %p478, %s477, 31
      %s480 = smul.addr %s479, 8
      %s481 = scalar_lea.vmem %s0, %s480
      %s482 = smul.u32 16, %s25
      %s483 = smul.u32 4, %s25
      %p484 = scmp.lt.s32.totalorder %s483, 7
      %s485 = scalar_select %p484, %s483, 7
      %s486 = smul.addr %s485, 2
      %s487 = smul.addr %s486, 4
      %s488 = scalar_lea.vmem %s1, %s487
      %s489 = smul.u32 4, %s25
      %s490 = smul.u32 16, %s25
      %p491 = scmp.lt.s32.totalorder %s490, 31
      %s492 = scalar_select %p491, %s490, 31
      %s493 = smul.addr %s492, 8
      %s494 = scalar_lea.vmem %s14, %s493
      %s495 = smul.u32 16, %s25
      %v497 = vld [vmem:[%s481] sm:$0xff]
      %v498 = vld [vmem:[%s481 + $0x8] sm:$0xff]
      %v499 = vld [vmem:[%s481 + $0x10] sm:$0xff]
      %v500 = vld [vmem:[%s481 + $0x18] sm:$0xff]
      %v501 = vld [vmem:[%s481 + $0x20] sm:$0xff]
      %v502 = vld [vmem:[%s481 + $0x28] sm:$0xff]
      %v503 = vld [vmem:[%s481 + $0x30] sm:$0xff]
      %v504 = vld [vmem:[%s481 + $0x38] sm:$0xff]
      %v505 = vld [vmem:[%s481 + $0x40] sm:$0xff]
      %v506 = vld [vmem:[%s481 + $0x48] sm:$0xff]
      %v507 = vld [vmem:[%s481 + $0x50] sm:$0xff]
      %v508 = vld [vmem:[%s481 + $0x58] sm:$0xff]
      %v509 = vld [vmem:[%s481 + $0x60] sm:$0xff]
      %v510 = vld [vmem:[%s481 + $0x68] sm:$0xff]
      %v511 = vld [vmem:[%s481 + $0x70] sm:$0xff]
      %v512 = vld [vmem:[%s481 + $0x78] sm:$0xff]
      %v513 = vpack.c.bf16 %v498, %v497
      %v514 = vpack.c.bf16 %v500, %v499
      %v515 = vpack.c.bf16 %v502, %v501
      %v516 = vpack.c.bf16 %v504, %v503
      %v517 = vpack.c.bf16 %v506, %v505
      %v518 = vpack.c.bf16 %v508, %v507
      %v519 = vpack.c.bf16 %v510, %v509
      %v520 = vpack.c.bf16 %v512, %v511
      %v521 = vld [vmem:[%s2] sm:$0xf]
      %v522 = vld [vmem:[%s2 + $0x4] sm:$0xf]
      %v523 = vld [vmem:[%s2 + $0x8] sm:$0xf]
      %v524 = vld [vmem:[%s2 + $0xc] sm:$0xf]
      %v525 = vld [vmem:[%s488] sm:$0xf]
      %v526 = vld [vmem:[%s488 + $0x4] sm:$0xf]
      %v527 = vld [vmem:[%s488 + $0x8] sm:$0xf]
      %v528 = vld [vmem:[%s488 + $0xc] sm:$0xf]
      %v529 = vld [vmem:[%s488 + $0x10] sm:$0xf]
      %v530 = vld [vmem:[%s488 + $0x14] sm:$0xf]
      %v531 = vld [vmem:[%s488 + $0x18] sm:$0xf]
      %v532 = vld [vmem:[%s488 + $0x1c] sm:$0xf]
      %v537 = vunpack.c.l.b16 %v521
      %v538 = vunpack.c.l.b16 %v522
      %v539 = vunpack.c.l.b16 %v523
      %v540 = vunpack.c.l.b16 %v524
      %v541 = vpack.c.b16 %v538, %v537
      %v542 = vpack.c.b16 %v540, %v539
      %v545 = vunpack.c.l.b16 %v525
      %v546 = vunpack.c.l.b16 %v526
      %v547 = vpack.c.b16 %v546, %v545
      %vm549 = vcmask 130048
      %v551 = vsel %vm549, %v541, 0
      %v554 = vsel %vm549, %v542, 0
      %556 = vmatprep.subr.bf16.mxu0 0
      %557 = vmatpush1.bf16.msra.mxu0 %v547
      %558 = vmatprep.subr.bf16.mxu0 0
      %559 = vmatpush1.bf16.msra.mxu0 0
      %560 = vmatprep.subr.bf16.mxu0 0
      %561 = vmatpush1.bf16.msra.mxu0 0
      %562 = vmatprep.subr.bf16.mxu0 0
      %563 = vmatpush1.bf16.msra.mxu0 0
      %564 = vmatprep.subr.bf16.mxu0 0
      %565 = vmatpush1.bf16.msra.mxu0 0
      %566 = vmatprep.subr.bf16.mxu0 0
      %567 = vmatpush1.bf16.msra.mxu0 0
      %568 = vmatprep.subr.bf16.mxu0 0
      %569 = vmatpush1.bf16.msra.mxu0 0
      %570 = vmatprep.subr.bf16.mxu0 0
      %571 = vmatpush1.bf16.msra.mxu0 0
      %572 = vmatprep.subr.bf16.mxu0 0
      %573 = vmatpush1.bf16.msra.mxu0 0
      %574 = vmatprep.subr.bf16.mxu0 0
      %575 = vmatpush1.bf16.msra.mxu0 0
      %576 = vmatprep.subr.bf16.mxu0 0
      %577 = vmatpush1.bf16.msra.mxu0 0
      %578 = vmatprep.subr.bf16.mxu0 0
      %579 = vmatpush1.bf16.msra.mxu0 0
      %580 = vmatprep.subr.bf16.mxu0 0
      %581 = vmatpush1.bf16.msra.mxu0 0
      %582 = vmatprep.subr.bf16.mxu0 0
      %583 = vmatpush1.bf16.msra.mxu0 0
      %584 = vmatprep.subr.bf16.mxu0 0
      %585 = vmatpush1.bf16.msra.mxu0 0
      %586 = vmatprep.subr.bf16.mxu0 0
      %587 = vmatpush1.bf16.msra.mxu0 0
      %588 = vmatprep.mubr.bf16.mxu0 0
      %589 = vmatmul.mubr.bf16.gmra.mrb[0].mxu0 %v551
      %v590 = vpop.f32.mrb[0].mxu0
      %v591 = vadd.f32 0.0, %v590
      %v592 = vpop.f32.mrb[0].mxu0
      %v593 = vpop.f32.mrb[0].mxu0
      %v594 = vadd.f32 0.0, %v593
      %v595 = vpop.f32.mrb[0].mxu0
      %596 = vmatprep.mubr.bf16.mxu0 0
      %597 = vmatmul.mubr.bf16.gmra.mrb[0].mxu0 %v554
      %v598 = vpop.f32.mrb[0].mxu0
      %v599 = vadd.f32 0.0, %v598
      %v600 = vpop.f32.mrb[0].mxu0
      %v601 = vpop.f32.mrb[0].mxu0
      %v602 = vadd.f32 0.0, %v601
      %v603 = vpop.f32.mrb[0].mxu0
      %604 = vdwg.mxu0
      %v607 = vunpack.c.l.b16 %v527
      %v608 = vunpack.c.l.b16 %v528
      %v609 = vpack.c.b16 %v608, %v607
      %611 = vmatprep.subr.bf16.mxu0 0
      %612 = vmatpush1.bf16.msra.mxu0 %v609
      %613 = vmatprep.subr.bf16.mxu0 0
      %614 = vmatpush1.bf16.msra.mxu0 0
      %615 = vmatprep.subr.bf16.mxu0 0
      %616 = vmatpush1.bf16.msra.mxu0 0
      %617 = vmatprep.subr.bf16.mxu0 0
      %618 = vmatpush1.bf16.msra.mxu0 0
      %619 = vmatprep.subr.bf16.mxu0 0
      %620 = vmatpush1.bf16.msra.mxu0 0
      %621 = vmatprep.subr.bf16.mxu0 0
      %622 = vmatpush1.bf16.msra.mxu0 0
      %623 = vmatprep.subr.bf16.mxu0 0
      %624 = vmatpush1.bf16.msra.mxu0 0
      %625 = vmatprep.subr.bf16.mxu0 0
      %626 = vmatpush1.bf16.msra.mxu0 0
      %627 = vmatprep.subr.bf16.mxu0 0
      %628 = vmatpush1.bf16.msra.mxu0 0
      %629 = vmatprep.subr.bf16.mxu0 0
      %630 = vmatpush1.bf16.msra.mxu0 0
      %631 = vmatprep.subr.bf16.mxu0 0
      %632 = vmatpush1.bf16.msra.mxu0 0
      %633 = vmatprep.subr.bf16.mxu0 0
      %634 = vmatpush1.bf16.msra.mxu0 0
      %635 = vmatprep.subr.bf16.mxu0 0
      %636 = vmatpush1.bf16.msra.mxu0 0
      %637 = vmatprep.subr.bf16.mxu0 0
      %638 = vmatpush1.bf16.msra.mxu0 0
      %639 = vmatprep.subr.bf16.mxu0 0
      %640 = vmatpush1.bf16.msra.mxu0 0
      %641 = vmatprep.subr.bf16.mxu0 0
      %642 = vmatpush1.bf16.msra.mxu0 0
      %643 = vmatprep.mubr.bf16.mxu0 0
      %644 = vmatmul.mubr.bf16.gmra.mrb[0].mxu0 %v551
      %v645 = vpop.f32.mrb[0].mxu0
      %v646 = vadd.f32 0.0, %v645
      %v647 = vpop.f32.mrb[0].mxu0
      %v648 = vpop.f32.mrb[0].mxu0
      %v649 = vadd.f32 0.0, %v648
      %v650 = vpop.f32.mrb[0].mxu0
      %651 = vmatprep.mubr.bf16.mxu0 0
      %652 = vmatmul.mubr.bf16.gmra.mrb[0].mxu0 %v554
      %v653 = vpop.f32.mrb[0].mxu0
      %v654 = vadd.f32 0.0, %v653
      %v655 = vpop.f32.mrb[0].mxu0
      %v656 = vpop.f32.mrb[0].mxu0
      %v657 = vadd.f32 0.0, %v656
      %v658 = vpop.f32.mrb[0].mxu0
      %659 = vdwg.mxu0
      %v662 = vunpack.c.l.b16 %v529
      %v663 = vunpack.c.l.b16 %v530
      %v664 = vpack.c.b16 %v663, %v662
      %666 = vmatprep.subr.bf16.mxu0 0
      %667 = vmatpush1.bf16.msra.mxu0 %v664
      %668 = vmatprep.subr.bf16.mxu0 0
      %669 = vmatpush1.bf16.msra.mxu0 0
      %670 = vmatprep.subr.bf16.mxu0 0
      %671 = vmatpush1.bf16.msra.mxu0 0
      %672 = vmatprep.subr.bf16.mxu0 0
      %673 = vmatpush1.bf16.msra.mxu0 0
      %674 = vmatprep.subr.bf16.mxu0 0
      %675 = vmatpush1.bf16.msra.mxu0 0
      %676 = vmatprep.subr.bf16.mxu0 0
      %677 = vmatpush1.bf16.msra.mxu0 0
      %678 = vmatprep.subr.bf16.mxu0 0
      %679 = vmatpush1.bf16.msra.mxu0 0
      %680 = vmatprep.subr.bf16.mxu0 0
      %681 = vmatpush1.bf16.msra.mxu0 0
      %682 = vmatprep.subr.bf16.mxu0 0
      %683 = vmatpush1.bf16.msra.mxu0 0
      %684 = vmatprep.subr.bf16.mxu0 0
      %685 = vmatpush1.bf16.msra.mxu0 0
      %686 = vmatprep.subr.bf16.mxu0 0
      %687 = vmatpush1.bf16.msra.mxu0 0
      %688 = vmatprep.subr.bf16.mxu0 0
      %689 = vmatpush1.bf16.msra.mxu0 0
      %690 = vmatprep.subr.bf16.mxu0 0
      %691 = vmatpush1.bf16.msra.mxu0 0
      %692 = vmatprep.subr.bf16.mxu0 0
      %693 = vmatpush1.bf16.msra.mxu0 0
      %694 = vmatprep.subr.bf16.mxu0 0
      %695 = vmatpush1.bf16.msra.mxu0 0
      %696 = vmatprep.subr.bf16.mxu0 0
      %697 = vmatpush1.bf16.msra.mxu0 0
      %698 = vmatprep.mubr.bf16.mxu0 0
      %699 = vmatmul.mubr.bf16.gmra.mrb[0].mxu0 %v551
      %v700 = vpop.f32.mrb[0].mxu0
      %v701 = vadd.f32 0.0, %v700
      %v702 = vpop.f32.mrb[0].mxu0
      %v703 = vpop.f32.mrb[0].mxu0
      %v704 = vadd.f32 0.0, %v703
      %v705 = vpop.f32.mrb[0].mxu0
      %706 = vmatprep.mubr.bf16.mxu0 0
      %707 = vmatmul.mubr.bf16.gmra.mrb[0].mxu0 %v554
      %v708 = vpop.f32.mrb[0].mxu0
      %v709 = vadd.f32 0.0, %v708
      %v710 = vpop.f32.mrb[0].mxu0
      %v711 = vpop.f32.mrb[0].mxu0
      %v712 = vadd.f32 0.0, %v711
      %v713 = vpop.f32.mrb[0].mxu0
      %714 = vdwg.mxu0
      %v717 = vunpack.c.l.b16 %v531
      %v718 = vunpack.c.l.b16 %v532
      %v719 = vpack.c.b16 %v718, %v717
      %721 = vmatprep.subr.bf16.mxu0 0
      %722 = vmatpush1.bf16.msra.mxu0 %v719
      %723 = vmatprep.subr.bf16.mxu0 0
      %724 = vmatpush1.bf16.msra.mxu0 0
      %725 = vmatprep.subr.bf16.mxu0 0
      %726 = vmatpush1.bf16.msra.mxu0 0
      %727 = vmatprep.subr.bf16.mxu0 0
      %728 = vmatpush1.bf16.msra.mxu0 0
      %729 = vmatprep.subr.bf16.mxu0 0
      %730 = vmatpush1.bf16.msra.mxu0 0
      %731 = vmatprep.subr.bf16.mxu0 0
      %732 = vmatpush1.bf16.msra.mxu0 0
      %733 = vmatprep.subr.bf16.mxu0 0
      %734 = vmatpush1.bf16.msra.mxu0 0
      %735 = vmatprep.subr.bf16.mxu0 0
      %736 = vmatpush1.bf16.msra.mxu0 0
      %737 = vmatprep.subr.bf16.mxu0 0
      %738 = vmatpush1.bf16.msra.mxu0 0
      %739 = vmatprep.subr.bf16.mxu0 0
      %740 = vmatpush1.bf16.msra.mxu0 0
      %741 = vmatprep.subr.bf16.mxu0 0
      %742 = vmatpush1.bf16.msra.mxu0 0
      %743 = vmatprep.subr.bf16.mxu0 0
      %744 = vmatpush1.bf16.msra.mxu0 0
      %745 = vmatprep.subr.bf16.mxu0 0
      %746 = vmatpush1.bf16.msra.mxu0 0
      %747 = vmatprep.subr.bf16.mxu0 0
      %748 = vmatpush1.bf16.msra.mxu0 0
      %749 = vmatprep.subr.bf16.mxu0 0
      %750 = vmatpush1.bf16.msra.mxu0 0
      %751 = vmatprep.subr.bf16.mxu0 0
      %752 = vmatpush1.bf16.msra.mxu0 0
      %753 = vmatprep.mubr.bf16.mxu0 0
      %754 = vmatmul.mubr.bf16.gmra.mrb[0].mxu0 %v551
      %v755 = vpop.f32.mrb[0].mxu0
      %v756 = vadd.f32 0.0, %v755
      %v757 = vpop.f32.mrb[0].mxu0
      %v758 = vpop.f32.mrb[0].mxu0
      %v759 = vadd.f32 0.0, %v758
      %v760 = vpop.f32.mrb[0].mxu0
      %761 = vmatprep.mubr.bf16.mxu0 0
      %762 = vmatmul.mubr.bf16.gmra.mrb[0].mxu0 %v554
      %v763 = vpop.f32.mrb[0].mxu0
      %v764 = vadd.f32 0.0, %v763
      %v765 = vpop.f32.mrb[0].mxu0
      %v766 = vpop.f32.mrb[0].mxu0
      %v767 = vadd.f32 0.0, %v766
      %v768 = vpop.f32.mrb[0].mxu0
      %769 = vdwg.mxu0
      %v770 = vpack.c.bf16 %v594, %v591
      %v771 = vpack.c.bf16 %v602, %v599
      %v772 = vpack.c.bf16 %v649, %v646
      %v773 = vpack.c.bf16 %v657, %v654
      %v774 = vpack.c.bf16 %v704, %v701
      %v775 = vpack.c.bf16 %v712, %v709
      %v776 = vpack.c.bf16 %v759, %v756
      %v777 = vpack.c.bf16 %v767, %v764
      %v778 = vld [vmem:[%s3] sm:$0xff]
      %v779 = vld [vmem:[%s3 + $0x8] sm:$0xf]
      %v780 = vld [vmem:[%s3 + $0xc] sm:$0xff]
      %v781 = vld [vmem:[%s3 + $0x14] sm:$0xf]
      %v782 = vld [vmem:[%s3 + $0x18] sm:$0xff]
      %v783 = vld [vmem:[%s3 + $0x20] sm:$0xf]
      %v784 = vld [vmem:[%s3 + $0x24] sm:$0xff]
      %v785 = vld [vmem:[%s3 + $0x2c] sm:$0xf]
      %v786 = vld [vmem:[%s3 + $0x30] sm:$0xff]
      %v787 = vld [vmem:[%s3 + $0x38] sm:$0xf]
      %v788 = vld [vmem:[%s3 + $0x3c] sm:$0xff]
      %v789 = vld [vmem:[%s3 + $0x44] sm:$0xf]
      %v790 = vld [vmem:[%s3 + $0x48] sm:$0xff]
      %v791 = vld [vmem:[%s3 + $0x50] sm:$0xf]
      %v792 = vld [vmem:[%s3 + $0x54] sm:$0xff]
      %v793 = vld [vmem:[%s3 + $0x5c] sm:$0xf]
      %v794 = vld [vmem:[%s3 + $0x60] sm:$0xff]
      %v795 = vld [vmem:[%s3 + $0x68] sm:$0xf]
      %v796 = vld [vmem:[%s3 + $0x6c] sm:$0xff]
      %v797 = vld [vmem:[%s3 + $0x74] sm:$0xf]
      %v798 = vld [vmem:[%s3 + $0x78] sm:$0xff]
      %v799 = vld [vmem:[%s3 + $0x80] sm:$0xf]
      %v800 = vld [vmem:[%s3 + $0x84] sm:$0xff]
      %v801 = vld [vmem:[%s3 + $0x8c] sm:$0xf]
      %v802 = vld [vmem:[%s3 + $0x90] sm:$0xff]
      %v803 = vld [vmem:[%s3 + $0x98] sm:$0xf]
      %v804 = vld [vmem:[%s3 + $0x9c] sm:$0xff]
      %v805 = vld [vmem:[%s3 + $0xa4] sm:$0xf]
      %v806 = vld [vmem:[%s3 + $0xa8] sm:$0xff]
      %v807 = vld [vmem:[%s3 + $0xb0] sm:$0xf]
      %v808 = vld [vmem:[%s3 + $0xb4] sm:$0xff]
      %v809 = vld [vmem:[%s3 + $0xbc] sm:$0xf]
      %v842 = vunpack.c.l.b16 %v778
      %v843 = vunpack.c.h.b16 %v778
      %v844 = vunpack.c.l.b16 %v779
      %v845 = vunpack.c.l.b16 %v780
      %v846 = vunpack.c.h.b16 %v780
      %v847 = vunpack.c.l.b16 %v781
      %v848 = vunpack.c.l.b16 %v782
      %v849 = vunpack.c.h.b16 %v782
      %v850 = vunpack.c.l.b16 %v783
      %v851 = vunpack.c.l.b16 %v784
      %v852 = vunpack.c.h.b16 %v784
      %v853 = vunpack.c.l.b16 %v785
      %v854 = vunpack.c.l.b16 %v786
      %v855 = vunpack.c.h.b16 %v786
      %v856 = vunpack.c.l.b16 %v787
      %v857 = vunpack.c.l.b16 %v788
      %v858 = vunpack.c.h.b16 %v788
      %v859 = vunpack.c.l.b16 %v789
      %v860 = vunpack.c.l.b16 %v790
      %v861 = vunpack.c.h.b16 %v790
      %v862 = vunpack.c.l.b16 %v791
      %v863 = vunpack.c.l.b16 %v792
      %v864 = vunpack.c.h.b16 %v792
      %v865 = vunpack.c.l.b16 %v793
      %v866 = vunpack.c.l.b16 %v794
      %v867 = vunpack.c.h.b16 %v794
      %v868 = vunpack.c.l.b16 %v795
      %v869 = vunpack.c.l.b16 %v796
      %v870 = vunpack.c.h.b16 %v796
      %v871 = vunpack.c.l.b16 %v797
      %v872 = vunpack.c.l.b16 %v798
      %v873 = vunpack.c.h.b16 %v798
      %v874 = vunpack.c.l.b16 %v799
      %v875 = vunpack.c.l.b16 %v800
      %v876 = vunpack.c.h.b16 %v800
      %v877 = vunpack.c.l.b16 %v801
      %v878 = vunpack.c.l.b16 %v802
      %v879 = vunpack.c.h.b16 %v802
      %v880 = vunpack.c.l.b16 %v803
      %v881 = vunpack.c.l.b16 %v804
      %v882 = vunpack.c.h.b16 %v804
      %v883 = vunpack.c.l.b16 %v805
      %v884 = vunpack.c.l.b16 %v806
      %v885 = vunpack.c.h.b16 %v806
      %v886 = vunpack.c.l.b16 %v807
      %v887 = vunpack.c.l.b16 %v808
      %v888 = vunpack.c.h.b16 %v808
      %v889 = vunpack.c.l.b16 %v809
      %v890 = vpack.c.b16 %v845, %v842
      %v891 = vpack.c.b16 %v846, %v843
      %v892 = vpack.c.b16 %v847, %v844
      %v893 = vpack.c.b16 %v851, %v848
      %v894 = vpack.c.b16 %v852, %v849
      %v895 = vpack.c.b16 %v853, %v850
      %v896 = vpack.c.b16 %v857, %v854
      %v897 = vpack.c.b16 %v858, %v855
      %v898 = vpack.c.b16 %v859, %v856
      %v899 = vpack.c.b16 %v863, %v860
      %v900 = vpack.c.b16 %v864, %v861
      %v901 = vpack.c.b16 %v865, %v862
      %v902 = vpack.c.b16 %v869, %v866
      %v903 = vpack.c.b16 %v870, %v867
      %v904 = vpack.c.b16 %v871, %v868
      %v905 = vpack.c.b16 %v875, %v872
      %v906 = vpack.c.b16 %v876, %v873
      %v907 = vpack.c.b16 %v877, %v874
      %v908 = vpack.c.b16 %v881, %v878
      %v909 = vpack.c.b16 %v882, %v879
      %v910 = vpack.c.b16 %v883, %v880
      %v911 = vpack.c.b16 %v887, %v884
      %v912 = vpack.c.b16 %v888, %v885
      %v913 = vpack.c.b16 %v889, %v886
      %938 = vmatprep.subr.bf16.mxu0 %v891
      %939 = vmatpush1.bf16.msra.mxu0 %v890
      %940 = vmatprep.subr.bf16.mxu0 %v894
      %941 = vmatpush1.bf16.msra.mxu0 %v893
      %942 = vmatprep.subr.bf16.mxu0 %v897
      %943 = vmatpush1.bf16.msra.mxu0 %v896
      %944 = vmatprep.subr.bf16.mxu0 %v900
      %945 = vmatpush1.bf16.msra.mxu0 %v899
      %946 = vmatprep.subr.bf16.mxu0 %v903
      %947 = vmatpush1.bf16.msra.mxu0 %v902
      %948 = vmatprep.subr.bf16.mxu0 %v906
      %949 = vmatpush1.bf16.msra.mxu0 %v905
      %950 = vmatprep.subr.bf16.mxu0 %v909
      %951 = vmatpush1.bf16.msra.mxu0 %v908
      %952 = vmatprep.subr.bf16.mxu0 %v912
      %953 = vmatpush1.bf16.msra.mxu0 %v911
      %954 = vmatprep.subr.bf16.mxu0 0
      %955 = vmatpush1.bf16.msra.mxu0 0
      %956 = vmatprep.subr.bf16.mxu0 0
      %957 = vmatpush1.bf16.msra.mxu0 0
      %958 = vmatprep.subr.bf16.mxu0 0
      %959 = vmatpush1.bf16.msra.mxu0 0
      %960 = vmatprep.subr.bf16.mxu0 0
      %961 = vmatpush1.bf16.msra.mxu0 0
      %962 = vmatprep.subr.bf16.mxu0 0
      %963 = vmatpush1.bf16.msra.mxu0 0
      %964 = vmatprep.subr.bf16.mxu0 0
      %965 = vmatpush1.bf16.msra.mxu0 0
      %966 = vmatprep.subr.bf16.mxu0 0
      %967 = vmatpush1.bf16.msra.mxu0 0
      %968 = vmatprep.subr.bf16.mxu0 0
      %969 = vmatpush1.bf16.msra.mxu0 0
      %970 = vmatprep.mubr.bf16.mxu0 0
      %971 = vmatmul.mubr.bf16.gmra.mrb[0].mxu0 %v770
      %v972 = vpop.f32.mrb[0].mxu0
      %v973 = vadd.f32 0.0, %v972
      %v974 = vpop.f32.mrb[0].mxu0
      %v975 = vadd.f32 0.0, %v974
      %v976 = vpop.f32.mrb[0].mxu0
      %v977 = vadd.f32 0.0, %v976
      %v978 = vpop.f32.mrb[0].mxu0
      %v979 = vadd.f32 0.0, %v978
      %980 = vmatprep.mubr.bf16.mxu0 0
      %981 = vmatmul.mubr.bf16.gmra.mrb[0].mxu0 %v771
      %v982 = vpop.f32.mrb[0].mxu0
      %v983 = vadd.f32 0.0, %v982
      %v984 = vpop.f32.mrb[0].mxu0
      %v985 = vadd.f32 0.0, %v984
      %v986 = vpop.f32.mrb[0].mxu0
      %v987 = vadd.f32 0.0, %v986
      %v988 = vpop.f32.mrb[0].mxu0
      %v989 = vadd.f32 0.0, %v988
      %990 = vmatprep.mubr.bf16.mxu0 0
      %991 = vmatmul.mubr.bf16.gmra.mrb[0].mxu0 %v772
      %v992 = vpop.f32.mrb[0].mxu0
      %v993 = vadd.f32 0.0, %v992
      %v994 = vpop.f32.mrb[0].mxu0
      %v995 = vadd.f32 0.0, %v994
      %v996 = vpop.f32.mrb[0].mxu0
      %v997 = vadd.f32 0.0, %v996
      %v998 = vpop.f32.mrb[0].mxu0
      %v999 = vadd.f32 0.0, %v998
      %1000 = vmatprep.mubr.bf16.mxu0 0
      %1001 = vmatmul.mubr.bf16.gmra.mrb[0].mxu0 %v773
      %v1002 = vpop.f32.mrb[0].mxu0
      %v1003 = vadd.f32 0.0, %v1002
      %v1004 = vpop.f32.mrb[0].mxu0
      %v1005 = vadd.f32 0.0, %v1004
      %v1006 = vpop.f32.mrb[0].mxu0
      %v1007 = vadd.f32 0.0, %v1006
      %v1008 = vpop.f32.mrb[0].mxu0
      %v1009 = vadd.f32 0.0, %v1008
      %1010 = vmatprep.mubr.bf16.mxu0 0
      %1011 = vmatmul.mubr.bf16.gmra.mrb[0].mxu0 %v774
      %v1012 = vpop.f32.mrb[0].mxu0
      %v1013 = vadd.f32 0.0, %v1012
      %v1014 = vpop.f32.mrb[0].mxu0
      %v1015 = vadd.f32 0.0, %v1014
      %v1016 = vpop.f32.mrb[0].mxu0
      %v1017 = vadd.f32 0.0, %v1016
      %v1018 = vpop.f32.mrb[0].mxu0
      %v1019 = vadd.f32 0.0, %v1018
      %1020 = vmatprep.mubr.bf16.mxu0 0
      %1021 = vmatmul.mubr.bf16.gmra.mrb[0].mxu0 %v775
      %v1022 = vpop.f32.mrb[0].mxu0
      %v1023 = vadd.f32 0.0, %v1022
      %v1024 = vpop.f32.mrb[0].mxu0
      %v1025 = vadd.f32 0.0, %v1024
      %v1026 = vpop.f32.mrb[0].mxu0
      %v1027 = vadd.f32 0.0, %v1026
      %v1028 = vpop.f32.mrb[0].mxu0
      %v1029 = vadd.f32 0.0, %v1028
      %1030 = vmatprep.mubr.bf16.mxu0 0
      %1031 = vmatmul.mubr.bf16.gmra.mrb[0].mxu0 %v776
      %v1032 = vpop.f32.mrb[0].mxu0
      %v1033 = vadd.f32 0.0, %v1032
      %v1034 = vpop.f32.mrb[0].mxu0
      %v1035 = vadd.f32 0.0, %v1034
      %v1036 = vpop.f32.mrb[0].mxu0
      %v1037 = vadd.f32 0.0, %v1036
      %v1038 = vpop.f32.mrb[0].mxu0
      %v1039 = vadd.f32 0.0, %v1038
      %1040 = vmatprep.mubr.bf16.mxu0 0
      %1041 = vmatmul.mubr.bf16.gmra.mrb[0].mxu0 %v777
      %v1042 = vpop.f32.mrb[0].mxu0
      %v1043 = vadd.f32 0.0, %v1042
      %v1044 = vpop.f32.mrb[0].mxu0
      %v1045 = vadd.f32 0.0, %v1044
      %v1046 = vpop.f32.mrb[0].mxu0
      %v1047 = vadd.f32 0.0, %v1046
      %v1048 = vpop.f32.mrb[0].mxu0
      %v1049 = vadd.f32 0.0, %v1048
      %1050 = vdwg.mxu0
      %1051 = vmatprep.subr.bf16.mxu0 0
      %1052 = vmatpush1.bf16.msra.mxu0 %v892
      %1053 = vmatprep.subr.bf16.mxu0 0
      %1054 = vmatpush1.bf16.msra.mxu0 %v895
      %1055 = vmatprep.subr.bf16.mxu0 0
      %1056 = vmatpush1.bf16.msra.mxu0 %v898
      %1057 = vmatprep.subr.bf16.mxu0 0
      %1058 = vmatpush1.bf16.msra.mxu0 %v901
      %1059 = vmatprep.subr.bf16.mxu0 0
      %1060 = vmatpush1.bf16.msra.mxu0 %v904
      %1061 = vmatprep.subr.bf16.mxu0 0
      %1062 = vmatpush1.bf16.msra.mxu0 %v907
      %1063 = vmatprep.subr.bf16.mxu0 0
      %1064 = vmatpush1.bf16.msra.mxu0 %v910
      %1065 = vmatprep.subr.bf16.mxu0 0
      %1066 = vmatpush1.bf16.msra.mxu0 %v913
      %1067 = vmatprep.subr.bf16.mxu0 0
      %1068 = vmatpush1.bf16.msra.mxu0 0
      %1069 = vmatprep.subr.bf16.mxu0 0
      %1070 = vmatpush1.bf16.msra.mxu0 0
      %1071 = vmatprep.subr.bf16.mxu0 0
      %1072 = vmatpush1.bf16.msra.mxu0 0
      %1073 = vmatprep.subr.bf16.mxu0 0
      %1074 = vmatpush1.bf16.msra.mxu0 0
      %1075 = vmatprep.subr.bf16.mxu0 0
      %1076 = vmatpush1.bf16.msra.mxu0 0
      %1077 = vmatprep.subr.bf16.mxu0 0
      %1078 = vmatpush1.bf16.msra.mxu0 0
      %1079 = vmatprep.subr.bf16.mxu0 0
      %1080 = vmatpush1.bf16.msra.mxu0 0
      %1081 = vmatprep.subr.bf16.mxu0 0
      %1082 = vmatpush1.bf16.msra.mxu0 0
      %1083 = vmatprep.mubr.bf16.mxu0 0
      %1084 = vmatmul.mubr.bf16.gmra.mrb[0].mxu0 %v770
      %v1085 = vpop.f32.mrb[0].mxu0
      %v1086 = vadd.f32 0.0, %v1085
      %v1087 = vpop.f32.mrb[0].mxu0
      %v1088 = vpop.f32.mrb[0].mxu0
      %v1089 = vadd.f32 0.0, %v1088
      %v1090 = vpop.f32.mrb[0].mxu0
      %1091 = vmatprep.mubr.bf16.mxu0 0
      %1092 = vmatmul.mubr.bf16.gmra.mrb[0].mxu0 %v771
      %v1093 = vpop.f32.mrb[0].mxu0
      %v1094 = vadd.f32 0.0, %v1093
      %v1095 = vpop.f32.mrb[0].mxu0
      %v1096 = vpop.f32.mrb[0].mxu0
      %v1097 = vadd.f32 0.0, %v1096
      %v1098 = vpop.f32.mrb[0].mxu0
      %1099 = vmatprep.mubr.bf16.mxu0 0
      %1100 = vmatmul.mubr.bf16.gmra.mrb[0].mxu0 %v772
      %v1101 = vpop.f32.mrb[0].mxu0
      %v1102 = vadd.f32 0.0, %v1101
      %v1103 = vpop.f32.mrb[0].mxu0
      %v1104 = vpop.f32.mrb[0].mxu0
      %v1105 = vadd.f32 0.0, %v1104
      %v1106 = vpop.f32.mrb[0].mxu0
      %1107 = vmatprep.mubr.bf16.mxu0 0
      %1108 = vmatmul.mubr.bf16.gmra.mrb[0].mxu0 %v773
      %v1109 = vpop.f32.mrb[0].mxu0
      %v1110 = vadd.f32 0.0, %v1109
      %v1111 = vpop.f32.mrb[0].mxu0
      %v1112 = vpop.f32.mrb[0].mxu0
      %v1113 = vadd.f32 0.0, %v1112
      %v1114 = vpop.f32.mrb[0].mxu0
      %1115 = vmatprep.mubr.bf16.mxu0 0
      %1116 = vmatmul.mubr.bf16.gmra.mrb[0].mxu0 %v774
      %v1117 = vpop.f32.mrb[0].mxu0
      %v1118 = vadd.f32 0.0, %v1117
      %v1119 = vpop.f32.mrb[0].mxu0
      %v1120 = vpop.f32.mrb[0].mxu0
      %v1121 = vadd.f32 0.0, %v1120
      %v1122 = vpop.f32.mrb[0].mxu0
      %1123 = vmatprep.mubr.bf16.mxu0 0
      %1124 = vmatmul.mubr.bf16.gmra.mrb[0].mxu0 %v775
      %v1125 = vpop.f32.mrb[0].mxu0
      %v1126 = vadd.f32 0.0, %v1125
      %v1127 = vpop.f32.mrb[0].mxu0
      %v1128 = vpop.f32.mrb[0].mxu0
      %v1129 = vadd.f32 0.0, %v1128
      %v1130 = vpop.f32.mrb[0].mxu0
      %1131 = vmatprep.mubr.bf16.mxu0 0
      %1132 = vmatmul.mubr.bf16.gmra.mrb[0].mxu0 %v776
      %v1133 = vpop.f32.mrb[0].mxu0
      %v1134 = vadd.f32 0.0, %v1133
      %v1135 = vpop.f32.mrb[0].mxu0
      %v1136 = vpop.f32.mrb[0].mxu0
      %v1137 = vadd.f32 0.0, %v1136
      %v1138 = vpop.f32.mrb[0].mxu0
      %1139 = vmatprep.mubr.bf16.mxu0 0
      %1140 = vmatmul.mubr.bf16.gmra.mrb[0].mxu0 %v777
      %v1141 = vpop.f32.mrb[0].mxu0
      %v1142 = vadd.f32 0.0, %v1141
      %v1143 = vpop.f32.mrb[0].mxu0
      %v1144 = vpop.f32.mrb[0].mxu0
      %v1145 = vadd.f32 0.0, %v1144
      %v1146 = vpop.f32.mrb[0].mxu0
      %1147 = vdwg.mxu0
      %v1148 = vld [vmem:[%s5] sm:$0xff]
      %v1149 = vld [vmem:[%s5 + $0x8] sm:$0xff]
      %v1150 = vld [vmem:[%s5 + $0x10] sm:$0xff]
      %v1151 = vld [vmem:[%s5 + $0x18] sm:$0xff]
      %v1156 = vunpack.c.l.b16 %v1148
      %v1157 = vunpack.c.h.b16 %v1148
      %v1158 = vunpack.c.l.b16 %v1149
      %v1159 = vunpack.c.h.b16 %v1149
      %v1160 = vunpack.c.l.b16 %v1150
      %v1161 = vunpack.c.h.b16 %v1150
      %v1162 = vunpack.c.l.b16 %v1151
      %v1163 = vunpack.c.h.b16 %v1151
      %v1164 = vpack.c.b16 %v1158, %v1156
      %v1165 = vpack.c.b16 %v1159, %v1157
      %v1166 = vpack.c.b16 %v1162, %v1160
      %v1167 = vpack.c.b16 %v1163, %v1161
      %vm1172 = vcmask 261120
      %v1174 = vsel %vm1172, %v513, 0
      %v1177 = vsel %vm1172, %v514, 0
      %v1180 = vsel %vm1172, %v515, 0
      %v1183 = vsel %vm1172, %v516, 0
      %v1186 = vsel %vm1172, %v517, 0
      %v1189 = vsel %vm1172, %v518, 0
      %v1192 = vsel %vm1172, %v519, 0
      %v1195 = vsel %vm1172, %v520, 0
      %1197 = vmatprep.subr.bf16.mxu0 %v1165
      %1198 = vmatpush1.bf16.msra.mxu0 %v1164
      %1199 = vmatprep.subr.bf16.mxu0 %v1167
      %1200 = vmatpush1.bf16.msra.mxu0 %v1166
      %1201 = vmatprep.subr.bf16.mxu0 0
      %1202 = vmatpush1.bf16.msra.mxu0 0
      %1203 = vmatprep.subr.bf16.mxu0 0
      %1204 = vmatpush1.bf16.msra.mxu0 0
      %1205 = vmatprep.subr.bf16.mxu0 0
      %1206 = vmatpush1.bf16.msra.mxu0 0
      %1207 = vmatprep.subr.bf16.mxu0 0
      %1208 = vmatpush1.bf16.msra.mxu0 0
      %1209 = vmatprep.subr.bf16.mxu0 0
      %1210 = vmatpush1.bf16.msra.mxu0 0
      %1211 = vmatprep.subr.bf16.mxu0 0
      %1212 = vmatpush1.bf16.msra.mxu0 0
      %1213 = vmatprep.subr.bf16.mxu0 0
      %1214 = vmatpush1.bf16.msra.mxu0 0
      %1215 = vmatprep.subr.bf16.mxu0 0
      %1216 = vmatpush1.bf16.msra.mxu0 0
      %1217 = vmatprep.subr.bf16.mxu0 0
      %1218 = vmatpush1.bf16.msra.mxu0 0
      %1219 = vmatprep.subr.bf16.mxu0 0
      %1220 = vmatpush1.bf16.msra.mxu0 0
      %1221 = vmatprep.subr.bf16.mxu0 0
      %1222 = vmatpush1.bf16.msra.mxu0 0
      %1223 = vmatprep.subr.bf16.mxu0 0
      %1224 = vmatpush1.bf16.msra.mxu0 0
      %1225 = vmatprep.subr.bf16.mxu0 0
      %1226 = vmatpush1.bf16.msra.mxu0 0
      %1227 = vmatprep.subr.bf16.mxu0 0
      %1228 = vmatpush1.bf16.msra.mxu0 0
      %1229 = vmatprep.mubr.bf16.mxu0 0
      %1230 = vmatmul.mubr.bf16.gmra.mrb[0].mxu0 %v1174
      %v1231 = vpop.f32.mrb[0].mxu0
      %v1232 = vadd.f32 0.0, %v1231
      %v1233 = vpop.f32.mrb[0].mxu0
      %v1234 = vadd.f32 0.0, %v1233
      %v1235 = vpop.f32.mrb[0].mxu0
      %v1236 = vadd.f32 0.0, %v1235
      %v1237 = vpop.f32.mrb[0].mxu0
      %v1238 = vadd.f32 0.0, %v1237
      %1239 = vmatprep.mubr.bf16.mxu0 0
      %1240 = vmatmul.mubr.bf16.gmra.mrb[0].mxu0 %v1177
      %v1241 = vpop.f32.mrb[0].mxu0
      %v1242 = vadd.f32 0.0, %v1241
      %v1243 = vpop.f32.mrb[0].mxu0
      %v1244 = vadd.f32 0.0, %v1243
      %v1245 = vpop.f32.mrb[0].mxu0
      %v1246 = vadd.f32 0.0, %v1245
      %v1247 = vpop.f32.mrb[0].mxu0
      %v1248 = vadd.f32 0.0, %v1247
      %1249 = vmatprep.mubr.bf16.mxu0 0
      %1250 = vmatmul.mubr.bf16.gmra.mrb[0].mxu0 %v1180
      %v1251 = vpop.f32.mrb[0].mxu0
      %v1252 = vadd.f32 0.0, %v1251
      %v1253 = vpop.f32.mrb[0].mxu0
      %v1254 = vadd.f32 0.0, %v1253
      %v1255 = vpop.f32.mrb[0].mxu0
      %v1256 = vadd.f32 0.0, %v1255
      %v1257 = vpop.f32.mrb[0].mxu0
      %v1258 = vadd.f32 0.0, %v1257
      %1259 = vmatprep.mubr.bf16.mxu0 0
      %1260 = vmatmul.mubr.bf16.gmra.mrb[0].mxu0 %v1183
      %v1261 = vpop.f32.mrb[0].mxu0
      %v1262 = vadd.f32 0.0, %v1261
      %v1263 = vpop.f32.mrb[0].mxu0
      %v1264 = vadd.f32 0.0, %v1263
      %v1265 = vpop.f32.mrb[0].mxu0
      %v1266 = vadd.f32 0.0, %v1265
      %v1267 = vpop.f32.mrb[0].mxu0
      %v1268 = vadd.f32 0.0, %v1267
      %1269 = vmatprep.mubr.bf16.mxu0 0
      %1270 = vmatmul.mubr.bf16.gmra.mrb[0].mxu0 %v1186
      %v1271 = vpop.f32.mrb[0].mxu0
      %v1272 = vadd.f32 0.0, %v1271
      %v1273 = vpop.f32.mrb[0].mxu0
      %v1274 = vadd.f32 0.0, %v1273
      %v1275 = vpop.f32.mrb[0].mxu0
      %v1276 = vadd.f32 0.0, %v1275
      %v1277 = vpop.f32.mrb[0].mxu0
      %v1278 = vadd.f32 0.0, %v1277
      %1279 = vmatprep.mubr.bf16.mxu0 0
      %1280 = vmatmul.mubr.bf16.gmra.mrb[0].mxu0 %v1189
      %v1281 = vpop.f32.mrb[0].mxu0
      %v1282 = vadd.f32 0.0, %v1281
      %v1283 = vpop.f32.mrb[0].mxu0
      %v1284 = vadd.f32 0.0, %v1283
      %v1285 = vpop.f32.mrb[0].mxu0
      %v1286 = vadd.f32 0.0, %v1285
      %v1287 = vpop.f32.mrb[0].mxu0
      %v1288 = vadd.f32 0.0, %v1287
      %1289 = vmatprep.mubr.bf16.mxu0 0
      %1290 = vmatmul.mubr.bf16.gmra.mrb[0].mxu0 %v1192
      %v1291 = vpop.f32.mrb[0].mxu0
      %v1292 = vadd.f32 0.0, %v1291
      %v1293 = vpop.f32.mrb[0].mxu0
      %v1294 = vadd.f32 0.0, %v1293
      %v1295 = vpop.f32.mrb[0].mxu0
      %v1296 = vadd.f32 0.0, %v1295
      %v1297 = vpop.f32.mrb[0].mxu0
      %v1298 = vadd.f32 0.0, %v1297
      %1299 = vmatprep.mubr.bf16.mxu0 0
      %1300 = vmatmul.mubr.bf16.gmra.mrb[0].mxu0 %v1195
      %v1301 = vpop.f32.mrb[0].mxu0
      %v1302 = vadd.f32 0.0, %v1301
      %v1303 = vpop.f32.mrb[0].mxu0
      %v1304 = vadd.f32 0.0, %v1303
      %v1305 = vpop.f32.mrb[0].mxu0
      %v1306 = vadd.f32 0.0, %v1305
      %v1307 = vpop.f32.mrb[0].mxu0
      %v1308 = vadd.f32 0.0, %v1307
      %1309 = vdwg.mxu0
      %v1310 = vld [vmem:[%s6] sm:$0xf]
      %v1311 = vld [vmem:[%s6 + $0x4] sm:$0xf]
      %v1312 = vld [vmem:[%s6 + $0x8] sm:$0xf]
      %v1313 = vld [vmem:[%s6 + $0xc] sm:$0xf]
      %v1314 = vld [vmem:[%s6 + $0x10] sm:$0xf]
      %v1315 = vld [vmem:[%s6 + $0x14] sm:$0xf]
      %v1316 = vld [vmem:[%s6 + $0x18] sm:$0xf]
      %v1317 = vld [vmem:[%s6 + $0x1c] sm:$0xf]
      %v1318 = vld [vmem:[%s6 + $0x20] sm:$0xf]
      %v1319 = vld [vmem:[%s6 + $0x24] sm:$0xf]
      %v1320 = vld [vmem:[%s6 + $0x28] sm:$0xf]
      %v1321 = vld [vmem:[%s6 + $0x2c] sm:$0xf]
      %v1322 = vld [vmem:[%s6 + $0x30] sm:$0xf]
      %v1323 = vld [vmem:[%s6 + $0x34] sm:$0xf]
      %v1324 = vld [vmem:[%s6 + $0x38] sm:$0xf]
      %v1325 = vld [vmem:[%s6 + $0x3c] sm:$0xf]
      %v1326 = vld [vmem:[%s7] sm:$0xf]
      %v1327 = vld [vmem:[%s7 + $0x4] sm:$0xf]
      %v1328 = vld [vmem:[%s7 + $0x8] sm:$0xf]
      %v1329 = vld [vmem:[%s7 + $0xc] sm:$0xf]
      %v1334 = vunpack.c.l.b16 %v1326
      %v1335 = vunpack.c.l.b16 %v1327
      %v1336 = vunpack.c.l.b16 %v1328
      %v1337 = vunpack.c.l.b16 %v1329
      %v1338 = vpack.c.b16 %v1335, %v1334
      %v1339 = vpack.c.b16 %v1337, %v1336
      %1342 = vmatprep.subr.bf16.mxu0 0
      %1343 = vmatpush1.bf16.msra.mxu0 %v1338
      %1344 = vmatprep.subr.bf16.mxu0 0
      %1345 = vmatpush1.bf16.msra.mxu0 %v1339
      %1346 = vmatprep.subr.bf16.mxu0 0
      %1347 = vmatpush1.bf16.msra.mxu0 0
      %1348 = vmatprep.subr.bf16.mxu0 0
      %1349 = vmatpush1.bf16.msra.mxu0 0
      %1350 = vmatprep.subr.bf16.mxu0 0
      %1351 = vmatpush1.bf16.msra.mxu0 0
      %1352 = vmatprep.subr.bf16.mxu0 0
      %1353 = vmatpush1.bf16.msra.mxu0 0
      %1354 = vmatprep.subr.bf16.mxu0 0
      %1355 = vmatpush1.bf16.msra.mxu0 0
      %1356 = vmatprep.subr.bf16.mxu0 0
      %1357 = vmatpush1.bf16.msra.mxu0 0
      %1358 = vmatprep.subr.bf16.mxu0 0
      %1359 = vmatpush1.bf16.msra.mxu0 0
      %1360 = vmatprep.subr.bf16.mxu0 0
      %1361 = vmatpush1.bf16.msra.mxu0 0
      %1362 = vmatprep.subr.bf16.mxu0 0
      %1363 = vmatpush1.bf16.msra.mxu0 0
      %1364 = vmatprep.subr.bf16.mxu0 0
      %1365 = vmatpush1.bf16.msra.mxu0 0
      %1366 = vmatprep.subr.bf16.mxu0 0
      %1367 = vmatpush1.bf16.msra.mxu0 0
      %1368 = vmatprep.subr.bf16.mxu0 0
      %1369 = vmatpush1.bf16.msra.mxu0 0
      %1370 = vmatprep.subr.bf16.mxu0 0
      %1371 = vmatpush1.bf16.msra.mxu0 0
      %1372 = vmatprep.subr.bf16.mxu0 0
      %1373 = vmatpush1.bf16.msra.mxu0 0
      %1374 = vmatprep.mubr.bf16.mxu0 0
      %1375 = vmatmul.mubr.bf16.gmra.mrb[0].mxu0 %v1174
      %v1376 = vpop.f32.mrb[0].mxu0
      %v1377 = vadd.f32 0.0, %v1376
      %v1378 = vpop.f32.mrb[0].mxu0
      %v1379 = vpop.f32.mrb[0].mxu0
      %v1380 = vadd.f32 0.0, %v1379
      %v1381 = vpop.f32.mrb[0].mxu0
      %1382 = vmatprep.mubr.bf16.mxu0 0
      %1383 = vmatmul.mubr.bf16.gmra.mrb[0].mxu0 %v1177
      %v1384 = vpop.f32.mrb[0].mxu0
      %v1385 = vadd.f32 0.0, %v1384
      %v1386 = vpop.f32.mrb[0].mxu0
      %v1387 = vpop.f32.mrb[0].mxu0
      %v1388 = vadd.f32 0.0, %v1387
      %v1389 = vpop.f32.mrb[0].mxu0
      %1390 = vmatprep.mubr.bf16.mxu0 0
      %1391 = vmatmul.mubr.bf16.gmra.mrb[0].mxu0 %v1180
      %v1392 = vpop.f32.mrb[0].mxu0
      %v1393 = vadd.f32 0.0, %v1392
      %v1394 = vpop.f32.mrb[0].mxu0
      %v1395 = vpop.f32.mrb[0].mxu0
      %v1396 = vadd.f32 0.0, %v1395
      %v1397 = vpop.f32.mrb[0].mxu0
      %1398 = vmatprep.mubr.bf16.mxu0 0
      %1399 = vmatmul.mubr.bf16.gmra.mrb[0].mxu0 %v1183
      %v1400 = vpop.f32.mrb[0].mxu0
      %v1401 = vadd.f32 0.0, %v1400
      %v1402 = vpop.f32.mrb[0].mxu0
      %v1403 = vpop.f32.mrb[0].mxu0
      %v1404 = vadd.f32 0.0, %v1403
      %v1405 = vpop.f32.mrb[0].mxu0
      %1406 = vmatprep.mubr.bf16.mxu0 0
      %1407 = vmatmul.mubr.bf16.gmra.mrb[0].mxu0 %v1186
      %v1408 = vpop.f32.mrb[0].mxu0
      %v1409 = vadd.f32 0.0, %v1408
      %v1410 = vpop.f32.mrb[0].mxu0
      %v1411 = vpop.f32.mrb[0].mxu0
      %v1412 = vadd.f32 0.0, %v1411
      %v1413 = vpop.f32.mrb[0].mxu0
      %1414 = vmatprep.mubr.bf16.mxu0 0
      %1415 = vmatmul.mubr.bf16.gmra.mrb[0].mxu0 %v1189
      %v1416 = vpop.f32.mrb[0].mxu0
      %v1417 = vadd.f32 0.0, %v1416
      %v1418 = vpop.f32.mrb[0].mxu0
      %v1419 = vpop.f32.mrb[0].mxu0
      %v1420 = vadd.f32 0.0, %v1419
      %v1421 = vpop.f32.mrb[0].mxu0
      %1422 = vmatprep.mubr.bf16.mxu0 0
      %1423 = vmatmul.mubr.bf16.gmra.mrb[0].mxu0 %v1192
      %v1424 = vpop.f32.mrb[0].mxu0
      %v1425 = vadd.f32 0.0, %v1424
      %v1426 = vpop.f32.mrb[0].mxu0
      %v1427 = vpop.f32.mrb[0].mxu0
      %v1428 = vadd.f32 0.0, %v1427
      %v1429 = vpop.f32.mrb[0].mxu0
      %1430 = vmatprep.mubr.bf16.mxu0 0
      %1431 = vmatmul.mubr.bf16.gmra.mrb[0].mxu0 %v1195
      %v1432 = vpop.f32.mrb[0].mxu0
      %v1433 = vadd.f32 0.0, %v1432
      %v1434 = vpop.f32.mrb[0].mxu0
      %v1435 = vpop.f32.mrb[0].mxu0
      %v1436 = vadd.f32 0.0, %v1435
      %v1437 = vpop.f32.mrb[0].mxu0
      %1438 = vdwg.mxu0
      %v1455 = vunpack.c.l.b16 %v1310
      %v1456 = vunpack.c.l.b16 %v1311
      %v1457 = vunpack.c.l.b16 %v1312
      %v1458 = vunpack.c.l.b16 %v1313
      %v1459 = vunpack.c.l.b16 %v1314
      %v1460 = vunpack.c.l.b16 %v1315
      %v1461 = vunpack.c.l.b16 %v1316
      %v1462 = vunpack.c.l.b16 %v1317
      %v1463 = vunpack.c.l.b16 %v1318
      %v1464 = vunpack.c.l.b16 %v1319
      %v1465 = vunpack.c.l.b16 %v1320
      %v1466 = vunpack.c.l.b16 %v1321
      %v1467 = vunpack.c.l.b16 %v1322
      %v1468 = vunpack.c.l.b16 %v1323
      %v1469 = vunpack.c.l.b16 %v1324
      %v1470 = vunpack.c.l.b16 %v1325
      %v1471 = vpack.c.b16 %v1456, %v1455
      %v1472 = vpack.c.b16 %v1458, %v1457
      %v1473 = vpack.c.b16 %v1460, %v1459
      %v1474 = vpack.c.b16 %v1462, %v1461
      %v1475 = vpack.c.b16 %v1464, %v1463
      %v1476 = vpack.c.b16 %v1466, %v1465
      %v1477 = vpack.c.b16 %v1468, %v1467
      %v1478 = vpack.c.b16 %v1470, %v1469
      %1487 = vmatprep.subr.bf16.mxu0 0
      %1488 = vmatpush1.bf16.msra.mxu0 %v1471
      %1489 = vmatprep.subr.bf16.mxu0 0
      %1490 = vmatpush1.bf16.msra.mxu0 %v1472
      %1491 = vmatprep.subr.bf16.mxu0 0
      %1492 = vmatpush1.bf16.msra.mxu0 %v1473
      %1493 = vmatprep.subr.bf16.mxu0 0
      %1494 = vmatpush1.bf16.msra.mxu0 %v1474
      %1495 = vmatprep.subr.bf16.mxu0 0
      %1496 = vmatpush1.bf16.msra.mxu0 %v1475
      %1497 = vmatprep.subr.bf16.mxu0 0
      %1498 = vmatpush1.bf16.msra.mxu0 %v1476
      %1499 = vmatprep.subr.bf16.mxu0 0
      %1500 = vmatpush1.bf16.msra.mxu0 %v1477
      %1501 = vmatprep.subr.bf16.mxu0 0
      %1502 = vmatpush1.bf16.msra.mxu0 %v1478
      %1503 = vmatprep.subr.bf16.mxu0 0
      %1504 = vmatpush1.bf16.msra.mxu0 0
      %1505 = vmatprep.subr.bf16.mxu0 0
      %1506 = vmatpush1.bf16.msra.mxu0 0
      %1507 = vmatprep.subr.bf16.mxu0 0
      %1508 = vmatpush1.bf16.msra.mxu0 0
      %1509 = vmatprep.subr.bf16.mxu0 0
      %1510 = vmatpush1.bf16.msra.mxu0 0
      %1511 = vmatprep.subr.bf16.mxu0 0
      %1512 = vmatpush1.bf16.msra.mxu0 0
      %1513 = vmatprep.subr.bf16.mxu0 0
      %1514 = vmatpush1.bf16.msra.mxu0 0
      %1515 = vmatprep.subr.bf16.mxu0 0
      %1516 = vmatpush1.bf16.msra.mxu0 0
      %1517 = vmatprep.subr.bf16.mxu0 0
      %1518 = vmatpush1.bf16.msra.mxu0 0
      %1519 = vmatprep.mubr.bf16.mxu0 0
      %1520 = vmatmul.mubr.bf16.gmra.mrb[0].mxu0 %v770
      %v1521 = vpop.f32.mrb[0].mxu0
      %v1522 = vadd.f32 %v1377, %v1521
      %v1523 = vpop.f32.mrb[0].mxu0
      %v1524 = vpop.f32.mrb[0].mxu0
      %v1525 = vadd.f32 %v1380, %v1524
      %v1526 = vpop.f32.mrb[0].mxu0
      %1527 = vmatprep.mubr.bf16.mxu0 0
      %1528 = vmatmul.mubr.bf16.gmra.mrb[0].mxu0 %v771
      %v1529 = vpop.f32.mrb[0].mxu0
      %v1530 = vadd.f32 %v1385, %v1529
      %v1531 = vpop.f32.mrb[0].mxu0
      %v1532 = vpop.f32.mrb[0].mxu0
      %v1533 = vadd.f32 %v1388, %v1532
      %v1534 = vpop.f32.mrb[0].mxu0
      %1535 = vmatprep.mubr.bf16.mxu0 0
      %1536 = vmatmul.mubr.bf16.gmra.mrb[0].mxu0 %v772
      %v1537 = vpop.f32.mrb[0].mxu0
      %v1538 = vadd.f32 %v1393, %v1537
      %v1539 = vpop.f32.mrb[0].mxu0
      %v1540 = vpop.f32.mrb[0].mxu0
      %v1541 = vadd.f32 %v1396, %v1540
      %v1542 = vpop.f32.mrb[0].mxu0
      %1543 = vmatprep.mubr.bf16.mxu0 0
      %1544 = vmatmul.mubr.bf16.gmra.mrb[0].mxu0 %v773
      %v1545 = vpop.f32.mrb[0].mxu0
      %v1546 = vadd.f32 %v1401, %v1545
      %v1547 = vpop.f32.mrb[0].mxu0
      %v1548 = vpop.f32.mrb[0].mxu0
      %v1549 = vadd.f32 %v1404, %v1548
      %v1550 = vpop.f32.mrb[0].mxu0
      %1551 = vmatprep.mubr.bf16.mxu0 0
      %1552 = vmatmul.mubr.bf16.gmra.mrb[0].mxu0 %v774
      %v1553 = vpop.f32.mrb[0].mxu0
      %v1554 = vadd.f32 %v1409, %v1553
      %v1555 = vpop.f32.mrb[0].mxu0
      %v1556 = vpop.f32.mrb[0].mxu0
      %v1557 = vadd.f32 %v1412, %v1556
      %v1558 = vpop.f32.mrb[0].mxu0
      %1559 = vmatprep.mubr.bf16.mxu0 0
      %1560 = vmatmul.mubr.bf16.gmra.mrb[0].mxu0 %v775
      %v1561 = vpop.f32.mrb[0].mxu0
      %v1562 = vadd.f32 %v1417, %v1561
      %v1563 = vpop.f32.mrb[0].mxu0
      %v1564 = vpop.f32.mrb[0].mxu0
      %v1565 = vadd.f32 %v1420, %v1564
      %v1566 = vpop.f32.mrb[0].mxu0
      %1567 = vmatprep.mubr.bf16.mxu0 0
      %1568 = vmatmul.mubr.bf16.gmra.mrb[0].mxu0 %v776
      %v1569 = vpop.f32.mrb[0].mxu0
      %v1570 = vadd.f32 %v1425, %v1569
      %v1571 = vpop.f32.mrb[0].mxu0
      %v1572 = vpop.f32.mrb[0].mxu0
      %v1573 = vadd.f32 %v1428, %v1572
      %v1574 = vpop.f32.mrb[0].mxu0
      %1575 = vmatprep.mubr.bf16.mxu0 0
      %1576 = vmatmul.mubr.bf16.gmra.mrb[0].mxu0 %v777
      %v1577 = vpop.f32.mrb[0].mxu0
      %v1578 = vadd.f32 %v1433, %v1577
      %v1579 = vpop.f32.mrb[0].mxu0
      %v1580 = vpop.f32.mrb[0].mxu0
      %v1581 = vadd.f32 %v1436, %v1580
      %v1582 = vpop.f32.mrb[0].mxu0
      %1583 = vdwg.mxu0
      %v1584 = vxor.u32 %v1522, 2147483648
      %v1585 = vxor.u32 %v1525, 2147483648
      %v1586 = vxor.u32 %v1530, 2147483648
      %v1587 = vxor.u32 %v1533, 2147483648
      %v1588 = vxor.u32 %v1538, 2147483648
      %v1589 = vxor.u32 %v1541, 2147483648
      %v1590 = vxor.u32 %v1546, 2147483648
      %v1591 = vxor.u32 %v1549, 2147483648
      %v1592 = vxor.u32 %v1554, 2147483648
      %v1593 = vxor.u32 %v1557, 2147483648
      %v1594 = vxor.u32 %v1562, 2147483648
      %v1595 = vxor.u32 %v1565, 2147483648
      %v1596 = vxor.u32 %v1570, 2147483648
      %v1597 = vxor.u32 %v1573, 2147483648
      %v1598 = vxor.u32 %v1578, 2147483648
      %v1599 = vxor.u32 %v1581, 2147483648
      %v1600 = vmul.f32 %v1584, 1.442695
      %v1601 = vpow.pop %v1600
      %v1602 = vmul.f32 %v1585, 1.442695
      %v1603 = vpow.pop %v1602
      %v1604 = vmul.f32 %v1586, 1.442695
      %v1605 = vpow.pop %v1604
      %v1606 = vmul.f32 %v1587, 1.442695
      %v1607 = vpow.pop %v1606
      %v1608 = vmul.f32 %v1588, 1.442695
      %v1609 = vpow.pop %v1608
      %v1610 = vmul.f32 %v1589, 1.442695
      %v1611 = vpow.pop %v1610
      %v1612 = vmul.f32 %v1590, 1.442695
      %v1613 = vpow.pop %v1612
      %v1614 = vmul.f32 %v1591, 1.442695
      %v1615 = vpow.pop %v1614
      %v1616 = vmul.f32 %v1592, 1.442695
      %v1617 = vpow.pop %v1616
      %v1618 = vmul.f32 %v1593, 1.442695
      %v1619 = vpow.pop %v1618
      %v1620 = vmul.f32 %v1594, 1.442695
      %v1621 = vpow.pop %v1620
      %v1622 = vmul.f32 %v1595, 1.442695
      %v1623 = vpow.pop %v1622
      %v1624 = vmul.f32 %v1596, 1.442695
      %v1625 = vpow.pop %v1624
      %v1626 = vmul.f32 %v1597, 1.442695
      %v1627 = vpow.pop %v1626
      %v1628 = vmul.f32 %v1598, 1.442695
      %v1629 = vpow.pop %v1628
      %v1630 = vmul.f32 %v1599, 1.442695
      %v1631 = vpow.pop %v1630
      %v1632 = vadd.f32 %v1601, 1.0
      %v1633 = vadd.f32 %v1603, 1.0
      %v1634 = vadd.f32 %v1605, 1.0
      %v1635 = vadd.f32 %v1607, 1.0
      %v1636 = vadd.f32 %v1609, 1.0
      %v1637 = vadd.f32 %v1611, 1.0
      %v1638 = vadd.f32 %v1613, 1.0
      %v1639 = vadd.f32 %v1615, 1.0
      %v1640 = vadd.f32 %v1617, 1.0
      %v1641 = vadd.f32 %v1619, 1.0
      %v1642 = vadd.f32 %v1621, 1.0
      %v1643 = vadd.f32 %v1623, 1.0
      %v1644 = vadd.f32 %v1625, 1.0
      %v1645 = vadd.f32 %v1627, 1.0
      %v1646 = vadd.f32 %v1629, 1.0
      %v1647 = vadd.f32 %v1631, 1.0
      %v1648 = vrcp.pop %v1632
      %v1649 = vmul.f32 1.0, %v1648
      %v1650 = vrcp.pop %v1633
      %v1651 = vmul.f32 1.0, %v1650
      %v1652 = vrcp.pop %v1634
      %v1653 = vmul.f32 1.0, %v1652
      %v1654 = vrcp.pop %v1635
      %v1655 = vmul.f32 1.0, %v1654
      %v1656 = vrcp.pop %v1636
      %v1657 = vmul.f32 1.0, %v1656
      %v1658 = vrcp.pop %v1637
      %v1659 = vmul.f32 1.0, %v1658
      %v1660 = vrcp.pop %v1638
      %v1661 = vmul.f32 1.0, %v1660
      %v1662 = vrcp.pop %v1639
      %v1663 = vmul.f32 1.0, %v1662
      %v1664 = vrcp.pop %v1640
      %v1665 = vmul.f32 1.0, %v1664
      %v1666 = vrcp.pop %v1641
      %v1667 = vmul.f32 1.0, %v1666
      %v1668 = vrcp.pop %v1642
      %v1669 = vmul.f32 1.0, %v1668
      %v1670 = vrcp.pop %v1643
      %v1671 = vmul.f32 1.0, %v1670
      %v1672 = vrcp.pop %v1644
      %v1673 = vmul.f32 1.0, %v1672
      %v1674 = vrcp.pop %v1645
      %v1675 = vmul.f32 1.0, %v1674
      %v1676 = vrcp.pop %v1646
      %v1677 = vmul.f32 1.0, %v1676
      %v1678 = vrcp.pop %v1647
      %v1679 = vmul.f32 1.0, %v1678
      %v1680 = vld [vmem:[%s4] sm:$0x1]
      %v1682 = vlaneseq
      %v1683 = vshrl.u32 %v1682, 7
      %v1684 = vsub.s32 0, %v1683
      %v1685 = vrot.slane %v1680, %v1684
      %v1687 = vadd.f32 %v973, %v1685
      %v1688 = vadd.f32 %v977, %v1685
      %v1689 = vadd.f32 %v983, %v1685
      %v1690 = vadd.f32 %v987, %v1685
      %v1691 = vadd.f32 %v993, %v1685
      %v1692 = vadd.f32 %v997, %v1685
      %v1693 = vadd.f32 %v1003, %v1685
      %v1694 = vadd.f32 %v1007, %v1685
      %v1695 = vadd.f32 %v1013, %v1685
      %v1696 = vadd.f32 %v1017, %v1685
      %v1697 = vadd.f32 %v1023, %v1685
      %v1698 = vadd.f32 %v1027, %v1685
      %v1699 = vadd.f32 %v1033, %v1685
      %v1700 = vadd.f32 %v1037, %v1685
      %v1701 = vadd.f32 %v1043, %v1685
      %v1702 = vadd.f32 %v1047, %v1685
      %v1703 = vsub.f32 1.0, %v1649
      %v1704 = vsub.f32 1.0, %v1651
      %v1705 = vsub.f32 1.0, %v1653
      %v1706 = vsub.f32 1.0, %v1655
      %v1707 = vsub.f32 1.0, %v1657
      %v1708 = vsub.f32 1.0, %v1659
      %v1709 = vsub.f32 1.0, %v1661
      %v1710 = vsub.f32 1.0, %v1663
      %v1711 = vsub.f32 1.0, %v1665
      %v1712 = vsub.f32 1.0, %v1667
      %v1713 = vsub.f32 1.0, %v1669
      %v1714 = vsub.f32 1.0, %v1671
      %v1715 = vsub.f32 1.0, %v1673
      %v1716 = vsub.f32 1.0, %v1675
      %v1717 = vsub.f32 1.0, %v1677
      %v1718 = vsub.f32 1.0, %v1679
      %1720 = vset.pattern.permute.xlu0 0
      %1721 = vperm.xlu0 %1720, %v1703
      %v1722 = vpop.permute.xlu0 %1721
      %1725 = vset.pattern.permute.xlu0 0
      %1726 = vperm.xlu0 %1725, %v1704
      %v1727 = vpop.permute.xlu0 %1726
      %1730 = vset.pattern.permute.xlu0 0
      %1731 = vperm.xlu0 %1730, %v1705
      %v1732 = vpop.permute.xlu0 %1731
      %1735 = vset.pattern.permute.xlu0 0
      %1736 = vperm.xlu0 %1735, %v1706
      %v1737 = vpop.permute.xlu0 %1736
      %1740 = vset.pattern.permute.xlu0 0
      %1741 = vperm.xlu0 %1740, %v1707
      %v1742 = vpop.permute.xlu0 %1741
      %1745 = vset.pattern.permute.xlu0 0
      %1746 = vperm.xlu0 %1745, %v1708
      %v1747 = vpop.permute.xlu0 %1746
      %1750 = vset.pattern.permute.xlu0 0
      %1751 = vperm.xlu0 %1750, %v1709
      %v1752 = vpop.permute.xlu0 %1751
      %1755 = vset.pattern.permute.xlu0 0
      %1756 = vperm.xlu0 %1755, %v1710
      %v1757 = vpop.permute.xlu0 %1756
      %1760 = vset.pattern.permute.xlu0 0
      %1761 = vperm.xlu0 %1760, %v1711
      %v1762 = vpop.permute.xlu0 %1761
      %1765 = vset.pattern.permute.xlu0 0
      %1766 = vperm.xlu0 %1765, %v1712
      %v1767 = vpop.permute.xlu0 %1766
      %1770 = vset.pattern.permute.xlu0 0
      %1771 = vperm.xlu0 %1770, %v1713
      %v1772 = vpop.permute.xlu0 %1771
      %1775 = vset.pattern.permute.xlu0 0
      %1776 = vperm.xlu0 %1775, %v1714
      %v1777 = vpop.permute.xlu0 %1776
      %1780 = vset.pattern.permute.xlu0 0
      %1781 = vperm.xlu0 %1780, %v1715
      %v1782 = vpop.permute.xlu0 %1781
      %1785 = vset.pattern.permute.xlu0 0
      %1786 = vperm.xlu0 %1785, %v1716
      %v1787 = vpop.permute.xlu0 %1786
      %1790 = vset.pattern.permute.xlu0 0
      %1791 = vperm.xlu0 %1790, %v1717
      %v1792 = vpop.permute.xlu0 %1791
      %1795 = vset.pattern.permute.xlu0 0
      %1796 = vperm.xlu0 %1795, %v1718
      %v1797 = vpop.permute.xlu0 %1796
      %v1799 = vmul.f32 %v1722, %v975
      %v1800 = vmul.f32 %v1727, %v979
      %v1801 = vmul.f32 %v1732, %v985
      %v1802 = vmul.f32 %v1737, %v989
      %v1803 = vmul.f32 %v1742, %v995
      %v1804 = vmul.f32 %v1747, %v999
      %v1805 = vmul.f32 %v1752, %v1005
      %v1806 = vmul.f32 %v1757, %v1009
      %v1807 = vmul.f32 %v1762, %v1015
      %v1808 = vmul.f32 %v1767, %v1019
      %v1809 = vmul.f32 %v1772, %v1025
      %v1810 = vmul.f32 %v1777, %v1029
      %v1811 = vmul.f32 %v1782, %v1035
      %v1812 = vmul.f32 %v1787, %v1039
      %v1813 = vmul.f32 %v1792, %v1045
      %v1814 = vmul.f32 %v1797, %v1049
      %1816 = vset.pattern.permute.xlu0 0
      %1817 = vperm.xlu0 %1816, %v1649
      %v1818 = vpop.permute.xlu0 %1817
      %1821 = vset.pattern.permute.xlu0 0
      %1822 = vperm.xlu0 %1821, %v1651
      %v1823 = vpop.permute.xlu0 %1822
      %1826 = vset.pattern.permute.xlu0 0
      %1827 = vperm.xlu0 %1826, %v1653
      %v1828 = vpop.permute.xlu0 %1827
      %1831 = vset.pattern.permute.xlu0 0
      %1832 = vperm.xlu0 %1831, %v1655
      %v1833 = vpop.permute.xlu0 %1832
      %1836 = vset.pattern.permute.xlu0 0
      %1837 = vperm.xlu0 %1836, %v1657
      %v1838 = vpop.permute.xlu0 %1837
      %1841 = vset.pattern.permute.xlu0 0
      %1842 = vperm.xlu0 %1841, %v1659
      %v1843 = vpop.permute.xlu0 %1842
      %1846 = vset.pattern.permute.xlu0 0
      %1847 = vperm.xlu0 %1846, %v1661
      %v1848 = vpop.permute.xlu0 %1847
      %1851 = vset.pattern.permute.xlu0 0
      %1852 = vperm.xlu0 %1851, %v1663
      %v1853 = vpop.permute.xlu0 %1852
      %1856 = vset.pattern.permute.xlu0 0
      %1857 = vperm.xlu0 %1856, %v1665
      %v1858 = vpop.permute.xlu0 %1857
      %1861 = vset.pattern.permute.xlu0 0
      %1862 = vperm.xlu0 %1861, %v1667
      %v1863 = vpop.permute.xlu0 %1862
      %1866 = vset.pattern.permute.xlu0 0
      %1867 = vperm.xlu0 %1866, %v1669
      %v1868 = vpop.permute.xlu0 %1867
      %1871 = vset.pattern.permute.xlu0 0
      %1872 = vperm.xlu0 %1871, %v1671
      %v1873 = vpop.permute.xlu0 %1872
      %1876 = vset.pattern.permute.xlu0 0
      %1877 = vperm.xlu0 %1876, %v1673
      %v1878 = vpop.permute.xlu0 %1877
      %1881 = vset.pattern.permute.xlu0 0
      %1882 = vperm.xlu0 %1881, %v1675
      %v1883 = vpop.permute.xlu0 %1882
      %1886 = vset.pattern.permute.xlu0 0
      %1887 = vperm.xlu0 %1886, %v1677
      %v1888 = vpop.permute.xlu0 %1887
      %1891 = vset.pattern.permute.xlu0 0
      %1892 = vperm.xlu0 %1891, %v1679
      %v1893 = vpop.permute.xlu0 %1892
      %v1895 = vmul.f32 %v1818, %v1232
      %v1896 = vmul.f32 %v1823, %v1236
      %v1897 = vmul.f32 %v1828, %v1242
      %v1898 = vmul.f32 %v1833, %v1246
      %v1899 = vmul.f32 %v1838, %v1252
      %v1900 = vmul.f32 %v1843, %v1256
      %v1901 = vmul.f32 %v1848, %v1262
      %v1902 = vmul.f32 %v1853, %v1266
      %v1903 = vmul.f32 %v1858, %v1272
      %v1904 = vmul.f32 %v1863, %v1276
      %v1905 = vmul.f32 %v1868, %v1282
      %v1906 = vmul.f32 %v1873, %v1286
      %v1907 = vmul.f32 %v1878, %v1292
      %v1908 = vmul.f32 %v1883, %v1296
      %v1909 = vmul.f32 %v1888, %v1302
      %v1910 = vmul.f32 %v1893, %v1306
      %v1911 = vadd.f32 %v1799, %v1895
      %v1912 = vadd.f32 %v1800, %v1896
      %v1913 = vadd.f32 %v1801, %v1897
      %v1914 = vadd.f32 %v1802, %v1898
      %v1915 = vadd.f32 %v1803, %v1899
      %v1916 = vadd.f32 %v1804, %v1900
      %v1917 = vadd.f32 %v1805, %v1901
      %v1918 = vadd.f32 %v1806, %v1902
      %v1919 = vadd.f32 %v1807, %v1903
      %v1920 = vadd.f32 %v1808, %v1904
      %v1921 = vadd.f32 %v1809, %v1905
      %v1922 = vadd.f32 %v1810, %v1906
      %v1923 = vadd.f32 %v1811, %v1907
      %v1924 = vadd.f32 %v1812, %v1908
      %v1925 = vadd.f32 %v1813, %v1909
      %v1926 = vadd.f32 %v1814, %v1910
      %v1927 = vld [vmem:[%s4 + $0x1] sm:$0x1]
      %v1929 = vlaneseq
      %v1930 = vshrl.u32 %v1929, 7
      %v1931 = vsub.s32 0, %v1930
      %v1932 = vrot.slane %v1927, %v1931
      %v1934 = vadd.f32 %v1911, %v1932
      %v1935 = vadd.f32 %v1912, %v1932
      %v1936 = vadd.f32 %v1913, %v1932
      %v1937 = vadd.f32 %v1914, %v1932
      %v1938 = vadd.f32 %v1915, %v1932
      %v1939 = vadd.f32 %v1916, %v1932
      %v1940 = vadd.f32 %v1917, %v1932
      %v1941 = vadd.f32 %v1918, %v1932
      %v1942 = vadd.f32 %v1919, %v1932
      %v1943 = vadd.f32 %v1920, %v1932
      %v1944 = vadd.f32 %v1921, %v1932
      %v1945 = vadd.f32 %v1922, %v1932
      %v1946 = vadd.f32 %v1923, %v1932
      %v1947 = vadd.f32 %v1924, %v1932
      %v1948 = vadd.f32 %v1925, %v1932
      %v1949 = vadd.f32 %v1926, %v1932
      %1950 = vset.pattern.permute.xlu0 1
      %1951 = vperm.xlu0 %1950, %v1703
      %v1952 = vpop.permute.xlu0 %1951
      %1954 = vset.pattern.permute.xlu0 1
      %1955 = vperm.xlu0 %1954, %v1704
      %v1956 = vpop.permute.xlu0 %1955
      %1958 = vset.pattern.permute.xlu0 1
      %1959 = vperm.xlu0 %1958, %v1705
      %v1960 = vpop.permute.xlu0 %1959
      %1962 = vset.pattern.permute.xlu0 1
      %1963 = vperm.xlu0 %1962, %v1706
      %v1964 = vpop.permute.xlu0 %1963
      %1966 = vset.pattern.permute.xlu0 1
      %1967 = vperm.xlu0 %1966, %v1707
      %v1968 = vpop.permute.xlu0 %1967
      %1970 = vset.pattern.permute.xlu0 1
      %1971 = vperm.xlu0 %1970, %v1708
      %v1972 = vpop.permute.xlu0 %1971
      %1974 = vset.pattern.permute.xlu0 1
      %1975 = vperm.xlu0 %1974, %v1709
      %v1976 = vpop.permute.xlu0 %1975
      %1978 = vset.pattern.permute.xlu0 1
      %1979 = vperm.xlu0 %1978, %v1710
      %v1980 = vpop.permute.xlu0 %1979
      %1982 = vset.pattern.permute.xlu0 1
      %1983 = vperm.xlu0 %1982, %v1711
      %v1984 = vpop.permute.xlu0 %1983
      %1986 = vset.pattern.permute.xlu0 1
      %1987 = vperm.xlu0 %1986, %v1712
      %v1988 = vpop.permute.xlu0 %1987
      %1990 = vset.pattern.permute.xlu0 1
      %1991 = vperm.xlu0 %1990, %v1713
      %v1992 = vpop.permute.xlu0 %1991
      %1994 = vset.pattern.permute.xlu0 1
      %1995 = vperm.xlu0 %1994, %v1714
      %v1996 = vpop.permute.xlu0 %1995
      %1998 = vset.pattern.permute.xlu0 1
      %1999 = vperm.xlu0 %1998, %v1715
      %v2000 = vpop.permute.xlu0 %1999
      %2002 = vset.pattern.permute.xlu0 1
      %2003 = vperm.xlu0 %2002, %v1716
      %v2004 = vpop.permute.xlu0 %2003
      %2006 = vset.pattern.permute.xlu0 1
      %2007 = vperm.xlu0 %2006, %v1717
      %v2008 = vpop.permute.xlu0 %2007
      %2010 = vset.pattern.permute.xlu0 1
      %2011 = vperm.xlu0 %2010, %v1718
      %v2012 = vpop.permute.xlu0 %2011
      %v2014 = vmul.f32 %v1952, %v1086
      %v2015 = vmul.f32 %v1956, %v1089
      %v2016 = vmul.f32 %v1960, %v1094
      %v2017 = vmul.f32 %v1964, %v1097
      %v2018 = vmul.f32 %v1968, %v1102
      %v2019 = vmul.f32 %v1972, %v1105
      %v2020 = vmul.f32 %v1976, %v1110
      %v2021 = vmul.f32 %v1980, %v1113
      %v2022 = vmul.f32 %v1984, %v1118
      %v2023 = vmul.f32 %v1988, %v1121
      %v2024 = vmul.f32 %v1992, %v1126
      %v2025 = vmul.f32 %v1996, %v1129
      %v2026 = vmul.f32 %v2000, %v1134
      %v2027 = vmul.f32 %v2004, %v1137
      %v2028 = vmul.f32 %v2008, %v1142
      %v2029 = vmul.f32 %v2012, %v1145
      %2030 = vset.pattern.permute.xlu0 1
      %2031 = vperm.xlu0 %2030, %v1649
      %v2032 = vpop.permute.xlu0 %2031
      %2034 = vset.pattern.permute.xlu0 1
      %2035 = vperm.xlu0 %2034, %v1651
      %v2036 = vpop.permute.xlu0 %2035
      %2038 = vset.pattern.permute.xlu0 1
      %2039 = vperm.xlu0 %2038, %v1653
      %v2040 = vpop.permute.xlu0 %2039
      %2042 = vset.pattern.permute.xlu0 1
      %2043 = vperm.xlu0 %2042, %v1655
      %v2044 = vpop.permute.xlu0 %2043
      %2046 = vset.pattern.permute.xlu0 1
      %2047 = vperm.xlu0 %2046, %v1657
      %v2048 = vpop.permute.xlu0 %2047
      %2050 = vset.pattern.permute.xlu0 1
      %2051 = vperm.xlu0 %2050, %v1659
      %v2052 = vpop.permute.xlu0 %2051
      %2054 = vset.pattern.permute.xlu0 1
      %2055 = vperm.xlu0 %2054, %v1661
      %v2056 = vpop.permute.xlu0 %2055
      %2058 = vset.pattern.permute.xlu0 1
      %2059 = vperm.xlu0 %2058, %v1663
      %v2060 = vpop.permute.xlu0 %2059
      %2062 = vset.pattern.permute.xlu0 1
      %2063 = vperm.xlu0 %2062, %v1665
      %v2064 = vpop.permute.xlu0 %2063
      %2066 = vset.pattern.permute.xlu0 1
      %2067 = vperm.xlu0 %2066, %v1667
      %v2068 = vpop.permute.xlu0 %2067
      %2070 = vset.pattern.permute.xlu0 1
      %2071 = vperm.xlu0 %2070, %v1669
      %v2072 = vpop.permute.xlu0 %2071
      %2074 = vset.pattern.permute.xlu0 1
      %2075 = vperm.xlu0 %2074, %v1671
      %v2076 = vpop.permute.xlu0 %2075
      %2078 = vset.pattern.permute.xlu0 1
      %2079 = vperm.xlu0 %2078, %v1673
      %v2080 = vpop.permute.xlu0 %2079
      %2082 = vset.pattern.permute.xlu0 1
      %2083 = vperm.xlu0 %2082, %v1675
      %v2084 = vpop.permute.xlu0 %2083
      %2086 = vset.pattern.permute.xlu0 1
      %2087 = vperm.xlu0 %2086, %v1677
      %v2088 = vpop.permute.xlu0 %2087
      %2090 = vset.pattern.permute.xlu0 1
      %2091 = vperm.xlu0 %2090, %v1679
      %v2092 = vpop.permute.xlu0 %2091
      %v2094 = vmul.f32 %v2032, %v1234
      %v2095 = vmul.f32 %v2036, %v1238
      %v2096 = vmul.f32 %v2040, %v1244
      %v2097 = vmul.f32 %v2044, %v1248
      %v2098 = vmul.f32 %v2048, %v1254
      %v2099 = vmul.f32 %v2052, %v1258
      %v2100 = vmul.f32 %v2056, %v1264
      %v2101 = vmul.f32 %v2060, %v1268
      %v2102 = vmul.f32 %v2064, %v1274
      %v2103 = vmul.f32 %v2068, %v1278
      %v2104 = vmul.f32 %v2072, %v1284
      %v2105 = vmul.f32 %v2076, %v1288
      %v2106 = vmul.f32 %v2080, %v1294
      %v2107 = vmul.f32 %v2084, %v1298
      %v2108 = vmul.f32 %v2088, %v1304
      %v2109 = vmul.f32 %v2092, %v1308
      %v2110 = vadd.f32 %v2014, %v2094
      %v2111 = vadd.f32 %v2015, %v2095
      %v2112 = vadd.f32 %v2016, %v2096
      %v2113 = vadd.f32 %v2017, %v2097
      %v2114 = vadd.f32 %v2018, %v2098
      %v2115 = vadd.f32 %v2019, %v2099
      %v2116 = vadd.f32 %v2020, %v2100
      %v2117 = vadd.f32 %v2021, %v2101
      %v2118 = vadd.f32 %v2022, %v2102
      %v2119 = vadd.f32 %v2023, %v2103
      %v2120 = vadd.f32 %v2024, %v2104
      %v2121 = vadd.f32 %v2025, %v2105
      %v2122 = vadd.f32 %v2026, %v2106
      %v2123 = vadd.f32 %v2027, %v2107
      %v2124 = vadd.f32 %v2028, %v2108
      %v2125 = vadd.f32 %v2029, %v2109
      %v2126 = vld [vmem:[%s4 + $0x2] sm:$0x1]
      %v2128 = vlaneseq
      %v2129 = vshrl.u32 %v2128, 7
      %v2130 = vsub.s32 0, %v2129
      %v2131 = vrot.slane %v2126, %v2130
      %v2133 = vadd.f32 %v2110, %v2131
      %v2134 = vadd.f32 %v2111, %v2131
      %v2135 = vadd.f32 %v2112, %v2131
      %v2136 = vadd.f32 %v2113, %v2131
      %v2137 = vadd.f32 %v2114, %v2131
      %v2138 = vadd.f32 %v2115, %v2131
      %v2139 = vadd.f32 %v2116, %v2131
      %v2140 = vadd.f32 %v2117, %v2131
      %v2141 = vadd.f32 %v2118, %v2131
      %v2142 = vadd.f32 %v2119, %v2131
      %v2143 = vadd.f32 %v2120, %v2131
      %v2144 = vadd.f32 %v2121, %v2131
      %v2145 = vadd.f32 %v2122, %v2131
      %v2146 = vadd.f32 %v2123, %v2131
      %v2147 = vadd.f32 %v2124, %v2131
      %v2148 = vadd.f32 %v2125, %v2131
      %v2149 = vpack.c.bf16 %v1688, %v1687
      %v2150 = vpack.c.bf16 %v1690, %v1689
      %v2151 = vpack.c.bf16 %v1692, %v1691
      %v2152 = vpack.c.bf16 %v1694, %v1693
      %v2153 = vpack.c.bf16 %v1696, %v1695
      %v2154 = vpack.c.bf16 %v1698, %v1697
      %v2155 = vpack.c.bf16 %v1700, %v1699
      %v2156 = vpack.c.bf16 %v1702, %v1701
      %v2157 = vpack.c.bf16 %v1935, %v1934
      %v2158 = vpack.c.bf16 %v1937, %v1936
      %v2159 = vpack.c.bf16 %v1939, %v1938
      %v2160 = vpack.c.bf16 %v1941, %v1940
      %v2161 = vpack.c.bf16 %v1943, %v1942
      %v2162 = vpack.c.bf16 %v1945, %v1944
      %v2163 = vpack.c.bf16 %v1947, %v1946
      %v2164 = vpack.c.bf16 %v1949, %v1948
      %v2165 = vpack.c.bf16 %v2134, %v2133
      %v2166 = vpack.c.bf16 %v2136, %v2135
      %v2167 = vpack.c.bf16 %v2138, %v2137
      %v2168 = vpack.c.bf16 %v2140, %v2139
      %v2169 = vpack.c.bf16 %v2142, %v2141
      %v2170 = vpack.c.bf16 %v2144, %v2143
      %v2171 = vpack.c.bf16 %v2146, %v2145
      %v2172 = vpack.c.bf16 %v2148, %v2147
      %2173 = vmatprep.subr.bf16.mxu0 0
      %2174 = vmatpush1.bf16.xpose.msra.mxu0 %v2157
      %2175 = vmatprep.subr.bf16.mxu0 0
      %2176 = vmatpush1.bf16.xpose.msra.mxu0 %v2158
      %2177 = vmatprep.subr.bf16.mxu0 0
      %2178 = vmatpush1.bf16.xpose.msra.mxu0 0
      %2179 = vmatprep.subr.bf16.mxu0 0
      %2180 = vmatpush1.bf16.xpose.msra.mxu0 0
      %2181 = vmatprep.subr.bf16.mxu0 0
      %2182 = vmatpush1.bf16.xpose.msra.mxu0 0
      %2183 = vmatprep.subr.bf16.mxu0 0
      %2184 = vmatpush1.bf16.xpose.msra.mxu0 0
      %2185 = vmatprep.subr.bf16.mxu0 0
      %2186 = vmatpush1.bf16.xpose.msra.mxu0 0
      %2187 = vmatprep.subr.bf16.mxu0 0
      %2188 = vmatpush1.bf16.xpose.msra.mxu0 0
      %2189 = vmatprep.subr.bf16.mxu0 0
      %2190 = vmatpush1.bf16.xpose.msra.mxu0 0
      %2191 = vmatprep.subr.bf16.mxu0 0
      %2192 = vmatpush1.bf16.xpose.msra.mxu0 0
      %2193 = vmatprep.subr.bf16.mxu0 0
      %2194 = vmatpush1.bf16.xpose.msra.mxu0 0
      %2195 = vmatprep.subr.bf16.mxu0 0
      %2196 = vmatpush1.bf16.xpose.msra.mxu0 0
      %2197 = vmatprep.subr.bf16.mxu0 0
      %2198 = vmatpush1.bf16.xpose.msra.mxu0 0
      %2199 = vmatprep.subr.bf16.mxu0 0
      %2200 = vmatpush1.bf16.xpose.msra.mxu0 0
      %2201 = vmatprep.subr.bf16.mxu0 0
      %2202 = vmatpush1.bf16.xpose.msra.mxu0 0
      %2203 = vmatprep.subr.bf16.mxu0 0
      %2204 = vmatpush1.bf16.xpose.msra.mxu0 0
      %2205 = vmatprep.mubr.bf16.mxu0 0
      %2206 = vmatmul.mubr.bf16.gmra.mrb[0].mxu0 %v2149
      %v2207 = vpop.f32.mrb[0].mxu0
      %v2208 = vadd.f32 0.0, %v2207
      %v2209 = vpop.f32.mrb[0].mxu0
      %v2210 = vpop.f32.mrb[0].mxu0
      %v2211 = vadd.f32 0.0, %v2210
      %v2212 = vpop.f32.mrb[0].mxu0
      %2213 = vmatprep.mubr.bf16.mxu0 0
      %2214 = vmatmul.mubr.bf16.gmra.mrb[0].mxu0 %v2150
      %v2215 = vpop.f32.mrb[0].mxu0
      %v2216 = vadd.f32 0.0, %v2215
      %v2217 = vpop.f32.mrb[0].mxu0
      %v2218 = vpop.f32.mrb[0].mxu0
      %v2219 = vadd.f32 0.0, %v2218
      %v2220 = vpop.f32.mrb[0].mxu0
      %2221 = vdwg.mxu0
      %2222 = vmatprep.subr.bf16.mxu0 0
      %2223 = vmatpush1.bf16.xpose.msra.mxu0 %v2159
      %2224 = vmatprep.subr.bf16.mxu0 0
      %2225 = vmatpush1.bf16.xpose.msra.mxu0 %v2160
      %2226 = vmatprep.subr.bf16.mxu0 0
      %2227 = vmatpush1.bf16.xpose.msra.mxu0 0
      %2228 = vmatprep.subr.bf16.mxu0 0
      %2229 = vmatpush1.bf16.xpose.msra.mxu0 0
      %2230 = vmatprep.subr.bf16.mxu0 0
      %2231 = vmatpush1.bf16.xpose.msra.mxu0 0
      %2232 = vmatprep.subr.bf16.mxu0 0
      %2233 = vmatpush1.bf16.xpose.msra.mxu0 0
      %2234 = vmatprep.subr.bf16.mxu0 0
      %2235 = vmatpush1.bf16.xpose.msra.mxu0 0
      %2236 = vmatprep.subr.bf16.mxu0 0
      %2237 = vmatpush1.bf16.xpose.msra.mxu0 0
      %2238 = vmatprep.subr.bf16.mxu0 0
      %2239 = vmatpush1.bf16.xpose.msra.mxu0 0
      %2240 = vmatprep.subr.bf16.mxu0 0
      %2241 = vmatpush1.bf16.xpose.msra.mxu0 0
      %2242 = vmatprep.subr.bf16.mxu0 0
      %2243 = vmatpush1.bf16.xpose.msra.mxu0 0
      %2244 = vmatprep.subr.bf16.mxu0 0
      %2245 = vmatpush1.bf16.xpose.msra.mxu0 0
      %2246 = vmatprep.subr.bf16.mxu0 0
      %2247 = vmatpush1.bf16.xpose.msra.mxu0 0
      %2248 = vmatprep.subr.bf16.mxu0 0
      %2249 = vmatpush1.bf16.xpose.msra.mxu0 0
      %2250 = vmatprep.subr.bf16.mxu0 0
      %2251 = vmatpush1.bf16.xpose.msra.mxu0 0
      %2252 = vmatprep.subr.bf16.mxu0 0
      %2253 = vmatpush1.bf16.xpose.msra.mxu0 0
      %2254 = vmatprep.mubr.bf16.mxu0 0
      %2255 = vmatmul.mubr.bf16.gmra.mrb[0].mxu0 %v2151
      %v2256 = vpop.f32.mrb[0].mxu0
      %v2257 = vadd.f32 0.0, %v2256
      %v2258 = vpop.f32.mrb[0].mxu0
      %v2259 = vpop.f32.mrb[0].mxu0
      %v2260 = vadd.f32 0.0, %v2259
      %v2261 = vpop.f32.mrb[0].mxu0
      %2262 = vmatprep.mubr.bf16.mxu0 0
      %2263 = vmatmul.mubr.bf16.gmra.mrb[0].mxu0 %v2152
      %v2264 = vpop.f32.mrb[0].mxu0
      %v2265 = vadd.f32 0.0, %v2264
      %v2266 = vpop.f32.mrb[0].mxu0
      %v2267 = vpop.f32.mrb[0].mxu0
      %v2268 = vadd.f32 0.0, %v2267
      %v2269 = vpop.f32.mrb[0].mxu0
      %2270 = vdwg.mxu0
      %2271 = vmatprep.subr.bf16.mxu0 0
      %2272 = vmatpush1.bf16.xpose.msra.mxu0 %v2161
      %2273 = vmatprep.subr.bf16.mxu0 0
      %2274 = vmatpush1.bf16.xpose.msra.mxu0 %v2162
      %2275 = vmatprep.subr.bf16.mxu0 0
      %2276 = vmatpush1.bf16.xpose.msra.mxu0 0
      %2277 = vmatprep.subr.bf16.mxu0 0
      %2278 = vmatpush1.bf16.xpose.msra.mxu0 0
      %2279 = vmatprep.subr.bf16.mxu0 0
      %2280 = vmatpush1.bf16.xpose.msra.mxu0 0
      %2281 = vmatprep.subr.bf16.mxu0 0
      %2282 = vmatpush1.bf16.xpose.msra.mxu0 0
      %2283 = vmatprep.subr.bf16.mxu0 0
      %2284 = vmatpush1.bf16.xpose.msra.mxu0 0
      %2285 = vmatprep.subr.bf16.mxu0 0
      %2286 = vmatpush1.bf16.xpose.msra.mxu0 0
      %2287 = vmatprep.subr.bf16.mxu0 0
      %2288 = vmatpush1.bf16.xpose.msra.mxu0 0
      %2289 = vmatprep.subr.bf16.mxu0 0
      %2290 = vmatpush1.bf16.xpose.msra.mxu0 0
      %2291 = vmatprep.subr.bf16.mxu0 0
      %2292 = vmatpush1.bf16.xpose.msra.mxu0 0
      %2293 = vmatprep.subr.bf16.mxu0 0
      %2294 = vmatpush1.bf16.xpose.msra.mxu0 0
      %2295 = vmatprep.subr.bf16.mxu0 0
      %2296 = vmatpush1.bf16.xpose.msra.mxu0 0
      %2297 = vmatprep.subr.bf16.mxu0 0
      %2298 = vmatpush1.bf16.xpose.msra.mxu0 0
      %2299 = vmatprep.subr.bf16.mxu0 0
      %2300 = vmatpush1.bf16.xpose.msra.mxu0 0
      %2301 = vmatprep.subr.bf16.mxu0 0
      %2302 = vmatpush1.bf16.xpose.msra.mxu0 0
      %2303 = vmatprep.mubr.bf16.mxu0 0
      %2304 = vmatmul.mubr.bf16.gmra.mrb[0].mxu0 %v2153
      %v2305 = vpop.f32.mrb[0].mxu0
      %v2306 = vadd.f32 0.0, %v2305
      %v2307 = vpop.f32.mrb[0].mxu0
      %v2308 = vpop.f32.mrb[0].mxu0
      %v2309 = vadd.f32 0.0, %v2308
      %v2310 = vpop.f32.mrb[0].mxu0
      %2311 = vmatprep.mubr.bf16.mxu0 0
      %2312 = vmatmul.mubr.bf16.gmra.mrb[0].mxu0 %v2154
      %v2313 = vpop.f32.mrb[0].mxu0
      %v2314 = vadd.f32 0.0, %v2313
      %v2315 = vpop.f32.mrb[0].mxu0
      %v2316 = vpop.f32.mrb[0].mxu0
      %v2317 = vadd.f32 0.0, %v2316
      %v2318 = vpop.f32.mrb[0].mxu0
      %2319 = vdwg.mxu0
      %2320 = vmatprep.subr.bf16.mxu0 0
      %2321 = vmatpush1.bf16.xpose.msra.mxu0 %v2163
      %2322 = vmatprep.subr.bf16.mxu0 0
      %2323 = vmatpush1.bf16.xpose.msra.mxu0 %v2164
      %2324 = vmatprep.subr.bf16.mxu0 0
      %2325 = vmatpush1.bf16.xpose.msra.mxu0 0
      %2326 = vmatprep.subr.bf16.mxu0 0
      %2327 = vmatpush1.bf16.xpose.msra.mxu0 0
      %2328 = vmatprep.subr.bf16.mxu0 0
      %2329 = vmatpush1.bf16.xpose.msra.mxu0 0
      %2330 = vmatprep.subr.bf16.mxu0 0
      %2331 = vmatpush1.bf16.xpose.msra.mxu0 0
      %2332 = vmatprep.subr.bf16.mxu0 0
      %2333 = vmatpush1.bf16.xpose.msra.mxu0 0
      %2334 = vmatprep.subr.bf16.mxu0 0
      %2335 = vmatpush1.bf16.xpose.msra.mxu0 0
      %2336 = vmatprep.subr.bf16.mxu0 0
      %2337 = vmatpush1.bf16.xpose.msra.mxu0 0
      %2338 = vmatprep.subr.bf16.mxu0 0
      %2339 = vmatpush1.bf16.xpose.msra.mxu0 0
      %2340 = vmatprep.subr.bf16.mxu0 0
      %2341 = vmatpush1.bf16.xpose.msra.mxu0 0
      %2342 = vmatprep.subr.bf16.mxu0 0
      %2343 = vmatpush1.bf16.xpose.msra.mxu0 0
      %2344 = vmatprep.subr.bf16.mxu0 0
      %2345 = vmatpush1.bf16.xpose.msra.mxu0 0
      %2346 = vmatprep.subr.bf16.mxu0 0
      %2347 = vmatpush1.bf16.xpose.msra.mxu0 0
      %2348 = vmatprep.subr.bf16.mxu0 0
      %2349 = vmatpush1.bf16.xpose.msra.mxu0 0
      %2350 = vmatprep.subr.bf16.mxu0 0
      %2351 = vmatpush1.bf16.xpose.msra.mxu0 0
      %2352 = vmatprep.mubr.bf16.mxu0 0
      %2353 = vmatmul.mubr.bf16.gmra.mrb[0].mxu0 %v2155
      %v2354 = vpop.f32.mrb[0].mxu0
      %v2355 = vadd.f32 0.0, %v2354
      %v2356 = vpop.f32.mrb[0].mxu0
      %v2357 = vpop.f32.mrb[0].mxu0
      %v2358 = vadd.f32 0.0, %v2357
      %v2359 = vpop.f32.mrb[0].mxu0
      %2360 = vmatprep.mubr.bf16.mxu0 0
      %2361 = vmatmul.mubr.bf16.gmra.mrb[0].mxu0 %v2156
      %v2362 = vpop.f32.mrb[0].mxu0
      %v2363 = vadd.f32 0.0, %v2362
      %v2364 = vpop.f32.mrb[0].mxu0
      %v2365 = vpop.f32.mrb[0].mxu0
      %v2366 = vadd.f32 0.0, %v2365
      %v2367 = vpop.f32.mrb[0].mxu0
      %2368 = vdwg.mxu0
      %v2369 = vsel %vm1172, %v2208, -inf
      %2370 = vmax.xlane.f32.xlu0 %v2369
      %v2371 = vpop.xlane.xlu0 %2370
      %v2372 = vsel %vm1172, %v2211, -inf
      %2373 = vmax.xlane.f32.xlu0 %v2372
      %v2374 = vpop.xlane.xlu0 %2373
      %v2375 = vsel %vm1172, %v2216, -inf
      %2376 = vmax.xlane.f32.xlu0 %v2375
      %v2377 = vpop.xlane.xlu0 %2376
      %v2378 = vsel %vm1172, %v2219, -inf
      %2379 = vmax.xlane.f32.xlu0 %v2378
      %v2380 = vpop.xlane.xlu0 %2379
      %v2381 = vsel %vm1172, %v2257, -inf
      %2382 = vmax.xlane.f32.xlu0 %v2381
      %v2383 = vpop.xlane.xlu0 %2382
      %v2384 = vsel %vm1172, %v2260, -inf
      %2385 = vmax.xlane.f32.xlu0 %v2384
      %v2386 = vpop.xlane.xlu0 %2385
      %v2387 = vsel %vm1172, %v2265, -inf
      %2388 = vmax.xlane.f32.xlu0 %v2387
      %v2389 = vpop.xlane.xlu0 %2388
      %v2390 = vsel %vm1172, %v2268, -inf
      %2391 = vmax.xlane.f32.xlu0 %v2390
      %v2392 = vpop.xlane.xlu0 %2391
      %v2393 = vsel %vm1172, %v2306, -inf
      %2394 = vmax.xlane.f32.xlu0 %v2393
      %v2395 = vpop.xlane.xlu0 %2394
      %v2396 = vsel %vm1172, %v2309, -inf
      %2397 = vmax.xlane.f32.xlu0 %v2396
      %v2398 = vpop.xlane.xlu0 %2397
      %v2399 = vsel %vm1172, %v2314, -inf
      %2400 = vmax.xlane.f32.xlu0 %v2399
      %v2401 = vpop.xlane.xlu0 %2400
      %v2402 = vsel %vm1172, %v2317, -inf
      %2403 = vmax.xlane.f32.xlu0 %v2402
      %v2404 = vpop.xlane.xlu0 %2403
      %v2405 = vsel %vm1172, %v2355, -inf
      %2406 = vmax.xlane.f32.xlu0 %v2405
      %v2407 = vpop.xlane.xlu0 %2406
      %v2408 = vsel %vm1172, %v2358, -inf
      %2409 = vmax.xlane.f32.xlu0 %v2408
      %v2410 = vpop.xlane.xlu0 %2409
      %v2411 = vsel %vm1172, %v2363, -inf
      %2412 = vmax.xlane.f32.xlu0 %v2411
      %v2413 = vpop.xlane.xlu0 %2412
      %v2414 = vsel %vm1172, %v2366, -inf
      %2415 = vmax.xlane.f32.xlu0 %v2414
      %v2416 = vpop.xlane.xlu0 %2415
      %v2417 = vsub.f32 %v2208, %v2371
      %v2418 = vsub.f32 %v2211, %v2374
      %v2419 = vsub.f32 %v2216, %v2377
      %v2420 = vsub.f32 %v2219, %v2380
      %v2421 = vsub.f32 %v2257, %v2383
      %v2422 = vsub.f32 %v2260, %v2386
      %v2423 = vsub.f32 %v2265, %v2389
      %v2424 = vsub.f32 %v2268, %v2392
      %v2425 = vsub.f32 %v2306, %v2395
      %v2426 = vsub.f32 %v2309, %v2398
      %v2427 = vsub.f32 %v2314, %v2401
      %v2428 = vsub.f32 %v2317, %v2404
      %v2429 = vsub.f32 %v2355, %v2407
      %v2430 = vsub.f32 %v2358, %v2410
      %v2431 = vsub.f32 %v2363, %v2413
      %v2432 = vsub.f32 %v2366, %v2416
      %v2433 = vmul.f32 %v2417, 1.442695
      %v2434 = vpow.pop %v2433
      %v2435 = vmul.f32 %v2418, 1.442695
      %v2436 = vpow.pop %v2435
      %v2437 = vmul.f32 %v2419, 1.442695
      %v2438 = vpow.pop %v2437
      %v2439 = vmul.f32 %v2420, 1.442695
      %v2440 = vpow.pop %v2439
      %v2441 = vmul.f32 %v2421, 1.442695
      %v2442 = vpow.pop %v2441
      %v2443 = vmul.f32 %v2422, 1.442695
      %v2444 = vpow.pop %v2443
      %v2445 = vmul.f32 %v2423, 1.442695
      %v2446 = vpow.pop %v2445
      %v2447 = vmul.f32 %v2424, 1.442695
      %v2448 = vpow.pop %v2447
      %v2449 = vmul.f32 %v2425, 1.442695
      %v2450 = vpow.pop %v2449
      %v2451 = vmul.f32 %v2426, 1.442695
      %v2452 = vpow.pop %v2451
      %v2453 = vmul.f32 %v2427, 1.442695
      %v2454 = vpow.pop %v2453
      %v2455 = vmul.f32 %v2428, 1.442695
      %v2456 = vpow.pop %v2455
      %v2457 = vmul.f32 %v2429, 1.442695
      %v2458 = vpow.pop %v2457
      %v2459 = vmul.f32 %v2430, 1.442695
      %v2460 = vpow.pop %v2459
      %v2461 = vmul.f32 %v2431, 1.442695
      %v2462 = vpow.pop %v2461
      %v2463 = vmul.f32 %v2432, 1.442695
      %v2464 = vpow.pop %v2463
      %v2465 = vsel %vm1172, %v2434, 0.0
      %2466 = vadd.xlane.f32.xlu0 %v2465
      %v2467 = vpop.xlane.xlu0 %2466
      %v2468 = vsel %vm1172, %v2436, 0.0
      %2469 = vadd.xlane.f32.xlu0 %v2468
      %v2470 = vpop.xlane.xlu0 %2469
      %v2471 = vsel %vm1172, %v2438, 0.0
      %2472 = vadd.xlane.f32.xlu0 %v2471
      %v2473 = vpop.xlane.xlu0 %2472
      %v2474 = vsel %vm1172, %v2440, 0.0
      %2475 = vadd.xlane.f32.xlu0 %v2474
      %v2476 = vpop.xlane.xlu0 %2475
      %v2477 = vsel %vm1172, %v2442, 0.0
      %2478 = vadd.xlane.f32.xlu0 %v2477
      %v2479 = vpop.xlane.xlu0 %2478
      %v2480 = vsel %vm1172, %v2444, 0.0
      %2481 = vadd.xlane.f32.xlu0 %v2480
      %v2482 = vpop.xlane.xlu0 %2481
      %v2483 = vsel %vm1172, %v2446, 0.0
      %2484 = vadd.xlane.f32.xlu0 %v2483
      %v2485 = vpop.xlane.xlu0 %2484
      %v2486 = vsel %vm1172, %v2448, 0.0
      %2487 = vadd.xlane.f32.xlu0 %v2486
      %v2488 = vpop.xlane.xlu0 %2487
      %v2489 = vsel %vm1172, %v2450, 0.0
      %2490 = vadd.xlane.f32.xlu0 %v2489
      %v2491 = vpop.xlane.xlu0 %2490
      %v2492 = vsel %vm1172, %v2452, 0.0
      %2493 = vadd.xlane.f32.xlu0 %v2492
      %v2494 = vpop.xlane.xlu0 %2493
      %v2495 = vsel %vm1172, %v2454, 0.0
      %2496 = vadd.xlane.f32.xlu0 %v2495
      %v2497 = vpop.xlane.xlu0 %2496
      %v2498 = vsel %vm1172, %v2456, 0.0
      %2499 = vadd.xlane.f32.xlu0 %v2498
      %v2500 = vpop.xlane.xlu0 %2499
      %v2501 = vsel %vm1172, %v2458, 0.0
      %2502 = vadd.xlane.f32.xlu0 %v2501
      %v2503 = vpop.xlane.xlu0 %2502
      %v2504 = vsel %vm1172, %v2460, 0.0
      %2505 = vadd.xlane.f32.xlu0 %v2504
      %v2506 = vpop.xlane.xlu0 %2505
      %v2507 = vsel %vm1172, %v2462, 0.0
      %2508 = vadd.xlane.f32.xlu0 %v2507
      %v2509 = vpop.xlane.xlu0 %2508
      %v2510 = vsel %vm1172, %v2464, 0.0
      %2511 = vadd.xlane.f32.xlu0 %v2510
      %v2512 = vpop.xlane.xlu0 %2511
      %v2513 = vrcp.pop %v2467
      %v2514 = vrcp.pop %v2470
      %v2515 = vrcp.pop %v2473
      %v2516 = vrcp.pop %v2476
      %v2517 = vrcp.pop %v2479
      %v2518 = vrcp.pop %v2482
      %v2519 = vrcp.pop %v2485
      %v2520 = vrcp.pop %v2488
      %v2521 = vrcp.pop %v2491
      %v2522 = vrcp.pop %v2494
      %v2523 = vrcp.pop %v2497
      %v2524 = vrcp.pop %v2500
      %v2525 = vrcp.pop %v2503
      %v2526 = vrcp.pop %v2506
      %v2527 = vrcp.pop %v2509
      %v2528 = vrcp.pop %v2512
      %v2529 = vmul.f32 %v2434, %v2513
      %v2530 = vmul.f32 %v2436, %v2514
      %v2531 = vmul.f32 %v2438, %v2515
      %v2532 = vmul.f32 %v2440, %v2516
      %v2533 = vmul.f32 %v2442, %v2517
      %v2534 = vmul.f32 %v2444, %v2518
      %v2535 = vmul.f32 %v2446, %v2519
      %v2536 = vmul.f32 %v2448, %v2520
      %v2537 = vmul.f32 %v2450, %v2521
      %v2538 = vmul.f32 %v2452, %v2522
      %v2539 = vmul.f32 %v2454, %v2523
      %v2540 = vmul.f32 %v2456, %v2524
      %v2541 = vmul.f32 %v2458, %v2525
      %v2542 = vmul.f32 %v2460, %v2526
      %v2543 = vmul.f32 %v2462, %v2527
      %v2544 = vmul.f32 %v2464, %v2528
      %v2545 = vpack.c.bf16 %v2530, %v2529
      %v2546 = vpack.c.bf16 %v2532, %v2531
      %v2547 = vpack.c.bf16 %v2534, %v2533
      %v2548 = vpack.c.bf16 %v2536, %v2535
      %v2549 = vpack.c.bf16 %v2538, %v2537
      %v2550 = vpack.c.bf16 %v2540, %v2539
      %v2551 = vpack.c.bf16 %v2542, %v2541
      %v2552 = vpack.c.bf16 %v2544, %v2543
      %v2554 = vsel %vm1172, %v2545, 0
      %v2557 = vsel %vm1172, %v2546, 0
      %2559 = vmatprep.subr.bf16.mxu0 0
      %2560 = vmatpush1.bf16.msra.mxu0 %v2165
      %2561 = vmatprep.subr.bf16.mxu0 0
      %2562 = vmatpush1.bf16.msra.mxu0 %v2166
      %2563 = vmatprep.subr.bf16.mxu0 0
      %2564 = vmatpush1.bf16.msra.mxu0 0
      %2565 = vmatprep.subr.bf16.mxu0 0
      %2566 = vmatpush1.bf16.msra.mxu0 0
      %2567 = vmatprep.subr.bf16.mxu0 0
      %2568 = vmatpush1.bf16.msra.mxu0 0
      %2569 = vmatprep.subr.bf16.mxu0 0
      %2570 = vmatpush1.bf16.msra.mxu0 0
      %2571 = vmatprep.subr.bf16.mxu0 0
      %2572 = vmatpush1.bf16.msra.mxu0 0
      %2573 = vmatprep.subr.bf16.mxu0 0
      %2574 = vmatpush1.bf16.msra.mxu0 0
      %2575 = vmatprep.subr.bf16.mxu0 0
      %2576 = vmatpush1.bf16.msra.mxu0 0
      %2577 = vmatprep.subr.bf16.mxu0 0
      %2578 = vmatpush1.bf16.msra.mxu0 0
      %2579 = vmatprep.subr.bf16.mxu0 0
      %2580 = vmatpush1.bf16.msra.mxu0 0
      %2581 = vmatprep.subr.bf16.mxu0 0
      %2582 = vmatpush1.bf16.msra.mxu0 0
      %2583 = vmatprep.subr.bf16.mxu0 0
      %2584 = vmatpush1.bf16.msra.mxu0 0
      %2585 = vmatprep.subr.bf16.mxu0 0
      %2586 = vmatpush1.bf16.msra.mxu0 0
      %2587 = vmatprep.subr.bf16.mxu0 0
      %2588 = vmatpush1.bf16.msra.mxu0 0
      %2589 = vmatprep.subr.bf16.mxu0 0
      %2590 = vmatpush1.bf16.msra.mxu0 0
      %2591 = vmatprep.mubr.bf16.mxu0 0
      %2592 = vmatmul.mubr.bf16.gmra.mrb[0].mxu0 %v2554
      %v2593 = vpop.f32.mrb[0].mxu0
      %v2594 = vadd.f32 0.0, %v2593
      %v2595 = vpop.f32.mrb[0].mxu0
      %v2596 = vpop.f32.mrb[0].mxu0
      %v2597 = vadd.f32 0.0, %v2596
      %v2598 = vpop.f32.mrb[0].mxu0
      %2599 = vmatprep.mubr.bf16.mxu0 0
      %2600 = vmatmul.mubr.bf16.gmra.mrb[0].mxu0 %v2557
      %v2601 = vpop.f32.mrb[0].mxu0
      %v2602 = vadd.f32 0.0, %v2601
      %v2603 = vpop.f32.mrb[0].mxu0
      %v2604 = vpop.f32.mrb[0].mxu0
      %v2605 = vadd.f32 0.0, %v2604
      %v2606 = vpop.f32.mrb[0].mxu0
      %2607 = vdwg.mxu0
      %v2609 = vsel %vm1172, %v2547, 0
      %v2612 = vsel %vm1172, %v2548, 0
      %2614 = vmatprep.subr.bf16.mxu0 0
      %2615 = vmatpush1.bf16.msra.mxu0 %v2167
      %2616 = vmatprep.subr.bf16.mxu0 0
      %2617 = vmatpush1.bf16.msra.mxu0 %v2168
      %2618 = vmatprep.subr.bf16.mxu0 0
      %2619 = vmatpush1.bf16.msra.mxu0 0
      %2620 = vmatprep.subr.bf16.mxu0 0
      %2621 = vmatpush1.bf16.msra.mxu0 0
      %2622 = vmatprep.subr.bf16.mxu0 0
      %2623 = vmatpush1.bf16.msra.mxu0 0
      %2624 = vmatprep.subr.bf16.mxu0 0
      %2625 = vmatpush1.bf16.msra.mxu0 0
      %2626 = vmatprep.subr.bf16.mxu0 0
      %2627 = vmatpush1.bf16.msra.mxu0 0
      %2628 = vmatprep.subr.bf16.mxu0 0
      %2629 = vmatpush1.bf16.msra.mxu0 0
      %2630 = vmatprep.subr.bf16.mxu0 0
      %2631 = vmatpush1.bf16.msra.mxu0 0
      %2632 = vmatprep.subr.bf16.mxu0 0
      %2633 = vmatpush1.bf16.msra.mxu0 0
      %2634 = vmatprep.subr.bf16.mxu0 0
      %2635 = vmatpush1.bf16.msra.mxu0 0
      %2636 = vmatprep.subr.bf16.mxu0 0
      %2637 = vmatpush1.bf16.msra.mxu0 0
      %2638 = vmatprep.subr.bf16.mxu0 0
      %2639 = vmatpush1.bf16.msra.mxu0 0
      %2640 = vmatprep.subr.bf16.mxu0 0
      %2641 = vmatpush1.bf16.msra.mxu0 0
      %2642 = vmatprep.subr.bf16.mxu0 0
      %2643 = vmatpush1.bf16.msra.mxu0 0
      %2644 = vmatprep.subr.bf16.mxu0 0
      %2645 = vmatpush1.bf16.msra.mxu0 0
      %2646 = vmatprep.mubr.bf16.mxu0 0
      %2647 = vmatmul.mubr.bf16.gmra.mrb[0].mxu0 %v2609
      %v2648 = vpop.f32.mrb[0].mxu0
      %v2649 = vadd.f32 0.0, %v2648
      %v2650 = vpop.f32.mrb[0].mxu0
      %v2651 = vpop.f32.mrb[0].mxu0
      %v2652 = vadd.f32 0.0, %v2651
      %v2653 = vpop.f32.mrb[0].mxu0
      %2654 = vmatprep.mubr.bf16.mxu0 0
      %2655 = vmatmul.mubr.bf16.gmra.mrb[0].mxu0 %v2612
      %v2656 = vpop.f32.mrb[0].mxu0
      %v2657 = vadd.f32 0.0, %v2656
      %v2658 = vpop.f32.mrb[0].mxu0
      %v2659 = vpop.f32.mrb[0].mxu0
      %v2660 = vadd.f32 0.0, %v2659
      %v2661 = vpop.f32.mrb[0].mxu0
      %2662 = vdwg.mxu0
      %v2664 = vsel %vm1172, %v2549, 0
      %v2667 = vsel %vm1172, %v2550, 0
      %2669 = vmatprep.subr.bf16.mxu0 0
      %2670 = vmatpush1.bf16.msra.mxu0 %v2169
      %2671 = vmatprep.subr.bf16.mxu0 0
      %2672 = vmatpush1.bf16.msra.mxu0 %v2170
      %2673 = vmatprep.subr.bf16.mxu0 0
      %2674 = vmatpush1.bf16.msra.mxu0 0
      %2675 = vmatprep.subr.bf16.mxu0 0
      %2676 = vmatpush1.bf16.msra.mxu0 0
      %2677 = vmatprep.subr.bf16.mxu0 0
      %2678 = vmatpush1.bf16.msra.mxu0 0
      %2679 = vmatprep.subr.bf16.mxu0 0
      %2680 = vmatpush1.bf16.msra.mxu0 0
      %2681 = vmatprep.subr.bf16.mxu0 0
      %2682 = vmatpush1.bf16.msra.mxu0 0
      %2683 = vmatprep.subr.bf16.mxu0 0
      %2684 = vmatpush1.bf16.msra.mxu0 0
      %2685 = vmatprep.subr.bf16.mxu0 0
      %2686 = vmatpush1.bf16.msra.mxu0 0
      %2687 = vmatprep.subr.bf16.mxu0 0
      %2688 = vmatpush1.bf16.msra.mxu0 0
      %2689 = vmatprep.subr.bf16.mxu0 0
      %2690 = vmatpush1.bf16.msra.mxu0 0
      %2691 = vmatprep.subr.bf16.mxu0 0
      %2692 = vmatpush1.bf16.msra.mxu0 0
      %2693 = vmatprep.subr.bf16.mxu0 0
      %2694 = vmatpush1.bf16.msra.mxu0 0
      %2695 = vmatprep.subr.bf16.mxu0 0
      %2696 = vmatpush1.bf16.msra.mxu0 0
      %2697 = vmatprep.subr.bf16.mxu0 0
      %2698 = vmatpush1.bf16.msra.mxu0 0
      %2699 = vmatprep.subr.bf16.mxu0 0
      %2700 = vmatpush1.bf16.msra.mxu0 0
      %2701 = vmatprep.mubr.bf16.mxu0 0
      %2702 = vmatmul.mubr.bf16.gmra.mrb[0].mxu0 %v2664
      %v2703 = vpop.f32.mrb[0].mxu0
      %v2704 = vadd.f32 0.0, %v2703
      %v2705 = vpop.f32.mrb[0].mxu0
      %v2706 = vpop.f32.mrb[0].mxu0
      %v2707 = vadd.f32 0.0, %v2706
      %v2708 = vpop.f32.mrb[0].mxu0
      %2709 = vmatprep.mubr.bf16.mxu0 0
      %2710 = vmatmul.mubr.bf16.gmra.mrb[0].mxu0 %v2667
      %v2711 = vpop.f32.mrb[0].mxu0
      %v2712 = vadd.f32 0.0, %v2711
      %v2713 = vpop.f32.mrb[0].mxu0
      %v2714 = vpop.f32.mrb[0].mxu0
      %v2715 = vadd.f32 0.0, %v2714
      %v2716 = vpop.f32.mrb[0].mxu0
      %2717 = vdwg.mxu0
      %v2719 = vsel %vm1172, %v2551, 0
      %v2722 = vsel %vm1172, %v2552, 0
      %2724 = vmatprep.subr.bf16.mxu0 0
      %2725 = vmatpush1.bf16.msra.mxu0 %v2171
      %2726 = vmatprep.subr.bf16.mxu0 0
      %2727 = vmatpush1.bf16.msra.mxu0 %v2172
      %2728 = vmatprep.subr.bf16.mxu0 0
      %2729 = vmatpush1.bf16.msra.mxu0 0
      %2730 = vmatprep.subr.bf16.mxu0 0
      %2731 = vmatpush1.bf16.msra.mxu0 0
      %2732 = vmatprep.subr.bf16.mxu0 0
      %2733 = vmatpush1.bf16.msra.mxu0 0
      %2734 = vmatprep.subr.bf16.mxu0 0
      %2735 = vmatpush1.bf16.msra.mxu0 0
      %2736 = vmatprep.subr.bf16.mxu0 0
      %2737 = vmatpush1.bf16.msra.mxu0 0
      %2738 = vmatprep.subr.bf16.mxu0 0
      %2739 = vmatpush1.bf16.msra.mxu0 0
      %2740 = vmatprep.subr.bf16.mxu0 0
      %2741 = vmatpush1.bf16.msra.mxu0 0
      %2742 = vmatprep.subr.bf16.mxu0 0
      %2743 = vmatpush1.bf16.msra.mxu0 0
      %2744 = vmatprep.subr.bf16.mxu0 0
      %2745 = vmatpush1.bf16.msra.mxu0 0
      %2746 = vmatprep.subr.bf16.mxu0 0
      %2747 = vmatpush1.bf16.msra.mxu0 0
      %2748 = vmatprep.subr.bf16.mxu0 0
      %2749 = vmatpush1.bf16.msra.mxu0 0
      %2750 = vmatprep.subr.bf16.mxu0 0
      %2751 = vmatpush1.bf16.msra.mxu0 0
      %2752 = vmatprep.subr.bf16.mxu0 0
      %2753 = vmatpush1.bf16.msra.mxu0 0
      %2754 = vmatprep.subr.bf16.mxu0 0
      %2755 = vmatpush1.bf16.msra.mxu0 0
      %2756 = vmatprep.mubr.bf16.mxu0 0
      %2757 = vmatmul.mubr.bf16.gmra.mrb[0].mxu0 %v2719
      %v2758 = vpop.f32.mrb[0].mxu0
      %v2759 = vadd.f32 0.0, %v2758
      %v2760 = vpop.f32.mrb[0].mxu0
      %v2761 = vpop.f32.mrb[0].mxu0
      %v2762 = vadd.f32 0.0, %v2761
      %v2763 = vpop.f32.mrb[0].mxu0
      %2764 = vmatprep.mubr.bf16.mxu0 0
      %2765 = vmatmul.mubr.bf16.gmra.mrb[0].mxu0 %v2722
      %v2766 = vpop.f32.mrb[0].mxu0
      %v2767 = vadd.f32 0.0, %v2766
      %v2768 = vpop.f32.mrb[0].mxu0
      %v2769 = vpop.f32.mrb[0].mxu0
      %v2770 = vadd.f32 0.0, %v2769
      %v2771 = vpop.f32.mrb[0].mxu0
      %2772 = vdwg.mxu0
      %v2773 = vpack.c.bf16 %v2597, %v2594
      %v2774 = vpack.c.bf16 %v2605, %v2602
      %v2775 = vpack.c.bf16 %v2652, %v2649
      %v2776 = vpack.c.bf16 %v2660, %v2657
      %v2777 = vpack.c.bf16 %v2707, %v2704
      %v2778 = vpack.c.bf16 %v2715, %v2712
      %v2779 = vpack.c.bf16 %v2762, %v2759
      %v2780 = vpack.c.bf16 %v2770, %v2767
      %v2781 = vld [vmem:[%s8] sm:$0xf]
      %v2782 = vld [vmem:[%s8 + $0x4] sm:$0xf]
      %v2783 = vld [vmem:[%s8 + $0x8] sm:$0xf]
      %v2784 = vld [vmem:[%s8 + $0xc] sm:$0xf]
      %v2785 = vld [vmem:[%s8 + $0x10] sm:$0xf]
      %v2786 = vld [vmem:[%s8 + $0x14] sm:$0xf]
      %v2787 = vld [vmem:[%s8 + $0x18] sm:$0xf]
      %v2788 = vld [vmem:[%s8 + $0x1c] sm:$0xf]
      %v2789 = vld [vmem:[%s8 + $0x20] sm:$0xf]
      %v2790 = vld [vmem:[%s8 + $0x24] sm:$0xf]
      %v2791 = vld [vmem:[%s8 + $0x28] sm:$0xf]
      %v2792 = vld [vmem:[%s8 + $0x2c] sm:$0xf]
      %v2793 = vld [vmem:[%s8 + $0x30] sm:$0xf]
      %v2794 = vld [vmem:[%s8 + $0x34] sm:$0xf]
      %v2795 = vld [vmem:[%s8 + $0x38] sm:$0xf]
      %v2796 = vld [vmem:[%s8 + $0x3c] sm:$0xf]
      %v2797 = vld [vmem:[%s9] sm:$0x1]
      %v2799 = vlaneseq
      %v2800 = vshrl.u32 %v2799, 7
      %v2801 = vsub.s32 0, %v2800
      %v2802 = vrot.slane %v2797, %v2801
      %v2820 = vunpack.c.l.b16 %v2781
      %v2821 = vunpack.c.l.b16 %v2782
      %v2822 = vunpack.c.l.b16 %v2783
      %v2823 = vunpack.c.l.b16 %v2784
      %v2824 = vunpack.c.l.b16 %v2785
      %v2825 = vunpack.c.l.b16 %v2786
      %v2826 = vunpack.c.l.b16 %v2787
      %v2827 = vunpack.c.l.b16 %v2788
      %v2828 = vunpack.c.l.b16 %v2789
      %v2829 = vunpack.c.l.b16 %v2790
      %v2830 = vunpack.c.l.b16 %v2791
      %v2831 = vunpack.c.l.b16 %v2792
      %v2832 = vunpack.c.l.b16 %v2793
      %v2833 = vunpack.c.l.b16 %v2794
      %v2834 = vunpack.c.l.b16 %v2795
      %v2835 = vunpack.c.l.b16 %v2796
      %v2836 = vpack.c.b16 %v2821, %v2820
      %v2837 = vpack.c.b16 %v2823, %v2822
      %v2838 = vpack.c.b16 %v2825, %v2824
      %v2839 = vpack.c.b16 %v2827, %v2826
      %v2840 = vpack.c.b16 %v2829, %v2828
      %v2841 = vpack.c.b16 %v2831, %v2830
      %v2842 = vpack.c.b16 %v2833, %v2832
      %v2843 = vpack.c.b16 %v2835, %v2834
      %2852 = vmatprep.subr.bf16.mxu0 0
      %2853 = vmatpush1.bf16.msra.mxu0 %v2836
      %2854 = vmatprep.subr.bf16.mxu0 0
      %2855 = vmatpush1.bf16.msra.mxu0 %v2837
      %2856 = vmatprep.subr.bf16.mxu0 0
      %2857 = vmatpush1.bf16.msra.mxu0 %v2838
      %2858 = vmatprep.subr.bf16.mxu0 0
      %2859 = vmatpush1.bf16.msra.mxu0 %v2839
      %2860 = vmatprep.subr.bf16.mxu0 0
      %2861 = vmatpush1.bf16.msra.mxu0 %v2840
      %2862 = vmatprep.subr.bf16.mxu0 0
      %2863 = vmatpush1.bf16.msra.mxu0 %v2841
      %2864 = vmatprep.subr.bf16.mxu0 0
      %2865 = vmatpush1.bf16.msra.mxu0 %v2842
      %2866 = vmatprep.subr.bf16.mxu0 0
      %2867 = vmatpush1.bf16.msra.mxu0 %v2843
      %2868 = vmatprep.subr.bf16.mxu0 0
      %2869 = vmatpush1.bf16.msra.mxu0 0
      %2870 = vmatprep.subr.bf16.mxu0 0
      %2871 = vmatpush1.bf16.msra.mxu0 0
      %2872 = vmatprep.subr.bf16.mxu0 0
      %2873 = vmatpush1.bf16.msra.mxu0 0
      %2874 = vmatprep.subr.bf16.mxu0 0
      %2875 = vmatpush1.bf16.msra.mxu0 0
      %2876 = vmatprep.subr.bf16.mxu0 0
      %2877 = vmatpush1.bf16.msra.mxu0 0
      %2878 = vmatprep.subr.bf16.mxu0 0
      %2879 = vmatpush1.bf16.msra.mxu0 0
      %2880 = vmatprep.subr.bf16.mxu0 0
      %2881 = vmatpush1.bf16.msra.mxu0 0
      %2882 = vmatprep.subr.bf16.mxu0 0
      %2883 = vmatpush1.bf16.msra.mxu0 0
      %2884 = vmatprep.mubr.bf16.mxu0 0
      %2885 = vmatmul.mubr.bf16.gmra.mrb[0].mxu0 %v2773
      %v2886 = vpop.f32.mrb[0].mxu0
      %v2887 = vadd.f32 %v2802, %v2886
      %v2888 = vpop.f32.mrb[0].mxu0
      %v2889 = vpop.f32.mrb[0].mxu0
      %v2890 = vadd.f32 %v2802, %v2889
      %v2891 = vpop.f32.mrb[0].mxu0
      %2892 = vmatprep.mubr.bf16.mxu0 0
      %2893 = vmatmul.mubr.bf16.gmra.mrb[0].mxu0 %v2774
      %v2894 = vpop.f32.mrb[0].mxu0
      %v2895 = vadd.f32 %v2802, %v2894
      %v2896 = vpop.f32.mrb[0].mxu0
      %v2897 = vpop.f32.mrb[0].mxu0
      %v2898 = vadd.f32 %v2802, %v2897
      %v2899 = vpop.f32.mrb[0].mxu0
      %2900 = vmatprep.mubr.bf16.mxu0 0
      %2901 = vmatmul.mubr.bf16.gmra.mrb[0].mxu0 %v2775
      %v2902 = vpop.f32.mrb[0].mxu0
      %v2903 = vadd.f32 %v2802, %v2902
      %v2904 = vpop.f32.mrb[0].mxu0
      %v2905 = vpop.f32.mrb[0].mxu0
      %v2906 = vadd.f32 %v2802, %v2905
      %v2907 = vpop.f32.mrb[0].mxu0
      %2908 = vmatprep.mubr.bf16.mxu0 0
      %2909 = vmatmul.mubr.bf16.gmra.mrb[0].mxu0 %v2776
      %v2910 = vpop.f32.mrb[0].mxu0
      %v2911 = vadd.f32 %v2802, %v2910
      %v2912 = vpop.f32.mrb[0].mxu0
      %v2913 = vpop.f32.mrb[0].mxu0
      %v2914 = vadd.f32 %v2802, %v2913
      %v2915 = vpop.f32.mrb[0].mxu0
      %2916 = vmatprep.mubr.bf16.mxu0 0
      %2917 = vmatmul.mubr.bf16.gmra.mrb[0].mxu0 %v2777
      %v2918 = vpop.f32.mrb[0].mxu0
      %v2919 = vadd.f32 %v2802, %v2918
      %v2920 = vpop.f32.mrb[0].mxu0
      %v2921 = vpop.f32.mrb[0].mxu0
      %v2922 = vadd.f32 %v2802, %v2921
      %v2923 = vpop.f32.mrb[0].mxu0
      %2924 = vmatprep.mubr.bf16.mxu0 0
      %2925 = vmatmul.mubr.bf16.gmra.mrb[0].mxu0 %v2778
      %v2926 = vpop.f32.mrb[0].mxu0
      %v2927 = vadd.f32 %v2802, %v2926
      %v2928 = vpop.f32.mrb[0].mxu0
      %v2929 = vpop.f32.mrb[0].mxu0
      %v2930 = vadd.f32 %v2802, %v2929
      %v2931 = vpop.f32.mrb[0].mxu0
      %2932 = vmatprep.mubr.bf16.mxu0 0
      %2933 = vmatmul.mubr.bf16.gmra.mrb[0].mxu0 %v2779
      %v2934 = vpop.f32.mrb[0].mxu0
      %v2935 = vadd.f32 %v2802, %v2934
      %v2936 = vpop.f32.mrb[0].mxu0
      %v2937 = vpop.f32.mrb[0].mxu0
      %v2938 = vadd.f32 %v2802, %v2937
      %v2939 = vpop.f32.mrb[0].mxu0
      %2940 = vmatprep.mubr.bf16.mxu0 0
      %2941 = vmatmul.mubr.bf16.gmra.mrb[0].mxu0 %v2780
      %v2942 = vpop.f32.mrb[0].mxu0
      %v2943 = vadd.f32 %v2802, %v2942
      %v2944 = vpop.f32.mrb[0].mxu0
      %v2945 = vpop.f32.mrb[0].mxu0
      %v2946 = vadd.f32 %v2802, %v2945
      %v2947 = vpop.f32.mrb[0].mxu0
      %2948 = vdwg.mxu0
      %v2949 = vpack.c.bf16 %v2890, %v2887
      %v2950 = vpack.c.bf16 %v2898, %v2895
      %v2951 = vpack.c.bf16 %v2906, %v2903
      %v2952 = vpack.c.bf16 %v2914, %v2911
      %v2953 = vpack.c.bf16 %v2922, %v2919
      %v2954 = vpack.c.bf16 %v2930, %v2927
      %v2955 = vpack.c.bf16 %v2938, %v2935
      %v2956 = vpack.c.bf16 %v2946, %v2943
      %v2957 = vld [vmem:[%s10] sm:$0xf]
      %v2958 = vld [vmem:[%s10 + $0x4] sm:$0xf]
      %v2959 = vld [vmem:[%s10 + $0x8] sm:$0xf]
      %v2960 = vld [vmem:[%s10 + $0xc] sm:$0xf]
      %v2961 = vld [vmem:[%s10 + $0x10] sm:$0xf]
      %v2962 = vld [vmem:[%s10 + $0x14] sm:$0xf]
      %v2963 = vld [vmem:[%s10 + $0x18] sm:$0xf]
      %v2964 = vld [vmem:[%s10 + $0x1c] sm:$0xf]
      %v2969 = vunpack.c.l.b16 %v2961
      %v2970 = vunpack.c.l.b16 %v2962
      %v2971 = vunpack.c.l.b16 %v2963
      %v2972 = vunpack.c.l.b16 %v2964
      %v2973 = vpack.c.b16 %v2970, %v2969
      %v2974 = vpack.c.b16 %v2972, %v2971
      %2977 = vmatprep.subr.bf16.mxu0 0
      %2978 = vmatpush1.bf16.msra.mxu0 %v2973
      %2979 = vmatprep.subr.bf16.mxu0 0
      %2980 = vmatpush1.bf16.msra.mxu0 %v2974
      %2981 = vmatprep.subr.bf16.mxu0 0
      %2982 = vmatpush1.bf16.msra.mxu0 0
      %2983 = vmatprep.subr.bf16.mxu0 0
      %2984 = vmatpush1.bf16.msra.mxu0 0
      %2985 = vmatprep.subr.bf16.mxu0 0
      %2986 = vmatpush1.bf16.msra.mxu0 0
      %2987 = vmatprep.subr.bf16.mxu0 0
      %2988 = vmatpush1.bf16.msra.mxu0 0
      %2989 = vmatprep.subr.bf16.mxu0 0
      %2990 = vmatpush1.bf16.msra.mxu0 0
      %2991 = vmatprep.subr.bf16.mxu0 0
      %2992 = vmatpush1.bf16.msra.mxu0 0
      %2993 = vmatprep.subr.bf16.mxu0 0
      %2994 = vmatpush1.bf16.msra.mxu0 0
      %2995 = vmatprep.subr.bf16.mxu0 0
      %2996 = vmatpush1.bf16.msra.mxu0 0
      %2997 = vmatprep.subr.bf16.mxu0 0
      %2998 = vmatpush1.bf16.msra.mxu0 0
      %2999 = vmatprep.subr.bf16.mxu0 0
      %3000 = vmatpush1.bf16.msra.mxu0 0
      %3001 = vmatprep.subr.bf16.mxu0 0
      %3002 = vmatpush1.bf16.msra.mxu0 0
      %3003 = vmatprep.subr.bf16.mxu0 0
      %3004 = vmatpush1.bf16.msra.mxu0 0
      %3005 = vmatprep.subr.bf16.mxu0 0
      %3006 = vmatpush1.bf16.msra.mxu0 0
      %3007 = vmatprep.subr.bf16.mxu0 0
      %3008 = vmatpush1.bf16.msra.mxu0 0
      %3009 = vmatprep.mubr.bf16.mxu0 0
      %3010 = vmatmul.mubr.bf16.gmra.mrb[0].mxu0 %v1174
      %v3011 = vpop.f32.mrb[0].mxu0
      %v3012 = vadd.f32 0.0, %v3011
      %v3013 = vpop.f32.mrb[0].mxu0
      %v3014 = vpop.f32.mrb[0].mxu0
      %v3015 = vadd.f32 0.0, %v3014
      %v3016 = vpop.f32.mrb[0].mxu0
      %3017 = vmatprep.mubr.bf16.mxu0 0
      %3018 = vmatmul.mubr.bf16.gmra.mrb[0].mxu0 %v1177
      %v3019 = vpop.f32.mrb[0].mxu0
      %v3020 = vadd.f32 0.0, %v3019
      %v3021 = vpop.f32.mrb[0].mxu0
      %v3022 = vpop.f32.mrb[0].mxu0
      %v3023 = vadd.f32 0.0, %v3022
      %v3024 = vpop.f32.mrb[0].mxu0
      %3025 = vmatprep.mubr.bf16.mxu0 0
      %3026 = vmatmul.mubr.bf16.gmra.mrb[0].mxu0 %v1180
      %v3027 = vpop.f32.mrb[0].mxu0
      %v3028 = vadd.f32 0.0, %v3027
      %v3029 = vpop.f32.mrb[0].mxu0
      %v3030 = vpop.f32.mrb[0].mxu0
      %v3031 = vadd.f32 0.0, %v3030
      %v3032 = vpop.f32.mrb[0].mxu0
      %3033 = vmatprep.mubr.bf16.mxu0 0
      %3034 = vmatmul.mubr.bf16.gmra.mrb[0].mxu0 %v1183
      %v3035 = vpop.f32.mrb[0].mxu0
      %v3036 = vadd.f32 0.0, %v3035
      %v3037 = vpop.f32.mrb[0].mxu0
      %v3038 = vpop.f32.mrb[0].mxu0
      %v3039 = vadd.f32 0.0, %v3038
      %v3040 = vpop.f32.mrb[0].mxu0
      %3041 = vmatprep.mubr.bf16.mxu0 0
      %3042 = vmatmul.mubr.bf16.gmra.mrb[0].mxu0 %v1186
      %v3043 = vpop.f32.mrb[0].mxu0
      %v3044 = vadd.f32 0.0, %v3043
      %v3045 = vpop.f32.mrb[0].mxu0
      %v3046 = vpop.f32.mrb[0].mxu0
      %v3047 = vadd.f32 0.0, %v3046
      %v3048 = vpop.f32.mrb[0].mxu0
      %3049 = vmatprep.mubr.bf16.mxu0 0
      %3050 = vmatmul.mubr.bf16.gmra.mrb[0].mxu0 %v1189
      %v3051 = vpop.f32.mrb[0].mxu0
      %v3052 = vadd.f32 0.0, %v3051
      %v3053 = vpop.f32.mrb[0].mxu0
      %v3054 = vpop.f32.mrb[0].mxu0
      %v3055 = vadd.f32 0.0, %v3054
      %v3056 = vpop.f32.mrb[0].mxu0
      %3057 = vmatprep.mubr.bf16.mxu0 0
      %3058 = vmatmul.mubr.bf16.gmra.mrb[0].mxu0 %v1192
      %v3059 = vpop.f32.mrb[0].mxu0
      %v3060 = vadd.f32 0.0, %v3059
      %v3061 = vpop.f32.mrb[0].mxu0
      %v3062 = vpop.f32.mrb[0].mxu0
      %v3063 = vadd.f32 0.0, %v3062
      %v3064 = vpop.f32.mrb[0].mxu0
      %3065 = vmatprep.mubr.bf16.mxu0 0
      %3066 = vmatmul.mubr.bf16.gmra.mrb[0].mxu0 %v1195
      %v3067 = vpop.f32.mrb[0].mxu0
      %v3068 = vadd.f32 0.0, %v3067
      %v3069 = vpop.f32.mrb[0].mxu0
      %v3070 = vpop.f32.mrb[0].mxu0
      %v3071 = vadd.f32 0.0, %v3070
      %v3072 = vpop.f32.mrb[0].mxu0
      %3073 = vdwg.mxu0
      %v3078 = vunpack.c.l.b16 %v2957
      %v3079 = vunpack.c.l.b16 %v2958
      %v3080 = vunpack.c.l.b16 %v2959
      %v3081 = vunpack.c.l.b16 %v2960
      %v3082 = vpack.c.b16 %v3079, %v3078
      %v3083 = vpack.c.b16 %v3081, %v3080
      %v3087 = vsel %vm1172, %v2949, 0
      %v3090 = vsel %vm1172, %v2950, 0
      %v3093 = vsel %vm1172, %v2951, 0
      %v3096 = vsel %vm1172, %v2952, 0
      %v3099 = vsel %vm1172, %v2953, 0
      %v3102 = vsel %vm1172, %v2954, 0
      %v3105 = vsel %vm1172, %v2955, 0
      %v3108 = vsel %vm1172, %v2956, 0
      %3110 = vmatprep.subr.bf16.mxu0 0
      %3111 = vmatpush1.bf16.msra.mxu0 %v3082
      %3112 = vmatprep.subr.bf16.mxu0 0
      %3113 = vmatpush1.bf16.msra.mxu0 %v3083
      %3114 = vmatprep.subr.bf16.mxu0 0
      %3115 = vmatpush1.bf16.msra.mxu0 0
      %3116 = vmatprep.subr.bf16.mxu0 0
      %3117 = vmatpush1.bf16.msra.mxu0 0
      %3118 = vmatprep.subr.bf16.mxu0 0
      %3119 = vmatpush1.bf16.msra.mxu0 0
      %3120 = vmatprep.subr.bf16.mxu0 0
      %3121 = vmatpush1.bf16.msra.mxu0 0
      %3122 = vmatprep.subr.bf16.mxu0 0
      %3123 = vmatpush1.bf16.msra.mxu0 0
      %3124 = vmatprep.subr.bf16.mxu0 0
      %3125 = vmatpush1.bf16.msra.mxu0 0
      %3126 = vmatprep.subr.bf16.mxu0 0
      %3127 = vmatpush1.bf16.msra.mxu0 0
      %3128 = vmatprep.subr.bf16.mxu0 0
      %3129 = vmatpush1.bf16.msra.mxu0 0
      %3130 = vmatprep.subr.bf16.mxu0 0
      %3131 = vmatpush1.bf16.msra.mxu0 0
      %3132 = vmatprep.subr.bf16.mxu0 0
      %3133 = vmatpush1.bf16.msra.mxu0 0
      %3134 = vmatprep.subr.bf16.mxu0 0
      %3135 = vmatpush1.bf16.msra.mxu0 0
      %3136 = vmatprep.subr.bf16.mxu0 0
      %3137 = vmatpush1.bf16.msra.mxu0 0
      %3138 = vmatprep.subr.bf16.mxu0 0
      %3139 = vmatpush1.bf16.msra.mxu0 0
      %3140 = vmatprep.subr.bf16.mxu0 0
      %3141 = vmatpush1.bf16.msra.mxu0 0
      %3142 = vmatprep.mubr.bf16.mxu0 0
      %3143 = vmatmul.mubr.bf16.gmra.mrb[0].mxu0 %v3087
      %v3144 = vpop.f32.mrb[0].mxu0
      %v3145 = vadd.f32 %v3012, %v3144
      %v3146 = vpop.f32.mrb[0].mxu0
      %v3147 = vpop.f32.mrb[0].mxu0
      %v3148 = vadd.f32 %v3015, %v3147
      %v3149 = vpop.f32.mrb[0].mxu0
      %3150 = vmatprep.mubr.bf16.mxu0 0
      %3151 = vmatmul.mubr.bf16.gmra.mrb[0].mxu0 %v3090
      %v3152 = vpop.f32.mrb[0].mxu0
      %v3153 = vadd.f32 %v3020, %v3152
      %v3154 = vpop.f32.mrb[0].mxu0
      %v3155 = vpop.f32.mrb[0].mxu0
      %v3156 = vadd.f32 %v3023, %v3155
      %v3157 = vpop.f32.mrb[0].mxu0
      %3158 = vmatprep.mubr.bf16.mxu0 0
      %3159 = vmatmul.mubr.bf16.gmra.mrb[0].mxu0 %v3093
      %v3160 = vpop.f32.mrb[0].mxu0
      %v3161 = vadd.f32 %v3028, %v3160
      %v3162 = vpop.f32.mrb[0].mxu0
      %v3163 = vpop.f32.mrb[0].mxu0
      %v3164 = vadd.f32 %v3031, %v3163
      %v3165 = vpop.f32.mrb[0].mxu0
      %3166 = vmatprep.mubr.bf16.mxu0 0
      %3167 = vmatmul.mubr.bf16.gmra.mrb[0].mxu0 %v3096
      %v3168 = vpop.f32.mrb[0].mxu0
      %v3169 = vadd.f32 %v3036, %v3168
      %v3170 = vpop.f32.mrb[0].mxu0
      %v3171 = vpop.f32.mrb[0].mxu0
      %v3172 = vadd.f32 %v3039, %v3171
      %v3173 = vpop.f32.mrb[0].mxu0
      %3174 = vmatprep.mubr.bf16.mxu0 0
      %3175 = vmatmul.mubr.bf16.gmra.mrb[0].mxu0 %v3099
      %v3176 = vpop.f32.mrb[0].mxu0
      %v3177 = vadd.f32 %v3044, %v3176
      %v3178 = vpop.f32.mrb[0].mxu0
      %v3179 = vpop.f32.mrb[0].mxu0
      %v3180 = vadd.f32 %v3047, %v3179
      %v3181 = vpop.f32.mrb[0].mxu0
      %3182 = vmatprep.mubr.bf16.mxu0 0
      %3183 = vmatmul.mubr.bf16.gmra.mrb[0].mxu0 %v3102
      %v3184 = vpop.f32.mrb[0].mxu0
      %v3185 = vadd.f32 %v3052, %v3184
      %v3186 = vpop.f32.mrb[0].mxu0
      %v3187 = vpop.f32.mrb[0].mxu0
      %v3188 = vadd.f32 %v3055, %v3187
      %v3189 = vpop.f32.mrb[0].mxu0
      %3190 = vmatprep.mubr.bf16.mxu0 0
      %3191 = vmatmul.mubr.bf16.gmra.mrb[0].mxu0 %v3105
      %v3192 = vpop.f32.mrb[0].mxu0
      %v3193 = vadd.f32 %v3060, %v3192
      %v3194 = vpop.f32.mrb[0].mxu0
      %v3195 = vpop.f32.mrb[0].mxu0
      %v3196 = vadd.f32 %v3063, %v3195
      %v3197 = vpop.f32.mrb[0].mxu0
      %3198 = vmatprep.mubr.bf16.mxu0 0
      %3199 = vmatmul.mubr.bf16.gmra.mrb[0].mxu0 %v3108
      %v3200 = vpop.f32.mrb[0].mxu0
      %v3201 = vadd.f32 %v3068, %v3200
      %v3202 = vpop.f32.mrb[0].mxu0
      %v3203 = vpop.f32.mrb[0].mxu0
      %v3204 = vadd.f32 %v3071, %v3203
      %v3205 = vpop.f32.mrb[0].mxu0
      %3206 = vdwg.mxu0
      %v3207 = vld [vmem:[%s11] sm:$0x1]
      %v3209 = vlaneseq
      %v3210 = vshrl.u32 %v3209, 7
      %v3211 = vsub.s32 0, %v3210
      %v3212 = vrot.slane %v3207, %v3211
      %v3214 = vadd.f32 %v3145, %v3212
      %v3215 = vadd.f32 %v3148, %v3212
      %v3216 = vadd.f32 %v3153, %v3212
      %v3217 = vadd.f32 %v3156, %v3212
      %v3218 = vadd.f32 %v3161, %v3212
      %v3219 = vadd.f32 %v3164, %v3212
      %v3220 = vadd.f32 %v3169, %v3212
      %v3221 = vadd.f32 %v3172, %v3212
      %v3222 = vadd.f32 %v3177, %v3212
      %v3223 = vadd.f32 %v3180, %v3212
      %v3224 = vadd.f32 %v3185, %v3212
      %v3225 = vadd.f32 %v3188, %v3212
      %v3226 = vadd.f32 %v3193, %v3212
      %v3227 = vadd.f32 %v3196, %v3212
      %v3228 = vadd.f32 %v3201, %v3212
      %v3229 = vadd.f32 %v3204, %v3212
      %v3230 = vxor.u32 %v3214, 2147483648
      %v3231 = vxor.u32 %v3215, 2147483648
      %v3232 = vxor.u32 %v3216, 2147483648
      %v3233 = vxor.u32 %v3217, 2147483648
      %v3234 = vxor.u32 %v3218, 2147483648
      %v3235 = vxor.u32 %v3219, 2147483648
      %v3236 = vxor.u32 %v3220, 2147483648
      %v3237 = vxor.u32 %v3221, 2147483648
      %v3238 = vxor.u32 %v3222, 2147483648
      %v3239 = vxor.u32 %v3223, 2147483648
      %v3240 = vxor.u32 %v3224, 2147483648
      %v3241 = vxor.u32 %v3225, 2147483648
      %v3242 = vxor.u32 %v3226, 2147483648
      %v3243 = vxor.u32 %v3227, 2147483648
      %v3244 = vxor.u32 %v3228, 2147483648
      %v3245 = vxor.u32 %v3229, 2147483648
      %v3246 = vmul.f32 %v3230, 1.442695
      %v3247 = vpow.pop %v3246
      %v3248 = vmul.f32 %v3231, 1.442695
      %v3249 = vpow.pop %v3248
      %v3250 = vmul.f32 %v3232, 1.442695
      %v3251 = vpow.pop %v3250
      %v3252 = vmul.f32 %v3233, 1.442695
      %v3253 = vpow.pop %v3252
      %v3254 = vmul.f32 %v3234, 1.442695
      %v3255 = vpow.pop %v3254
      %v3256 = vmul.f32 %v3235, 1.442695
      %v3257 = vpow.pop %v3256
      %v3258 = vmul.f32 %v3236, 1.442695
      %v3259 = vpow.pop %v3258
      %v3260 = vmul.f32 %v3237, 1.442695
      %v3261 = vpow.pop %v3260
      %v3262 = vmul.f32 %v3238, 1.442695
      %v3263 = vpow.pop %v3262
      %v3264 = vmul.f32 %v3239, 1.442695
      %v3265 = vpow.pop %v3264
      %v3266 = vmul.f32 %v3240, 1.442695
      %v3267 = vpow.pop %v3266
      %v3268 = vmul.f32 %v3241, 1.442695
      %v3269 = vpow.pop %v3268
      %v3270 = vmul.f32 %v3242, 1.442695
      %v3271 = vpow.pop %v3270
      %v3272 = vmul.f32 %v3243, 1.442695
      %v3273 = vpow.pop %v3272
      %v3274 = vmul.f32 %v3244, 1.442695
      %v3275 = vpow.pop %v3274
      %v3276 = vmul.f32 %v3245, 1.442695
      %v3277 = vpow.pop %v3276
      %v3278 = vadd.f32 %v3247, 1.0
      %v3279 = vadd.f32 %v3249, 1.0
      %v3280 = vadd.f32 %v3251, 1.0
      %v3281 = vadd.f32 %v3253, 1.0
      %v3282 = vadd.f32 %v3255, 1.0
      %v3283 = vadd.f32 %v3257, 1.0
      %v3284 = vadd.f32 %v3259, 1.0
      %v3285 = vadd.f32 %v3261, 1.0
      %v3286 = vadd.f32 %v3263, 1.0
      %v3287 = vadd.f32 %v3265, 1.0
      %v3288 = vadd.f32 %v3267, 1.0
      %v3289 = vadd.f32 %v3269, 1.0
      %v3290 = vadd.f32 %v3271, 1.0
      %v3291 = vadd.f32 %v3273, 1.0
      %v3292 = vadd.f32 %v3275, 1.0
      %v3293 = vadd.f32 %v3277, 1.0
      %v3294 = vrcp.pop %v3278
      %v3295 = vmul.f32 1.0, %v3294
      %v3296 = vrcp.pop %v3279
      %v3297 = vmul.f32 1.0, %v3296
      %v3298 = vrcp.pop %v3280
      %v3299 = vmul.f32 1.0, %v3298
      %v3300 = vrcp.pop %v3281
      %v3301 = vmul.f32 1.0, %v3300
      %v3302 = vrcp.pop %v3282
      %v3303 = vmul.f32 1.0, %v3302
      %v3304 = vrcp.pop %v3283
      %v3305 = vmul.f32 1.0, %v3304
      %v3306 = vrcp.pop %v3284
      %v3307 = vmul.f32 1.0, %v3306
      %v3308 = vrcp.pop %v3285
      %v3309 = vmul.f32 1.0, %v3308
      %v3310 = vrcp.pop %v3286
      %v3311 = vmul.f32 1.0, %v3310
      %v3312 = vrcp.pop %v3287
      %v3313 = vmul.f32 1.0, %v3312
      %v3314 = vrcp.pop %v3288
      %v3315 = vmul.f32 1.0, %v3314
      %v3316 = vrcp.pop %v3289
      %v3317 = vmul.f32 1.0, %v3316
      %v3318 = vrcp.pop %v3290
      %v3319 = vmul.f32 1.0, %v3318
      %v3320 = vrcp.pop %v3291
      %v3321 = vmul.f32 1.0, %v3320
      %v3322 = vrcp.pop %v3292
      %v3323 = vmul.f32 1.0, %v3322
      %v3324 = vrcp.pop %v3293
      %v3325 = vmul.f32 1.0, %v3324
      %v3326 = vmul.f32 %v3295, %v2887
      %v3327 = vmul.f32 %v3297, %v2890
      %v3328 = vmul.f32 %v3299, %v2895
      %v3329 = vmul.f32 %v3301, %v2898
      %v3330 = vmul.f32 %v3303, %v2903
      %v3331 = vmul.f32 %v3305, %v2906
      %v3332 = vmul.f32 %v3307, %v2911
      %v3333 = vmul.f32 %v3309, %v2914
      %v3334 = vmul.f32 %v3311, %v2919
      %v3335 = vmul.f32 %v3313, %v2922
      %v3336 = vmul.f32 %v3315, %v2927
      %v3337 = vmul.f32 %v3317, %v2930
      %v3338 = vmul.f32 %v3319, %v2935
      %v3339 = vmul.f32 %v3321, %v2938
      %v3340 = vmul.f32 %v3323, %v2943
      %v3341 = vmul.f32 %v3325, %v2946
      %v3342 = vadd.f32 %v497, %v3326
      %v3343 = vadd.f32 %v498, %v3327
      %v3344 = vadd.f32 %v499, %v3328
      %v3345 = vadd.f32 %v500, %v3329
      %v3346 = vadd.f32 %v501, %v3330
      %v3347 = vadd.f32 %v502, %v3331
      %v3348 = vadd.f32 %v503, %v3332
      %v3349 = vadd.f32 %v504, %v3333
      %v3350 = vadd.f32 %v505, %v3334
      %v3351 = vadd.f32 %v506, %v3335
      %v3352 = vadd.f32 %v507, %v3336
      %v3353 = vadd.f32 %v508, %v3337
      %v3354 = vadd.f32 %v509, %v3338
      %v3355 = vadd.f32 %v510, %v3339
      %v3356 = vadd.f32 %v511, %v3340
      %v3357 = vadd.f32 %v512, %v3341
      %v3358 = vsel %vm1172, %v3342, 0.0
      %3359 = vadd.xlane.f32.xlu0 %v3358
      %v3360 = vpop.xlane.xlu0 %3359
      %v3361 = vsel %vm1172, %v3343, 0.0
      %3362 = vadd.xlane.f32.xlu0 %v3361
      %v3363 = vpop.xlane.xlu0 %3362
      %v3364 = vsel %vm1172, %v3344, 0.0
      %3365 = vadd.xlane.f32.xlu0 %v3364
      %v3366 = vpop.xlane.xlu0 %3365
      %v3367 = vsel %vm1172, %v3345, 0.0
      %3368 = vadd.xlane.f32.xlu0 %v3367
      %v3369 = vpop.xlane.xlu0 %3368
      %v3370 = vsel %vm1172, %v3346, 0.0
      %3371 = vadd.xlane.f32.xlu0 %v3370
      %v3372 = vpop.xlane.xlu0 %3371
      %v3373 = vsel %vm1172, %v3347, 0.0
      %3374 = vadd.xlane.f32.xlu0 %v3373
      %v3375 = vpop.xlane.xlu0 %3374
      %v3376 = vsel %vm1172, %v3348, 0.0
      %3377 = vadd.xlane.f32.xlu0 %v3376
      %v3378 = vpop.xlane.xlu0 %3377
      %v3379 = vsel %vm1172, %v3349, 0.0
      %3380 = vadd.xlane.f32.xlu0 %v3379
      %v3381 = vpop.xlane.xlu0 %3380
      %v3382 = vsel %vm1172, %v3350, 0.0
      %3383 = vadd.xlane.f32.xlu0 %v3382
      %v3384 = vpop.xlane.xlu0 %3383
      %v3385 = vsel %vm1172, %v3351, 0.0
      %3386 = vadd.xlane.f32.xlu0 %v3385
      %v3387 = vpop.xlane.xlu0 %3386
      %v3388 = vsel %vm1172, %v3352, 0.0
      %3389 = vadd.xlane.f32.xlu0 %v3388
      %v3390 = vpop.xlane.xlu0 %3389
      %v3391 = vsel %vm1172, %v3353, 0.0
      %3392 = vadd.xlane.f32.xlu0 %v3391
      %v3393 = vpop.xlane.xlu0 %3392
      %v3394 = vsel %vm1172, %v3354, 0.0
      %3395 = vadd.xlane.f32.xlu0 %v3394
      %v3396 = vpop.xlane.xlu0 %3395
      %v3397 = vsel %vm1172, %v3355, 0.0
      %3398 = vadd.xlane.f32.xlu0 %v3397
      %v3399 = vpop.xlane.xlu0 %3398
      %v3400 = vsel %vm1172, %v3356, 0.0
      %3401 = vadd.xlane.f32.xlu0 %v3400
      %v3402 = vpop.xlane.xlu0 %3401
      %v3403 = vsel %vm1172, %v3357, 0.0
      %3404 = vadd.xlane.f32.xlu0 %v3403
      %v3405 = vpop.xlane.xlu0 %3404
      %v3406 = vrcp.pop 32.0
      %v3407 = vmul.f32 %v3360, %v3406
      %v3408 = vmul.f32 %v3363, %v3406
      %v3409 = vmul.f32 %v3366, %v3406
      %v3410 = vmul.f32 %v3369, %v3406
      %v3411 = vmul.f32 %v3372, %v3406
      %v3412 = vmul.f32 %v3375, %v3406
      %v3413 = vmul.f32 %v3378, %v3406
      %v3414 = vmul.f32 %v3381, %v3406
      %v3415 = vmul.f32 %v3384, %v3406
      %v3416 = vmul.f32 %v3387, %v3406
      %v3417 = vmul.f32 %v3390, %v3406
      %v3418 = vmul.f32 %v3393, %v3406
      %v3419 = vmul.f32 %v3396, %v3406
      %v3420 = vmul.f32 %v3399, %v3406
      %v3421 = vmul.f32 %v3402, %v3406
      %v3422 = vmul.f32 %v3405, %v3406
      %v3423 = vsub.f32 %v3342, %v3407
      %v3424 = vsub.f32 %v3343, %v3408
      %v3425 = vsub.f32 %v3344, %v3409
      %v3426 = vsub.f32 %v3345, %v3410
      %v3427 = vsub.f32 %v3346, %v3411
      %v3428 = vsub.f32 %v3347, %v3412
      %v3429 = vsub.f32 %v3348, %v3413
      %v3430 = vsub.f32 %v3349, %v3414
      %v3431 = vsub.f32 %v3350, %v3415
      %v3432 = vsub.f32 %v3351, %v3416
      %v3433 = vsub.f32 %v3352, %v3417
      %v3434 = vsub.f32 %v3353, %v3418
      %v3435 = vsub.f32 %v3354, %v3419
      %v3436 = vsub.f32 %v3355, %v3420
      %v3437 = vsub.f32 %v3356, %v3421
      %v3438 = vsub.f32 %v3357, %v3422
      %v3439 = vmul.f32 %v3423, %v3423
      %v3440 = vmul.f32 %v3424, %v3424
      %v3441 = vmul.f32 %v3425, %v3425
      %v3442 = vmul.f32 %v3426, %v3426
      %v3443 = vmul.f32 %v3427, %v3427
      %v3444 = vmul.f32 %v3428, %v3428
      %v3445 = vmul.f32 %v3429, %v3429
      %v3446 = vmul.f32 %v3430, %v3430
      %v3447 = vmul.f32 %v3431, %v3431
      %v3448 = vmul.f32 %v3432, %v3432
      %v3449 = vmul.f32 %v3433, %v3433
      %v3450 = vmul.f32 %v3434, %v3434
      %v3451 = vmul.f32 %v3435, %v3435
      %v3452 = vmul.f32 %v3436, %v3436
      %v3453 = vmul.f32 %v3437, %v3437
      %v3454 = vmul.f32 %v3438, %v3438
      %v3455 = vsel %vm1172, %v3439, 0.0
      %3456 = vadd.xlane.f32.xlu0 %v3455
      %v3457 = vpop.xlane.xlu0 %3456
      %v3458 = vsel %vm1172, %v3440, 0.0
      %3459 = vadd.xlane.f32.xlu0 %v3458
      %v3460 = vpop.xlane.xlu0 %3459
      %v3461 = vsel %vm1172, %v3441, 0.0
      %3462 = vadd.xlane.f32.xlu0 %v3461
      %v3463 = vpop.xlane.xlu0 %3462
      %v3464 = vsel %vm1172, %v3442, 0.0
      %3465 = vadd.xlane.f32.xlu0 %v3464
      %v3466 = vpop.xlane.xlu0 %3465
      %v3467 = vsel %vm1172, %v3443, 0.0
      %3468 = vadd.xlane.f32.xlu0 %v3467
      %v3469 = vpop.xlane.xlu0 %3468
      %v3470 = vsel %vm1172, %v3444, 0.0
      %3471 = vadd.xlane.f32.xlu0 %v3470
      %v3472 = vpop.xlane.xlu0 %3471
      %v3473 = vsel %vm1172, %v3445, 0.0
      %3474 = vadd.xlane.f32.xlu0 %v3473
      %v3475 = vpop.xlane.xlu0 %3474
      %v3476 = vsel %vm1172, %v3446, 0.0
      %3477 = vadd.xlane.f32.xlu0 %v3476
      %v3478 = vpop.xlane.xlu0 %3477
      %v3479 = vsel %vm1172, %v3447, 0.0
      %3480 = vadd.xlane.f32.xlu0 %v3479
      %v3481 = vpop.xlane.xlu0 %3480
      %v3482 = vsel %vm1172, %v3448, 0.0
      %3483 = vadd.xlane.f32.xlu0 %v3482
      %v3484 = vpop.xlane.xlu0 %3483
      %v3485 = vsel %vm1172, %v3449, 0.0
      %3486 = vadd.xlane.f32.xlu0 %v3485
      %v3487 = vpop.xlane.xlu0 %3486
      %v3488 = vsel %vm1172, %v3450, 0.0
      %3489 = vadd.xlane.f32.xlu0 %v3488
      %v3490 = vpop.xlane.xlu0 %3489
      %v3491 = vsel %vm1172, %v3451, 0.0
      %3492 = vadd.xlane.f32.xlu0 %v3491
      %v3493 = vpop.xlane.xlu0 %3492
      %v3494 = vsel %vm1172, %v3452, 0.0
      %3495 = vadd.xlane.f32.xlu0 %v3494
      %v3496 = vpop.xlane.xlu0 %3495
      %v3497 = vsel %vm1172, %v3453, 0.0
      %3498 = vadd.xlane.f32.xlu0 %v3497
      %v3499 = vpop.xlane.xlu0 %3498
      %v3500 = vsel %vm1172, %v3454, 0.0
      %3501 = vadd.xlane.f32.xlu0 %v3500
      %v3502 = vpop.xlane.xlu0 %3501
      %v3503 = vmul.f32 %v3457, %v3406
      %v3504 = vmul.f32 %v3460, %v3406
      %v3505 = vmul.f32 %v3463, %v3406
      %v3506 = vmul.f32 %v3466, %v3406
      %v3507 = vmul.f32 %v3469, %v3406
      %v3508 = vmul.f32 %v3472, %v3406
      %v3509 = vmul.f32 %v3475, %v3406
      %v3510 = vmul.f32 %v3478, %v3406
      %v3511 = vmul.f32 %v3481, %v3406
      %v3512 = vmul.f32 %v3484, %v3406
      %v3513 = vmul.f32 %v3487, %v3406
      %v3514 = vmul.f32 %v3490, %v3406
      %v3515 = vmul.f32 %v3493, %v3406
      %v3516 = vmul.f32 %v3496, %v3406
      %v3517 = vmul.f32 %v3499, %v3406
      %v3518 = vmul.f32 %v3502, %v3406
      %v3519 = vadd.f32 %v3503, 1e-05
      %v3520 = vadd.f32 %v3504, 1e-05
      %v3521 = vadd.f32 %v3505, 1e-05
      %v3522 = vadd.f32 %v3506, 1e-05
      %v3523 = vadd.f32 %v3507, 1e-05
      %v3524 = vadd.f32 %v3508, 1e-05
      %v3525 = vadd.f32 %v3509, 1e-05
      %v3526 = vadd.f32 %v3510, 1e-05
      %v3527 = vadd.f32 %v3511, 1e-05
      %v3528 = vadd.f32 %v3512, 1e-05
      %v3529 = vadd.f32 %v3513, 1e-05
      %v3530 = vadd.f32 %v3514, 1e-05
      %v3531 = vadd.f32 %v3515, 1e-05
      %v3532 = vadd.f32 %v3516, 1e-05
      %v3533 = vadd.f32 %v3517, 1e-05
      %v3534 = vadd.f32 %v3518, 1e-05
      %v3535 = vrsqrt.pop %v3519
      %v3536 = vrsqrt.pop %v3520
      %v3537 = vrsqrt.pop %v3521
      %v3538 = vrsqrt.pop %v3522
      %v3539 = vrsqrt.pop %v3523
      %v3540 = vrsqrt.pop %v3524
      %v3541 = vrsqrt.pop %v3525
      %v3542 = vrsqrt.pop %v3526
      %v3543 = vrsqrt.pop %v3527
      %v3544 = vrsqrt.pop %v3528
      %v3545 = vrsqrt.pop %v3529
      %v3546 = vrsqrt.pop %v3530
      %v3547 = vrsqrt.pop %v3531
      %v3548 = vrsqrt.pop %v3532
      %v3549 = vrsqrt.pop %v3533
      %v3550 = vrsqrt.pop %v3534
      %v3551 = vmul.f32 %v3423, %v3535
      %v3552 = vmul.f32 %v3424, %v3536
      %v3553 = vmul.f32 %v3425, %v3537
      %v3554 = vmul.f32 %v3426, %v3538
      %v3555 = vmul.f32 %v3427, %v3539
      %v3556 = vmul.f32 %v3428, %v3540
      %v3557 = vmul.f32 %v3429, %v3541
      %v3558 = vmul.f32 %v3430, %v3542
      %v3559 = vmul.f32 %v3431, %v3543
      %v3560 = vmul.f32 %v3432, %v3544
      %v3561 = vmul.f32 %v3433, %v3545
      %v3562 = vmul.f32 %v3434, %v3546
      %v3563 = vmul.f32 %v3435, %v3547
      %v3564 = vmul.f32 %v3436, %v3548
      %v3565 = vmul.f32 %v3437, %v3549
      %v3566 = vmul.f32 %v3438, %v3550
      %v3567 = vld [vmem:[%s12] sm:$0x1]
      %v3569 = vlaneseq
      %v3570 = vshrl.u32 %v3569, 7
      %v3571 = vsub.s32 0, %v3570
      %v3572 = vrot.slane %v3567, %v3571
      %v3574 = vmul.f32 %v3551, %v3572
      %v3575 = vmul.f32 %v3552, %v3572
      %v3576 = vmul.f32 %v3553, %v3572
      %v3577 = vmul.f32 %v3554, %v3572
      %v3578 = vmul.f32 %v3555, %v3572
      %v3579 = vmul.f32 %v3556, %v3572
      %v3580 = vmul.f32 %v3557, %v3572
      %v3581 = vmul.f32 %v3558, %v3572
      %v3582 = vmul.f32 %v3559, %v3572
      %v3583 = vmul.f32 %v3560, %v3572
      %v3584 = vmul.f32 %v3561, %v3572
      %v3585 = vmul.f32 %v3562, %v3572
      %v3586 = vmul.f32 %v3563, %v3572
      %v3587 = vmul.f32 %v3564, %v3572
      %v3588 = vmul.f32 %v3565, %v3572
      %v3589 = vmul.f32 %v3566, %v3572
      %v3590 = vld [vmem:[%s13] sm:$0x1]
      %v3592 = vlaneseq
      %v3593 = vshrl.u32 %v3592, 7
      %v3594 = vsub.s32 0, %v3593
      %v3595 = vrot.slane %v3590, %v3594
      %v3597 = vadd.f32 %v3574, %v3595
      %v3598 = vadd.f32 %v3575, %v3595
      %v3599 = vadd.f32 %v3576, %v3595
      %v3600 = vadd.f32 %v3577, %v3595
      %v3601 = vadd.f32 %v3578, %v3595
      %v3602 = vadd.f32 %v3579, %v3595
      %v3603 = vadd.f32 %v3580, %v3595
      %v3604 = vadd.f32 %v3581, %v3595
      %v3605 = vadd.f32 %v3582, %v3595
      %v3606 = vadd.f32 %v3583, %v3595
      %v3607 = vadd.f32 %v3584, %v3595
      %v3608 = vadd.f32 %v3585, %v3595
      %v3609 = vadd.f32 %v3586, %v3595
      %v3610 = vadd.f32 %v3587, %v3595
      %v3611 = vadd.f32 %v3588, %v3595
      %v3612 = vadd.f32 %v3589, %v3595
      %3613 = vst.msk [vmem:[%s494] sm:$0xff] %vm1172, %v3597
      %3614 = vst.msk [vmem:[%s494 + $0x8] sm:$0xff] %vm1172, %v3598
      %3615 = vst.msk [vmem:[%s494 + $0x10] sm:$0xff] %vm1172, %v3599
      %3616 = vst.msk [vmem:[%s494 + $0x18] sm:$0xff] %vm1172, %v3600
      %3617 = vst.msk [vmem:[%s494 + $0x20] sm:$0xff] %vm1172, %v3601
      %3618 = vst.msk [vmem:[%s494 + $0x28] sm:$0xff] %vm1172, %v3602
      %3619 = vst.msk [vmem:[%s494 + $0x30] sm:$0xff] %vm1172, %v3603
      %3620 = vst.msk [vmem:[%s494 + $0x38] sm:$0xff] %vm1172, %v3604
      %3621 = vst.msk [vmem:[%s494 + $0x40] sm:$0xff] %vm1172, %v3605
      %3622 = vst.msk [vmem:[%s494 + $0x48] sm:$0xff] %vm1172, %v3606
      %3623 = vst.msk [vmem:[%s494 + $0x50] sm:$0xff] %vm1172, %v3607
      %3624 = vst.msk [vmem:[%s494 + $0x58] sm:$0xff] %vm1172, %v3608
      %3625 = vst.msk [vmem:[%s494 + $0x60] sm:$0xff] %vm1172, %v3609
      %3626 = vst.msk [vmem:[%s494 + $0x68] sm:$0xff] %vm1172, %v3610
      %3627 = vst.msk [vmem:[%s494 + $0x70] sm:$0xff] %vm1172, %v3611
      %3628 = vst.msk [vmem:[%s494 + $0x78] sm:$0xff] %vm1172, %v3612
      %s3629 = smul.u32 16, %s25
      %p3630 = scmp.lt.s32.totalorder %s3629, 31
      %s3631 = scalar_select %p3630, %s3629, 31
      %s3632 = smul.addr %s3631, 8
      %s3633 = scalar_lea.vmem %s14, %s3632
      // Predicated region
      $region77: #{tpu_custom_call.1} parent=75 // pred_check
        %p3634 = pneg %p347
      $region78: #{tpu_custom_call.1} parent=75 // pred_check_branch
        %3636 = sbr.rel (%p3634) target = $region80
      $region79: #{tpu_custom_call.1} parent=75 // pred_region
        %s3637 = smul.u32 16, %s25
      $region80: #{tpu_custom_call.1} parent=75 // pred_fallthru
        _
    $region76: #{tpu_custom_call.1} parent=5 // pred_fallthru
      _
    %p3638 = scmp.le.s32.totalorder 2, %s20
    // Predicated region
    $region81: #{tpu_custom_call.1} parent=5 // pred_check
      %p3639 = pneg %p3638
    $region82: #{tpu_custom_call.1} parent=5 // pred_check_branch
      %3641 = sbr.rel (%p3639) target = $region84
    $region83: #{tpu_custom_call.1} parent=5 // pred_region
      %s3642 = ssub.s32 %s20, 2
      // Predicated region
      $region85: #{tpu_custom_call.1} parent=83 // pred_check
        %p3643 = pneg %p353
      $region86: #{tpu_custom_call.1} parent=83 // pred_check_branch
        %3645 = sbr.rel (%p3643) target = $region88
      $region87: #{tpu_custom_call.1} parent=83 // pred_region
        %s3646 = smul.u32 16, %s26
        %p3647 = scmp.lt.s32.totalorder %s3646, 31
        %s3648 = scalar_select %p3647, %s3646, 31
        %s3649 = smul.addr %s3648, 8
        %s3650 = scalar_lea.vmem %s14, %s3649
      $region88: #{tpu_custom_call.1} parent=83 // pred_fallthru
        _
    $region84: #{tpu_custom_call.1} parent=5 // pred_fallthru
      _
  $region6: #{tpu_custom_call.1} parent=0 // loop_footer
    %s24 = sadd.s32 1, %s20
  $region7: #{tpu_custom_call.1} parent=0 // loop_footer_branch
    %19 = sbr.rel target = $region3
  $region8: #{tpu_custom_call.1} parent=0 // loop_exit
    _

</llo_original>
